<compile_context>
chip_gen: v5e
topology: v5e:2x2
jax: 0.10.0
libtpu: 0.0.40
codegen_flags: <defaults>
</compile_context>

<pallas_src>
import functools
import math

import numpy as np
import jax
import jax.numpy as jnp
from jax.experimental import pallas as pl
from jax.experimental.pallas import tpu as pltpu

EPS_IN = 1e-5  # torch InstanceNorm2d eps


# ----------------------------- in-kernel helpers -----------------------------

def _gelu(x):
    # TODO(synk): torch nn.GELU defaults to the exact erf form; the tanh
    # approximation is used for a Mosaic-safe lowering.
    c = math.sqrt(2.0 / math.pi)
    return 0.5 * x * (1.0 + jnp.tanh(c * (x + 0.044715 * x * x * x)))


def _instance_norm(y):
    # InstanceNorm2d(affine=False): per-channel over the N tokens of one batch
    # item.  Single-pass variance: E[x^2] - mean^2.
    mean = jnp.mean(y, axis=0, keepdims=True)
    msq = jnp.mean(y * y, axis=0, keepdims=True)
    var = jnp.maximum(msq - mean * mean, 0.0)
    return (y - mean) * jax.lax.rsqrt(var + EPS_IN)


def _knn_max(dist, feats, k):
    """Per row i: max over the k nearest (smallest dist[i, :]) rows of `feats`.

    Iteratively extracts the current per-row minimum (ties broken toward the
    lowest column index), builds a one-hot row selector and gathers the
    selected feature row with a small MXU matmul.  Avoids XLA top_k + gather
    and never materializes an (N, K, C) neighbour tensor.
    """
    n, c = dist.shape[0], feats.shape[1]
    col = jax.lax.broadcasted_iota(jnp.int32, (n, n), 1).astype(jnp.float32)
    d = dist
    agg = jnp.full((n, c), -jnp.inf, jnp.float32)
    for _ in range(k):
        dmin = jnp.min(d, axis=-1, keepdims=True)                       # (N, 1)
        jsel = jnp.min(jnp.where(d <= dmin, col, jnp.float32(n)),
                       axis=-1, keepdims=True)                          # (N, 1)
        onehot = (col == jsel).astype(jnp.float32)                      # (N, N)
        picked = jnp.dot(onehot, feats, preferred_element_type=jnp.float32)
        agg = jnp.maximum(agg, picked)
        d = jnp.where(col == jsel, jnp.float32(1e30), d)
    return agg


def _grapher(x, rel, fc1_w, fc1_b, gcx_w, gcm_w, gc_b, fc2_w, fc2_b, k):
    """ViG Grapher (conv='mr', r=1, relative_pos) on one batch item (N, C)."""
    shortcut = x
    y = _instance_norm(
        jnp.dot(x, fc1_w, preferred_element_type=jnp.float32) + fc1_b)
    # Dynamic kNN graph on L2-normalized features + relative_pos bias.
    # xn is normalized => squared distance = 2 - 2*inner; the constant does not
    # change the top-k ordering, so only -2*inner + rel is computed.
    yn = y * jax.lax.rsqrt(
        jnp.maximum(jnp.sum(y * y, axis=-1, keepdims=True), 1e-24))
    inner = jax.lax.dot_general(yn, yn, (((1,), (1,)), ((), ())),
                                preferred_element_type=jnp.float32)     # (N, N)
    dist = -2.0 * inner + rel
    # MRConv: max_k(x_j - x_i) == max_k(x_j) - x_i ; the channel concat with x
    # is folded into two matmuls summed into the same f32 accumulator (no
    # lane-axis concatenate / relayout).
    m = _knn_max(dist, y, k) - y
    g = (jnp.dot(y, gcx_w, preferred_element_type=jnp.float32)
         + jnp.dot(m, gcm_w, preferred_element_type=jnp.float32) + gc_b)
    g = _gelu(_instance_norm(g))
    out = _instance_norm(
        jnp.dot(g, fc2_w, preferred_element_type=jnp.float32) + fc2_b)
    return out + shortcut


def _ffn(x, fc1_w, fc1_b, fc2_w, fc2_b):
    h = _gelu(_instance_norm(
        jnp.dot(x, fc1_w, preferred_element_type=jnp.float32) + fc1_b))
    out = _instance_norm(
        jnp.dot(h, fc2_w, preferred_element_type=jnp.float32) + fc2_b)
    return out + x


# ------------------------------ fused block kernel ----------------------------

def _vig_block_kernel(x_ref, rel_ref, *rest, k):
    o_ref = rest[-1]
    (g1_fc1_w, g1_fc1_b, g1_gcx_w, g1_gcm_w, g1_gc_b, g1_fc2_w, g1_fc2_b,
     f1_fc1_w, f1_fc1_b, f1_fc2_w, f1_fc2_b,
     g2_fc1_w, g2_fc1_b, g2_gcx_w, g2_gcm_w, g2_gc_b, g2_fc2_w, g2_fc2_b,
     f2_fc1_w, f2_fc1_b, f2_fc2_w, f2_fc2_b) = [r[...] for r in rest[:-1]]

    x = x_ref[...].astype(jnp.float32)           # (N, C)
    rel = rel_ref[...].astype(jnp.float32)       # (N, N)

    y = _grapher(x, rel, g1_fc1_w, g1_fc1_b, g1_gcx_w, g1_gcm_w, g1_gc_b,
                 g1_fc2_w, g1_fc2_b, k)
    y = _ffn(y, f1_fc1_w, f1_fc1_b, f1_fc2_w, f1_fc2_b)
    y = jnp.maximum(_instance_norm(y), 0.0)      # InstanceNorm2d + ReLU
    y = _grapher(y, rel, g2_fc1_w, g2_fc1_b, g2_gcx_w, g2_gcm_w, g2_gc_b,
                 g2_fc2_w, g2_fc2_b, k)
    y = _ffn(y, f2_fc1_w, f2_fc1_b, f2_fc2_w, f2_fc2_b)
    y = _instance_norm(y) + x                    # final InstanceNorm + outer skip
    o_ref[...] = y.astype(o_ref.dtype)


# ---------------------------------- wrapper -----------------------------------

_G_KEYS = ("fc1_w", "fc1_b", "gcx_w", "gcm_w", "gc_b", "fc2_w", "fc2_b")
_F_KEYS = ("fc1_w", "fc1_b", "fc2_w", "fc2_b")


def _flatten_params(params):
    flat = []
    for grp, keys in (("g1", _G_KEYS), ("f1", _F_KEYS),
                      ("g2", _G_KEYS), ("f2", _F_KEYS)):
        for name in keys:
            w = params[grp][name]
            if w.ndim == 1:                      # biases -> (1, Cout) 2-D blocks
                w = w.reshape(1, -1)
            flat.append(w)
    return flat


def vig_block_forward(x_nchw, params, rel_pos, k=9):
    """x_nchw: (B, C, H, W) -> (B, C, H, W).  One fused Pallas kernel, grid=(B,)."""
    B, C, H, W = x_nchw.shape
    N = H * W
    x = jnp.transpose(x_nchw.reshape(B, C, N), (0, 2, 1))    # (B, N, C)

    weights = _flatten_params(params)

    def const_spec(a):
        return pl.BlockSpec(a.shape, lambda i: (0,) * a.ndim)

    in_specs = ([pl.BlockSpec((None, N, C), lambda i: (i, 0, 0)),
                 const_spec(rel_pos)]
                + [const_spec(w) for w in weights])

    y = pl.pallas_call(
        functools.partial(_vig_block_kernel, k=k),
        out_shape=jax.ShapeDtypeStruct((B, N, C), x.dtype),
        grid=(B,),
        in_specs=in_specs,
        out_specs=pl.BlockSpec((None, N, C), lambda i: (i, 0, 0)),
        compiler_params=pltpu.CompilerParams(
            dimension_semantics=("parallel",)),   # shard batch items over TCs (v7x)
    )(x, rel_pos, *weights)

    return jnp.transpose(y, (0, 2, 1)).reshape(B, C, H, W)   # back to NCHW


# ------------------------- relative positional bias --------------------------

def _get_1d_sincos(embed_dim, pos):
    omega = np.arange(embed_dim // 2, dtype=np.float64) / (embed_dim / 2.0)
    omega = 1.0 / 10000 ** omega
    out = np.einsum("m,d->md", pos.reshape(-1), omega)
    return np.concatenate([np.sin(out), np.cos(out)], axis=1)


def get_2d_relative_pos_embed(embed_dim, grid_size):
    grid_h = np.arange(grid_size, dtype=np.float32)
    grid_w = np.arange(grid_size, dtype=np.float32)
    grid = np.stack(np.meshgrid(grid_w, grid_h), axis=0).reshape(2, -1)
    emb_h = _get_1d_sincos(embed_dim // 2, grid[0])
    emb_w = _get_1d_sincos(embed_dim // 2, grid[1])
    pos_embed = np.concatenate([emb_h, emb_w], axis=1)          # (N, embed_dim)
    # bicubic interpolate to (n, n) with same size is identity -> skipped
    return 2.0 * np.matmul(pos_embed, pos_embed.T) / pos_embed.shape[1]


# ------------------------------ parameter init --------------------------------

def init_params(key, C):
    def conv_init(k, cin, cout, fan_in=None):
        k1, k2 = jax.random.split(k)
        bound = 1.0 / math.sqrt(fan_in or cin)
        w = jax.random.uniform(k1, (cin, cout), jnp.float32, -bound, bound)
        b = jax.random.uniform(k2, (cout,), jnp.float32, -bound, bound)
        return w, b

    def grapher_params(k):
        k1, k2, k3, k4 = jax.random.split(k, 4)
        fc1_w, fc1_b = conv_init(k1, C, C)
        # MRConv weight is split so concat([x, max_k(x_j)-x]) @ W becomes
        # x @ W_x + m @ W_m inside the kernel (no lane-axis concat).
        gcx_w, gc_b = conv_init(k2, C, 2 * C, fan_in=2 * C)
        gcm_w, _ = conv_init(k3, C, 2 * C, fan_in=2 * C)
        fc2_w, fc2_b = conv_init(k4, 2 * C, C)
        return dict(fc1_w=fc1_w, fc1_b=fc1_b, gcx_w=gcx_w, gcm_w=gcm_w,
                    gc_b=gc_b, fc2_w=fc2_w, fc2_b=fc2_b)

    def ffn_params(k):
        k1, k2 = jax.random.split(k)
        fc1_w, fc1_b = conv_init(k1, C, 4 * C)
        fc2_w, fc2_b = conv_init(k2, 4 * C, C)
        return dict(fc1_w=fc1_w, fc1_b=fc1_b, fc2_w=fc2_w, fc2_b=fc2_b)

    keys = jax.random.split(key, 4)
    return dict(g1=grapher_params(keys[0]), f1=ffn_params(keys[1]),
                g2=grapher_params(keys[2]), f2=ffn_params(keys[3]))


# ------------------------------------ main ------------------------------------

if __name__ == "__main__":
    B, C, H, W = 2, 4, 8, 8       # in_features=4, HW=64
    K = 9
    N = H * W

    key = jax.random.PRNGKey(0)
    kx, kp = jax.random.split(key)
    x = jax.random.normal(kx, (B, C, H, W), jnp.float32)
    params = init_params(kp, C)

    # stored (non-trainable) relative_pos parameter is the NEGATED embed
    rel = -get_2d_relative_pos_embed(C, int(math.sqrt(N)))
    rel_pos = jnp.asarray(rel, jnp.float32)                   # (N, N)

    fwd = jax.jit(functools.partial(vig_block_forward, k=K))
    out = fwd(x, params, rel_pos)
    out = jax.block_until_ready(out)
    assert out.shape == (B, C, H, W) and out.dtype == jnp.float32
    print("KERNEL_OK")
</pallas_src>

<mosaic_0001>
module attributes {stable_mosaic.version = 11 : i64} {
  func.func @_vig_block_kernel(%arg0: i32, %arg1: memref<1x64x4xf32, #tpu.memory_space<vmem>>, %arg2: memref<64x64xf32, #tpu.memory_space<vmem>>, %arg3: memref<4x4xf32, #tpu.memory_space<vmem>>, %arg4: memref<1x4xf32, #tpu.memory_space<vmem>>, %arg5: memref<4x8xf32, #tpu.memory_space<vmem>>, %arg6: memref<4x8xf32, #tpu.memory_space<vmem>>, %arg7: memref<1x8xf32, #tpu.memory_space<vmem>>, %arg8: memref<8x4xf32, #tpu.memory_space<vmem>>, %arg9: memref<1x4xf32, #tpu.memory_space<vmem>>, %arg10: memref<4x16xf32, #tpu.memory_space<vmem>>, %arg11: memref<1x16xf32, #tpu.memory_space<vmem>>, %arg12: memref<16x4xf32, #tpu.memory_space<vmem>>, %arg13: memref<1x4xf32, #tpu.memory_space<vmem>>, %arg14: memref<4x4xf32, #tpu.memory_space<vmem>>, %arg15: memref<1x4xf32, #tpu.memory_space<vmem>>, %arg16: memref<4x8xf32, #tpu.memory_space<vmem>>, %arg17: memref<4x8xf32, #tpu.memory_space<vmem>>, %arg18: memref<1x8xf32, #tpu.memory_space<vmem>>, %arg19: memref<8x4xf32, #tpu.memory_space<vmem>>, %arg20: memref<1x4xf32, #tpu.memory_space<vmem>>, %arg21: memref<4x16xf32, #tpu.memory_space<vmem>>, %arg22: memref<1x16xf32, #tpu.memory_space<vmem>>, %arg23: memref<16x4xf32, #tpu.memory_space<vmem>>, %arg24: memref<1x4xf32, #tpu.memory_space<vmem>>, %arg25: memref<1x64x4xf32, #tpu.memory_space<vmem>>) attributes {dimension_semantics = [#tpu.dimension_semantics<parallel>], iteration_bounds = array<i64: 2>, scalar_prefetch = 0 : i64, scratch_operands = 0 : i64, tpu.core_type = #tpu.core_type<tc>, window_params = [{transform_indices = @transform_0, window_bounds = array<i64: 1, 64, 4>}, {pipeline_mode = #tpu.pipeline_mode<synchronous>, transform_indices = @transform_1, window_bounds = array<i64: 64, 64>}, {pipeline_mode = #tpu.pipeline_mode<synchronous>, transform_indices = @transform_2, window_bounds = array<i64: 4, 4>}, {pipeline_mode = #tpu.pipeline_mode<synchronous>, transform_indices = @transform_3, window_bounds = array<i64: 1, 4>}, {pipeline_mode = #tpu.pipeline_mode<synchronous>, transform_indices = @transform_4, window_bounds = array<i64: 4, 8>}, {pipeline_mode = #tpu.pipeline_mode<synchronous>, transform_indices = @transform_5, window_bounds = array<i64: 4, 8>}, {pipeline_mode = #tpu.pipeline_mode<synchronous>, transform_indices = @transform_6, window_bounds = array<i64: 1, 8>}, {pipeline_mode = #tpu.pipeline_mode<synchronous>, transform_indices = @transform_7, window_bounds = array<i64: 8, 4>}, {pipeline_mode = #tpu.pipeline_mode<synchronous>, transform_indices = @transform_8, window_bounds = array<i64: 1, 4>}, {pipeline_mode = #tpu.pipeline_mode<synchronous>, transform_indices = @transform_9, window_bounds = array<i64: 4, 16>}, {pipeline_mode = #tpu.pipeline_mode<synchronous>, transform_indices = @transform_10, window_bounds = array<i64: 1, 16>}, {pipeline_mode = #tpu.pipeline_mode<synchronous>, transform_indices = @transform_11, window_bounds = array<i64: 16, 4>}, {pipeline_mode = #tpu.pipeline_mode<synchronous>, transform_indices = @transform_12, window_bounds = array<i64: 1, 4>}, {pipeline_mode = #tpu.pipeline_mode<synchronous>, transform_indices = @transform_13, window_bounds = array<i64: 4, 4>}, {pipeline_mode = #tpu.pipeline_mode<synchronous>, transform_indices = @transform_14, window_bounds = array<i64: 1, 4>}, {pipeline_mode = #tpu.pipeline_mode<synchronous>, transform_indices = @transform_15, window_bounds = array<i64: 4, 8>}, {pipeline_mode = #tpu.pipeline_mode<synchronous>, transform_indices = @transform_16, window_bounds = array<i64: 4, 8>}, {pipeline_mode = #tpu.pipeline_mode<synchronous>, transform_indices = @transform_17, window_bounds = array<i64: 1, 8>}, {pipeline_mode = #tpu.pipeline_mode<synchronous>, transform_indices = @transform_18, window_bounds = array<i64: 8, 4>}, {pipeline_mode = #tpu.pipeline_mode<synchronous>, transform_indices = @transform_19, window_bounds = array<i64: 1, 4>}, {pipeline_mode = #tpu.pipeline_mode<synchronous>, transform_indices = @transform_20, window_bounds = array<i64: 4, 16>}, {pipeline_mode = #tpu.pipeline_mode<synchronous>, transform_indices = @transform_21, window_bounds = array<i64: 1, 16>}, {pipeline_mode = #tpu.pipeline_mode<synchronous>, transform_indices = @transform_22, window_bounds = array<i64: 16, 4>}, {pipeline_mode = #tpu.pipeline_mode<synchronous>, transform_indices = @transform_23, window_bounds = array<i64: 1, 4>}, {transform_indices = @transform_24, window_bounds = array<i64: 1, 64, 4>}]} {
    %c0 = arith.constant 0 : index
    %c0_0 = arith.constant 0 : index
    %0 = vector.load %arg3[%c0, %c0_0] : memref<4x4xf32, #tpu.memory_space<vmem>>, vector<4x4xf32>
    %c0_1 = arith.constant 0 : index
    %c0_2 = arith.constant 0 : index
    %1 = vector.load %arg4[%c0_1, %c0_2] : memref<1x4xf32, #tpu.memory_space<vmem>>, vector<1x4xf32>
    %c0_3 = arith.constant 0 : index
    %c0_4 = arith.constant 0 : index
    %2 = vector.load %arg5[%c0_3, %c0_4] : memref<4x8xf32, #tpu.memory_space<vmem>>, vector<4x8xf32>
    %c0_5 = arith.constant 0 : index
    %c0_6 = arith.constant 0 : index
    %3 = vector.load %arg6[%c0_5, %c0_6] : memref<4x8xf32, #tpu.memory_space<vmem>>, vector<4x8xf32>
    %c0_7 = arith.constant 0 : index
    %c0_8 = arith.constant 0 : index
    %4 = vector.load %arg7[%c0_7, %c0_8] : memref<1x8xf32, #tpu.memory_space<vmem>>, vector<1x8xf32>
    %c0_9 = arith.constant 0 : index
    %c0_10 = arith.constant 0 : index
    %5 = vector.load %arg8[%c0_9, %c0_10] : memref<8x4xf32, #tpu.memory_space<vmem>>, vector<8x4xf32>
    %c0_11 = arith.constant 0 : index
    %c0_12 = arith.constant 0 : index
    %6 = vector.load %arg9[%c0_11, %c0_12] : memref<1x4xf32, #tpu.memory_space<vmem>>, vector<1x4xf32>
    %c0_13 = arith.constant 0 : index
    %c0_14 = arith.constant 0 : index
    %7 = vector.load %arg10[%c0_13, %c0_14] : memref<4x16xf32, #tpu.memory_space<vmem>>, vector<4x16xf32>
    %c0_15 = arith.constant 0 : index
    %c0_16 = arith.constant 0 : index
    %8 = vector.load %arg11[%c0_15, %c0_16] : memref<1x16xf32, #tpu.memory_space<vmem>>, vector<1x16xf32>
    %c0_17 = arith.constant 0 : index
    %c0_18 = arith.constant 0 : index
    %9 = vector.load %arg12[%c0_17, %c0_18] : memref<16x4xf32, #tpu.memory_space<vmem>>, vector<16x4xf32>
    %c0_19 = arith.constant 0 : index
    %c0_20 = arith.constant 0 : index
    %10 = vector.load %arg13[%c0_19, %c0_20] : memref<1x4xf32, #tpu.memory_space<vmem>>, vector<1x4xf32>
    %c0_21 = arith.constant 0 : index
    %c0_22 = arith.constant 0 : index
    %11 = vector.load %arg14[%c0_21, %c0_22] : memref<4x4xf32, #tpu.memory_space<vmem>>, vector<4x4xf32>
    %c0_23 = arith.constant 0 : index
    %c0_24 = arith.constant 0 : index
    %12 = vector.load %arg15[%c0_23, %c0_24] : memref<1x4xf32, #tpu.memory_space<vmem>>, vector<1x4xf32>
    %c0_25 = arith.constant 0 : index
    %c0_26 = arith.constant 0 : index
    %13 = vector.load %arg16[%c0_25, %c0_26] : memref<4x8xf32, #tpu.memory_space<vmem>>, vector<4x8xf32>
    %c0_27 = arith.constant 0 : index
    %c0_28 = arith.constant 0 : index
    %14 = vector.load %arg17[%c0_27, %c0_28] : memref<4x8xf32, #tpu.memory_space<vmem>>, vector<4x8xf32>
    %c0_29 = arith.constant 0 : index
    %c0_30 = arith.constant 0 : index
    %15 = vector.load %arg18[%c0_29, %c0_30] : memref<1x8xf32, #tpu.memory_space<vmem>>, vector<1x8xf32>
    %c0_31 = arith.constant 0 : index
    %c0_32 = arith.constant 0 : index
    %16 = vector.load %arg19[%c0_31, %c0_32] : memref<8x4xf32, #tpu.memory_space<vmem>>, vector<8x4xf32>
    %c0_33 = arith.constant 0 : index
    %c0_34 = arith.constant 0 : index
    %17 = vector.load %arg20[%c0_33, %c0_34] : memref<1x4xf32, #tpu.memory_space<vmem>>, vector<1x4xf32>
    %c0_35 = arith.constant 0 : index
    %c0_36 = arith.constant 0 : index
    %18 = vector.load %arg21[%c0_35, %c0_36] : memref<4x16xf32, #tpu.memory_space<vmem>>, vector<4x16xf32>
    %c0_37 = arith.constant 0 : index
    %c0_38 = arith.constant 0 : index
    %19 = vector.load %arg22[%c0_37, %c0_38] : memref<1x16xf32, #tpu.memory_space<vmem>>, vector<1x16xf32>
    %c0_39 = arith.constant 0 : index
    %c0_40 = arith.constant 0 : index
    %20 = vector.load %arg23[%c0_39, %c0_40] : memref<16x4xf32, #tpu.memory_space<vmem>>, vector<16x4xf32>
    %c0_41 = arith.constant 0 : index
    %c0_42 = arith.constant 0 : index
    %21 = vector.load %arg24[%c0_41, %c0_42] : memref<1x4xf32, #tpu.memory_space<vmem>>, vector<1x4xf32>
    %c0_43 = arith.constant 0 : index
    %c0_44 = arith.constant 0 : index
    %c0_45 = arith.constant 0 : index
    %22 = vector.load %arg1[%c0_43, %c0_44, %c0_45] : memref<1x64x4xf32, #tpu.memory_space<vmem>>, vector<1x64x4xf32>
    %23 = vector.shape_cast %22 : vector<1x64x4xf32> to vector<64x4xf32>
    %c0_46 = arith.constant 0 : index
    %c0_47 = arith.constant 0 : index
    %24 = vector.load %arg2[%c0_46, %c0_47] : memref<64x64xf32, #tpu.memory_space<vmem>>, vector<64x64xf32>
    %cst = arith.constant dense<0.000000e+00> : vector<64x4xf32>
    %25 = tpu.matmul %23, %0, %cst {dimension_numbers = #tpu.dot_dimension_numbers<[1], [0], [0], [1], [0, 0, 1, 1], [], []>} : vector<64x4xf32>, vector<4x4xf32>, vector<64x4xf32> -> vector<64x4xf32>
    %26 = vector.broadcast %1 : vector<1x4xf32> to vector<64x4xf32>
    %27 = arith.addf %25, %26 : vector<64x4xf32>
    %cst_48 = arith.constant dense<0.000000e+00> : vector<4xf32>
    %28 = vector.multi_reduction <add>, %27, %cst_48 [0] : vector<64x4xf32> to vector<4xf32>
    %29 = vector.shape_cast %28 : vector<4xf32> to vector<1x4xf32>
    %cst_49 = arith.constant 6.400000e+01 : f32
    %30 = vector.broadcast %cst_49 : f32 to vector<1x4xf32>
    %31 = arith.divf %29, %30 : vector<1x4xf32>
    %32 = arith.mulf %27, %27 : vector<64x4xf32>
    %cst_50 = arith.constant dense<0.000000e+00> : vector<4xf32>
    %33 = vector.multi_reduction <add>, %32, %cst_50 [0] : vector<64x4xf32> to vector<4xf32>
    %34 = vector.shape_cast %33 : vector<4xf32> to vector<1x4xf32>
    %cst_51 = arith.constant 6.400000e+01 : f32
    %35 = vector.broadcast %cst_51 : f32 to vector<1x4xf32>
    %36 = arith.divf %34, %35 : vector<1x4xf32>
    %37 = arith.mulf %31, %31 : vector<1x4xf32>
    %38 = arith.subf %36, %37 : vector<1x4xf32>
    %cst_52 = arith.constant 0.000000e+00 : f32
    %39 = vector.broadcast %cst_52 : f32 to vector<1x4xf32>
    %40 = arith.maximumf %38, %39 : vector<1x4xf32>
    %41 = vector.broadcast %31 : vector<1x4xf32> to vector<64x4xf32>
    %42 = arith.subf %27, %41 : vector<64x4xf32>
    %cst_53 = arith.constant 9.99999974E-6 : f32
    %43 = vector.broadcast %cst_53 : f32 to vector<1x4xf32>
    %44 = arith.addf %40, %43 : vector<1x4xf32>
    %45 = math.rsqrt %44 : vector<1x4xf32>
    %46 = vector.broadcast %45 : vector<1x4xf32> to vector<64x4xf32>
    %47 = arith.mulf %42, %46 : vector<64x4xf32>
    %48 = arith.mulf %47, %47 : vector<64x4xf32>
    %cst_54 = arith.constant dense<0.000000e+00> : vector<64xf32>
    %49 = vector.multi_reduction <add>, %48, %cst_54 [1] : vector<64x4xf32> to vector<64xf32>
    %50 = vector.shape_cast %49 : vector<64xf32> to vector<64x1xf32>
    %cst_55 = arith.constant 1.000000e-24 : f32
    %51 = vector.broadcast %cst_55 : f32 to vector<64x1xf32>
    %52 = arith.maximumf %50, %51 : vector<64x1xf32>
    %53 = math.rsqrt %52 : vector<64x1xf32>
    %54 = vector.broadcast %53 : vector<64x1xf32> to vector<64x4xf32>
    %55 = arith.mulf %47, %54 : vector<64x4xf32>
    %cst_56 = arith.constant dense<0.000000e+00> : vector<64x64xf32>
    %56 = tpu.matmul %55, %55, %cst_56 {dimension_numbers = #tpu.dot_dimension_numbers<[1], [1], [0], [0], [0, 0, 1, 0], [], []>} : vector<64x4xf32>, vector<64x4xf32>, vector<64x64xf32> -> vector<64x64xf32>
    %cst_57 = arith.constant -2.000000e+00 : f32
    %57 = vector.broadcast %cst_57 : f32 to vector<64x64xf32>
    %58 = arith.mulf %57, %56 : vector<64x64xf32>
    %59 = arith.addf %58, %24 : vector<64x64xf32>
    %60 = tpu.iota {dimensions = array<i32: 1>} : vector<64x64xi32>
    %61 = arith.sitofp %60 : vector<64x64xi32> to vector<64x64xf32>
    %cst_58 = arith.constant 0xFF800000 : f32
    %62 = vector.broadcast %cst_58 : f32 to vector<64x4xf32>
    %cst_59 = arith.constant dense<0x7F800000> : vector<64xf32>
    %63 = vector.multi_reduction <minimumf>, %59, %cst_59 [1] : vector<64x64xf32> to vector<64xf32>
    %64 = vector.shape_cast %63 : vector<64xf32> to vector<64x1xf32>
    %65 = vector.broadcast %64 : vector<64x1xf32> to vector<64x64xf32>
    %66 = arith.cmpf ole, %59, %65 : vector<64x64xf32>
    %cst_60 = arith.constant 6.400000e+01 : f32
    %67 = vector.broadcast %cst_60 : f32 to vector<64x64xf32>
    %68 = arith.select %66, %61, %67 : vector<64x64xi1>, vector<64x64xf32>
    %cst_61 = arith.constant dense<0x7F800000> : vector<64xf32>
    %69 = vector.multi_reduction <minimumf>, %68, %cst_61 [1] : vector<64x64xf32> to vector<64xf32>
    %70 = vector.shape_cast %69 : vector<64xf32> to vector<64x1xf32>
    %71 = vector.broadcast %70 : vector<64x1xf32> to vector<64x64xf32>
    %72 = arith.cmpf oeq, %61, %71 : vector<64x64xf32>
    %73 = arith.extui %72 : vector<64x64xi1> to vector<64x64xi32>
    %74 = arith.sitofp %73 : vector<64x64xi32> to vector<64x64xf32>
    %cst_62 = arith.constant dense<0.000000e+00> : vector<64x4xf32>
    %75 = tpu.matmul %74, %47, %cst_62 {dimension_numbers = #tpu.dot_dimension_numbers<[1], [0], [0], [1], [0, 0, 1, 1], [], []>} : vector<64x64xf32>, vector<64x4xf32>, vector<64x4xf32> -> vector<64x4xf32>
    %76 = arith.maximumf %62, %75 : vector<64x4xf32>
    %77 = vector.broadcast %70 : vector<64x1xf32> to vector<64x64xf32>
    %78 = arith.cmpf oeq, %61, %77 : vector<64x64xf32>
    %cst_63 = arith.constant 1.000000e+30 : f32
    %79 = vector.broadcast %cst_63 : f32 to vector<64x64xf32>
    %80 = arith.select %78, %79, %59 : vector<64x64xi1>, vector<64x64xf32>
    %cst_64 = arith.constant dense<0x7F800000> : vector<64xf32>
    %81 = vector.multi_reduction <minimumf>, %80, %cst_64 [1] : vector<64x64xf32> to vector<64xf32>
    %82 = vector.shape_cast %81 : vector<64xf32> to vector<64x1xf32>
    %83 = vector.broadcast %82 : vector<64x1xf32> to vector<64x64xf32>
    %84 = arith.cmpf ole, %80, %83 : vector<64x64xf32>
    %cst_65 = arith.constant 6.400000e+01 : f32
    %85 = vector.broadcast %cst_65 : f32 to vector<64x64xf32>
    %86 = arith.select %84, %61, %85 : vector<64x64xi1>, vector<64x64xf32>
    %cst_66 = arith.constant dense<0x7F800000> : vector<64xf32>
    %87 = vector.multi_reduction <minimumf>, %86, %cst_66 [1] : vector<64x64xf32> to vector<64xf32>
    %88 = vector.shape_cast %87 : vector<64xf32> to vector<64x1xf32>
    %89 = vector.broadcast %88 : vector<64x1xf32> to vector<64x64xf32>
    %90 = arith.cmpf oeq, %61, %89 : vector<64x64xf32>
    %91 = arith.extui %90 : vector<64x64xi1> to vector<64x64xi32>
    %92 = arith.sitofp %91 : vector<64x64xi32> to vector<64x64xf32>
    %cst_67 = arith.constant dense<0.000000e+00> : vector<64x4xf32>
    %93 = tpu.matmul %92, %47, %cst_67 {dimension_numbers = #tpu.dot_dimension_numbers<[1], [0], [0], [1], [0, 0, 1, 1], [], []>} : vector<64x64xf32>, vector<64x4xf32>, vector<64x4xf32> -> vector<64x4xf32>
    %94 = arith.maximumf %76, %93 : vector<64x4xf32>
    %95 = vector.broadcast %88 : vector<64x1xf32> to vector<64x64xf32>
    %96 = arith.cmpf oeq, %61, %95 : vector<64x64xf32>
    %cst_68 = arith.constant 1.000000e+30 : f32
    %97 = vector.broadcast %cst_68 : f32 to vector<64x64xf32>
    %98 = arith.select %96, %97, %80 : vector<64x64xi1>, vector<64x64xf32>
    %cst_69 = arith.constant dense<0x7F800000> : vector<64xf32>
    %99 = vector.multi_reduction <minimumf>, %98, %cst_69 [1] : vector<64x64xf32> to vector<64xf32>
    %100 = vector.shape_cast %99 : vector<64xf32> to vector<64x1xf32>
    %101 = vector.broadcast %100 : vector<64x1xf32> to vector<64x64xf32>
    %102 = arith.cmpf ole, %98, %101 : vector<64x64xf32>
    %cst_70 = arith.constant 6.400000e+01 : f32
    %103 = vector.broadcast %cst_70 : f32 to vector<64x64xf32>
    %104 = arith.select %102, %61, %103 : vector<64x64xi1>, vector<64x64xf32>
    %cst_71 = arith.constant dense<0x7F800000> : vector<64xf32>
    %105 = vector.multi_reduction <minimumf>, %104, %cst_71 [1] : vector<64x64xf32> to vector<64xf32>
    %106 = vector.shape_cast %105 : vector<64xf32> to vector<64x1xf32>
    %107 = vector.broadcast %106 : vector<64x1xf32> to vector<64x64xf32>
    %108 = arith.cmpf oeq, %61, %107 : vector<64x64xf32>
    %109 = arith.extui %108 : vector<64x64xi1> to vector<64x64xi32>
    %110 = arith.sitofp %109 : vector<64x64xi32> to vector<64x64xf32>
    %cst_72 = arith.constant dense<0.000000e+00> : vector<64x4xf32>
    %111 = tpu.matmul %110, %47, %cst_72 {dimension_numbers = #tpu.dot_dimension_numbers<[1], [0], [0], [1], [0, 0, 1, 1], [], []>} : vector<64x64xf32>, vector<64x4xf32>, vector<64x4xf32> -> vector<64x4xf32>
    %112 = arith.maximumf %94, %111 : vector<64x4xf32>
    %113 = vector.broadcast %106 : vector<64x1xf32> to vector<64x64xf32>
    %114 = arith.cmpf oeq, %61, %113 : vector<64x64xf32>
    %cst_73 = arith.constant 1.000000e+30 : f32
    %115 = vector.broadcast %cst_73 : f32 to vector<64x64xf32>
    %116 = arith.select %114, %115, %98 : vector<64x64xi1>, vector<64x64xf32>
    %cst_74 = arith.constant dense<0x7F800000> : vector<64xf32>
    %117 = vector.multi_reduction <minimumf>, %116, %cst_74 [1] : vector<64x64xf32> to vector<64xf32>
    %118 = vector.shape_cast %117 : vector<64xf32> to vector<64x1xf32>
    %119 = vector.broadcast %118 : vector<64x1xf32> to vector<64x64xf32>
    %120 = arith.cmpf ole, %116, %119 : vector<64x64xf32>
    %cst_75 = arith.constant 6.400000e+01 : f32
    %121 = vector.broadcast %cst_75 : f32 to vector<64x64xf32>
    %122 = arith.select %120, %61, %121 : vector<64x64xi1>, vector<64x64xf32>
    %cst_76 = arith.constant dense<0x7F800000> : vector<64xf32>
    %123 = vector.multi_reduction <minimumf>, %122, %cst_76 [1] : vector<64x64xf32> to vector<64xf32>
    %124 = vector.shape_cast %123 : vector<64xf32> to vector<64x1xf32>
    %125 = vector.broadcast %124 : vector<64x1xf32> to vector<64x64xf32>
    %126 = arith.cmpf oeq, %61, %125 : vector<64x64xf32>
    %127 = arith.extui %126 : vector<64x64xi1> to vector<64x64xi32>
    %128 = arith.sitofp %127 : vector<64x64xi32> to vector<64x64xf32>
    %cst_77 = arith.constant dense<0.000000e+00> : vector<64x4xf32>
    %129 = tpu.matmul %128, %47, %cst_77 {dimension_numbers = #tpu.dot_dimension_numbers<[1], [0], [0], [1], [0, 0, 1, 1], [], []>} : vector<64x64xf32>, vector<64x4xf32>, vector<64x4xf32> -> vector<64x4xf32>
    %130 = arith.maximumf %112, %129 : vector<64x4xf32>
    %131 = vector.broadcast %124 : vector<64x1xf32> to vector<64x64xf32>
    %132 = arith.cmpf oeq, %61, %131 : vector<64x64xf32>
    %cst_78 = arith.constant 1.000000e+30 : f32
    %133 = vector.broadcast %cst_78 : f32 to vector<64x64xf32>
    %134 = arith.select %132, %133, %116 : vector<64x64xi1>, vector<64x64xf32>
    %cst_79 = arith.constant dense<0x7F800000> : vector<64xf32>
    %135 = vector.multi_reduction <minimumf>, %134, %cst_79 [1] : vector<64x64xf32> to vector<64xf32>
    %136 = vector.shape_cast %135 : vector<64xf32> to vector<64x1xf32>
    %137 = vector.broadcast %136 : vector<64x1xf32> to vector<64x64xf32>
    %138 = arith.cmpf ole, %134, %137 : vector<64x64xf32>
    %cst_80 = arith.constant 6.400000e+01 : f32
    %139 = vector.broadcast %cst_80 : f32 to vector<64x64xf32>
    %140 = arith.select %138, %61, %139 : vector<64x64xi1>, vector<64x64xf32>
    %cst_81 = arith.constant dense<0x7F800000> : vector<64xf32>
    %141 = vector.multi_reduction <minimumf>, %140, %cst_81 [1] : vector<64x64xf32> to vector<64xf32>
    %142 = vector.shape_cast %141 : vector<64xf32> to vector<64x1xf32>
    %143 = vector.broadcast %142 : vector<64x1xf32> to vector<64x64xf32>
    %144 = arith.cmpf oeq, %61, %143 : vector<64x64xf32>
    %145 = arith.extui %144 : vector<64x64xi1> to vector<64x64xi32>
    %146 = arith.sitofp %145 : vector<64x64xi32> to vector<64x64xf32>
    %cst_82 = arith.constant dense<0.000000e+00> : vector<64x4xf32>
    %147 = tpu.matmul %146, %47, %cst_82 {dimension_numbers = #tpu.dot_dimension_numbers<[1], [0], [0], [1], [0, 0, 1, 1], [], []>} : vector<64x64xf32>, vector<64x4xf32>, vector<64x4xf32> -> vector<64x4xf32>
    %148 = arith.maximumf %130, %147 : vector<64x4xf32>
    %149 = vector.broadcast %142 : vector<64x1xf32> to vector<64x64xf32>
    %150 = arith.cmpf oeq, %61, %149 : vector<64x64xf32>
    %cst_83 = arith.constant 1.000000e+30 : f32
    %151 = vector.broadcast %cst_83 : f32 to vector<64x64xf32>
    %152 = arith.select %150, %151, %134 : vector<64x64xi1>, vector<64x64xf32>
    %cst_84 = arith.constant dense<0x7F800000> : vector<64xf32>
    %153 = vector.multi_reduction <minimumf>, %152, %cst_84 [1] : vector<64x64xf32> to vector<64xf32>
    %154 = vector.shape_cast %153 : vector<64xf32> to vector<64x1xf32>
    %155 = vector.broadcast %154 : vector<64x1xf32> to vector<64x64xf32>
    %156 = arith.cmpf ole, %152, %155 : vector<64x64xf32>
    %cst_85 = arith.constant 6.400000e+01 : f32
    %157 = vector.broadcast %cst_85 : f32 to vector<64x64xf32>
    %158 = arith.select %156, %61, %157 : vector<64x64xi1>, vector<64x64xf32>
    %cst_86 = arith.constant dense<0x7F800000> : vector<64xf32>
    %159 = vector.multi_reduction <minimumf>, %158, %cst_86 [1] : vector<64x64xf32> to vector<64xf32>
    %160 = vector.shape_cast %159 : vector<64xf32> to vector<64x1xf32>
    %161 = vector.broadcast %160 : vector<64x1xf32> to vector<64x64xf32>
    %162 = arith.cmpf oeq, %61, %161 : vector<64x64xf32>
    %163 = arith.extui %162 : vector<64x64xi1> to vector<64x64xi32>
    %164 = arith.sitofp %163 : vector<64x64xi32> to vector<64x64xf32>
    %cst_87 = arith.constant dense<0.000000e+00> : vector<64x4xf32>
    %165 = tpu.matmul %164, %47, %cst_87 {dimension_numbers = #tpu.dot_dimension_numbers<[1], [0], [0], [1], [0, 0, 1, 1], [], []>} : vector<64x64xf32>, vector<64x4xf32>, vector<64x4xf32> -> vector<64x4xf32>
    %166 = arith.maximumf %148, %165 : vector<64x4xf32>
    %167 = vector.broadcast %160 : vector<64x1xf32> to vector<64x64xf32>
    %168 = arith.cmpf oeq, %61, %167 : vector<64x64xf32>
    %cst_88 = arith.constant 1.000000e+30 : f32
    %169 = vector.broadcast %cst_88 : f32 to vector<64x64xf32>
    %170 = arith.select %168, %169, %152 : vector<64x64xi1>, vector<64x64xf32>
    %cst_89 = arith.constant dense<0x7F800000> : vector<64xf32>
    %171 = vector.multi_reduction <minimumf>, %170, %cst_89 [1] : vector<64x64xf32> to vector<64xf32>
    %172 = vector.shape_cast %171 : vector<64xf32> to vector<64x1xf32>
    %173 = vector.broadcast %172 : vector<64x1xf32> to vector<64x64xf32>
    %174 = arith.cmpf ole, %170, %173 : vector<64x64xf32>
    %cst_90 = arith.constant 6.400000e+01 : f32
    %175 = vector.broadcast %cst_90 : f32 to vector<64x64xf32>
    %176 = arith.select %174, %61, %175 : vector<64x64xi1>, vector<64x64xf32>
    %cst_91 = arith.constant dense<0x7F800000> : vector<64xf32>
    %177 = vector.multi_reduction <minimumf>, %176, %cst_91 [1] : vector<64x64xf32> to vector<64xf32>
    %178 = vector.shape_cast %177 : vector<64xf32> to vector<64x1xf32>
    %179 = vector.broadcast %178 : vector<64x1xf32> to vector<64x64xf32>
    %180 = arith.cmpf oeq, %61, %179 : vector<64x64xf32>
    %181 = arith.extui %180 : vector<64x64xi1> to vector<64x64xi32>
    %182 = arith.sitofp %181 : vector<64x64xi32> to vector<64x64xf32>
    %cst_92 = arith.constant dense<0.000000e+00> : vector<64x4xf32>
    %183 = tpu.matmul %182, %47, %cst_92 {dimension_numbers = #tpu.dot_dimension_numbers<[1], [0], [0], [1], [0, 0, 1, 1], [], []>} : vector<64x64xf32>, vector<64x4xf32>, vector<64x4xf32> -> vector<64x4xf32>
    %184 = arith.maximumf %166, %183 : vector<64x4xf32>
    %185 = vector.broadcast %178 : vector<64x1xf32> to vector<64x64xf32>
    %186 = arith.cmpf oeq, %61, %185 : vector<64x64xf32>
    %cst_93 = arith.constant 1.000000e+30 : f32
    %187 = vector.broadcast %cst_93 : f32 to vector<64x64xf32>
    %188 = arith.select %186, %187, %170 : vector<64x64xi1>, vector<64x64xf32>
    %cst_94 = arith.constant dense<0x7F800000> : vector<64xf32>
    %189 = vector.multi_reduction <minimumf>, %188, %cst_94 [1] : vector<64x64xf32> to vector<64xf32>
    %190 = vector.shape_cast %189 : vector<64xf32> to vector<64x1xf32>
    %191 = vector.broadcast %190 : vector<64x1xf32> to vector<64x64xf32>
    %192 = arith.cmpf ole, %188, %191 : vector<64x64xf32>
    %cst_95 = arith.constant 6.400000e+01 : f32
    %193 = vector.broadcast %cst_95 : f32 to vector<64x64xf32>
    %194 = arith.select %192, %61, %193 : vector<64x64xi1>, vector<64x64xf32>
    %cst_96 = arith.constant dense<0x7F800000> : vector<64xf32>
    %195 = vector.multi_reduction <minimumf>, %194, %cst_96 [1] : vector<64x64xf32> to vector<64xf32>
    %196 = vector.shape_cast %195 : vector<64xf32> to vector<64x1xf32>
    %197 = vector.broadcast %196 : vector<64x1xf32> to vector<64x64xf32>
    %198 = arith.cmpf oeq, %61, %197 : vector<64x64xf32>
    %199 = arith.extui %198 : vector<64x64xi1> to vector<64x64xi32>
    %200 = arith.sitofp %199 : vector<64x64xi32> to vector<64x64xf32>
    %cst_97 = arith.constant dense<0.000000e+00> : vector<64x4xf32>
    %201 = tpu.matmul %200, %47, %cst_97 {dimension_numbers = #tpu.dot_dimension_numbers<[1], [0], [0], [1], [0, 0, 1, 1], [], []>} : vector<64x64xf32>, vector<64x4xf32>, vector<64x4xf32> -> vector<64x4xf32>
    %202 = arith.maximumf %184, %201 : vector<64x4xf32>
    %203 = vector.broadcast %196 : vector<64x1xf32> to vector<64x64xf32>
    %204 = arith.cmpf oeq, %61, %203 : vector<64x64xf32>
    %cst_98 = arith.constant 1.000000e+30 : f32
    %205 = vector.broadcast %cst_98 : f32 to vector<64x64xf32>
    %206 = arith.select %204, %205, %188 : vector<64x64xi1>, vector<64x64xf32>
    %cst_99 = arith.constant dense<0x7F800000> : vector<64xf32>
    %207 = vector.multi_reduction <minimumf>, %206, %cst_99 [1] : vector<64x64xf32> to vector<64xf32>
    %208 = vector.shape_cast %207 : vector<64xf32> to vector<64x1xf32>
    %209 = vector.broadcast %208 : vector<64x1xf32> to vector<64x64xf32>
    %210 = arith.cmpf ole, %206, %209 : vector<64x64xf32>
    %cst_100 = arith.constant 6.400000e+01 : f32
    %211 = vector.broadcast %cst_100 : f32 to vector<64x64xf32>
    %212 = arith.select %210, %61, %211 : vector<64x64xi1>, vector<64x64xf32>
    %cst_101 = arith.constant dense<0x7F800000> : vector<64xf32>
    %213 = vector.multi_reduction <minimumf>, %212, %cst_101 [1] : vector<64x64xf32> to vector<64xf32>
    %214 = vector.shape_cast %213 : vector<64xf32> to vector<64x1xf32>
    %215 = vector.broadcast %214 : vector<64x1xf32> to vector<64x64xf32>
    %216 = arith.cmpf oeq, %61, %215 : vector<64x64xf32>
    %217 = arith.extui %216 : vector<64x64xi1> to vector<64x64xi32>
    %218 = arith.sitofp %217 : vector<64x64xi32> to vector<64x64xf32>
    %cst_102 = arith.constant dense<0.000000e+00> : vector<64x4xf32>
    %219 = tpu.matmul %218, %47, %cst_102 {dimension_numbers = #tpu.dot_dimension_numbers<[1], [0], [0], [1], [0, 0, 1, 1], [], []>} : vector<64x64xf32>, vector<64x4xf32>, vector<64x4xf32> -> vector<64x4xf32>
    %220 = arith.maximumf %202, %219 : vector<64x4xf32>
    %221 = arith.subf %220, %47 : vector<64x4xf32>
    %cst_103 = arith.constant dense<0.000000e+00> : vector<64x8xf32>
    %222 = tpu.matmul %47, %2, %cst_103 {dimension_numbers = #tpu.dot_dimension_numbers<[1], [0], [0], [1], [0, 0, 1, 1], [], []>} : vector<64x4xf32>, vector<4x8xf32>, vector<64x8xf32> -> vector<64x8xf32>
    %cst_104 = arith.constant dense<0.000000e+00> : vector<64x8xf32>
    %223 = tpu.matmul %221, %3, %cst_104 {dimension_numbers = #tpu.dot_dimension_numbers<[1], [0], [0], [1], [0, 0, 1, 1], [], []>} : vector<64x4xf32>, vector<4x8xf32>, vector<64x8xf32> -> vector<64x8xf32>
    %224 = arith.addf %222, %223 : vector<64x8xf32>
    %225 = vector.broadcast %4 : vector<1x8xf32> to vector<64x8xf32>
    %226 = arith.addf %224, %225 : vector<64x8xf32>
    %cst_105 = arith.constant dense<0.000000e+00> : vector<8xf32>
    %227 = vector.multi_reduction <add>, %226, %cst_105 [0] : vector<64x8xf32> to vector<8xf32>
    %228 = vector.shape_cast %227 : vector<8xf32> to vector<1x8xf32>
    %cst_106 = arith.constant 6.400000e+01 : f32
    %229 = vector.broadcast %cst_106 : f32 to vector<1x8xf32>
    %230 = arith.divf %228, %229 : vector<1x8xf32>
    %231 = arith.mulf %226, %226 : vector<64x8xf32>
    %cst_107 = arith.constant dense<0.000000e+00> : vector<8xf32>
    %232 = vector.multi_reduction <add>, %231, %cst_107 [0] : vector<64x8xf32> to vector<8xf32>
    %233 = vector.shape_cast %232 : vector<8xf32> to vector<1x8xf32>
    %cst_108 = arith.constant 6.400000e+01 : f32
    %234 = vector.broadcast %cst_108 : f32 to vector<1x8xf32>
    %235 = arith.divf %233, %234 : vector<1x8xf32>
    %236 = arith.mulf %230, %230 : vector<1x8xf32>
    %237 = arith.subf %235, %236 : vector<1x8xf32>
    %cst_109 = arith.constant 0.000000e+00 : f32
    %238 = vector.broadcast %cst_109 : f32 to vector<1x8xf32>
    %239 = arith.maximumf %237, %238 : vector<1x8xf32>
    %240 = vector.broadcast %230 : vector<1x8xf32> to vector<64x8xf32>
    %241 = arith.subf %226, %240 : vector<64x8xf32>
    %cst_110 = arith.constant 9.99999974E-6 : f32
    %242 = vector.broadcast %cst_110 : f32 to vector<1x8xf32>
    %243 = arith.addf %239, %242 : vector<1x8xf32>
    %244 = math.rsqrt %243 : vector<1x8xf32>
    %245 = vector.broadcast %244 : vector<1x8xf32> to vector<64x8xf32>
    %246 = arith.mulf %241, %245 : vector<64x8xf32>
    %cst_111 = arith.constant 5.000000e-01 : f32
    %247 = vector.broadcast %cst_111 : f32 to vector<64x8xf32>
    %248 = arith.mulf %247, %246 : vector<64x8xf32>
    %cst_112 = arith.constant 4.471500e-02 : f32
    %249 = vector.broadcast %cst_112 : f32 to vector<64x8xf32>
    %250 = arith.mulf %249, %246 : vector<64x8xf32>
    %251 = arith.mulf %250, %246 : vector<64x8xf32>
    %252 = arith.mulf %251, %246 : vector<64x8xf32>
    %253 = arith.addf %246, %252 : vector<64x8xf32>
    %cst_113 = arith.constant 0.797884583 : f32
    %254 = vector.broadcast %cst_113 : f32 to vector<64x8xf32>
    %255 = arith.mulf %254, %253 : vector<64x8xf32>
    %256 = math.tanh %255 : vector<64x8xf32>
    %cst_114 = arith.constant 1.000000e+00 : f32
    %257 = vector.broadcast %cst_114 : f32 to vector<64x8xf32>
    %258 = arith.addf %257, %256 : vector<64x8xf32>
    %259 = arith.mulf %248, %258 : vector<64x8xf32>
    %cst_115 = arith.constant dense<0.000000e+00> : vector<64x4xf32>
    %260 = tpu.matmul %259, %5, %cst_115 {dimension_numbers = #tpu.dot_dimension_numbers<[1], [0], [0], [1], [0, 0, 1, 1], [], []>} : vector<64x8xf32>, vector<8x4xf32>, vector<64x4xf32> -> vector<64x4xf32>
    %261 = vector.broadcast %6 : vector<1x4xf32> to vector<64x4xf32>
    %262 = arith.addf %260, %261 : vector<64x4xf32>
    %cst_116 = arith.constant dense<0.000000e+00> : vector<4xf32>
    %263 = vector.multi_reduction <add>, %262, %cst_116 [0] : vector<64x4xf32> to vector<4xf32>
    %264 = vector.shape_cast %263 : vector<4xf32> to vector<1x4xf32>
    %cst_117 = arith.constant 6.400000e+01 : f32
    %265 = vector.broadcast %cst_117 : f32 to vector<1x4xf32>
    %266 = arith.divf %264, %265 : vector<1x4xf32>
    %267 = arith.mulf %262, %262 : vector<64x4xf32>
    %cst_118 = arith.constant dense<0.000000e+00> : vector<4xf32>
    %268 = vector.multi_reduction <add>, %267, %cst_118 [0] : vector<64x4xf32> to vector<4xf32>
    %269 = vector.shape_cast %268 : vector<4xf32> to vector<1x4xf32>
    %cst_119 = arith.constant 6.400000e+01 : f32
    %270 = vector.broadcast %cst_119 : f32 to vector<1x4xf32>
    %271 = arith.divf %269, %270 : vector<1x4xf32>
    %272 = arith.mulf %266, %266 : vector<1x4xf32>
    %273 = arith.subf %271, %272 : vector<1x4xf32>
    %cst_120 = arith.constant 0.000000e+00 : f32
    %274 = vector.broadcast %cst_120 : f32 to vector<1x4xf32>
    %275 = arith.maximumf %273, %274 : vector<1x4xf32>
    %276 = vector.broadcast %266 : vector<1x4xf32> to vector<64x4xf32>
    %277 = arith.subf %262, %276 : vector<64x4xf32>
    %cst_121 = arith.constant 9.99999974E-6 : f32
    %278 = vector.broadcast %cst_121 : f32 to vector<1x4xf32>
    %279 = arith.addf %275, %278 : vector<1x4xf32>
    %280 = math.rsqrt %279 : vector<1x4xf32>
    %281 = vector.broadcast %280 : vector<1x4xf32> to vector<64x4xf32>
    %282 = arith.mulf %277, %281 : vector<64x4xf32>
    %283 = arith.addf %282, %23 : vector<64x4xf32>
    %cst_122 = arith.constant dense<0.000000e+00> : vector<64x16xf32>
    %284 = tpu.matmul %283, %7, %cst_122 {dimension_numbers = #tpu.dot_dimension_numbers<[1], [0], [0], [1], [0, 0, 1, 1], [], []>} : vector<64x4xf32>, vector<4x16xf32>, vector<64x16xf32> -> vector<64x16xf32>
    %285 = vector.broadcast %8 : vector<1x16xf32> to vector<64x16xf32>
    %286 = arith.addf %284, %285 : vector<64x16xf32>
    %cst_123 = arith.constant dense<0.000000e+00> : vector<16xf32>
    %287 = vector.multi_reduction <add>, %286, %cst_123 [0] : vector<64x16xf32> to vector<16xf32>
    %288 = vector.shape_cast %287 : vector<16xf32> to vector<1x16xf32>
    %cst_124 = arith.constant 6.400000e+01 : f32
    %289 = vector.broadcast %cst_124 : f32 to vector<1x16xf32>
    %290 = arith.divf %288, %289 : vector<1x16xf32>
    %291 = arith.mulf %286, %286 : vector<64x16xf32>
    %cst_125 = arith.constant dense<0.000000e+00> : vector<16xf32>
    %292 = vector.multi_reduction <add>, %291, %cst_125 [0] : vector<64x16xf32> to vector<16xf32>
    %293 = vector.shape_cast %292 : vector<16xf32> to vector<1x16xf32>
    %cst_126 = arith.constant 6.400000e+01 : f32
    %294 = vector.broadcast %cst_126 : f32 to vector<1x16xf32>
    %295 = arith.divf %293, %294 : vector<1x16xf32>
    %296 = arith.mulf %290, %290 : vector<1x16xf32>
    %297 = arith.subf %295, %296 : vector<1x16xf32>
    %cst_127 = arith.constant 0.000000e+00 : f32
    %298 = vector.broadcast %cst_127 : f32 to vector<1x16xf32>
    %299 = arith.maximumf %297, %298 : vector<1x16xf32>
    %300 = vector.broadcast %290 : vector<1x16xf32> to vector<64x16xf32>
    %301 = arith.subf %286, %300 : vector<64x16xf32>
    %cst_128 = arith.constant 9.99999974E-6 : f32
    %302 = vector.broadcast %cst_128 : f32 to vector<1x16xf32>
    %303 = arith.addf %299, %302 : vector<1x16xf32>
    %304 = math.rsqrt %303 : vector<1x16xf32>
    %305 = vector.broadcast %304 : vector<1x16xf32> to vector<64x16xf32>
    %306 = arith.mulf %301, %305 : vector<64x16xf32>
    %cst_129 = arith.constant 5.000000e-01 : f32
    %307 = vector.broadcast %cst_129 : f32 to vector<64x16xf32>
    %308 = arith.mulf %307, %306 : vector<64x16xf32>
    %cst_130 = arith.constant 4.471500e-02 : f32
    %309 = vector.broadcast %cst_130 : f32 to vector<64x16xf32>
    %310 = arith.mulf %309, %306 : vector<64x16xf32>
    %311 = arith.mulf %310, %306 : vector<64x16xf32>
    %312 = arith.mulf %311, %306 : vector<64x16xf32>
    %313 = arith.addf %306, %312 : vector<64x16xf32>
    %cst_131 = arith.constant 0.797884583 : f32
    %314 = vector.broadcast %cst_131 : f32 to vector<64x16xf32>
    %315 = arith.mulf %314, %313 : vector<64x16xf32>
    %316 = math.tanh %315 : vector<64x16xf32>
    %cst_132 = arith.constant 1.000000e+00 : f32
    %317 = vector.broadcast %cst_132 : f32 to vector<64x16xf32>
    %318 = arith.addf %317, %316 : vector<64x16xf32>
    %319 = arith.mulf %308, %318 : vector<64x16xf32>
    %cst_133 = arith.constant dense<0.000000e+00> : vector<64x4xf32>
    %320 = tpu.matmul %319, %9, %cst_133 {dimension_numbers = #tpu.dot_dimension_numbers<[1], [0], [0], [1], [0, 0, 1, 1], [], []>} : vector<64x16xf32>, vector<16x4xf32>, vector<64x4xf32> -> vector<64x4xf32>
    %321 = vector.broadcast %10 : vector<1x4xf32> to vector<64x4xf32>
    %322 = arith.addf %320, %321 : vector<64x4xf32>
    %cst_134 = arith.constant dense<0.000000e+00> : vector<4xf32>
    %323 = vector.multi_reduction <add>, %322, %cst_134 [0] : vector<64x4xf32> to vector<4xf32>
    %324 = vector.shape_cast %323 : vector<4xf32> to vector<1x4xf32>
    %cst_135 = arith.constant 6.400000e+01 : f32
    %325 = vector.broadcast %cst_135 : f32 to vector<1x4xf32>
    %326 = arith.divf %324, %325 : vector<1x4xf32>
    %327 = arith.mulf %322, %322 : vector<64x4xf32>
    %cst_136 = arith.constant dense<0.000000e+00> : vector<4xf32>
    %328 = vector.multi_reduction <add>, %327, %cst_136 [0] : vector<64x4xf32> to vector<4xf32>
    %329 = vector.shape_cast %328 : vector<4xf32> to vector<1x4xf32>
    %cst_137 = arith.constant 6.400000e+01 : f32
    %330 = vector.broadcast %cst_137 : f32 to vector<1x4xf32>
    %331 = arith.divf %329, %330 : vector<1x4xf32>
    %332 = arith.mulf %326, %326 : vector<1x4xf32>
    %333 = arith.subf %331, %332 : vector<1x4xf32>
    %cst_138 = arith.constant 0.000000e+00 : f32
    %334 = vector.broadcast %cst_138 : f32 to vector<1x4xf32>
    %335 = arith.maximumf %333, %334 : vector<1x4xf32>
    %336 = vector.broadcast %326 : vector<1x4xf32> to vector<64x4xf32>
    %337 = arith.subf %322, %336 : vector<64x4xf32>
    %cst_139 = arith.constant 9.99999974E-6 : f32
    %338 = vector.broadcast %cst_139 : f32 to vector<1x4xf32>
    %339 = arith.addf %335, %338 : vector<1x4xf32>
    %340 = math.rsqrt %339 : vector<1x4xf32>
    %341 = vector.broadcast %340 : vector<1x4xf32> to vector<64x4xf32>
    %342 = arith.mulf %337, %341 : vector<64x4xf32>
    %343 = arith.addf %342, %283 : vector<64x4xf32>
    %cst_140 = arith.constant dense<0.000000e+00> : vector<4xf32>
    %344 = vector.multi_reduction <add>, %343, %cst_140 [0] : vector<64x4xf32> to vector<4xf32>
    %345 = vector.shape_cast %344 : vector<4xf32> to vector<1x4xf32>
    %cst_141 = arith.constant 6.400000e+01 : f32
    %346 = vector.broadcast %cst_141 : f32 to vector<1x4xf32>
    %347 = arith.divf %345, %346 : vector<1x4xf32>
    %348 = arith.mulf %343, %343 : vector<64x4xf32>
    %cst_142 = arith.constant dense<0.000000e+00> : vector<4xf32>
    %349 = vector.multi_reduction <add>, %348, %cst_142 [0] : vector<64x4xf32> to vector<4xf32>
    %350 = vector.shape_cast %349 : vector<4xf32> to vector<1x4xf32>
    %cst_143 = arith.constant 6.400000e+01 : f32
    %351 = vector.broadcast %cst_143 : f32 to vector<1x4xf32>
    %352 = arith.divf %350, %351 : vector<1x4xf32>
    %353 = arith.mulf %347, %347 : vector<1x4xf32>
    %354 = arith.subf %352, %353 : vector<1x4xf32>
    %cst_144 = arith.constant 0.000000e+00 : f32
    %355 = vector.broadcast %cst_144 : f32 to vector<1x4xf32>
    %356 = arith.maximumf %354, %355 : vector<1x4xf32>
    %357 = vector.broadcast %347 : vector<1x4xf32> to vector<64x4xf32>
    %358 = arith.subf %343, %357 : vector<64x4xf32>
    %cst_145 = arith.constant 9.99999974E-6 : f32
    %359 = vector.broadcast %cst_145 : f32 to vector<1x4xf32>
    %360 = arith.addf %356, %359 : vector<1x4xf32>
    %361 = math.rsqrt %360 : vector<1x4xf32>
    %362 = vector.broadcast %361 : vector<1x4xf32> to vector<64x4xf32>
    %363 = arith.mulf %358, %362 : vector<64x4xf32>
    %cst_146 = arith.constant 0.000000e+00 : f32
    %364 = vector.broadcast %cst_146 : f32 to vector<64x4xf32>
    %365 = arith.maximumf %363, %364 : vector<64x4xf32>
    %cst_147 = arith.constant dense<0.000000e+00> : vector<64x4xf32>
    %366 = tpu.matmul %365, %11, %cst_147 {dimension_numbers = #tpu.dot_dimension_numbers<[1], [0], [0], [1], [0, 0, 1, 1], [], []>} : vector<64x4xf32>, vector<4x4xf32>, vector<64x4xf32> -> vector<64x4xf32>
    %367 = vector.broadcast %12 : vector<1x4xf32> to vector<64x4xf32>
    %368 = arith.addf %366, %367 : vector<64x4xf32>
    %cst_148 = arith.constant dense<0.000000e+00> : vector<4xf32>
    %369 = vector.multi_reduction <add>, %368, %cst_148 [0] : vector<64x4xf32> to vector<4xf32>
    %370 = vector.shape_cast %369 : vector<4xf32> to vector<1x4xf32>
    %cst_149 = arith.constant 6.400000e+01 : f32
    %371 = vector.broadcast %cst_149 : f32 to vector<1x4xf32>
    %372 = arith.divf %370, %371 : vector<1x4xf32>
    %373 = arith.mulf %368, %368 : vector<64x4xf32>
    %cst_150 = arith.constant dense<0.000000e+00> : vector<4xf32>
    %374 = vector.multi_reduction <add>, %373, %cst_150 [0] : vector<64x4xf32> to vector<4xf32>
    %375 = vector.shape_cast %374 : vector<4xf32> to vector<1x4xf32>
    %cst_151 = arith.constant 6.400000e+01 : f32
    %376 = vector.broadcast %cst_151 : f32 to vector<1x4xf32>
    %377 = arith.divf %375, %376 : vector<1x4xf32>
    %378 = arith.mulf %372, %372 : vector<1x4xf32>
    %379 = arith.subf %377, %378 : vector<1x4xf32>
    %cst_152 = arith.constant 0.000000e+00 : f32
    %380 = vector.broadcast %cst_152 : f32 to vector<1x4xf32>
    %381 = arith.maximumf %379, %380 : vector<1x4xf32>
    %382 = vector.broadcast %372 : vector<1x4xf32> to vector<64x4xf32>
    %383 = arith.subf %368, %382 : vector<64x4xf32>
    %cst_153 = arith.constant 9.99999974E-6 : f32
    %384 = vector.broadcast %cst_153 : f32 to vector<1x4xf32>
    %385 = arith.addf %381, %384 : vector<1x4xf32>
    %386 = math.rsqrt %385 : vector<1x4xf32>
    %387 = vector.broadcast %386 : vector<1x4xf32> to vector<64x4xf32>
    %388 = arith.mulf %383, %387 : vector<64x4xf32>
    %389 = arith.mulf %388, %388 : vector<64x4xf32>
    %cst_154 = arith.constant dense<0.000000e+00> : vector<64xf32>
    %390 = vector.multi_reduction <add>, %389, %cst_154 [1] : vector<64x4xf32> to vector<64xf32>
    %391 = vector.shape_cast %390 : vector<64xf32> to vector<64x1xf32>
    %cst_155 = arith.constant 1.000000e-24 : f32
    %392 = vector.broadcast %cst_155 : f32 to vector<64x1xf32>
    %393 = arith.maximumf %391, %392 : vector<64x1xf32>
    %394 = math.rsqrt %393 : vector<64x1xf32>
    %395 = vector.broadcast %394 : vector<64x1xf32> to vector<64x4xf32>
    %396 = arith.mulf %388, %395 : vector<64x4xf32>
    %cst_156 = arith.constant dense<0.000000e+00> : vector<64x64xf32>
    %397 = tpu.matmul %396, %396, %cst_156 {dimension_numbers = #tpu.dot_dimension_numbers<[1], [1], [0], [0], [0, 0, 1, 0], [], []>} : vector<64x4xf32>, vector<64x4xf32>, vector<64x64xf32> -> vector<64x64xf32>
    %cst_157 = arith.constant -2.000000e+00 : f32
    %398 = vector.broadcast %cst_157 : f32 to vector<64x64xf32>
    %399 = arith.mulf %398, %397 : vector<64x64xf32>
    %400 = arith.addf %399, %24 : vector<64x64xf32>
    %401 = tpu.iota {dimensions = array<i32: 1>} : vector<64x64xi32>
    %402 = arith.sitofp %401 : vector<64x64xi32> to vector<64x64xf32>
    %cst_158 = arith.constant 0xFF800000 : f32
    %403 = vector.broadcast %cst_158 : f32 to vector<64x4xf32>
    %cst_159 = arith.constant dense<0x7F800000> : vector<64xf32>
    %404 = vector.multi_reduction <minimumf>, %400, %cst_159 [1] : vector<64x64xf32> to vector<64xf32>
    %405 = vector.shape_cast %404 : vector<64xf32> to vector<64x1xf32>
    %406 = vector.broadcast %405 : vector<64x1xf32> to vector<64x64xf32>
    %407 = arith.cmpf ole, %400, %406 : vector<64x64xf32>
    %cst_160 = arith.constant 6.400000e+01 : f32
    %408 = vector.broadcast %cst_160 : f32 to vector<64x64xf32>
    %409 = arith.select %407, %402, %408 : vector<64x64xi1>, vector<64x64xf32>
    %cst_161 = arith.constant dense<0x7F800000> : vector<64xf32>
    %410 = vector.multi_reduction <minimumf>, %409, %cst_161 [1] : vector<64x64xf32> to vector<64xf32>
    %411 = vector.shape_cast %410 : vector<64xf32> to vector<64x1xf32>
    %412 = vector.broadcast %411 : vector<64x1xf32> to vector<64x64xf32>
    %413 = arith.cmpf oeq, %402, %412 : vector<64x64xf32>
    %414 = arith.extui %413 : vector<64x64xi1> to vector<64x64xi32>
    %415 = arith.sitofp %414 : vector<64x64xi32> to vector<64x64xf32>
    %cst_162 = arith.constant dense<0.000000e+00> : vector<64x4xf32>
    %416 = tpu.matmul %415, %388, %cst_162 {dimension_numbers = #tpu.dot_dimension_numbers<[1], [0], [0], [1], [0, 0, 1, 1], [], []>} : vector<64x64xf32>, vector<64x4xf32>, vector<64x4xf32> -> vector<64x4xf32>
    %417 = arith.maximumf %403, %416 : vector<64x4xf32>
    %418 = vector.broadcast %411 : vector<64x1xf32> to vector<64x64xf32>
    %419 = arith.cmpf oeq, %402, %418 : vector<64x64xf32>
    %cst_163 = arith.constant 1.000000e+30 : f32
    %420 = vector.broadcast %cst_163 : f32 to vector<64x64xf32>
    %421 = arith.select %419, %420, %400 : vector<64x64xi1>, vector<64x64xf32>
    %cst_164 = arith.constant dense<0x7F800000> : vector<64xf32>
    %422 = vector.multi_reduction <minimumf>, %421, %cst_164 [1] : vector<64x64xf32> to vector<64xf32>
    %423 = vector.shape_cast %422 : vector<64xf32> to vector<64x1xf32>
    %424 = vector.broadcast %423 : vector<64x1xf32> to vector<64x64xf32>
    %425 = arith.cmpf ole, %421, %424 : vector<64x64xf32>
    %cst_165 = arith.constant 6.400000e+01 : f32
    %426 = vector.broadcast %cst_165 : f32 to vector<64x64xf32>
    %427 = arith.select %425, %402, %426 : vector<64x64xi1>, vector<64x64xf32>
    %cst_166 = arith.constant dense<0x7F800000> : vector<64xf32>
    %428 = vector.multi_reduction <minimumf>, %427, %cst_166 [1] : vector<64x64xf32> to vector<64xf32>
    %429 = vector.shape_cast %428 : vector<64xf32> to vector<64x1xf32>
    %430 = vector.broadcast %429 : vector<64x1xf32> to vector<64x64xf32>
    %431 = arith.cmpf oeq, %402, %430 : vector<64x64xf32>
    %432 = arith.extui %431 : vector<64x64xi1> to vector<64x64xi32>
    %433 = arith.sitofp %432 : vector<64x64xi32> to vector<64x64xf32>
    %cst_167 = arith.constant dense<0.000000e+00> : vector<64x4xf32>
    %434 = tpu.matmul %433, %388, %cst_167 {dimension_numbers = #tpu.dot_dimension_numbers<[1], [0], [0], [1], [0, 0, 1, 1], [], []>} : vector<64x64xf32>, vector<64x4xf32>, vector<64x4xf32> -> vector<64x4xf32>
    %435 = arith.maximumf %417, %434 : vector<64x4xf32>
    %436 = vector.broadcast %429 : vector<64x1xf32> to vector<64x64xf32>
    %437 = arith.cmpf oeq, %402, %436 : vector<64x64xf32>
    %cst_168 = arith.constant 1.000000e+30 : f32
    %438 = vector.broadcast %cst_168 : f32 to vector<64x64xf32>
    %439 = arith.select %437, %438, %421 : vector<64x64xi1>, vector<64x64xf32>
    %cst_169 = arith.constant dense<0x7F800000> : vector<64xf32>
    %440 = vector.multi_reduction <minimumf>, %439, %cst_169 [1] : vector<64x64xf32> to vector<64xf32>
    %441 = vector.shape_cast %440 : vector<64xf32> to vector<64x1xf32>
    %442 = vector.broadcast %441 : vector<64x1xf32> to vector<64x64xf32>
    %443 = arith.cmpf ole, %439, %442 : vector<64x64xf32>
    %cst_170 = arith.constant 6.400000e+01 : f32
    %444 = vector.broadcast %cst_170 : f32 to vector<64x64xf32>
    %445 = arith.select %443, %402, %444 : vector<64x64xi1>, vector<64x64xf32>
    %cst_171 = arith.constant dense<0x7F800000> : vector<64xf32>
    %446 = vector.multi_reduction <minimumf>, %445, %cst_171 [1] : vector<64x64xf32> to vector<64xf32>
    %447 = vector.shape_cast %446 : vector<64xf32> to vector<64x1xf32>
    %448 = vector.broadcast %447 : vector<64x1xf32> to vector<64x64xf32>
    %449 = arith.cmpf oeq, %402, %448 : vector<64x64xf32>
    %450 = arith.extui %449 : vector<64x64xi1> to vector<64x64xi32>
    %451 = arith.sitofp %450 : vector<64x64xi32> to vector<64x64xf32>
    %cst_172 = arith.constant dense<0.000000e+00> : vector<64x4xf32>
    %452 = tpu.matmul %451, %388, %cst_172 {dimension_numbers = #tpu.dot_dimension_numbers<[1], [0], [0], [1], [0, 0, 1, 1], [], []>} : vector<64x64xf32>, vector<64x4xf32>, vector<64x4xf32> -> vector<64x4xf32>
    %453 = arith.maximumf %435, %452 : vector<64x4xf32>
    %454 = vector.broadcast %447 : vector<64x1xf32> to vector<64x64xf32>
    %455 = arith.cmpf oeq, %402, %454 : vector<64x64xf32>
    %cst_173 = arith.constant 1.000000e+30 : f32
    %456 = vector.broadcast %cst_173 : f32 to vector<64x64xf32>
    %457 = arith.select %455, %456, %439 : vector<64x64xi1>, vector<64x64xf32>
    %cst_174 = arith.constant dense<0x7F800000> : vector<64xf32>
    %458 = vector.multi_reduction <minimumf>, %457, %cst_174 [1] : vector<64x64xf32> to vector<64xf32>
    %459 = vector.shape_cast %458 : vector<64xf32> to vector<64x1xf32>
    %460 = vector.broadcast %459 : vector<64x1xf32> to vector<64x64xf32>
    %461 = arith.cmpf ole, %457, %460 : vector<64x64xf32>
    %cst_175 = arith.constant 6.400000e+01 : f32
    %462 = vector.broadcast %cst_175 : f32 to vector<64x64xf32>
    %463 = arith.select %461, %402, %462 : vector<64x64xi1>, vector<64x64xf32>
    %cst_176 = arith.constant dense<0x7F800000> : vector<64xf32>
    %464 = vector.multi_reduction <minimumf>, %463, %cst_176 [1] : vector<64x64xf32> to vector<64xf32>
    %465 = vector.shape_cast %464 : vector<64xf32> to vector<64x1xf32>
    %466 = vector.broadcast %465 : vector<64x1xf32> to vector<64x64xf32>
    %467 = arith.cmpf oeq, %402, %466 : vector<64x64xf32>
    %468 = arith.extui %467 : vector<64x64xi1> to vector<64x64xi32>
    %469 = arith.sitofp %468 : vector<64x64xi32> to vector<64x64xf32>
    %cst_177 = arith.constant dense<0.000000e+00> : vector<64x4xf32>
    %470 = tpu.matmul %469, %388, %cst_177 {dimension_numbers = #tpu.dot_dimension_numbers<[1], [0], [0], [1], [0, 0, 1, 1], [], []>} : vector<64x64xf32>, vector<64x4xf32>, vector<64x4xf32> -> vector<64x4xf32>
    %471 = arith.maximumf %453, %470 : vector<64x4xf32>
    %472 = vector.broadcast %465 : vector<64x1xf32> to vector<64x64xf32>
    %473 = arith.cmpf oeq, %402, %472 : vector<64x64xf32>
    %cst_178 = arith.constant 1.000000e+30 : f32
    %474 = vector.broadcast %cst_178 : f32 to vector<64x64xf32>
    %475 = arith.select %473, %474, %457 : vector<64x64xi1>, vector<64x64xf32>
    %cst_179 = arith.constant dense<0x7F800000> : vector<64xf32>
    %476 = vector.multi_reduction <minimumf>, %475, %cst_179 [1] : vector<64x64xf32> to vector<64xf32>
    %477 = vector.shape_cast %476 : vector<64xf32> to vector<64x1xf32>
    %478 = vector.broadcast %477 : vector<64x1xf32> to vector<64x64xf32>
    %479 = arith.cmpf ole, %475, %478 : vector<64x64xf32>
    %cst_180 = arith.constant 6.400000e+01 : f32
    %480 = vector.broadcast %cst_180 : f32 to vector<64x64xf32>
    %481 = arith.select %479, %402, %480 : vector<64x64xi1>, vector<64x64xf32>
    %cst_181 = arith.constant dense<0x7F800000> : vector<64xf32>
    %482 = vector.multi_reduction <minimumf>, %481, %cst_181 [1] : vector<64x64xf32> to vector<64xf32>
    %483 = vector.shape_cast %482 : vector<64xf32> to vector<64x1xf32>
    %484 = vector.broadcast %483 : vector<64x1xf32> to vector<64x64xf32>
    %485 = arith.cmpf oeq, %402, %484 : vector<64x64xf32>
    %486 = arith.extui %485 : vector<64x64xi1> to vector<64x64xi32>
    %487 = arith.sitofp %486 : vector<64x64xi32> to vector<64x64xf32>
    %cst_182 = arith.constant dense<0.000000e+00> : vector<64x4xf32>
    %488 = tpu.matmul %487, %388, %cst_182 {dimension_numbers = #tpu.dot_dimension_numbers<[1], [0], [0], [1], [0, 0, 1, 1], [], []>} : vector<64x64xf32>, vector<64x4xf32>, vector<64x4xf32> -> vector<64x4xf32>
    %489 = arith.maximumf %471, %488 : vector<64x4xf32>
    %490 = vector.broadcast %483 : vector<64x1xf32> to vector<64x64xf32>
    %491 = arith.cmpf oeq, %402, %490 : vector<64x64xf32>
    %cst_183 = arith.constant 1.000000e+30 : f32
    %492 = vector.broadcast %cst_183 : f32 to vector<64x64xf32>
    %493 = arith.select %491, %492, %475 : vector<64x64xi1>, vector<64x64xf32>
    %cst_184 = arith.constant dense<0x7F800000> : vector<64xf32>
    %494 = vector.multi_reduction <minimumf>, %493, %cst_184 [1] : vector<64x64xf32> to vector<64xf32>
    %495 = vector.shape_cast %494 : vector<64xf32> to vector<64x1xf32>
    %496 = vector.broadcast %495 : vector<64x1xf32> to vector<64x64xf32>
    %497 = arith.cmpf ole, %493, %496 : vector<64x64xf32>
    %cst_185 = arith.constant 6.400000e+01 : f32
    %498 = vector.broadcast %cst_185 : f32 to vector<64x64xf32>
    %499 = arith.select %497, %402, %498 : vector<64x64xi1>, vector<64x64xf32>
    %cst_186 = arith.constant dense<0x7F800000> : vector<64xf32>
    %500 = vector.multi_reduction <minimumf>, %499, %cst_186 [1] : vector<64x64xf32> to vector<64xf32>
    %501 = vector.shape_cast %500 : vector<64xf32> to vector<64x1xf32>
    %502 = vector.broadcast %501 : vector<64x1xf32> to vector<64x64xf32>
    %503 = arith.cmpf oeq, %402, %502 : vector<64x64xf32>
    %504 = arith.extui %503 : vector<64x64xi1> to vector<64x64xi32>
    %505 = arith.sitofp %504 : vector<64x64xi32> to vector<64x64xf32>
    %cst_187 = arith.constant dense<0.000000e+00> : vector<64x4xf32>
    %506 = tpu.matmul %505, %388, %cst_187 {dimension_numbers = #tpu.dot_dimension_numbers<[1], [0], [0], [1], [0, 0, 1, 1], [], []>} : vector<64x64xf32>, vector<64x4xf32>, vector<64x4xf32> -> vector<64x4xf32>
    %507 = arith.maximumf %489, %506 : vector<64x4xf32>
    %508 = vector.broadcast %501 : vector<64x1xf32> to vector<64x64xf32>
    %509 = arith.cmpf oeq, %402, %508 : vector<64x64xf32>
    %cst_188 = arith.constant 1.000000e+30 : f32
    %510 = vector.broadcast %cst_188 : f32 to vector<64x64xf32>
    %511 = arith.select %509, %510, %493 : vector<64x64xi1>, vector<64x64xf32>
    %cst_189 = arith.constant dense<0x7F800000> : vector<64xf32>
    %512 = vector.multi_reduction <minimumf>, %511, %cst_189 [1] : vector<64x64xf32> to vector<64xf32>
    %513 = vector.shape_cast %512 : vector<64xf32> to vector<64x1xf32>
    %514 = vector.broadcast %513 : vector<64x1xf32> to vector<64x64xf32>
    %515 = arith.cmpf ole, %511, %514 : vector<64x64xf32>
    %cst_190 = arith.constant 6.400000e+01 : f32
    %516 = vector.broadcast %cst_190 : f32 to vector<64x64xf32>
    %517 = arith.select %515, %402, %516 : vector<64x64xi1>, vector<64x64xf32>
    %cst_191 = arith.constant dense<0x7F800000> : vector<64xf32>
    %518 = vector.multi_reduction <minimumf>, %517, %cst_191 [1] : vector<64x64xf32> to vector<64xf32>
    %519 = vector.shape_cast %518 : vector<64xf32> to vector<64x1xf32>
    %520 = vector.broadcast %519 : vector<64x1xf32> to vector<64x64xf32>
    %521 = arith.cmpf oeq, %402, %520 : vector<64x64xf32>
    %522 = arith.extui %521 : vector<64x64xi1> to vector<64x64xi32>
    %523 = arith.sitofp %522 : vector<64x64xi32> to vector<64x64xf32>
    %cst_192 = arith.constant dense<0.000000e+00> : vector<64x4xf32>
    %524 = tpu.matmul %523, %388, %cst_192 {dimension_numbers = #tpu.dot_dimension_numbers<[1], [0], [0], [1], [0, 0, 1, 1], [], []>} : vector<64x64xf32>, vector<64x4xf32>, vector<64x4xf32> -> vector<64x4xf32>
    %525 = arith.maximumf %507, %524 : vector<64x4xf32>
    %526 = vector.broadcast %519 : vector<64x1xf32> to vector<64x64xf32>
    %527 = arith.cmpf oeq, %402, %526 : vector<64x64xf32>
    %cst_193 = arith.constant 1.000000e+30 : f32
    %528 = vector.broadcast %cst_193 : f32 to vector<64x64xf32>
    %529 = arith.select %527, %528, %511 : vector<64x64xi1>, vector<64x64xf32>
    %cst_194 = arith.constant dense<0x7F800000> : vector<64xf32>
    %530 = vector.multi_reduction <minimumf>, %529, %cst_194 [1] : vector<64x64xf32> to vector<64xf32>
    %531 = vector.shape_cast %530 : vector<64xf32> to vector<64x1xf32>
    %532 = vector.broadcast %531 : vector<64x1xf32> to vector<64x64xf32>
    %533 = arith.cmpf ole, %529, %532 : vector<64x64xf32>
    %cst_195 = arith.constant 6.400000e+01 : f32
    %534 = vector.broadcast %cst_195 : f32 to vector<64x64xf32>
    %535 = arith.select %533, %402, %534 : vector<64x64xi1>, vector<64x64xf32>
    %cst_196 = arith.constant dense<0x7F800000> : vector<64xf32>
    %536 = vector.multi_reduction <minimumf>, %535, %cst_196 [1] : vector<64x64xf32> to vector<64xf32>
    %537 = vector.shape_cast %536 : vector<64xf32> to vector<64x1xf32>
    %538 = vector.broadcast %537 : vector<64x1xf32> to vector<64x64xf32>
    %539 = arith.cmpf oeq, %402, %538 : vector<64x64xf32>
    %540 = arith.extui %539 : vector<64x64xi1> to vector<64x64xi32>
    %541 = arith.sitofp %540 : vector<64x64xi32> to vector<64x64xf32>
    %cst_197 = arith.constant dense<0.000000e+00> : vector<64x4xf32>
    %542 = tpu.matmul %541, %388, %cst_197 {dimension_numbers = #tpu.dot_dimension_numbers<[1], [0], [0], [1], [0, 0, 1, 1], [], []>} : vector<64x64xf32>, vector<64x4xf32>, vector<64x4xf32> -> vector<64x4xf32>
    %543 = arith.maximumf %525, %542 : vector<64x4xf32>
    %544 = vector.broadcast %537 : vector<64x1xf32> to vector<64x64xf32>
    %545 = arith.cmpf oeq, %402, %544 : vector<64x64xf32>
    %cst_198 = arith.constant 1.000000e+30 : f32
    %546 = vector.broadcast %cst_198 : f32 to vector<64x64xf32>
    %547 = arith.select %545, %546, %529 : vector<64x64xi1>, vector<64x64xf32>
    %cst_199 = arith.constant dense<0x7F800000> : vector<64xf32>
    %548 = vector.multi_reduction <minimumf>, %547, %cst_199 [1] : vector<64x64xf32> to vector<64xf32>
    %549 = vector.shape_cast %548 : vector<64xf32> to vector<64x1xf32>
    %550 = vector.broadcast %549 : vector<64x1xf32> to vector<64x64xf32>
    %551 = arith.cmpf ole, %547, %550 : vector<64x64xf32>
    %cst_200 = arith.constant 6.400000e+01 : f32
    %552 = vector.broadcast %cst_200 : f32 to vector<64x64xf32>
    %553 = arith.select %551, %402, %552 : vector<64x64xi1>, vector<64x64xf32>
    %cst_201 = arith.constant dense<0x7F800000> : vector<64xf32>
    %554 = vector.multi_reduction <minimumf>, %553, %cst_201 [1] : vector<64x64xf32> to vector<64xf32>
    %555 = vector.shape_cast %554 : vector<64xf32> to vector<64x1xf32>
    %556 = vector.broadcast %555 : vector<64x1xf32> to vector<64x64xf32>
    %557 = arith.cmpf oeq, %402, %556 : vector<64x64xf32>
    %558 = arith.extui %557 : vector<64x64xi1> to vector<64x64xi32>
    %559 = arith.sitofp %558 : vector<64x64xi32> to vector<64x64xf32>
    %cst_202 = arith.constant dense<0.000000e+00> : vector<64x4xf32>
    %560 = tpu.matmul %559, %388, %cst_202 {dimension_numbers = #tpu.dot_dimension_numbers<[1], [0], [0], [1], [0, 0, 1, 1], [], []>} : vector<64x64xf32>, vector<64x4xf32>, vector<64x4xf32> -> vector<64x4xf32>
    %561 = arith.maximumf %543, %560 : vector<64x4xf32>
    %562 = arith.subf %561, %388 : vector<64x4xf32>
    %cst_203 = arith.constant dense<0.000000e+00> : vector<64x8xf32>
    %563 = tpu.matmul %388, %13, %cst_203 {dimension_numbers = #tpu.dot_dimension_numbers<[1], [0], [0], [1], [0, 0, 1, 1], [], []>} : vector<64x4xf32>, vector<4x8xf32>, vector<64x8xf32> -> vector<64x8xf32>
    %cst_204 = arith.constant dense<0.000000e+00> : vector<64x8xf32>
    %564 = tpu.matmul %562, %14, %cst_204 {dimension_numbers = #tpu.dot_dimension_numbers<[1], [0], [0], [1], [0, 0, 1, 1], [], []>} : vector<64x4xf32>, vector<4x8xf32>, vector<64x8xf32> -> vector<64x8xf32>
    %565 = arith.addf %563, %564 : vector<64x8xf32>
    %566 = vector.broadcast %15 : vector<1x8xf32> to vector<64x8xf32>
    %567 = arith.addf %565, %566 : vector<64x8xf32>
    %cst_205 = arith.constant dense<0.000000e+00> : vector<8xf32>
    %568 = vector.multi_reduction <add>, %567, %cst_205 [0] : vector<64x8xf32> to vector<8xf32>
    %569 = vector.shape_cast %568 : vector<8xf32> to vector<1x8xf32>
    %cst_206 = arith.constant 6.400000e+01 : f32
    %570 = vector.broadcast %cst_206 : f32 to vector<1x8xf32>
    %571 = arith.divf %569, %570 : vector<1x8xf32>
    %572 = arith.mulf %567, %567 : vector<64x8xf32>
    %cst_207 = arith.constant dense<0.000000e+00> : vector<8xf32>
    %573 = vector.multi_reduction <add>, %572, %cst_207 [0] : vector<64x8xf32> to vector<8xf32>
    %574 = vector.shape_cast %573 : vector<8xf32> to vector<1x8xf32>
    %cst_208 = arith.constant 6.400000e+01 : f32
    %575 = vector.broadcast %cst_208 : f32 to vector<1x8xf32>
    %576 = arith.divf %574, %575 : vector<1x8xf32>
    %577 = arith.mulf %571, %571 : vector<1x8xf32>
    %578 = arith.subf %576, %577 : vector<1x8xf32>
    %cst_209 = arith.constant 0.000000e+00 : f32
    %579 = vector.broadcast %cst_209 : f32 to vector<1x8xf32>
    %580 = arith.maximumf %578, %579 : vector<1x8xf32>
    %581 = vector.broadcast %571 : vector<1x8xf32> to vector<64x8xf32>
    %582 = arith.subf %567, %581 : vector<64x8xf32>
    %cst_210 = arith.constant 9.99999974E-6 : f32
    %583 = vector.broadcast %cst_210 : f32 to vector<1x8xf32>
    %584 = arith.addf %580, %583 : vector<1x8xf32>
    %585 = math.rsqrt %584 : vector<1x8xf32>
    %586 = vector.broadcast %585 : vector<1x8xf32> to vector<64x8xf32>
    %587 = arith.mulf %582, %586 : vector<64x8xf32>
    %cst_211 = arith.constant 5.000000e-01 : f32
    %588 = vector.broadcast %cst_211 : f32 to vector<64x8xf32>
    %589 = arith.mulf %588, %587 : vector<64x8xf32>
    %cst_212 = arith.constant 4.471500e-02 : f32
    %590 = vector.broadcast %cst_212 : f32 to vector<64x8xf32>
    %591 = arith.mulf %590, %587 : vector<64x8xf32>
    %592 = arith.mulf %591, %587 : vector<64x8xf32>
    %593 = arith.mulf %592, %587 : vector<64x8xf32>
    %594 = arith.addf %587, %593 : vector<64x8xf32>
    %cst_213 = arith.constant 0.797884583 : f32
    %595 = vector.broadcast %cst_213 : f32 to vector<64x8xf32>
    %596 = arith.mulf %595, %594 : vector<64x8xf32>
    %597 = math.tanh %596 : vector<64x8xf32>
    %cst_214 = arith.constant 1.000000e+00 : f32
    %598 = vector.broadcast %cst_214 : f32 to vector<64x8xf32>
    %599 = arith.addf %598, %597 : vector<64x8xf32>
    %600 = arith.mulf %589, %599 : vector<64x8xf32>
    %cst_215 = arith.constant dense<0.000000e+00> : vector<64x4xf32>
    %601 = tpu.matmul %600, %16, %cst_215 {dimension_numbers = #tpu.dot_dimension_numbers<[1], [0], [0], [1], [0, 0, 1, 1], [], []>} : vector<64x8xf32>, vector<8x4xf32>, vector<64x4xf32> -> vector<64x4xf32>
    %602 = vector.broadcast %17 : vector<1x4xf32> to vector<64x4xf32>
    %603 = arith.addf %601, %602 : vector<64x4xf32>
    %cst_216 = arith.constant dense<0.000000e+00> : vector<4xf32>
    %604 = vector.multi_reduction <add>, %603, %cst_216 [0] : vector<64x4xf32> to vector<4xf32>
    %605 = vector.shape_cast %604 : vector<4xf32> to vector<1x4xf32>
    %cst_217 = arith.constant 6.400000e+01 : f32
    %606 = vector.broadcast %cst_217 : f32 to vector<1x4xf32>
    %607 = arith.divf %605, %606 : vector<1x4xf32>
    %608 = arith.mulf %603, %603 : vector<64x4xf32>
    %cst_218 = arith.constant dense<0.000000e+00> : vector<4xf32>
    %609 = vector.multi_reduction <add>, %608, %cst_218 [0] : vector<64x4xf32> to vector<4xf32>
    %610 = vector.shape_cast %609 : vector<4xf32> to vector<1x4xf32>
    %cst_219 = arith.constant 6.400000e+01 : f32
    %611 = vector.broadcast %cst_219 : f32 to vector<1x4xf32>
    %612 = arith.divf %610, %611 : vector<1x4xf32>
    %613 = arith.mulf %607, %607 : vector<1x4xf32>
    %614 = arith.subf %612, %613 : vector<1x4xf32>
    %cst_220 = arith.constant 0.000000e+00 : f32
    %615 = vector.broadcast %cst_220 : f32 to vector<1x4xf32>
    %616 = arith.maximumf %614, %615 : vector<1x4xf32>
    %617 = vector.broadcast %607 : vector<1x4xf32> to vector<64x4xf32>
    %618 = arith.subf %603, %617 : vector<64x4xf32>
    %cst_221 = arith.constant 9.99999974E-6 : f32
    %619 = vector.broadcast %cst_221 : f32 to vector<1x4xf32>
    %620 = arith.addf %616, %619 : vector<1x4xf32>
    %621 = math.rsqrt %620 : vector<1x4xf32>
    %622 = vector.broadcast %621 : vector<1x4xf32> to vector<64x4xf32>
    %623 = arith.mulf %618, %622 : vector<64x4xf32>
    %624 = arith.addf %623, %365 : vector<64x4xf32>
    %cst_222 = arith.constant dense<0.000000e+00> : vector<64x16xf32>
    %625 = tpu.matmul %624, %18, %cst_222 {dimension_numbers = #tpu.dot_dimension_numbers<[1], [0], [0], [1], [0, 0, 1, 1], [], []>} : vector<64x4xf32>, vector<4x16xf32>, vector<64x16xf32> -> vector<64x16xf32>
    %626 = vector.broadcast %19 : vector<1x16xf32> to vector<64x16xf32>
    %627 = arith.addf %625, %626 : vector<64x16xf32>
    %cst_223 = arith.constant dense<0.000000e+00> : vector<16xf32>
    %628 = vector.multi_reduction <add>, %627, %cst_223 [0] : vector<64x16xf32> to vector<16xf32>
    %629 = vector.shape_cast %628 : vector<16xf32> to vector<1x16xf32>
    %cst_224 = arith.constant 6.400000e+01 : f32
    %630 = vector.broadcast %cst_224 : f32 to vector<1x16xf32>
    %631 = arith.divf %629, %630 : vector<1x16xf32>
    %632 = arith.mulf %627, %627 : vector<64x16xf32>
    %cst_225 = arith.constant dense<0.000000e+00> : vector<16xf32>
    %633 = vector.multi_reduction <add>, %632, %cst_225 [0] : vector<64x16xf32> to vector<16xf32>
    %634 = vector.shape_cast %633 : vector<16xf32> to vector<1x16xf32>
    %cst_226 = arith.constant 6.400000e+01 : f32
    %635 = vector.broadcast %cst_226 : f32 to vector<1x16xf32>
    %636 = arith.divf %634, %635 : vector<1x16xf32>
    %637 = arith.mulf %631, %631 : vector<1x16xf32>
    %638 = arith.subf %636, %637 : vector<1x16xf32>
    %cst_227 = arith.constant 0.000000e+00 : f32
    %639 = vector.broadcast %cst_227 : f32 to vector<1x16xf32>
    %640 = arith.maximumf %638, %639 : vector<1x16xf32>
    %641 = vector.broadcast %631 : vector<1x16xf32> to vector<64x16xf32>
    %642 = arith.subf %627, %641 : vector<64x16xf32>
    %cst_228 = arith.constant 9.99999974E-6 : f32
    %643 = vector.broadcast %cst_228 : f32 to vector<1x16xf32>
    %644 = arith.addf %640, %643 : vector<1x16xf32>
    %645 = math.rsqrt %644 : vector<1x16xf32>
    %646 = vector.broadcast %645 : vector<1x16xf32> to vector<64x16xf32>
    %647 = arith.mulf %642, %646 : vector<64x16xf32>
    %cst_229 = arith.constant 5.000000e-01 : f32
    %648 = vector.broadcast %cst_229 : f32 to vector<64x16xf32>
    %649 = arith.mulf %648, %647 : vector<64x16xf32>
    %cst_230 = arith.constant 4.471500e-02 : f32
    %650 = vector.broadcast %cst_230 : f32 to vector<64x16xf32>
    %651 = arith.mulf %650, %647 : vector<64x16xf32>
    %652 = arith.mulf %651, %647 : vector<64x16xf32>
    %653 = arith.mulf %652, %647 : vector<64x16xf32>
    %654 = arith.addf %647, %653 : vector<64x16xf32>
    %cst_231 = arith.constant 0.797884583 : f32
    %655 = vector.broadcast %cst_231 : f32 to vector<64x16xf32>
    %656 = arith.mulf %655, %654 : vector<64x16xf32>
    %657 = math.tanh %656 : vector<64x16xf32>
    %cst_232 = arith.constant 1.000000e+00 : f32
    %658 = vector.broadcast %cst_232 : f32 to vector<64x16xf32>
    %659 = arith.addf %658, %657 : vector<64x16xf32>
    %660 = arith.mulf %649, %659 : vector<64x16xf32>
    %cst_233 = arith.constant dense<0.000000e+00> : vector<64x4xf32>
    %661 = tpu.matmul %660, %20, %cst_233 {dimension_numbers = #tpu.dot_dimension_numbers<[1], [0], [0], [1], [0, 0, 1, 1], [], []>} : vector<64x16xf32>, vector<16x4xf32>, vector<64x4xf32> -> vector<64x4xf32>
    %662 = vector.broadcast %21 : vector<1x4xf32> to vector<64x4xf32>
    %663 = arith.addf %661, %662 : vector<64x4xf32>
    %cst_234 = arith.constant dense<0.000000e+00> : vector<4xf32>
    %664 = vector.multi_reduction <add>, %663, %cst_234 [0] : vector<64x4xf32> to vector<4xf32>
    %665 = vector.shape_cast %664 : vector<4xf32> to vector<1x4xf32>
    %cst_235 = arith.constant 6.400000e+01 : f32
    %666 = vector.broadcast %cst_235 : f32 to vector<1x4xf32>
    %667 = arith.divf %665, %666 : vector<1x4xf32>
    %668 = arith.mulf %663, %663 : vector<64x4xf32>
    %cst_236 = arith.constant dense<0.000000e+00> : vector<4xf32>
    %669 = vector.multi_reduction <add>, %668, %cst_236 [0] : vector<64x4xf32> to vector<4xf32>
    %670 = vector.shape_cast %669 : vector<4xf32> to vector<1x4xf32>
    %cst_237 = arith.constant 6.400000e+01 : f32
    %671 = vector.broadcast %cst_237 : f32 to vector<1x4xf32>
    %672 = arith.divf %670, %671 : vector<1x4xf32>
    %673 = arith.mulf %667, %667 : vector<1x4xf32>
    %674 = arith.subf %672, %673 : vector<1x4xf32>
    %cst_238 = arith.constant 0.000000e+00 : f32
    %675 = vector.broadcast %cst_238 : f32 to vector<1x4xf32>
    %676 = arith.maximumf %674, %675 : vector<1x4xf32>
    %677 = vector.broadcast %667 : vector<1x4xf32> to vector<64x4xf32>
    %678 = arith.subf %663, %677 : vector<64x4xf32>
    %cst_239 = arith.constant 9.99999974E-6 : f32
    %679 = vector.broadcast %cst_239 : f32 to vector<1x4xf32>
    %680 = arith.addf %676, %679 : vector<1x4xf32>
    %681 = math.rsqrt %680 : vector<1x4xf32>
    %682 = vector.broadcast %681 : vector<1x4xf32> to vector<64x4xf32>
    %683 = arith.mulf %678, %682 : vector<64x4xf32>
    %684 = arith.addf %683, %624 : vector<64x4xf32>
    %cst_240 = arith.constant dense<0.000000e+00> : vector<4xf32>
    %685 = vector.multi_reduction <add>, %684, %cst_240 [0] : vector<64x4xf32> to vector<4xf32>
    %686 = vector.shape_cast %685 : vector<4xf32> to vector<1x4xf32>
    %cst_241 = arith.constant 6.400000e+01 : f32
    %687 = vector.broadcast %cst_241 : f32 to vector<1x4xf32>
    %688 = arith.divf %686, %687 : vector<1x4xf32>
    %689 = arith.mulf %684, %684 : vector<64x4xf32>
    %cst_242 = arith.constant dense<0.000000e+00> : vector<4xf32>
    %690 = vector.multi_reduction <add>, %689, %cst_242 [0] : vector<64x4xf32> to vector<4xf32>
    %691 = vector.shape_cast %690 : vector<4xf32> to vector<1x4xf32>
    %cst_243 = arith.constant 6.400000e+01 : f32
    %692 = vector.broadcast %cst_243 : f32 to vector<1x4xf32>
    %693 = arith.divf %691, %692 : vector<1x4xf32>
    %694 = arith.mulf %688, %688 : vector<1x4xf32>
    %695 = arith.subf %693, %694 : vector<1x4xf32>
    %cst_244 = arith.constant 0.000000e+00 : f32
    %696 = vector.broadcast %cst_244 : f32 to vector<1x4xf32>
    %697 = arith.maximumf %695, %696 : vector<1x4xf32>
    %698 = vector.broadcast %688 : vector<1x4xf32> to vector<64x4xf32>
    %699 = arith.subf %684, %698 : vector<64x4xf32>
    %cst_245 = arith.constant 9.99999974E-6 : f32
    %700 = vector.broadcast %cst_245 : f32 to vector<1x4xf32>
    %701 = arith.addf %697, %700 : vector<1x4xf32>
    %702 = math.rsqrt %701 : vector<1x4xf32>
    %703 = vector.broadcast %702 : vector<1x4xf32> to vector<64x4xf32>
    %704 = arith.mulf %699, %703 : vector<64x4xf32>
    %705 = arith.addf %704, %23 : vector<64x4xf32>
    %c0_246 = arith.constant 0 : index
    %c0_247 = arith.constant 0 : index
    %c0_248 = arith.constant 0 : index
    %706 = vector.load %arg25[%c0_246, %c0_247, %c0_248] : memref<1x64x4xf32, #tpu.memory_space<vmem>>, vector<1x64x4xf32>
    %707 = vector.shape_cast %706 : vector<1x64x4xf32> to vector<64x4xf32>
    %708 = vector.shape_cast %705 : vector<64x4xf32> to vector<1x64x4xf32>
    tpu.vector_store %arg25[%c0_246, %c0_247, %c0_248], %708 {strides = array<i32>} : memref<1x64x4xf32, #tpu.memory_space<vmem>>, vector<1x64x4xf32>,
    return
  }
  func.func @transform_0(%arg0: i32) -> (i32, i32, i32) {
    %c0_i32 = arith.constant 0 : i32
    %c0_i32_0 = arith.constant 0 : i32
    %c0_i32_1 = arith.constant 0 : i32
    return %arg0, %c0_i32, %c0_i32_0 : i32, i32, i32
  }
  func.func @transform_1(%arg0: i32) -> (i32, i32) {
    %c0_i32 = arith.constant 0 : i32
    %c0_i32_0 = arith.constant 0 : i32
    %c0_i32_1 = arith.constant 0 : i32
    return %c0_i32, %c0_i32_0 : i32, i32
  }
  func.func @transform_2(%arg0: i32) -> (i32, i32) {
    %c0_i32 = arith.constant 0 : i32
    %c0_i32_0 = arith.constant 0 : i32
    %c0_i32_1 = arith.constant 0 : i32
    return %c0_i32, %c0_i32_0 : i32, i32
  }
  func.func @transform_3(%arg0: i32) -> (i32, i32) {
    %c0_i32 = arith.constant 0 : i32
    %c0_i32_0 = arith.constant 0 : i32
    %c0_i32_1 = arith.constant 0 : i32
    return %c0_i32, %c0_i32_0 : i32, i32
  }
  func.func @transform_4(%arg0: i32) -> (i32, i32) {
    %c0_i32 = arith.constant 0 : i32
    %c0_i32_0 = arith.constant 0 : i32
    %c0_i32_1 = arith.constant 0 : i32
    return %c0_i32, %c0_i32_0 : i32, i32
  }
  func.func @transform_5(%arg0: i32) -> (i32, i32) {
    %c0_i32 = arith.constant 0 : i32
    %c0_i32_0 = arith.constant 0 : i32
    %c0_i32_1 = arith.constant 0 : i32
    return %c0_i32, %c0_i32_0 : i32, i32
  }
  func.func @transform_6(%arg0: i32) -> (i32, i32) {
    %c0_i32 = arith.constant 0 : i32
    %c0_i32_0 = arith.constant 0 : i32
    %c0_i32_1 = arith.constant 0 : i32
    return %c0_i32, %c0_i32_0 : i32, i32
  }
  func.func @transform_7(%arg0: i32) -> (i32, i32) {
    %c0_i32 = arith.constant 0 : i32
    %c0_i32_0 = arith.constant 0 : i32
    %c0_i32_1 = arith.constant 0 : i32
    return %c0_i32, %c0_i32_0 : i32, i32
  }
  func.func @transform_8(%arg0: i32) -> (i32, i32) {
    %c0_i32 = arith.constant 0 : i32
    %c0_i32_0 = arith.constant 0 : i32
    %c0_i32_1 = arith.constant 0 : i32
    return %c0_i32, %c0_i32_0 : i32, i32
  }
  func.func @transform_9(%arg0: i32) -> (i32, i32) {
    %c0_i32 = arith.constant 0 : i32
    %c0_i32_0 = arith.constant 0 : i32
    %c0_i32_1 = arith.constant 0 : i32
    return %c0_i32, %c0_i32_0 : i32, i32
  }
  func.func @transform_10(%arg0: i32) -> (i32, i32) {
    %c0_i32 = arith.constant 0 : i32
    %c0_i32_0 = arith.constant 0 : i32
    %c0_i32_1 = arith.constant 0 : i32
    return %c0_i32, %c0_i32_0 : i32, i32
  }
  func.func @transform_11(%arg0: i32) -> (i32, i32) {
    %c0_i32 = arith.constant 0 : i32
    %c0_i32_0 = arith.constant 0 : i32
    %c0_i32_1 = arith.constant 0 : i32
    return %c0_i32, %c0_i32_0 : i32, i32
  }
  func.func @transform_12(%arg0: i32) -> (i32, i32) {
    %c0_i32 = arith.constant 0 : i32
    %c0_i32_0 = arith.constant 0 : i32
    %c0_i32_1 = arith.constant 0 : i32
    return %c0_i32, %c0_i32_0 : i32, i32
  }
  func.func @transform_13(%arg0: i32) -> (i32, i32) {
    %c0_i32 = arith.constant 0 : i32
    %c0_i32_0 = arith.constant 0 : i32
    %c0_i32_1 = arith.constant 0 : i32
    return %c0_i32, %c0_i32_0 : i32, i32
  }
  func.func @transform_14(%arg0: i32) -> (i32, i32) {
    %c0_i32 = arith.constant 0 : i32
    %c0_i32_0 = arith.constant 0 : i32
    %c0_i32_1 = arith.constant 0 : i32
    return %c0_i32, %c0_i32_0 : i32, i32
  }
  func.func @transform_15(%arg0: i32) -> (i32, i32) {
    %c0_i32 = arith.constant 0 : i32
    %c0_i32_0 = arith.constant 0 : i32
    %c0_i32_1 = arith.constant 0 : i32
    return %c0_i32, %c0_i32_0 : i32, i32
  }
  func.func @transform_16(%arg0: i32) -> (i32, i32) {
    %c0_i32 = arith.constant 0 : i32
    %c0_i32_0 = arith.constant 0 : i32
    %c0_i32_1 = arith.constant 0 : i32
    return %c0_i32, %c0_i32_0 : i32, i32
  }
  func.func @transform_17(%arg0: i32) -> (i32, i32) {
    %c0_i32 = arith.constant 0 : i32
    %c0_i32_0 = arith.constant 0 : i32
    %c0_i32_1 = arith.constant 0 : i32
    return %c0_i32, %c0_i32_0 : i32, i32
  }
  func.func @transform_18(%arg0: i32) -> (i32, i32) {
    %c0_i32 = arith.constant 0 : i32
    %c0_i32_0 = arith.constant 0 : i32
    %c0_i32_1 = arith.constant 0 : i32
    return %c0_i32, %c0_i32_0 : i32, i32
  }
  func.func @transform_19(%arg0: i32) -> (i32, i32) {
    %c0_i32 = arith.constant 0 : i32
    %c0_i32_0 = arith.constant 0 : i32
    %c0_i32_1 = arith.constant 0 : i32
    return %c0_i32, %c0_i32_0 : i32, i32
  }
  func.func @transform_20(%arg0: i32) -> (i32, i32) {
    %c0_i32 = arith.constant 0 : i32
    %c0_i32_0 = arith.constant 0 : i32
    %c0_i32_1 = arith.constant 0 : i32
    return %c0_i32, %c0_i32_0 : i32, i32
  }
  func.func @transform_21(%arg0: i32) -> (i32, i32) {
    %c0_i32 = arith.constant 0 : i32
    %c0_i32_0 = arith.constant 0 : i32
    %c0_i32_1 = arith.constant 0 : i32
    return %c0_i32, %c0_i32_0 : i32, i32
  }
  func.func @transform_22(%arg0: i32) -> (i32, i32) {
    %c0_i32 = arith.constant 0 : i32
    %c0_i32_0 = arith.constant 0 : i32
    %c0_i32_1 = arith.constant 0 : i32
    return %c0_i32, %c0_i32_0 : i32, i32
  }
  func.func @transform_23(%arg0: i32) -> (i32, i32) {
    %c0_i32 = arith.constant 0 : i32
    %c0_i32_0 = arith.constant 0 : i32
    %c0_i32_1 = arith.constant 0 : i32
    return %c0_i32, %c0_i32_0 : i32, i32
  }
  func.func @transform_24(%arg0: i32) -> (i32, i32, i32) {
    %c0_i32 = arith.constant 0 : i32
    %c0_i32_0 = arith.constant 0 : i32
    %c0_i32_1 = arith.constant 0 : i32
    return %arg0, %c0_i32, %c0_i32_0 : i32, i32, i32
  }
}

</mosaic_0001>

<llo_original>
// kernel: vig_block_forward.1
$region0: #{vig_block_forward.1}
  #allocation0 [shape = 'u32[]', space=smem, size = 0x4, offset = 0x4, fixed_abs, tag = 'smem constant byte address 0x4 - core index']
  #allocation1 [shape = 'u32[72,128]{1,0:T(1,128)}', space=vmem, size = 0x9000, scoped, tag = 'internal scratch']
  %s0 = inlined_call_operand.vmem [shape: f32[2,64,4], index: 0, kind: input, shape index: {}]
  %s1 = inlined_call_operand.vmem [shape: f32[64,64], index: 1, kind: input, shape index: {}]
  %s2 = inlined_call_operand.vmem [shape: f32[4,4], index: 2, kind: input, shape index: {}]
  %s3 = inlined_call_operand.vmem [shape: f32[1,4], index: 3, kind: input, shape index: {}]
  %s4 = inlined_call_operand.vmem [shape: f32[4,8], index: 4, kind: input, shape index: {}]
  %s5 = inlined_call_operand.vmem [shape: f32[4,8], index: 5, kind: input, shape index: {}]
  %s6 = inlined_call_operand.vmem [shape: f32[1,8], index: 6, kind: input, shape index: {}]
  %s7 = inlined_call_operand.vmem [shape: f32[8,4], index: 7, kind: input, shape index: {}]
  %s8 = inlined_call_operand.vmem [shape: f32[1,4], index: 8, kind: input, shape index: {}]
  %s9 = inlined_call_operand.vmem [shape: f32[4,16], index: 9, kind: input, shape index: {}]
  %s10 = inlined_call_operand.vmem [shape: f32[1,16], index: 10, kind: input, shape index: {}]
  %s11 = inlined_call_operand.vmem [shape: f32[16,4], index: 11, kind: input, shape index: {}]
  %s12 = inlined_call_operand.vmem [shape: f32[1,4], index: 12, kind: input, shape index: {}]
  %s13 = inlined_call_operand.vmem [shape: f32[4,4], index: 13, kind: input, shape index: {}]
  %s14 = inlined_call_operand.vmem [shape: f32[1,4], index: 14, kind: input, shape index: {}]
  %s15 = inlined_call_operand.vmem [shape: f32[4,8], index: 15, kind: input, shape index: {}]
  %s16 = inlined_call_operand.vmem [shape: f32[4,8], index: 16, kind: input, shape index: {}]
  %s17 = inlined_call_operand.vmem [shape: f32[1,8], index: 17, kind: input, shape index: {}]
  %s18 = inlined_call_operand.vmem [shape: f32[8,4], index: 18, kind: input, shape index: {}]
  %s19 = inlined_call_operand.vmem [shape: f32[1,4], index: 19, kind: input, shape index: {}]
  %s20 = inlined_call_operand.vmem [shape: f32[4,16], index: 20, kind: input, shape index: {}]
  %s21 = inlined_call_operand.vmem [shape: f32[1,16], index: 21, kind: input, shape index: {}]
  %s22 = inlined_call_operand.vmem [shape: f32[16,4], index: 22, kind: input, shape index: {}]
  %s23 = inlined_call_operand.vmem [shape: f32[1,4], index: 23, kind: input, shape index: {}]
  %s24 = inlined_call_operand.vmem [shape: f32[2,64,4], index: 24, kind: output, shape index: {}]
  %s25 = sld [smem:[#allocation0]]
  $region129: #{vig_block_forward.1} parent=0
    _
  %s27 = ssub.s32 1, %s25
  %s28 = scalar_select 0, %s27, %s25
  loop: start=0, step=1, limit=4
  $region2: #{vig_block_forward.1} parent=0 // loop_pre_header
    _
  $region3: #{vig_block_forward.1} parent=0 // loop_header
    %s30 = sphi 0, %s34
    %p31 = scmp.ge.s32.totalorder %s30, 4
    %s40 = sphi 0, %s42
    %s43 = sphi 0, %s40
    %s44 = sphi 0, %s43
    %s60 = sphi 0, %s44
    %s64 = sphi 0, %s64
    %s66 = sphi 0, %s64
    %s67 = sphi 0, %s66
    %s81 = sphi 0, %s67
    %s85 = sphi 0, %s85
    %s87 = sphi 0, %s85
    %s88 = sphi 0, %s87
    %s102 = sphi 0, %s88
    %s106 = sphi 0, %s106
    %s108 = sphi 0, %s106
    %s109 = sphi 0, %s108
    %s123 = sphi 0, %s109
    %s127 = sphi 0, %s127
    %s129 = sphi 0, %s127
    %s130 = sphi 0, %s129
    %s144 = sphi 0, %s130
    %s148 = sphi 0, %s148
    %s150 = sphi 0, %s148
    %s151 = sphi 0, %s150
    %s165 = sphi 0, %s151
    %s169 = sphi 0, %s169
    %s171 = sphi 0, %s169
    %s172 = sphi 0, %s171
    %s186 = sphi 0, %s172
    %s190 = sphi 0, %s190
    %s192 = sphi 0, %s190
    %s193 = sphi 0, %s192
    %s207 = sphi 0, %s193
    %s211 = sphi 0, %s211
    %s213 = sphi 0, %s211
    %s214 = sphi 0, %s213
    %s228 = sphi 0, %s214
    %s232 = sphi 0, %s232
    %s234 = sphi 0, %s232
    %s235 = sphi 0, %s234
    %s249 = sphi 0, %s235
    %s253 = sphi 0, %s253
    %s255 = sphi 0, %s253
    %s256 = sphi 0, %s255
    %s270 = sphi 0, %s256
    %s274 = sphi 0, %s274
    %s276 = sphi 0, %s274
    %s277 = sphi 0, %s276
    %s291 = sphi 0, %s277
    %s295 = sphi 0, %s295
    %s297 = sphi 0, %s295
    %s298 = sphi 0, %s297
    %s312 = sphi 0, %s298
    %s316 = sphi 0, %s316
    %s318 = sphi 0, %s316
    %s319 = sphi 0, %s318
    %s333 = sphi 0, %s319
    %s337 = sphi 0, %s337
    %s339 = sphi 0, %s337
    %s340 = sphi 0, %s339
    %s354 = sphi 0, %s340
    %s358 = sphi 0, %s358
    %s360 = sphi 0, %s358
    %s361 = sphi 0, %s360
    %s375 = sphi 0, %s361
    %s379 = sphi 0, %s379
    %s381 = sphi 0, %s379
    %s382 = sphi 0, %s381
    %s396 = sphi 0, %s382
    %s400 = sphi 0, %s400
    %s402 = sphi 0, %s400
    %s403 = sphi 0, %s402
    %s417 = sphi 0, %s403
    %s421 = sphi 0, %s421
    %s423 = sphi 0, %s421
    %s424 = sphi 0, %s423
    %s438 = sphi 0, %s424
    %s442 = sphi 0, %s442
    %s444 = sphi 0, %s442
    %s445 = sphi 0, %s444
    %s459 = sphi 0, %s445
    %s463 = sphi 0, %s463
    %s465 = sphi 0, %s463
    %s466 = sphi 0, %s465
    %s480 = sphi 0, %s466
    %s484 = sphi 0, %s484
    %s486 = sphi 0, %s484
    %s487 = sphi 0, %s486
    %s501 = sphi 0, %s487
    %s505 = sphi 0, %s505
    %s507 = sphi 0, %s505
    %s508 = sphi 0, %s507
    %s522 = sphi 0, %s508
    %s526 = sphi 0, %s526
    %s528 = sphi 0, %s526
    %s529 = sphi 0, %s528
    %s543 = sphi 0, %s529
    %s549 = sphi 0, %s551
    %s552 = sphi 0, %s549
    %s553 = sphi 0, %s552
    %s569 = sphi 0, %s553
  $region4: #{vig_block_forward.1} parent=0 // loop_header_branch
    %33 = sbr.rel (%p31) target = $region8
  $region5: #{vig_block_forward.1} parent=0 // loop_body
    %s35 = ssub.s32 %s30, 1
    %s36 = ssub.s32 %s30, 2
    %s37 = sadd.s32 %s30, 1
    %s38 = ssub.s32 %s30, %s37
    %p39 = scmp.eq.s32.totalorder %s38, 0
    %s41 = sadd.s32 %s40, 1
    %s42 = scalar_select %p39, %s40, %s41
    %p45 = pneg %p39
    %p46 = scmp.eq.s32.totalorder %s30, 1
    %p47 = por %p45, %p46
    %p48 = scmp.ne.s32.totalorder %s40, %s43
    %p49 = scmp.eq.s32.totalorder %s30, 0
    %p50 = por %p48, %p49
    %p51 = scmp.ne.s32.totalorder %s40, %s43
    %p52 = scmp.eq.s32.totalorder %s35, 1
    %p53 = por %p51, %p52
    %p54 = scmp.ne.s32.totalorder %s43, %s44
    %p55 = scmp.eq.s32.totalorder %s35, 0
    %p56 = por %p54, %p55
    %p57 = scmp.ne.s32.totalorder %s43, %s44
    %p58 = scmp.eq.s32.totalorder %s36, 1
    %p59 = por %p57, %p58
    %p61 = scmp.ne.s32.totalorder %s44, %s60
    %p62 = scmp.eq.s32.totalorder %s36, 0
    %p63 = por %p61, %p62
    %s65 = sadd.s32 %s64, 1
    %p68 = scmp.eq.s32.totalorder %s30, 1
    %p69 = scmp.ne.s32.totalorder %s64, %s66
    %p70 = scmp.eq.s32.totalorder %s30, 0
    %p71 = por %p69, %p70
    %p72 = scmp.ne.s32.totalorder %s64, %s66
    %p73 = scmp.eq.s32.totalorder %s35, 1
    %p74 = por %p72, %p73
    %p75 = scmp.ne.s32.totalorder %s66, %s67
    %p76 = scmp.eq.s32.totalorder %s35, 0
    %p77 = por %p75, %p76
    %p78 = scmp.ne.s32.totalorder %s66, %s67
    %p79 = scmp.eq.s32.totalorder %s36, 1
    %p80 = por %p78, %p79
    %p82 = scmp.ne.s32.totalorder %s67, %s81
    %p83 = scmp.eq.s32.totalorder %s36, 0
    %p84 = por %p82, %p83
    %s86 = sadd.s32 %s85, 1
    %p89 = scmp.eq.s32.totalorder %s30, 1
    %p90 = scmp.ne.s32.totalorder %s85, %s87
    %p91 = scmp.eq.s32.totalorder %s30, 0
    %p92 = por %p90, %p91
    %p93 = scmp.ne.s32.totalorder %s85, %s87
    %p94 = scmp.eq.s32.totalorder %s35, 1
    %p95 = por %p93, %p94
    %p96 = scmp.ne.s32.totalorder %s87, %s88
    %p97 = scmp.eq.s32.totalorder %s35, 0
    %p98 = por %p96, %p97
    %p99 = scmp.ne.s32.totalorder %s87, %s88
    %p100 = scmp.eq.s32.totalorder %s36, 1
    %p101 = por %p99, %p100
    %p103 = scmp.ne.s32.totalorder %s88, %s102
    %p104 = scmp.eq.s32.totalorder %s36, 0
    %p105 = por %p103, %p104
    %s107 = sadd.s32 %s106, 1
    %p110 = scmp.eq.s32.totalorder %s30, 1
    %p111 = scmp.ne.s32.totalorder %s106, %s108
    %p112 = scmp.eq.s32.totalorder %s30, 0
    %p113 = por %p111, %p112
    %p114 = scmp.ne.s32.totalorder %s106, %s108
    %p115 = scmp.eq.s32.totalorder %s35, 1
    %p116 = por %p114, %p115
    %p117 = scmp.ne.s32.totalorder %s108, %s109
    %p118 = scmp.eq.s32.totalorder %s35, 0
    %p119 = por %p117, %p118
    %p120 = scmp.ne.s32.totalorder %s108, %s109
    %p121 = scmp.eq.s32.totalorder %s36, 1
    %p122 = por %p120, %p121
    %p124 = scmp.ne.s32.totalorder %s109, %s123
    %p125 = scmp.eq.s32.totalorder %s36, 0
    %p126 = por %p124, %p125
    %s128 = sadd.s32 %s127, 1
    %p131 = scmp.eq.s32.totalorder %s30, 1
    %p132 = scmp.ne.s32.totalorder %s127, %s129
    %p133 = scmp.eq.s32.totalorder %s30, 0
    %p134 = por %p132, %p133
    %p135 = scmp.ne.s32.totalorder %s127, %s129
    %p136 = scmp.eq.s32.totalorder %s35, 1
    %p137 = por %p135, %p136
    %p138 = scmp.ne.s32.totalorder %s129, %s130
    %p139 = scmp.eq.s32.totalorder %s35, 0
    %p140 = por %p138, %p139
    %p141 = scmp.ne.s32.totalorder %s129, %s130
    %p142 = scmp.eq.s32.totalorder %s36, 1
    %p143 = por %p141, %p142
    %p145 = scmp.ne.s32.totalorder %s130, %s144
    %p146 = scmp.eq.s32.totalorder %s36, 0
    %p147 = por %p145, %p146
    %s149 = sadd.s32 %s148, 1
    %p152 = scmp.eq.s32.totalorder %s30, 1
    %p153 = scmp.ne.s32.totalorder %s148, %s150
    %p154 = scmp.eq.s32.totalorder %s30, 0
    %p155 = por %p153, %p154
    %p156 = scmp.ne.s32.totalorder %s148, %s150
    %p157 = scmp.eq.s32.totalorder %s35, 1
    %p158 = por %p156, %p157
    %p159 = scmp.ne.s32.totalorder %s150, %s151
    %p160 = scmp.eq.s32.totalorder %s35, 0
    %p161 = por %p159, %p160
    %p162 = scmp.ne.s32.totalorder %s150, %s151
    %p163 = scmp.eq.s32.totalorder %s36, 1
    %p164 = por %p162, %p163
    %p166 = scmp.ne.s32.totalorder %s151, %s165
    %p167 = scmp.eq.s32.totalorder %s36, 0
    %p168 = por %p166, %p167
    %s170 = sadd.s32 %s169, 1
    %p173 = scmp.eq.s32.totalorder %s30, 1
    %p174 = scmp.ne.s32.totalorder %s169, %s171
    %p175 = scmp.eq.s32.totalorder %s30, 0
    %p176 = por %p174, %p175
    %p177 = scmp.ne.s32.totalorder %s169, %s171
    %p178 = scmp.eq.s32.totalorder %s35, 1
    %p179 = por %p177, %p178
    %p180 = scmp.ne.s32.totalorder %s171, %s172
    %p181 = scmp.eq.s32.totalorder %s35, 0
    %p182 = por %p180, %p181
    %p183 = scmp.ne.s32.totalorder %s171, %s172
    %p184 = scmp.eq.s32.totalorder %s36, 1
    %p185 = por %p183, %p184
    %p187 = scmp.ne.s32.totalorder %s172, %s186
    %p188 = scmp.eq.s32.totalorder %s36, 0
    %p189 = por %p187, %p188
    %s191 = sadd.s32 %s190, 1
    %p194 = scmp.eq.s32.totalorder %s30, 1
    %p195 = scmp.ne.s32.totalorder %s190, %s192
    %p196 = scmp.eq.s32.totalorder %s30, 0
    %p197 = por %p195, %p196
    %p198 = scmp.ne.s32.totalorder %s190, %s192
    %p199 = scmp.eq.s32.totalorder %s35, 1
    %p200 = por %p198, %p199
    %p201 = scmp.ne.s32.totalorder %s192, %s193
    %p202 = scmp.eq.s32.totalorder %s35, 0
    %p203 = por %p201, %p202
    %p204 = scmp.ne.s32.totalorder %s192, %s193
    %p205 = scmp.eq.s32.totalorder %s36, 1
    %p206 = por %p204, %p205
    %p208 = scmp.ne.s32.totalorder %s193, %s207
    %p209 = scmp.eq.s32.totalorder %s36, 0
    %p210 = por %p208, %p209
    %s212 = sadd.s32 %s211, 1
    %p215 = scmp.eq.s32.totalorder %s30, 1
    %p216 = scmp.ne.s32.totalorder %s211, %s213
    %p217 = scmp.eq.s32.totalorder %s30, 0
    %p218 = por %p216, %p217
    %p219 = scmp.ne.s32.totalorder %s211, %s213
    %p220 = scmp.eq.s32.totalorder %s35, 1
    %p221 = por %p219, %p220
    %p222 = scmp.ne.s32.totalorder %s213, %s214
    %p223 = scmp.eq.s32.totalorder %s35, 0
    %p224 = por %p222, %p223
    %p225 = scmp.ne.s32.totalorder %s213, %s214
    %p226 = scmp.eq.s32.totalorder %s36, 1
    %p227 = por %p225, %p226
    %p229 = scmp.ne.s32.totalorder %s214, %s228
    %p230 = scmp.eq.s32.totalorder %s36, 0
    %p231 = por %p229, %p230
    %s233 = sadd.s32 %s232, 1
    %p236 = scmp.eq.s32.totalorder %s30, 1
    %p237 = scmp.ne.s32.totalorder %s232, %s234
    %p238 = scmp.eq.s32.totalorder %s30, 0
    %p239 = por %p237, %p238
    %p240 = scmp.ne.s32.totalorder %s232, %s234
    %p241 = scmp.eq.s32.totalorder %s35, 1
    %p242 = por %p240, %p241
    %p243 = scmp.ne.s32.totalorder %s234, %s235
    %p244 = scmp.eq.s32.totalorder %s35, 0
    %p245 = por %p243, %p244
    %p246 = scmp.ne.s32.totalorder %s234, %s235
    %p247 = scmp.eq.s32.totalorder %s36, 1
    %p248 = por %p246, %p247
    %p250 = scmp.ne.s32.totalorder %s235, %s249
    %p251 = scmp.eq.s32.totalorder %s36, 0
    %p252 = por %p250, %p251
    %s254 = sadd.s32 %s253, 1
    %p257 = scmp.eq.s32.totalorder %s30, 1
    %p258 = scmp.ne.s32.totalorder %s253, %s255
    %p259 = scmp.eq.s32.totalorder %s30, 0
    %p260 = por %p258, %p259
    %p261 = scmp.ne.s32.totalorder %s253, %s255
    %p262 = scmp.eq.s32.totalorder %s35, 1
    %p263 = por %p261, %p262
    %p264 = scmp.ne.s32.totalorder %s255, %s256
    %p265 = scmp.eq.s32.totalorder %s35, 0
    %p266 = por %p264, %p265
    %p267 = scmp.ne.s32.totalorder %s255, %s256
    %p268 = scmp.eq.s32.totalorder %s36, 1
    %p269 = por %p267, %p268
    %p271 = scmp.ne.s32.totalorder %s256, %s270
    %p272 = scmp.eq.s32.totalorder %s36, 0
    %p273 = por %p271, %p272
    %s275 = sadd.s32 %s274, 1
    %p278 = scmp.eq.s32.totalorder %s30, 1
    %p279 = scmp.ne.s32.totalorder %s274, %s276
    %p280 = scmp.eq.s32.totalorder %s30, 0
    %p281 = por %p279, %p280
    %p282 = scmp.ne.s32.totalorder %s274, %s276
    %p283 = scmp.eq.s32.totalorder %s35, 1
    %p284 = por %p282, %p283
    %p285 = scmp.ne.s32.totalorder %s276, %s277
    %p286 = scmp.eq.s32.totalorder %s35, 0
    %p287 = por %p285, %p286
    %p288 = scmp.ne.s32.totalorder %s276, %s277
    %p289 = scmp.eq.s32.totalorder %s36, 1
    %p290 = por %p288, %p289
    %p292 = scmp.ne.s32.totalorder %s277, %s291
    %p293 = scmp.eq.s32.totalorder %s36, 0
    %p294 = por %p292, %p293
    %s296 = sadd.s32 %s295, 1
    %p299 = scmp.eq.s32.totalorder %s30, 1
    %p300 = scmp.ne.s32.totalorder %s295, %s297
    %p301 = scmp.eq.s32.totalorder %s30, 0
    %p302 = por %p300, %p301
    %p303 = scmp.ne.s32.totalorder %s295, %s297
    %p304 = scmp.eq.s32.totalorder %s35, 1
    %p305 = por %p303, %p304
    %p306 = scmp.ne.s32.totalorder %s297, %s298
    %p307 = scmp.eq.s32.totalorder %s35, 0
    %p308 = por %p306, %p307
    %p309 = scmp.ne.s32.totalorder %s297, %s298
    %p310 = scmp.eq.s32.totalorder %s36, 1
    %p311 = por %p309, %p310
    %p313 = scmp.ne.s32.totalorder %s298, %s312
    %p314 = scmp.eq.s32.totalorder %s36, 0
    %p315 = por %p313, %p314
    %s317 = sadd.s32 %s316, 1
    %p320 = scmp.eq.s32.totalorder %s30, 1
    %p321 = scmp.ne.s32.totalorder %s316, %s318
    %p322 = scmp.eq.s32.totalorder %s30, 0
    %p323 = por %p321, %p322
    %p324 = scmp.ne.s32.totalorder %s316, %s318
    %p325 = scmp.eq.s32.totalorder %s35, 1
    %p326 = por %p324, %p325
    %p327 = scmp.ne.s32.totalorder %s318, %s319
    %p328 = scmp.eq.s32.totalorder %s35, 0
    %p329 = por %p327, %p328
    %p330 = scmp.ne.s32.totalorder %s318, %s319
    %p331 = scmp.eq.s32.totalorder %s36, 1
    %p332 = por %p330, %p331
    %p334 = scmp.ne.s32.totalorder %s319, %s333
    %p335 = scmp.eq.s32.totalorder %s36, 0
    %p336 = por %p334, %p335
    %s338 = sadd.s32 %s337, 1
    %p341 = scmp.eq.s32.totalorder %s30, 1
    %p342 = scmp.ne.s32.totalorder %s337, %s339
    %p343 = scmp.eq.s32.totalorder %s30, 0
    %p344 = por %p342, %p343
    %p345 = scmp.ne.s32.totalorder %s337, %s339
    %p346 = scmp.eq.s32.totalorder %s35, 1
    %p347 = por %p345, %p346
    %p348 = scmp.ne.s32.totalorder %s339, %s340
    %p349 = scmp.eq.s32.totalorder %s35, 0
    %p350 = por %p348, %p349
    %p351 = scmp.ne.s32.totalorder %s339, %s340
    %p352 = scmp.eq.s32.totalorder %s36, 1
    %p353 = por %p351, %p352
    %p355 = scmp.ne.s32.totalorder %s340, %s354
    %p356 = scmp.eq.s32.totalorder %s36, 0
    %p357 = por %p355, %p356
    %s359 = sadd.s32 %s358, 1
    %p362 = scmp.eq.s32.totalorder %s30, 1
    %p363 = scmp.ne.s32.totalorder %s358, %s360
    %p364 = scmp.eq.s32.totalorder %s30, 0
    %p365 = por %p363, %p364
    %p366 = scmp.ne.s32.totalorder %s358, %s360
    %p367 = scmp.eq.s32.totalorder %s35, 1
    %p368 = por %p366, %p367
    %p369 = scmp.ne.s32.totalorder %s360, %s361
    %p370 = scmp.eq.s32.totalorder %s35, 0
    %p371 = por %p369, %p370
    %p372 = scmp.ne.s32.totalorder %s360, %s361
    %p373 = scmp.eq.s32.totalorder %s36, 1
    %p374 = por %p372, %p373
    %p376 = scmp.ne.s32.totalorder %s361, %s375
    %p377 = scmp.eq.s32.totalorder %s36, 0
    %p378 = por %p376, %p377
    %s380 = sadd.s32 %s379, 1
    %p383 = scmp.eq.s32.totalorder %s30, 1
    %p384 = scmp.ne.s32.totalorder %s379, %s381
    %p385 = scmp.eq.s32.totalorder %s30, 0
    %p386 = por %p384, %p385
    %p387 = scmp.ne.s32.totalorder %s379, %s381
    %p388 = scmp.eq.s32.totalorder %s35, 1
    %p389 = por %p387, %p388
    %p390 = scmp.ne.s32.totalorder %s381, %s382
    %p391 = scmp.eq.s32.totalorder %s35, 0
    %p392 = por %p390, %p391
    %p393 = scmp.ne.s32.totalorder %s381, %s382
    %p394 = scmp.eq.s32.totalorder %s36, 1
    %p395 = por %p393, %p394
    %p397 = scmp.ne.s32.totalorder %s382, %s396
    %p398 = scmp.eq.s32.totalorder %s36, 0
    %p399 = por %p397, %p398
    %s401 = sadd.s32 %s400, 1
    %p404 = scmp.eq.s32.totalorder %s30, 1
    %p405 = scmp.ne.s32.totalorder %s400, %s402
    %p406 = scmp.eq.s32.totalorder %s30, 0
    %p407 = por %p405, %p406
    %p408 = scmp.ne.s32.totalorder %s400, %s402
    %p409 = scmp.eq.s32.totalorder %s35, 1
    %p410 = por %p408, %p409
    %p411 = scmp.ne.s32.totalorder %s402, %s403
    %p412 = scmp.eq.s32.totalorder %s35, 0
    %p413 = por %p411, %p412
    %p414 = scmp.ne.s32.totalorder %s402, %s403
    %p415 = scmp.eq.s32.totalorder %s36, 1
    %p416 = por %p414, %p415
    %p418 = scmp.ne.s32.totalorder %s403, %s417
    %p419 = scmp.eq.s32.totalorder %s36, 0
    %p420 = por %p418, %p419
    %s422 = sadd.s32 %s421, 1
    %p425 = scmp.eq.s32.totalorder %s30, 1
    %p426 = scmp.ne.s32.totalorder %s421, %s423
    %p427 = scmp.eq.s32.totalorder %s30, 0
    %p428 = por %p426, %p427
    %p429 = scmp.ne.s32.totalorder %s421, %s423
    %p430 = scmp.eq.s32.totalorder %s35, 1
    %p431 = por %p429, %p430
    %p432 = scmp.ne.s32.totalorder %s423, %s424
    %p433 = scmp.eq.s32.totalorder %s35, 0
    %p434 = por %p432, %p433
    %p435 = scmp.ne.s32.totalorder %s423, %s424
    %p436 = scmp.eq.s32.totalorder %s36, 1
    %p437 = por %p435, %p436
    %p439 = scmp.ne.s32.totalorder %s424, %s438
    %p440 = scmp.eq.s32.totalorder %s36, 0
    %p441 = por %p439, %p440
    %s443 = sadd.s32 %s442, 1
    %p446 = scmp.eq.s32.totalorder %s30, 1
    %p447 = scmp.ne.s32.totalorder %s442, %s444
    %p448 = scmp.eq.s32.totalorder %s30, 0
    %p449 = por %p447, %p448
    %p450 = scmp.ne.s32.totalorder %s442, %s444
    %p451 = scmp.eq.s32.totalorder %s35, 1
    %p452 = por %p450, %p451
    %p453 = scmp.ne.s32.totalorder %s444, %s445
    %p454 = scmp.eq.s32.totalorder %s35, 0
    %p455 = por %p453, %p454
    %p456 = scmp.ne.s32.totalorder %s444, %s445
    %p457 = scmp.eq.s32.totalorder %s36, 1
    %p458 = por %p456, %p457
    %p460 = scmp.ne.s32.totalorder %s445, %s459
    %p461 = scmp.eq.s32.totalorder %s36, 0
    %p462 = por %p460, %p461
    %s464 = sadd.s32 %s463, 1
    %p467 = scmp.eq.s32.totalorder %s30, 1
    %p468 = scmp.ne.s32.totalorder %s463, %s465
    %p469 = scmp.eq.s32.totalorder %s30, 0
    %p470 = por %p468, %p469
    %p471 = scmp.ne.s32.totalorder %s463, %s465
    %p472 = scmp.eq.s32.totalorder %s35, 1
    %p473 = por %p471, %p472
    %p474 = scmp.ne.s32.totalorder %s465, %s466
    %p475 = scmp.eq.s32.totalorder %s35, 0
    %p476 = por %p474, %p475
    %p477 = scmp.ne.s32.totalorder %s465, %s466
    %p478 = scmp.eq.s32.totalorder %s36, 1
    %p479 = por %p477, %p478
    %p481 = scmp.ne.s32.totalorder %s466, %s480
    %p482 = scmp.eq.s32.totalorder %s36, 0
    %p483 = por %p481, %p482
    %s485 = sadd.s32 %s484, 1
    %p488 = scmp.eq.s32.totalorder %s30, 1
    %p489 = scmp.ne.s32.totalorder %s484, %s486
    %p490 = scmp.eq.s32.totalorder %s30, 0
    %p491 = por %p489, %p490
    %p492 = scmp.ne.s32.totalorder %s484, %s486
    %p493 = scmp.eq.s32.totalorder %s35, 1
    %p494 = por %p492, %p493
    %p495 = scmp.ne.s32.totalorder %s486, %s487
    %p496 = scmp.eq.s32.totalorder %s35, 0
    %p497 = por %p495, %p496
    %p498 = scmp.ne.s32.totalorder %s486, %s487
    %p499 = scmp.eq.s32.totalorder %s36, 1
    %p500 = por %p498, %p499
    %p502 = scmp.ne.s32.totalorder %s487, %s501
    %p503 = scmp.eq.s32.totalorder %s36, 0
    %p504 = por %p502, %p503
    %s506 = sadd.s32 %s505, 1
    %p509 = scmp.eq.s32.totalorder %s30, 1
    %p510 = scmp.ne.s32.totalorder %s505, %s507
    %p511 = scmp.eq.s32.totalorder %s30, 0
    %p512 = por %p510, %p511
    %p513 = scmp.ne.s32.totalorder %s505, %s507
    %p514 = scmp.eq.s32.totalorder %s35, 1
    %p515 = por %p513, %p514
    %p516 = scmp.ne.s32.totalorder %s507, %s508
    %p517 = scmp.eq.s32.totalorder %s35, 0
    %p518 = por %p516, %p517
    %p519 = scmp.ne.s32.totalorder %s507, %s508
    %p520 = scmp.eq.s32.totalorder %s36, 1
    %p521 = por %p519, %p520
    %p523 = scmp.ne.s32.totalorder %s508, %s522
    %p524 = scmp.eq.s32.totalorder %s36, 0
    %p525 = por %p523, %p524
    %s527 = sadd.s32 %s526, 1
    %p530 = scmp.eq.s32.totalorder %s30, 1
    %p531 = scmp.ne.s32.totalorder %s526, %s528
    %p532 = scmp.eq.s32.totalorder %s30, 0
    %p533 = por %p531, %p532
    %p534 = scmp.ne.s32.totalorder %s526, %s528
    %p535 = scmp.eq.s32.totalorder %s35, 1
    %p536 = por %p534, %p535
    %p537 = scmp.ne.s32.totalorder %s528, %s529
    %p538 = scmp.eq.s32.totalorder %s35, 0
    %p539 = por %p537, %p538
    %p540 = scmp.ne.s32.totalorder %s528, %s529
    %p541 = scmp.eq.s32.totalorder %s36, 1
    %p542 = por %p540, %p541
    %p544 = scmp.ne.s32.totalorder %s529, %s543
    %p545 = scmp.eq.s32.totalorder %s36, 0
    %p546 = por %p544, %p545
    %s547 = ssub.s32 %s30, %s37
    %p548 = scmp.eq.s32.totalorder %s547, 0
    %s550 = sadd.s32 %s549, 1
    %s551 = scalar_select %p548, %s549, %s550
    %p554 = pneg %p548
    %p555 = scmp.eq.s32.totalorder %s30, 1
    %p556 = por %p554, %p555
    %p557 = scmp.ne.s32.totalorder %s549, %s552
    %p558 = scmp.eq.s32.totalorder %s30, 0
    %p559 = por %p557, %p558
    %p560 = scmp.ne.s32.totalorder %s549, %s552
    %p561 = scmp.eq.s32.totalorder %s35, 1
    %p562 = por %p560, %p561
    %p563 = scmp.ne.s32.totalorder %s552, %s553
    %p564 = scmp.eq.s32.totalorder %s35, 0
    %p565 = por %p563, %p564
    %p566 = scmp.ne.s32.totalorder %s552, %s553
    %p567 = scmp.eq.s32.totalorder %s36, 1
    %p568 = por %p566, %p567
    %p570 = scmp.ne.s32.totalorder %s553, %s569
    %p571 = scmp.eq.s32.totalorder %s36, 0
    %p572 = por %p570, %p571
    %p573 = scmp.le.s32.totalorder 1, %s30
    %p574 = scmp.lt.s32.totalorder %s30, 3
    %p575 = pnand %p573, %p574
    %p576 = pneg %p575
    // Predicated region
    $region9: #{vig_block_forward.1} parent=5 // pred_check
      _
    $region10: #{vig_block_forward.1} parent=5 // pred_check_branch
      %578 = sbr.rel (%p575) target = $region12
    $region11: #{vig_block_forward.1} parent=5 // pred_region
      %s579 = ssub.s32 %s30, 1
      // Predicated region
      $region13: #{vig_block_forward.1} parent=11 // pred_check
        %p580 = pneg %p77
      $region14: #{vig_block_forward.1} parent=11 // pred_check_branch
        %582 = sbr.rel (%p580) target = $region16
      $region15: #{vig_block_forward.1} parent=11 // pred_region
        _
      $region16: #{vig_block_forward.1} parent=11 // pred_fallthru
        _
      // Predicated region
      $region17: #{vig_block_forward.1} parent=11 // pred_check
        %p583 = pneg %p98
      $region18: #{vig_block_forward.1} parent=11 // pred_check_branch
        %585 = sbr.rel (%p583) target = $region20
      $region19: #{vig_block_forward.1} parent=11 // pred_region
        _
      $region20: #{vig_block_forward.1} parent=11 // pred_fallthru
        _
      // Predicated region
      $region21: #{vig_block_forward.1} parent=11 // pred_check
        %p586 = pneg %p119
      $region22: #{vig_block_forward.1} parent=11 // pred_check_branch
        %588 = sbr.rel (%p586) target = $region24
      $region23: #{vig_block_forward.1} parent=11 // pred_region
        _
      $region24: #{vig_block_forward.1} parent=11 // pred_fallthru
        _
      // Predicated region
      $region25: #{vig_block_forward.1} parent=11 // pred_check
        %p589 = pneg %p140
      $region26: #{vig_block_forward.1} parent=11 // pred_check_branch
        %591 = sbr.rel (%p589) target = $region28
      $region27: #{vig_block_forward.1} parent=11 // pred_region
        _
      $region28: #{vig_block_forward.1} parent=11 // pred_fallthru
        _
      // Predicated region
      $region29: #{vig_block_forward.1} parent=11 // pred_check
        %p592 = pneg %p161
      $region30: #{vig_block_forward.1} parent=11 // pred_check_branch
        %594 = sbr.rel (%p592) target = $region32
      $region31: #{vig_block_forward.1} parent=11 // pred_region
        _
      $region32: #{vig_block_forward.1} parent=11 // pred_fallthru
        _
      // Predicated region
      $region33: #{vig_block_forward.1} parent=11 // pred_check
        %p595 = pneg %p182
      $region34: #{vig_block_forward.1} parent=11 // pred_check_branch
        %597 = sbr.rel (%p595) target = $region36
      $region35: #{vig_block_forward.1} parent=11 // pred_region
        _
      $region36: #{vig_block_forward.1} parent=11 // pred_fallthru
        _
      // Predicated region
      $region37: #{vig_block_forward.1} parent=11 // pred_check
        %p598 = pneg %p203
      $region38: #{vig_block_forward.1} parent=11 // pred_check_branch
        %600 = sbr.rel (%p598) target = $region40
      $region39: #{vig_block_forward.1} parent=11 // pred_region
        _
      $region40: #{vig_block_forward.1} parent=11 // pred_fallthru
        _
      // Predicated region
      $region41: #{vig_block_forward.1} parent=11 // pred_check
        %p601 = pneg %p224
      $region42: #{vig_block_forward.1} parent=11 // pred_check_branch
        %603 = sbr.rel (%p601) target = $region44
      $region43: #{vig_block_forward.1} parent=11 // pred_region
        _
      $region44: #{vig_block_forward.1} parent=11 // pred_fallthru
        _
      // Predicated region
      $region45: #{vig_block_forward.1} parent=11 // pred_check
        %p604 = pneg %p245
      $region46: #{vig_block_forward.1} parent=11 // pred_check_branch
        %606 = sbr.rel (%p604) target = $region48
      $region47: #{vig_block_forward.1} parent=11 // pred_region
        _
      $region48: #{vig_block_forward.1} parent=11 // pred_fallthru
        _
      // Predicated region
      $region49: #{vig_block_forward.1} parent=11 // pred_check
        %p607 = pneg %p266
      $region50: #{vig_block_forward.1} parent=11 // pred_check_branch
        %609 = sbr.rel (%p607) target = $region52
      $region51: #{vig_block_forward.1} parent=11 // pred_region
        _
      $region52: #{vig_block_forward.1} parent=11 // pred_fallthru
        _
      // Predicated region
      $region53: #{vig_block_forward.1} parent=11 // pred_check
        %p610 = pneg %p287
      $region54: #{vig_block_forward.1} parent=11 // pred_check_branch
        %612 = sbr.rel (%p610) target = $region56
      $region55: #{vig_block_forward.1} parent=11 // pred_region
        _
      $region56: #{vig_block_forward.1} parent=11 // pred_fallthru
        _
      // Predicated region
      $region57: #{vig_block_forward.1} parent=11 // pred_check
        %p613 = pneg %p308
      $region58: #{vig_block_forward.1} parent=11 // pred_check_branch
        %615 = sbr.rel (%p613) target = $region60
      $region59: #{vig_block_forward.1} parent=11 // pred_region
        _
      $region60: #{vig_block_forward.1} parent=11 // pred_fallthru
        _
      // Predicated region
      $region61: #{vig_block_forward.1} parent=11 // pred_check
        %p616 = pneg %p329
      $region62: #{vig_block_forward.1} parent=11 // pred_check_branch
        %618 = sbr.rel (%p616) target = $region64
      $region63: #{vig_block_forward.1} parent=11 // pred_region
        _
      $region64: #{vig_block_forward.1} parent=11 // pred_fallthru
        _
      // Predicated region
      $region65: #{vig_block_forward.1} parent=11 // pred_check
        %p619 = pneg %p350
      $region66: #{vig_block_forward.1} parent=11 // pred_check_branch
        %621 = sbr.rel (%p619) target = $region68
      $region67: #{vig_block_forward.1} parent=11 // pred_region
        _
      $region68: #{vig_block_forward.1} parent=11 // pred_fallthru
        _
      // Predicated region
      $region69: #{vig_block_forward.1} parent=11 // pred_check
        %p622 = pneg %p371
      $region70: #{vig_block_forward.1} parent=11 // pred_check_branch
        %624 = sbr.rel (%p622) target = $region72
      $region71: #{vig_block_forward.1} parent=11 // pred_region
        _
      $region72: #{vig_block_forward.1} parent=11 // pred_fallthru
        _
      // Predicated region
      $region73: #{vig_block_forward.1} parent=11 // pred_check
        %p625 = pneg %p392
      $region74: #{vig_block_forward.1} parent=11 // pred_check_branch
        %627 = sbr.rel (%p625) target = $region76
      $region75: #{vig_block_forward.1} parent=11 // pred_region
        _
      $region76: #{vig_block_forward.1} parent=11 // pred_fallthru
        _
      // Predicated region
      $region77: #{vig_block_forward.1} parent=11 // pred_check
        %p628 = pneg %p413
      $region78: #{vig_block_forward.1} parent=11 // pred_check_branch
        %630 = sbr.rel (%p628) target = $region80
      $region79: #{vig_block_forward.1} parent=11 // pred_region
        _
      $region80: #{vig_block_forward.1} parent=11 // pred_fallthru
        _
      // Predicated region
      $region81: #{vig_block_forward.1} parent=11 // pred_check
        %p631 = pneg %p434
      $region82: #{vig_block_forward.1} parent=11 // pred_check_branch
        %633 = sbr.rel (%p631) target = $region84
      $region83: #{vig_block_forward.1} parent=11 // pred_region
        _
      $region84: #{vig_block_forward.1} parent=11 // pred_fallthru
        _
      // Predicated region
      $region85: #{vig_block_forward.1} parent=11 // pred_check
        %p634 = pneg %p455
      $region86: #{vig_block_forward.1} parent=11 // pred_check_branch
        %636 = sbr.rel (%p634) target = $region88
      $region87: #{vig_block_forward.1} parent=11 // pred_region
        _
      $region88: #{vig_block_forward.1} parent=11 // pred_fallthru
        _
      // Predicated region
      $region89: #{vig_block_forward.1} parent=11 // pred_check
        %p637 = pneg %p476
      $region90: #{vig_block_forward.1} parent=11 // pred_check_branch
        %639 = sbr.rel (%p637) target = $region92
      $region91: #{vig_block_forward.1} parent=11 // pred_region
        _
      $region92: #{vig_block_forward.1} parent=11 // pred_fallthru
        _
      // Predicated region
      $region93: #{vig_block_forward.1} parent=11 // pred_check
        %p640 = pneg %p497
      $region94: #{vig_block_forward.1} parent=11 // pred_check_branch
        %642 = sbr.rel (%p640) target = $region96
      $region95: #{vig_block_forward.1} parent=11 // pred_region
        _
      $region96: #{vig_block_forward.1} parent=11 // pred_fallthru
        _
      // Predicated region
      $region97: #{vig_block_forward.1} parent=11 // pred_check
        %p643 = pneg %p518
      $region98: #{vig_block_forward.1} parent=11 // pred_check_branch
        %645 = sbr.rel (%p643) target = $region100
      $region99: #{vig_block_forward.1} parent=11 // pred_region
        _
      $region100: #{vig_block_forward.1} parent=11 // pred_fallthru
        _
      // Predicated region
      $region101: #{vig_block_forward.1} parent=11 // pred_check
        %p646 = pneg %p539
      $region102: #{vig_block_forward.1} parent=11 // pred_check_branch
        %648 = sbr.rel (%p646) target = $region104
      $region103: #{vig_block_forward.1} parent=11 // pred_region
        _
      $region104: #{vig_block_forward.1} parent=11 // pred_fallthru
        _
    $region12: #{vig_block_forward.1} parent=5 // pred_fallthru
      _
    %p649 = scmp.lt.s32.totalorder %s30, 2
    // Predicated region
    $region105: #{vig_block_forward.1} parent=5 // pred_check
      %p650 = pneg %p649
    $region106: #{vig_block_forward.1} parent=5 // pred_check_branch
      %652 = sbr.rel (%p650) target = $region108
    $region107: #{vig_block_forward.1} parent=5 // pred_region
      // Predicated region
      $region109: #{vig_block_forward.1} parent=107 // pred_check
        %p653 = pneg %p50
      $region110: #{vig_block_forward.1} parent=107 // pred_check_branch
        %655 = sbr.rel (%p653) target = $region112
      $region111: #{vig_block_forward.1} parent=107 // pred_region
        %p656 = scmp.lt.s32.totalorder %s30, 1
        %s657 = scalar_select %p656, %s30, 1
        %s658 = smul.addr %s657, 8
        %s659 = smul.addr %s658, 8
        %s660 = scalar_lea.vmem %s0, %s659
      $region112: #{vig_block_forward.1} parent=107 // pred_fallthru
        _
    $region108: #{vig_block_forward.1} parent=5 // pred_fallthru
      _
    %p661 = scmp.le.s32.totalorder 1, %s30
    %p662 = scmp.lt.s32.totalorder %s30, 3
    %p663 = pnand %p661, %p662
    %p664 = pneg %p663
    // Predicated region
    $region113: #{vig_block_forward.1} parent=5 // pred_check
      _
    $region114: #{vig_block_forward.1} parent=5 // pred_check_branch
      %666 = sbr.rel (%p663) target = $region116
    $region115: #{vig_block_forward.1} parent=5 // pred_region
      %s667 = ssub.s32 %s30, 1
      %p668 = scmp.lt.s32.totalorder %s35, 1
      %s669 = scalar_select %p668, %s35, 1
      %s670 = smul.addr %s669, 8
      %s671 = smul.addr %s670, 8
      %s672 = scalar_lea.vmem %s0, %s671
      %p673 = pneg %p56
      %p674 = pneg %p53
      %p675 = pneg %p77
      %p676 = pneg %p74
      %p677 = pneg %p98
      %p678 = pneg %p95
      %p679 = pneg %p119
      %p680 = pneg %p116
      %p681 = pneg %p140
      %p682 = pneg %p137
      %p683 = pneg %p161
      %p684 = pneg %p158
      %p685 = pneg %p182
      %p686 = pneg %p179
      %p687 = pneg %p203
      %p688 = pneg %p200
      %p689 = pneg %p224
      %p690 = pneg %p221
      %p691 = pneg %p245
      %p692 = pneg %p242
      %p693 = pneg %p266
      %p694 = pneg %p263
      %p695 = pneg %p287
      %p696 = pneg %p284
      %p697 = pneg %p308
      %p698 = pneg %p305
      %p699 = pneg %p329
      %p700 = pneg %p326
      %p701 = pneg %p350
      %p702 = pneg %p347
      %p703 = pneg %p371
      %p704 = pneg %p368
      %p705 = pneg %p392
      %p706 = pneg %p389
      %p707 = pneg %p413
      %p708 = pneg %p410
      %p709 = pneg %p434
      %p710 = pneg %p431
      %p711 = pneg %p455
      %p712 = pneg %p452
      %p713 = pneg %p476
      %p714 = pneg %p473
      %p715 = pneg %p497
      %p716 = pneg %p494
      %p717 = pneg %p518
      %p718 = pneg %p515
      %p719 = pneg %p539
      %p720 = pneg %p536
      %p721 = pneg %p565
      %p722 = pneg %p562
      %p723 = scmp.lt.s32.totalorder %s35, 1
      %s724 = scalar_select %p723, %s35, 1
      %s725 = smul.addr %s724, 8
      %s726 = smul.addr %s725, 8
      %s727 = scalar_lea.vmem %s24, %s726
      %p728 = scmp.lt.s32.totalorder %s35, 1
      %s729 = scalar_select %p728, %s35, 1
      %s730 = smul.addr %s729, 8
      %s731 = smul.addr %s730, 8
      %s732 = scalar_lea.vmem %s0, %s731
      %p733 = scmp.lt.s32.totalorder %s35, 1
      %s734 = scalar_select %p733, %s35, 1
      %s735 = smul.addr %s734, 8
      %s736 = smul.addr %s735, 8
      %s737 = scalar_lea.vmem %s24, %s736
      %v738 = vld [vmem:[%s2] sm:$0xf]
      %v739 = vld [vmem:[%s3] sm:$0x1]
      %v740 = vld [vmem:[%s4] sm:$0xf]
      %v741 = vld [vmem:[%s5] sm:$0xf]
      %v742 = vld [vmem:[%s6] sm:$0x1]
      %v743 = vld [vmem:[%s7] sm:$0xff]
      %v744 = vld [vmem:[%s8] sm:$0x1]
      %v745 = vld [vmem:[%s9] sm:$0xf]
      %v746 = vld [vmem:[%s10] sm:$0x1]
      %v747 = vld [vmem:[%s11] sm:$0xff]
      %v748 = vld [vmem:[%s11 + $0x8] sm:$0xff]
      %v749 = vld [vmem:[%s12] sm:$0x1]
      %v750 = vld [vmem:[%s13] sm:$0xf]
      %v751 = vld [vmem:[%s14] sm:$0x1]
      %v752 = vld [vmem:[%s15] sm:$0xf]
      %v753 = vld [vmem:[%s16] sm:$0xf]
      %v754 = vld [vmem:[%s17] sm:$0x1]
      %v755 = vld [vmem:[%s18] sm:$0xff]
      %v756 = vld [vmem:[%s19] sm:$0x1]
      %v757 = vld [vmem:[%s20] sm:$0xf]
      %v758 = vld [vmem:[%s21] sm:$0x1]
      %v759 = vld [vmem:[%s22] sm:$0xff]
      %v760 = vld [vmem:[%s22 + $0x8] sm:$0xff]
      %v761 = vld [vmem:[%s23] sm:$0x1]
      %v762 = vld [vmem:[%s732] sm:$0xff]
      %v763 = vld [vmem:[%s732 + $0x8] sm:$0xff]
      %v764 = vld [vmem:[%s732 + $0x10] sm:$0xff]
      %v765 = vld [vmem:[%s732 + $0x18] sm:$0xff]
      %v766 = vld [vmem:[%s732 + $0x20] sm:$0xff]
      %v767 = vld [vmem:[%s732 + $0x28] sm:$0xff]
      %v768 = vld [vmem:[%s732 + $0x30] sm:$0xff]
      %v769 = vld [vmem:[%s732 + $0x38] sm:$0xff]
      %v770 = vld [vmem:[%s1] sm:$0xff]
      %v771 = vld [vmem:[%s1 + $0x8] sm:$0xff]
      %v772 = vld [vmem:[%s1 + $0x10] sm:$0xff]
      %v773 = vld [vmem:[%s1 + $0x18] sm:$0xff]
      %v774 = vld [vmem:[%s1 + $0x20] sm:$0xff]
      %v775 = vld [vmem:[%s1 + $0x28] sm:$0xff]
      %v776 = vld [vmem:[%s1 + $0x30] sm:$0xff]
      %v777 = vld [vmem:[%s1 + $0x38] sm:$0xff]
      %v779 = vperm.slane %v739, 0
      %vm781 = vcmask 31744
      %v783 = vsel %vm781, %v762, 0
      %v786 = vsel %vm781, %v763, 0
      %v789 = vsel %vm781, %v764, 0
      %v792 = vsel %vm781, %v765, 0
      %v795 = vsel %vm781, %v766, 0
      %v798 = vsel %vm781, %v767, 0
      %v801 = vsel %vm781, %v768, 0
      %v804 = vsel %vm781, %v769, 0
      %vm806 = vcmask 1043456
      %v808 = vsel %vm806, %v738, 0
      %810 = vmatpush.msra.mxu0 0.0
      %811 = vmatpush.msra.mxu0 0.0
      %812 = vmatpush.msra.mxu0 0.0
      %813 = vmatpush.msra.mxu0 0.0
      %814 = vmatpush.msra.mxu0 0.0
      %815 = vmatpush.msra.mxu0 0.0
      %816 = vmatpush.msra.mxu0 0.0
      %817 = vmatpush.msra.mxu0 0.0
      %818 = vmatpush.msra.mxu0 0.0
      %819 = vmatpush.msra.mxu0 0.0
      %820 = vmatpush.msra.mxu0 0.0
      %821 = vmatpush.msra.mxu0 0.0
      %822 = vmatpush.msra.mxu0 0.0
      %823 = vmatpush.msra.mxu0 0.0
      %824 = vmatpush.msra.mxu0 0.0
      %825 = vmatpush.msra.mxu0 %v808
      %826 = vmatmul.f32.gmra.mxu0 %v783
      %v827 = vpop.f32.mrf.mxu0
      %v828 = vadd.f32 %v779, %v827
      %829 = vmatmul.f32.gmra.mxu0 %v786
      %v830 = vpop.f32.mrf.mxu0
      %v831 = vadd.f32 %v779, %v830
      %832 = vmatmul.f32.gmra.mxu0 %v789
      %v833 = vpop.f32.mrf.mxu0
      %v834 = vadd.f32 %v779, %v833
      %835 = vmatmul.f32.gmra.mxu0 %v792
      %v836 = vpop.f32.mrf.mxu0
      %v837 = vadd.f32 %v779, %v836
      %838 = vmatmul.f32.gmra.mxu0 %v795
      %v839 = vpop.f32.mrf.mxu0
      %v840 = vadd.f32 %v779, %v839
      %841 = vmatmul.f32.gmra.mxu0 %v798
      %v842 = vpop.f32.mrf.mxu0
      %v843 = vadd.f32 %v779, %v842
      %844 = vmatmul.f32.gmra.mxu0 %v801
      %v845 = vpop.f32.mrf.mxu0
      %v846 = vadd.f32 %v779, %v845
      %847 = vmatmul.f32.gmra.mxu0 %v804
      %v848 = vpop.f32.mrf.mxu0
      %v849 = vadd.f32 %v779, %v848
      %850 = vdwg.mxu0
      %v851 = vsel %vm781, %v828, 0.0
      %v852 = vsel %vm781, %v831, 0.0
      %v853 = vadd.f32 %v851, %v852
      %v854 = vsel %vm781, %v834, 0.0
      %v855 = vadd.f32 %v853, %v854
      %v856 = vsel %vm781, %v837, 0.0
      %v857 = vadd.f32 %v855, %v856
      %v858 = vsel %vm781, %v840, 0.0
      %v859 = vadd.f32 %v857, %v858
      %v860 = vsel %vm781, %v843, 0.0
      %v861 = vadd.f32 %v859, %v860
      %v862 = vsel %vm781, %v846, 0.0
      %v863 = vadd.f32 %v861, %v862
      %v864 = vsel %vm781, %v849, 0.0
      %v865 = vadd.f32 %v863, %v864
      %v866 = vrot.slane %v865, 4
      %v867 = vadd.f32 %v865, %v866
      %v868 = vrot.slane %v867, 2
      %v869 = vadd.f32 %v867, %v868
      %v870 = vrot.slane %v869, 1
      %v871 = vadd.f32 %v869, %v870
      %v872 = vrcp.pop 64.0
      %v873 = vmul.f32 64.0, %v872
      %v874 = vsub.f32 1.0, %v873
      %v875 = vmul.f32 %v872, %v874
      %v876 = vadd.f32 %v872, %v875
      %vm877 = vweird.f32 %v872
      %v878 = vsel %vm877, %v872, %v876
      %v879 = vmul.f32 %v871, %v878
      %v880 = vmul.f32 %v828, %v828
      %v881 = vmul.f32 %v831, %v831
      %v882 = vmul.f32 %v834, %v834
      %v883 = vmul.f32 %v837, %v837
      %v884 = vmul.f32 %v840, %v840
      %v885 = vmul.f32 %v843, %v843
      %v886 = vmul.f32 %v846, %v846
      %v887 = vmul.f32 %v849, %v849
      %v888 = vsel %vm781, %v880, 0.0
      %v889 = vsel %vm781, %v881, 0.0
      %v890 = vadd.f32 %v888, %v889
      %v891 = vsel %vm781, %v882, 0.0
      %v892 = vadd.f32 %v890, %v891
      %v893 = vsel %vm781, %v883, 0.0
      %v894 = vadd.f32 %v892, %v893
      %v895 = vsel %vm781, %v884, 0.0
      %v896 = vadd.f32 %v894, %v895
      %v897 = vsel %vm781, %v885, 0.0
      %v898 = vadd.f32 %v896, %v897
      %v899 = vsel %vm781, %v886, 0.0
      %v900 = vadd.f32 %v898, %v899
      %v901 = vsel %vm781, %v887, 0.0
      %v902 = vadd.f32 %v900, %v901
      %v903 = vrot.slane %v902, 4
      %v904 = vadd.f32 %v902, %v903
      %v905 = vrot.slane %v904, 2
      %v906 = vadd.f32 %v904, %v905
      %v907 = vrot.slane %v906, 1
      %v908 = vadd.f32 %v906, %v907
      %v909 = vmul.f32 %v908, %v878
      %v910 = vmul.f32 %v879, %v879
      %v911 = vsub.f32 %v909, %v910
      %v912 = vmax.f32 %v911, 0.0
      %v913 = vsub.f32 %v828, %v879
      %v914 = vsub.f32 %v831, %v879
      %v915 = vsub.f32 %v834, %v879
      %v916 = vsub.f32 %v837, %v879
      %v917 = vsub.f32 %v840, %v879
      %v918 = vsub.f32 %v843, %v879
      %v919 = vsub.f32 %v846, %v879
      %v920 = vsub.f32 %v849, %v879
      %v921 = vadd.f32 %v912, 1e-05
      %v922 = vrsqrt.pop %v921
      %v923 = vmul.f32 %v922, %v921
      %v924 = vmul.f32 %v923, %v922
      %v925 = vmul.f32 0.5, %v924
      %v926 = vsub.f32 1.5, %v925
      %v927 = vmul.f32 %v922, %v926
      %vm928 = vweird.f32 %v921
      %vm929 = vweird.f32 %v922
      %vm930 = vmor %vm928, %vm929
      %v931 = vsel %vm930, %v922, %v927
      %v932 = vmul.f32 %v913, %v931
      %v933 = vmul.f32 %v914, %v931
      %v934 = vmul.f32 %v915, %v931
      %v935 = vmul.f32 %v916, %v931
      %v936 = vmul.f32 %v917, %v931
      %v937 = vmul.f32 %v918, %v931
      %v938 = vmul.f32 %v919, %v931
      %v939 = vmul.f32 %v920, %v931
      %v940 = vmul.f32 %v932, %v932
      %v941 = vmul.f32 %v933, %v933
      %v942 = vmul.f32 %v934, %v934
      %v943 = vmul.f32 %v935, %v935
      %v944 = vmul.f32 %v936, %v936
      %v945 = vmul.f32 %v937, %v937
      %v946 = vmul.f32 %v938, %v938
      %v947 = vmul.f32 %v939, %v939
      %v948 = vsel %vm781, %v940, 0.0
      %949 = vadd.xlane.f32.xlu0 %v948
      %v950 = vpop.xlane.xlu0 %949
      %v951 = vsel %vm781, %v941, 0.0
      %952 = vadd.xlane.f32.xlu0 %v951
      %v953 = vpop.xlane.xlu0 %952
      %v954 = vsel %vm781, %v942, 0.0
      %955 = vadd.xlane.f32.xlu0 %v954
      %v956 = vpop.xlane.xlu0 %955
      %v957 = vsel %vm781, %v943, 0.0
      %958 = vadd.xlane.f32.xlu0 %v957
      %v959 = vpop.xlane.xlu0 %958
      %v960 = vsel %vm781, %v944, 0.0
      %961 = vadd.xlane.f32.xlu0 %v960
      %v962 = vpop.xlane.xlu0 %961
      %v963 = vsel %vm781, %v945, 0.0
      %964 = vadd.xlane.f32.xlu0 %v963
      %v965 = vpop.xlane.xlu0 %964
      %v966 = vsel %vm781, %v946, 0.0
      %967 = vadd.xlane.f32.xlu0 %v966
      %v968 = vpop.xlane.xlu0 %967
      %v969 = vsel %vm781, %v947, 0.0
      %970 = vadd.xlane.f32.xlu0 %v969
      %v971 = vpop.xlane.xlu0 %970
      %v972 = vmax.f32 %v950, 1e-24
      %v973 = vmax.f32 %v953, 1e-24
      %v974 = vmax.f32 %v956, 1e-24
      %v975 = vmax.f32 %v959, 1e-24
      %v976 = vmax.f32 %v962, 1e-24
      %v977 = vmax.f32 %v965, 1e-24
      %v978 = vmax.f32 %v968, 1e-24
      %v979 = vmax.f32 %v971, 1e-24
      %v980 = vrsqrt.pop %v972
      %v981 = vmul.f32 %v980, %v972
      %v982 = vmul.f32 %v981, %v980
      %v983 = vmul.f32 0.5, %v982
      %v984 = vsub.f32 1.5, %v983
      %v985 = vmul.f32 %v980, %v984
      %vm986 = vweird.f32 %v972
      %vm987 = vweird.f32 %v980
      %vm988 = vmor %vm986, %vm987
      %v989 = vsel %vm988, %v980, %v985
      %v990 = vrsqrt.pop %v973
      %v991 = vmul.f32 %v990, %v973
      %v992 = vmul.f32 %v991, %v990
      %v993 = vmul.f32 0.5, %v992
      %v994 = vsub.f32 1.5, %v993
      %v995 = vmul.f32 %v990, %v994
      %vm996 = vweird.f32 %v973
      %vm997 = vweird.f32 %v990
      %vm998 = vmor %vm996, %vm997
      %v999 = vsel %vm998, %v990, %v995
      %v1000 = vrsqrt.pop %v974
      %v1001 = vmul.f32 %v1000, %v974
      %v1002 = vmul.f32 %v1001, %v1000
      %v1003 = vmul.f32 0.5, %v1002
      %v1004 = vsub.f32 1.5, %v1003
      %v1005 = vmul.f32 %v1000, %v1004
      %vm1006 = vweird.f32 %v974
      %vm1007 = vweird.f32 %v1000
      %vm1008 = vmor %vm1006, %vm1007
      %v1009 = vsel %vm1008, %v1000, %v1005
      %v1010 = vrsqrt.pop %v975
      %v1011 = vmul.f32 %v1010, %v975
      %v1012 = vmul.f32 %v1011, %v1010
      %v1013 = vmul.f32 0.5, %v1012
      %v1014 = vsub.f32 1.5, %v1013
      %v1015 = vmul.f32 %v1010, %v1014
      %vm1016 = vweird.f32 %v975
      %vm1017 = vweird.f32 %v1010
      %vm1018 = vmor %vm1016, %vm1017
      %v1019 = vsel %vm1018, %v1010, %v1015
      %v1020 = vrsqrt.pop %v976
      %v1021 = vmul.f32 %v1020, %v976
      %v1022 = vmul.f32 %v1021, %v1020
      %v1023 = vmul.f32 0.5, %v1022
      %v1024 = vsub.f32 1.5, %v1023
      %v1025 = vmul.f32 %v1020, %v1024
      %vm1026 = vweird.f32 %v976
      %vm1027 = vweird.f32 %v1020
      %vm1028 = vmor %vm1026, %vm1027
      %v1029 = vsel %vm1028, %v1020, %v1025
      %v1030 = vrsqrt.pop %v977
      %v1031 = vmul.f32 %v1030, %v977
      %v1032 = vmul.f32 %v1031, %v1030
      %v1033 = vmul.f32 0.5, %v1032
      %v1034 = vsub.f32 1.5, %v1033
      %v1035 = vmul.f32 %v1030, %v1034
      %vm1036 = vweird.f32 %v977
      %vm1037 = vweird.f32 %v1030
      %vm1038 = vmor %vm1036, %vm1037
      %v1039 = vsel %vm1038, %v1030, %v1035
      %v1040 = vrsqrt.pop %v978
      %v1041 = vmul.f32 %v1040, %v978
      %v1042 = vmul.f32 %v1041, %v1040
      %v1043 = vmul.f32 0.5, %v1042
      %v1044 = vsub.f32 1.5, %v1043
      %v1045 = vmul.f32 %v1040, %v1044
      %vm1046 = vweird.f32 %v978
      %vm1047 = vweird.f32 %v1040
      %vm1048 = vmor %vm1046, %vm1047
      %v1049 = vsel %vm1048, %v1040, %v1045
      %v1050 = vrsqrt.pop %v979
      %v1051 = vmul.f32 %v1050, %v979
      %v1052 = vmul.f32 %v1051, %v1050
      %v1053 = vmul.f32 0.5, %v1052
      %v1054 = vsub.f32 1.5, %v1053
      %v1055 = vmul.f32 %v1050, %v1054
      %vm1056 = vweird.f32 %v979
      %vm1057 = vweird.f32 %v1050
      %vm1058 = vmor %vm1056, %vm1057
      %v1059 = vsel %vm1058, %v1050, %v1055
      %v1060 = vmul.f32 %v932, %v989
      %v1061 = vmul.f32 %v933, %v999
      %v1062 = vmul.f32 %v934, %v1009
      %v1063 = vmul.f32 %v935, %v1019
      %v1064 = vmul.f32 %v936, %v1029
      %v1065 = vmul.f32 %v937, %v1039
      %v1066 = vmul.f32 %v938, %v1049
      %v1067 = vmul.f32 %v939, %v1059
      %v1069 = vsel %vm781, %v1060, 0
      %v1072 = vsel %vm781, %v1061, 0
      %v1075 = vsel %vm781, %v1062, 0
      %v1078 = vsel %vm781, %v1063, 0
      %v1081 = vsel %vm781, %v1064, 0
      %v1084 = vsel %vm781, %v1065, 0
      %v1087 = vsel %vm781, %v1066, 0
      %v1090 = vsel %vm781, %v1067, 0
      %1092 = vmatpush.xpose.msra.mxu0 0.0
      %1093 = vmatpush.xpose.msra.mxu0 0.0
      %1094 = vmatpush.xpose.msra.mxu0 0.0
      %1095 = vmatpush.xpose.msra.mxu0 0.0
      %1096 = vmatpush.xpose.msra.mxu0 0.0
      %1097 = vmatpush.xpose.msra.mxu0 0.0
      %1098 = vmatpush.xpose.msra.mxu0 0.0
      %1099 = vmatpush.xpose.msra.mxu0 0.0
      %1100 = vmatpush.xpose.msra.mxu0 %v1090
      %1101 = vmatpush.xpose.msra.mxu0 %v1087
      %1102 = vmatpush.xpose.msra.mxu0 %v1084
      %1103 = vmatpush.xpose.msra.mxu0 %v1081
      %1104 = vmatpush.xpose.msra.mxu0 %v1078
      %1105 = vmatpush.xpose.msra.mxu0 %v1075
      %1106 = vmatpush.xpose.msra.mxu0 %v1072
      %1107 = vmatpush.xpose.msra.mxu0 %v1069
      %1108 = vmatmul.f32.gmra.mxu0 %v1069
      %v1109 = vpop.f32.mrf.mxu0
      %v1110 = vadd.f32 0.0, %v1109
      %1111 = vmatmul.f32.gmra.mxu0 %v1072
      %v1112 = vpop.f32.mrf.mxu0
      %v1113 = vadd.f32 0.0, %v1112
      %1114 = vmatmul.f32.gmra.mxu0 %v1075
      %v1115 = vpop.f32.mrf.mxu0
      %v1116 = vadd.f32 0.0, %v1115
      %1117 = vmatmul.f32.gmra.mxu0 %v1078
      %v1118 = vpop.f32.mrf.mxu0
      %v1119 = vadd.f32 0.0, %v1118
      %1120 = vmatmul.f32.gmra.mxu0 %v1081
      %v1121 = vpop.f32.mrf.mxu0
      %v1122 = vadd.f32 0.0, %v1121
      %1123 = vmatmul.f32.gmra.mxu0 %v1084
      %v1124 = vpop.f32.mrf.mxu0
      %v1125 = vadd.f32 0.0, %v1124
      %1126 = vmatmul.f32.gmra.mxu0 %v1087
      %v1127 = vpop.f32.mrf.mxu0
      %v1128 = vadd.f32 0.0, %v1127
      %1129 = vmatmul.f32.gmra.mxu0 %v1090
      %v1130 = vpop.f32.mrf.mxu0
      %v1131 = vadd.f32 0.0, %v1130
      %1132 = vdwg.mxu0
      %v1133 = vmul.f32 %v1110, -2.0
      %v1134 = vmul.f32 %v1113, -2.0
      %v1135 = vmul.f32 %v1116, -2.0
      %v1136 = vmul.f32 %v1119, -2.0
      %v1137 = vmul.f32 %v1122, -2.0
      %v1138 = vmul.f32 %v1125, -2.0
      %v1139 = vmul.f32 %v1128, -2.0
      %v1140 = vmul.f32 %v1131, -2.0
      %v1141 = vadd.f32 %v1133, %v770
      %v1142 = vadd.f32 %v1134, %v771
      %v1143 = vadd.f32 %v1135, %v772
      %v1144 = vadd.f32 %v1136, %v773
      %v1145 = vadd.f32 %v1137, %v774
      %v1146 = vadd.f32 %v1138, %v775
      %v1147 = vadd.f32 %v1139, %v776
      %v1148 = vadd.f32 %v1140, %v777
      %v1149 = vlaneseq
      %v1150 = vand.u32 %v1149, 127
      %v1151 = vcvt.s32.f32 %v1150
      %vm1152 = vcmask 523264
      %v1153 = vsel %vm1152, %v1141, inf
      %1154 = vmin.xlane.f32.xlu0 %v1153
      %v1155 = vpop.xlane.xlu0 %1154
      %v1156 = vsel %vm1152, %v1142, inf
      %1157 = vmin.xlane.f32.xlu0 %v1156
      %v1158 = vpop.xlane.xlu0 %1157
      %v1159 = vsel %vm1152, %v1143, inf
      %1160 = vmin.xlane.f32.xlu0 %v1159
      %v1161 = vpop.xlane.xlu0 %1160
      %v1162 = vsel %vm1152, %v1144, inf
      %1163 = vmin.xlane.f32.xlu0 %v1162
      %v1164 = vpop.xlane.xlu0 %1163
      %v1165 = vsel %vm1152, %v1145, inf
      %1166 = vmin.xlane.f32.xlu0 %v1165
      %v1167 = vpop.xlane.xlu0 %1166
      %v1168 = vsel %vm1152, %v1146, inf
      %1169 = vmin.xlane.f32.xlu0 %v1168
      %v1170 = vpop.xlane.xlu0 %1169
      %v1171 = vsel %vm1152, %v1147, inf
      %1172 = vmin.xlane.f32.xlu0 %v1171
      %v1173 = vpop.xlane.xlu0 %1172
      %v1174 = vsel %vm1152, %v1148, inf
      %1175 = vmin.xlane.f32.xlu0 %v1174
      %v1176 = vpop.xlane.xlu0 %1175
      %vm1177 = vcmp.le.f32.partialorder %v1141, %v1155
      %vm1178 = vcmp.le.f32.partialorder %v1142, %v1158
      %vm1179 = vcmp.le.f32.partialorder %v1143, %v1161
      %vm1180 = vcmp.le.f32.partialorder %v1144, %v1164
      %vm1181 = vcmp.le.f32.partialorder %v1145, %v1167
      %vm1182 = vcmp.le.f32.partialorder %v1146, %v1170
      %vm1183 = vcmp.le.f32.partialorder %v1147, %v1173
      %vm1184 = vcmp.le.f32.partialorder %v1148, %v1176
      %v1185 = vsel %vm1177, %v1151, 64.0
      %v1186 = vsel %vm1178, %v1151, 64.0
      %v1187 = vsel %vm1179, %v1151, 64.0
      %v1188 = vsel %vm1180, %v1151, 64.0
      %v1189 = vsel %vm1181, %v1151, 64.0
      %v1190 = vsel %vm1182, %v1151, 64.0
      %v1191 = vsel %vm1183, %v1151, 64.0
      %v1192 = vsel %vm1184, %v1151, 64.0
      %v1193 = vsel %vm1152, %v1185, inf
      %1194 = vmin.xlane.f32.xlu0 %v1193
      %v1195 = vpop.xlane.xlu0 %1194
      %v1196 = vsel %vm1152, %v1186, inf
      %1197 = vmin.xlane.f32.xlu0 %v1196
      %v1198 = vpop.xlane.xlu0 %1197
      %v1199 = vsel %vm1152, %v1187, inf
      %1200 = vmin.xlane.f32.xlu0 %v1199
      %v1201 = vpop.xlane.xlu0 %1200
      %v1202 = vsel %vm1152, %v1188, inf
      %1203 = vmin.xlane.f32.xlu0 %v1202
      %v1204 = vpop.xlane.xlu0 %1203
      %v1205 = vsel %vm1152, %v1189, inf
      %1206 = vmin.xlane.f32.xlu0 %v1205
      %v1207 = vpop.xlane.xlu0 %1206
      %v1208 = vsel %vm1152, %v1190, inf
      %1209 = vmin.xlane.f32.xlu0 %v1208
      %v1210 = vpop.xlane.xlu0 %1209
      %v1211 = vsel %vm1152, %v1191, inf
      %1212 = vmin.xlane.f32.xlu0 %v1211
      %v1213 = vpop.xlane.xlu0 %1212
      %v1214 = vsel %vm1152, %v1192, inf
      %1215 = vmin.xlane.f32.xlu0 %v1214
      %v1216 = vpop.xlane.xlu0 %1215
      %vm1217 = vcmp.eq.f32.partialorder %v1151, %v1195
      %vm1218 = vcmp.eq.f32.partialorder %v1151, %v1198
      %vm1219 = vcmp.eq.f32.partialorder %v1151, %v1201
      %vm1220 = vcmp.eq.f32.partialorder %v1151, %v1204
      %vm1221 = vcmp.eq.f32.partialorder %v1151, %v1207
      %vm1222 = vcmp.eq.f32.partialorder %v1151, %v1210
      %vm1223 = vcmp.eq.f32.partialorder %v1151, %v1213
      %vm1224 = vcmp.eq.f32.partialorder %v1151, %v1216
      %v1225 = vsel %vm1217, 1, 0
      %v1226 = vsel %vm1218, 1, 0
      %v1227 = vsel %vm1219, 1, 0
      %v1228 = vsel %vm1220, 1, 0
      %v1229 = vsel %vm1221, 1, 0
      %v1230 = vsel %vm1222, 1, 0
      %v1231 = vsel %vm1223, 1, 0
      %v1232 = vsel %vm1224, 1, 0
      %v1233 = vcvt.s32.f32 %v1225
      %v1234 = vcvt.s32.f32 %v1226
      %v1235 = vcvt.s32.f32 %v1227
      %v1236 = vcvt.s32.f32 %v1228
      %v1237 = vcvt.s32.f32 %v1229
      %v1238 = vcvt.s32.f32 %v1230
      %v1239 = vcvt.s32.f32 %v1231
      %v1240 = vcvt.s32.f32 %v1232
      %v1242 = vsel %vm1152, %v1233, 0
      %v1245 = vsel %vm1152, %v1234, 0
      %v1248 = vsel %vm1152, %v1235, 0
      %v1251 = vsel %vm1152, %v1236, 0
      %v1254 = vsel %vm1152, %v1237, 0
      %v1257 = vsel %vm1152, %v1238, 0
      %v1260 = vsel %vm1152, %v1239, 0
      %v1263 = vsel %vm1152, %v1240, 0
      %1265 = vmatpush.msra.mxu0 0.0
      %1266 = vmatpush.msra.mxu0 0.0
      %1267 = vmatpush.msra.mxu0 0.0
      %1268 = vmatpush.msra.mxu0 0.0
      %1269 = vmatpush.msra.mxu0 0.0
      %1270 = vmatpush.msra.mxu0 0.0
      %1271 = vmatpush.msra.mxu0 0.0
      %1272 = vmatpush.msra.mxu0 0.0
      %1273 = vmatpush.msra.mxu0 %v939
      %1274 = vmatpush.msra.mxu0 %v938
      %1275 = vmatpush.msra.mxu0 %v937
      %1276 = vmatpush.msra.mxu0 %v936
      %1277 = vmatpush.msra.mxu0 %v935
      %1278 = vmatpush.msra.mxu0 %v934
      %1279 = vmatpush.msra.mxu0 %v933
      %1280 = vmatpush.msra.mxu0 %v932
      %1281 = vmatmul.f32.gmra.mxu0 %v1242
      %v1282 = vpop.f32.mrf.mxu0
      %v1283 = vadd.f32 0.0, %v1282
      %1284 = vmatmul.f32.gmra.mxu0 %v1245
      %v1285 = vpop.f32.mrf.mxu0
      %v1286 = vadd.f32 0.0, %v1285
      %1287 = vmatmul.f32.gmra.mxu0 %v1248
      %v1288 = vpop.f32.mrf.mxu0
      %v1289 = vadd.f32 0.0, %v1288
      %1290 = vmatmul.f32.gmra.mxu0 %v1251
      %v1291 = vpop.f32.mrf.mxu0
      %v1292 = vadd.f32 0.0, %v1291
      %1293 = vmatmul.f32.gmra.mxu0 %v1254
      %v1294 = vpop.f32.mrf.mxu0
      %v1295 = vadd.f32 0.0, %v1294
      %1296 = vmatmul.f32.gmra.mxu0 %v1257
      %v1297 = vpop.f32.mrf.mxu0
      %v1298 = vadd.f32 0.0, %v1297
      %1299 = vmatmul.f32.gmra.mxu0 %v1260
      %v1300 = vpop.f32.mrf.mxu0
      %v1301 = vadd.f32 0.0, %v1300
      %1302 = vmatmul.f32.gmra.mxu0 %v1263
      %v1303 = vpop.f32.mrf.mxu0
      %v1304 = vadd.f32 0.0, %v1303
      %1305 = vdwg.mxu0
      %v1306 = vsel %vm1217, 1e+30, %v1141
      %v1307 = vsel %vm1218, 1e+30, %v1142
      %v1308 = vsel %vm1219, 1e+30, %v1143
      %v1309 = vsel %vm1220, 1e+30, %v1144
      %v1310 = vsel %vm1221, 1e+30, %v1145
      %v1311 = vsel %vm1222, 1e+30, %v1146
      %v1312 = vsel %vm1223, 1e+30, %v1147
      %v1313 = vsel %vm1224, 1e+30, %v1148
      %v1314 = vsel %vm1152, %v1306, inf
      %1315 = vmin.xlane.f32.xlu0 %v1314
      %v1316 = vpop.xlane.xlu0 %1315
      %v1317 = vsel %vm1152, %v1307, inf
      %1318 = vmin.xlane.f32.xlu0 %v1317
      %v1319 = vpop.xlane.xlu0 %1318
      %v1320 = vsel %vm1152, %v1308, inf
      %1321 = vmin.xlane.f32.xlu0 %v1320
      %v1322 = vpop.xlane.xlu0 %1321
      %v1323 = vsel %vm1152, %v1309, inf
      %1324 = vmin.xlane.f32.xlu0 %v1323
      %v1325 = vpop.xlane.xlu0 %1324
      %v1326 = vsel %vm1152, %v1310, inf
      %1327 = vmin.xlane.f32.xlu0 %v1326
      %v1328 = vpop.xlane.xlu0 %1327
      %v1329 = vsel %vm1152, %v1311, inf
      %1330 = vmin.xlane.f32.xlu0 %v1329
      %v1331 = vpop.xlane.xlu0 %1330
      %v1332 = vsel %vm1152, %v1312, inf
      %1333 = vmin.xlane.f32.xlu0 %v1332
      %v1334 = vpop.xlane.xlu0 %1333
      %v1335 = vsel %vm1152, %v1313, inf
      %1336 = vmin.xlane.f32.xlu0 %v1335
      %v1337 = vpop.xlane.xlu0 %1336
      %vm1338 = vcmp.le.f32.partialorder %v1306, %v1316
      %vm1339 = vcmp.le.f32.partialorder %v1307, %v1319
      %vm1340 = vcmp.le.f32.partialorder %v1308, %v1322
      %vm1341 = vcmp.le.f32.partialorder %v1309, %v1325
      %vm1342 = vcmp.le.f32.partialorder %v1310, %v1328
      %vm1343 = vcmp.le.f32.partialorder %v1311, %v1331
      %vm1344 = vcmp.le.f32.partialorder %v1312, %v1334
      %vm1345 = vcmp.le.f32.partialorder %v1313, %v1337
      %v1346 = vsel %vm1338, %v1151, 64.0
      %v1347 = vsel %vm1339, %v1151, 64.0
      %v1348 = vsel %vm1340, %v1151, 64.0
      %v1349 = vsel %vm1341, %v1151, 64.0
      %v1350 = vsel %vm1342, %v1151, 64.0
      %v1351 = vsel %vm1343, %v1151, 64.0
      %v1352 = vsel %vm1344, %v1151, 64.0
      %v1353 = vsel %vm1345, %v1151, 64.0
      %v1354 = vsel %vm1152, %v1346, inf
      %1355 = vmin.xlane.f32.xlu0 %v1354
      %v1356 = vpop.xlane.xlu0 %1355
      %v1357 = vsel %vm1152, %v1347, inf
      %1358 = vmin.xlane.f32.xlu0 %v1357
      %v1359 = vpop.xlane.xlu0 %1358
      %v1360 = vsel %vm1152, %v1348, inf
      %1361 = vmin.xlane.f32.xlu0 %v1360
      %v1362 = vpop.xlane.xlu0 %1361
      %v1363 = vsel %vm1152, %v1349, inf
      %1364 = vmin.xlane.f32.xlu0 %v1363
      %v1365 = vpop.xlane.xlu0 %1364
      %v1366 = vsel %vm1152, %v1350, inf
      %1367 = vmin.xlane.f32.xlu0 %v1366
      %v1368 = vpop.xlane.xlu0 %1367
      %v1369 = vsel %vm1152, %v1351, inf
      %1370 = vmin.xlane.f32.xlu0 %v1369
      %v1371 = vpop.xlane.xlu0 %1370
      %v1372 = vsel %vm1152, %v1352, inf
      %1373 = vmin.xlane.f32.xlu0 %v1372
      %v1374 = vpop.xlane.xlu0 %1373
      %v1375 = vsel %vm1152, %v1353, inf
      %1376 = vmin.xlane.f32.xlu0 %v1375
      %v1377 = vpop.xlane.xlu0 %1376
      %vm1378 = vcmp.eq.f32.partialorder %v1151, %v1356
      %vm1379 = vcmp.eq.f32.partialorder %v1151, %v1359
      %vm1380 = vcmp.eq.f32.partialorder %v1151, %v1362
      %vm1381 = vcmp.eq.f32.partialorder %v1151, %v1365
      %vm1382 = vcmp.eq.f32.partialorder %v1151, %v1368
      %vm1383 = vcmp.eq.f32.partialorder %v1151, %v1371
      %vm1384 = vcmp.eq.f32.partialorder %v1151, %v1374
      %vm1385 = vcmp.eq.f32.partialorder %v1151, %v1377
      %v1386 = vsel %vm1378, 1, 0
      %v1387 = vsel %vm1379, 1, 0
      %v1388 = vsel %vm1380, 1, 0
      %v1389 = vsel %vm1381, 1, 0
      %v1390 = vsel %vm1382, 1, 0
      %v1391 = vsel %vm1383, 1, 0
      %v1392 = vsel %vm1384, 1, 0
      %v1393 = vsel %vm1385, 1, 0
      %v1394 = vcvt.s32.f32 %v1386
      %v1395 = vcvt.s32.f32 %v1387
      %v1396 = vcvt.s32.f32 %v1388
      %v1397 = vcvt.s32.f32 %v1389
      %v1398 = vcvt.s32.f32 %v1390
      %v1399 = vcvt.s32.f32 %v1391
      %v1400 = vcvt.s32.f32 %v1392
      %v1401 = vcvt.s32.f32 %v1393
      %v1403 = vsel %vm1152, %v1394, 0
      %v1406 = vsel %vm1152, %v1395, 0
      %v1409 = vsel %vm1152, %v1396, 0
      %v1412 = vsel %vm1152, %v1397, 0
      %v1415 = vsel %vm1152, %v1398, 0
      %v1418 = vsel %vm1152, %v1399, 0
      %v1421 = vsel %vm1152, %v1400, 0
      %v1424 = vsel %vm1152, %v1401, 0
      %1426 = vmatpush.msra.mxu0 0.0
      %1427 = vmatpush.msra.mxu0 0.0
      %1428 = vmatpush.msra.mxu0 0.0
      %1429 = vmatpush.msra.mxu0 0.0
      %1430 = vmatpush.msra.mxu0 0.0
      %1431 = vmatpush.msra.mxu0 0.0
      %1432 = vmatpush.msra.mxu0 0.0
      %1433 = vmatpush.msra.mxu0 0.0
      %1434 = vmatpush.msra.mxu0 %v939
      %1435 = vmatpush.msra.mxu0 %v938
      %1436 = vmatpush.msra.mxu0 %v937
      %1437 = vmatpush.msra.mxu0 %v936
      %1438 = vmatpush.msra.mxu0 %v935
      %1439 = vmatpush.msra.mxu0 %v934
      %1440 = vmatpush.msra.mxu0 %v933
      %1441 = vmatpush.msra.mxu0 %v932
      %1442 = vmatmul.f32.gmra.mxu0 %v1403
      %v1443 = vpop.f32.mrf.mxu0
      %v1444 = vadd.f32 0.0, %v1443
      %1445 = vmatmul.f32.gmra.mxu0 %v1406
      %v1446 = vpop.f32.mrf.mxu0
      %v1447 = vadd.f32 0.0, %v1446
      %1448 = vmatmul.f32.gmra.mxu0 %v1409
      %v1449 = vpop.f32.mrf.mxu0
      %v1450 = vadd.f32 0.0, %v1449
      %1451 = vmatmul.f32.gmra.mxu0 %v1412
      %v1452 = vpop.f32.mrf.mxu0
      %v1453 = vadd.f32 0.0, %v1452
      %1454 = vmatmul.f32.gmra.mxu0 %v1415
      %v1455 = vpop.f32.mrf.mxu0
      %v1456 = vadd.f32 0.0, %v1455
      %1457 = vmatmul.f32.gmra.mxu0 %v1418
      %v1458 = vpop.f32.mrf.mxu0
      %v1459 = vadd.f32 0.0, %v1458
      %1460 = vmatmul.f32.gmra.mxu0 %v1421
      %v1461 = vpop.f32.mrf.mxu0
      %v1462 = vadd.f32 0.0, %v1461
      %1463 = vmatmul.f32.gmra.mxu0 %v1424
      %v1464 = vpop.f32.mrf.mxu0
      %v1465 = vadd.f32 0.0, %v1464
      %1466 = vdwg.mxu0
      %v1467 = vmax.f32 %v1283, %v1444
      %v1468 = vmax.f32 %v1286, %v1447
      %v1469 = vmax.f32 %v1289, %v1450
      %v1470 = vmax.f32 %v1292, %v1453
      %v1471 = vmax.f32 %v1295, %v1456
      %v1472 = vmax.f32 %v1298, %v1459
      %v1473 = vmax.f32 %v1301, %v1462
      %v1474 = vmax.f32 %v1304, %v1465
      %v1475 = vsel %vm1378, 1e+30, %v1306
      %v1476 = vsel %vm1379, 1e+30, %v1307
      %v1477 = vsel %vm1380, 1e+30, %v1308
      %v1478 = vsel %vm1381, 1e+30, %v1309
      %v1479 = vsel %vm1382, 1e+30, %v1310
      %v1480 = vsel %vm1383, 1e+30, %v1311
      %v1481 = vsel %vm1384, 1e+30, %v1312
      %v1482 = vsel %vm1385, 1e+30, %v1313
      %v1483 = vsel %vm1152, %v1475, inf
      %1484 = vmin.xlane.f32.xlu0 %v1483
      %v1485 = vpop.xlane.xlu0 %1484
      %v1486 = vsel %vm1152, %v1476, inf
      %1487 = vmin.xlane.f32.xlu0 %v1486
      %v1488 = vpop.xlane.xlu0 %1487
      %v1489 = vsel %vm1152, %v1477, inf
      %1490 = vmin.xlane.f32.xlu0 %v1489
      %v1491 = vpop.xlane.xlu0 %1490
      %v1492 = vsel %vm1152, %v1478, inf
      %1493 = vmin.xlane.f32.xlu0 %v1492
      %v1494 = vpop.xlane.xlu0 %1493
      %v1495 = vsel %vm1152, %v1479, inf
      %1496 = vmin.xlane.f32.xlu0 %v1495
      %v1497 = vpop.xlane.xlu0 %1496
      %v1498 = vsel %vm1152, %v1480, inf
      %1499 = vmin.xlane.f32.xlu0 %v1498
      %v1500 = vpop.xlane.xlu0 %1499
      %v1501 = vsel %vm1152, %v1481, inf
      %1502 = vmin.xlane.f32.xlu0 %v1501
      %v1503 = vpop.xlane.xlu0 %1502
      %v1504 = vsel %vm1152, %v1482, inf
      %1505 = vmin.xlane.f32.xlu0 %v1504
      %v1506 = vpop.xlane.xlu0 %1505
      %vm1507 = vcmp.le.f32.partialorder %v1475, %v1485
      %vm1508 = vcmp.le.f32.partialorder %v1476, %v1488
      %vm1509 = vcmp.le.f32.partialorder %v1477, %v1491
      %vm1510 = vcmp.le.f32.partialorder %v1478, %v1494
      %vm1511 = vcmp.le.f32.partialorder %v1479, %v1497
      %vm1512 = vcmp.le.f32.partialorder %v1480, %v1500
      %vm1513 = vcmp.le.f32.partialorder %v1481, %v1503
      %vm1514 = vcmp.le.f32.partialorder %v1482, %v1506
      %v1515 = vsel %vm1507, %v1151, 64.0
      %v1516 = vsel %vm1508, %v1151, 64.0
      %v1517 = vsel %vm1509, %v1151, 64.0
      %v1518 = vsel %vm1510, %v1151, 64.0
      %v1519 = vsel %vm1511, %v1151, 64.0
      %v1520 = vsel %vm1512, %v1151, 64.0
      %v1521 = vsel %vm1513, %v1151, 64.0
      %v1522 = vsel %vm1514, %v1151, 64.0
      %v1523 = vsel %vm1152, %v1515, inf
      %1524 = vmin.xlane.f32.xlu0 %v1523
      %v1525 = vpop.xlane.xlu0 %1524
      %v1526 = vsel %vm1152, %v1516, inf
      %1527 = vmin.xlane.f32.xlu0 %v1526
      %v1528 = vpop.xlane.xlu0 %1527
      %v1529 = vsel %vm1152, %v1517, inf
      %1530 = vmin.xlane.f32.xlu0 %v1529
      %v1531 = vpop.xlane.xlu0 %1530
      %v1532 = vsel %vm1152, %v1518, inf
      %1533 = vmin.xlane.f32.xlu0 %v1532
      %v1534 = vpop.xlane.xlu0 %1533
      %v1535 = vsel %vm1152, %v1519, inf
      %1536 = vmin.xlane.f32.xlu0 %v1535
      %v1537 = vpop.xlane.xlu0 %1536
      %v1538 = vsel %vm1152, %v1520, inf
      %1539 = vmin.xlane.f32.xlu0 %v1538
      %v1540 = vpop.xlane.xlu0 %1539
      %v1541 = vsel %vm1152, %v1521, inf
      %1542 = vmin.xlane.f32.xlu0 %v1541
      %v1543 = vpop.xlane.xlu0 %1542
      %v1544 = vsel %vm1152, %v1522, inf
      %1545 = vmin.xlane.f32.xlu0 %v1544
      %v1546 = vpop.xlane.xlu0 %1545
      %vm1547 = vcmp.eq.f32.partialorder %v1151, %v1525
      %vm1548 = vcmp.eq.f32.partialorder %v1151, %v1528
      %vm1549 = vcmp.eq.f32.partialorder %v1151, %v1531
      %vm1550 = vcmp.eq.f32.partialorder %v1151, %v1534
      %vm1551 = vcmp.eq.f32.partialorder %v1151, %v1537
      %vm1552 = vcmp.eq.f32.partialorder %v1151, %v1540
      %vm1553 = vcmp.eq.f32.partialorder %v1151, %v1543
      %vm1554 = vcmp.eq.f32.partialorder %v1151, %v1546
      %v1555 = vsel %vm1547, 1, 0
      %v1556 = vsel %vm1548, 1, 0
      %v1557 = vsel %vm1549, 1, 0
      %v1558 = vsel %vm1550, 1, 0
      %v1559 = vsel %vm1551, 1, 0
      %v1560 = vsel %vm1552, 1, 0
      %v1561 = vsel %vm1553, 1, 0
      %v1562 = vsel %vm1554, 1, 0
      %v1563 = vcvt.s32.f32 %v1555
      %v1564 = vcvt.s32.f32 %v1556
      %v1565 = vcvt.s32.f32 %v1557
      %v1566 = vcvt.s32.f32 %v1558
      %v1567 = vcvt.s32.f32 %v1559
      %v1568 = vcvt.s32.f32 %v1560
      %v1569 = vcvt.s32.f32 %v1561
      %v1570 = vcvt.s32.f32 %v1562
      %v1572 = vsel %vm1152, %v1563, 0
      %v1575 = vsel %vm1152, %v1564, 0
      %v1578 = vsel %vm1152, %v1565, 0
      %v1581 = vsel %vm1152, %v1566, 0
      %v1584 = vsel %vm1152, %v1567, 0
      %v1587 = vsel %vm1152, %v1568, 0
      %v1590 = vsel %vm1152, %v1569, 0
      %v1593 = vsel %vm1152, %v1570, 0
      %1595 = vmatpush.msra.mxu0 0.0
      %1596 = vmatpush.msra.mxu0 0.0
      %1597 = vmatpush.msra.mxu0 0.0
      %1598 = vmatpush.msra.mxu0 0.0
      %1599 = vmatpush.msra.mxu0 0.0
      %1600 = vmatpush.msra.mxu0 0.0
      %1601 = vmatpush.msra.mxu0 0.0
      %1602 = vmatpush.msra.mxu0 0.0
      %1603 = vmatpush.msra.mxu0 %v939
      %1604 = vmatpush.msra.mxu0 %v938
      %1605 = vmatpush.msra.mxu0 %v937
      %1606 = vmatpush.msra.mxu0 %v936
      %1607 = vmatpush.msra.mxu0 %v935
      %1608 = vmatpush.msra.mxu0 %v934
      %1609 = vmatpush.msra.mxu0 %v933
      %1610 = vmatpush.msra.mxu0 %v932
      %1611 = vmatmul.f32.gmra.mxu0 %v1572
      %v1612 = vpop.f32.mrf.mxu0
      %v1613 = vadd.f32 0.0, %v1612
      %1614 = vmatmul.f32.gmra.mxu0 %v1575
      %v1615 = vpop.f32.mrf.mxu0
      %v1616 = vadd.f32 0.0, %v1615
      %1617 = vmatmul.f32.gmra.mxu0 %v1578
      %v1618 = vpop.f32.mrf.mxu0
      %v1619 = vadd.f32 0.0, %v1618
      %1620 = vmatmul.f32.gmra.mxu0 %v1581
      %v1621 = vpop.f32.mrf.mxu0
      %v1622 = vadd.f32 0.0, %v1621
      %1623 = vmatmul.f32.gmra.mxu0 %v1584
      %v1624 = vpop.f32.mrf.mxu0
      %v1625 = vadd.f32 0.0, %v1624
      %1626 = vmatmul.f32.gmra.mxu0 %v1587
      %v1627 = vpop.f32.mrf.mxu0
      %v1628 = vadd.f32 0.0, %v1627
      %1629 = vmatmul.f32.gmra.mxu0 %v1590
      %v1630 = vpop.f32.mrf.mxu0
      %v1631 = vadd.f32 0.0, %v1630
      %1632 = vmatmul.f32.gmra.mxu0 %v1593
      %v1633 = vpop.f32.mrf.mxu0
      %v1634 = vadd.f32 0.0, %v1633
      %1635 = vdwg.mxu0
      %v1636 = vmax.f32 %v1467, %v1613
      %v1637 = vmax.f32 %v1468, %v1616
      %v1638 = vmax.f32 %v1469, %v1619
      %v1639 = vmax.f32 %v1470, %v1622
      %v1640 = vmax.f32 %v1471, %v1625
      %v1641 = vmax.f32 %v1472, %v1628
      %v1642 = vmax.f32 %v1473, %v1631
      %v1643 = vmax.f32 %v1474, %v1634
      %v1644 = vsel %vm1547, 1e+30, %v1475
      %v1645 = vsel %vm1548, 1e+30, %v1476
      %v1646 = vsel %vm1549, 1e+30, %v1477
      %v1647 = vsel %vm1550, 1e+30, %v1478
      %v1648 = vsel %vm1551, 1e+30, %v1479
      %v1649 = vsel %vm1552, 1e+30, %v1480
      %v1650 = vsel %vm1553, 1e+30, %v1481
      %v1651 = vsel %vm1554, 1e+30, %v1482
      %v1652 = vsel %vm1152, %v1644, inf
      %1653 = vmin.xlane.f32.xlu0 %v1652
      %v1654 = vpop.xlane.xlu0 %1653
      %v1655 = vsel %vm1152, %v1645, inf
      %1656 = vmin.xlane.f32.xlu0 %v1655
      %v1657 = vpop.xlane.xlu0 %1656
      %v1658 = vsel %vm1152, %v1646, inf
      %1659 = vmin.xlane.f32.xlu0 %v1658
      %v1660 = vpop.xlane.xlu0 %1659
      %v1661 = vsel %vm1152, %v1647, inf
      %1662 = vmin.xlane.f32.xlu0 %v1661
      %v1663 = vpop.xlane.xlu0 %1662
      %v1664 = vsel %vm1152, %v1648, inf
      %1665 = vmin.xlane.f32.xlu0 %v1664
      %v1666 = vpop.xlane.xlu0 %1665
      %v1667 = vsel %vm1152, %v1649, inf
      %1668 = vmin.xlane.f32.xlu0 %v1667
      %v1669 = vpop.xlane.xlu0 %1668
      %v1670 = vsel %vm1152, %v1650, inf
      %1671 = vmin.xlane.f32.xlu0 %v1670
      %v1672 = vpop.xlane.xlu0 %1671
      %v1673 = vsel %vm1152, %v1651, inf
      %1674 = vmin.xlane.f32.xlu0 %v1673
      %v1675 = vpop.xlane.xlu0 %1674
      %vm1676 = vcmp.le.f32.partialorder %v1644, %v1654
      %vm1677 = vcmp.le.f32.partialorder %v1645, %v1657
      %vm1678 = vcmp.le.f32.partialorder %v1646, %v1660
      %vm1679 = vcmp.le.f32.partialorder %v1647, %v1663
      %vm1680 = vcmp.le.f32.partialorder %v1648, %v1666
      %vm1681 = vcmp.le.f32.partialorder %v1649, %v1669
      %vm1682 = vcmp.le.f32.partialorder %v1650, %v1672
      %vm1683 = vcmp.le.f32.partialorder %v1651, %v1675
      %v1684 = vsel %vm1676, %v1151, 64.0
      %v1685 = vsel %vm1677, %v1151, 64.0
      %v1686 = vsel %vm1678, %v1151, 64.0
      %v1687 = vsel %vm1679, %v1151, 64.0
      %v1688 = vsel %vm1680, %v1151, 64.0
      %v1689 = vsel %vm1681, %v1151, 64.0
      %v1690 = vsel %vm1682, %v1151, 64.0
      %v1691 = vsel %vm1683, %v1151, 64.0
      %v1692 = vsel %vm1152, %v1684, inf
      %1693 = vmin.xlane.f32.xlu0 %v1692
      %v1694 = vpop.xlane.xlu0 %1693
      %v1695 = vsel %vm1152, %v1685, inf
      %1696 = vmin.xlane.f32.xlu0 %v1695
      %v1697 = vpop.xlane.xlu0 %1696
      %v1698 = vsel %vm1152, %v1686, inf
      %1699 = vmin.xlane.f32.xlu0 %v1698
      %v1700 = vpop.xlane.xlu0 %1699
      %v1701 = vsel %vm1152, %v1687, inf
      %1702 = vmin.xlane.f32.xlu0 %v1701
      %v1703 = vpop.xlane.xlu0 %1702
      %v1704 = vsel %vm1152, %v1688, inf
      %1705 = vmin.xlane.f32.xlu0 %v1704
      %v1706 = vpop.xlane.xlu0 %1705
      %v1707 = vsel %vm1152, %v1689, inf
      %1708 = vmin.xlane.f32.xlu0 %v1707
      %v1709 = vpop.xlane.xlu0 %1708
      %v1710 = vsel %vm1152, %v1690, inf
      %1711 = vmin.xlane.f32.xlu0 %v1710
      %v1712 = vpop.xlane.xlu0 %1711
      %v1713 = vsel %vm1152, %v1691, inf
      %1714 = vmin.xlane.f32.xlu0 %v1713
      %v1715 = vpop.xlane.xlu0 %1714
      %vm1716 = vcmp.eq.f32.partialorder %v1151, %v1694
      %vm1717 = vcmp.eq.f32.partialorder %v1151, %v1697
      %vm1718 = vcmp.eq.f32.partialorder %v1151, %v1700
      %vm1719 = vcmp.eq.f32.partialorder %v1151, %v1703
      %vm1720 = vcmp.eq.f32.partialorder %v1151, %v1706
      %vm1721 = vcmp.eq.f32.partialorder %v1151, %v1709
      %vm1722 = vcmp.eq.f32.partialorder %v1151, %v1712
      %vm1723 = vcmp.eq.f32.partialorder %v1151, %v1715
      %v1724 = vsel %vm1716, 1, 0
      %v1725 = vsel %vm1717, 1, 0
      %v1726 = vsel %vm1718, 1, 0
      %v1727 = vsel %vm1719, 1, 0
      %v1728 = vsel %vm1720, 1, 0
      %v1729 = vsel %vm1721, 1, 0
      %v1730 = vsel %vm1722, 1, 0
      %v1731 = vsel %vm1723, 1, 0
      %v1732 = vcvt.s32.f32 %v1724
      %v1733 = vcvt.s32.f32 %v1725
      %v1734 = vcvt.s32.f32 %v1726
      %v1735 = vcvt.s32.f32 %v1727
      %v1736 = vcvt.s32.f32 %v1728
      %v1737 = vcvt.s32.f32 %v1729
      %v1738 = vcvt.s32.f32 %v1730
      %v1739 = vcvt.s32.f32 %v1731
      %v1741 = vsel %vm1152, %v1732, 0
      %v1744 = vsel %vm1152, %v1733, 0
      %v1747 = vsel %vm1152, %v1734, 0
      %v1750 = vsel %vm1152, %v1735, 0
      %v1753 = vsel %vm1152, %v1736, 0
      %v1756 = vsel %vm1152, %v1737, 0
      %v1759 = vsel %vm1152, %v1738, 0
      %v1762 = vsel %vm1152, %v1739, 0
      %1764 = vmatpush.msra.mxu0 0.0
      %1765 = vmatpush.msra.mxu0 0.0
      %1766 = vmatpush.msra.mxu0 0.0
      %1767 = vmatpush.msra.mxu0 0.0
      %1768 = vmatpush.msra.mxu0 0.0
      %1769 = vmatpush.msra.mxu0 0.0
      %1770 = vmatpush.msra.mxu0 0.0
      %1771 = vmatpush.msra.mxu0 0.0
      %1772 = vmatpush.msra.mxu0 %v939
      %1773 = vmatpush.msra.mxu0 %v938
      %1774 = vmatpush.msra.mxu0 %v937
      %1775 = vmatpush.msra.mxu0 %v936
      %1776 = vmatpush.msra.mxu0 %v935
      %1777 = vmatpush.msra.mxu0 %v934
      %1778 = vmatpush.msra.mxu0 %v933
      %1779 = vmatpush.msra.mxu0 %v932
      %1780 = vmatmul.f32.gmra.mxu0 %v1741
      %v1781 = vpop.f32.mrf.mxu0
      %v1782 = vadd.f32 0.0, %v1781
      %1783 = vmatmul.f32.gmra.mxu0 %v1744
      %v1784 = vpop.f32.mrf.mxu0
      %v1785 = vadd.f32 0.0, %v1784
      %1786 = vmatmul.f32.gmra.mxu0 %v1747
      %v1787 = vpop.f32.mrf.mxu0
      %v1788 = vadd.f32 0.0, %v1787
      %1789 = vmatmul.f32.gmra.mxu0 %v1750
      %v1790 = vpop.f32.mrf.mxu0
      %v1791 = vadd.f32 0.0, %v1790
      %1792 = vmatmul.f32.gmra.mxu0 %v1753
      %v1793 = vpop.f32.mrf.mxu0
      %v1794 = vadd.f32 0.0, %v1793
      %1795 = vmatmul.f32.gmra.mxu0 %v1756
      %v1796 = vpop.f32.mrf.mxu0
      %v1797 = vadd.f32 0.0, %v1796
      %1798 = vmatmul.f32.gmra.mxu0 %v1759
      %v1799 = vpop.f32.mrf.mxu0
      %v1800 = vadd.f32 0.0, %v1799
      %1801 = vmatmul.f32.gmra.mxu0 %v1762
      %v1802 = vpop.f32.mrf.mxu0
      %v1803 = vadd.f32 0.0, %v1802
      %1804 = vdwg.mxu0
      %v1805 = vmax.f32 %v1636, %v1782
      %v1806 = vmax.f32 %v1637, %v1785
      %v1807 = vmax.f32 %v1638, %v1788
      %v1808 = vmax.f32 %v1639, %v1791
      %v1809 = vmax.f32 %v1640, %v1794
      %v1810 = vmax.f32 %v1641, %v1797
      %v1811 = vmax.f32 %v1642, %v1800
      %v1812 = vmax.f32 %v1643, %v1803
      %v1813 = vsel %vm1716, 1e+30, %v1644
      %v1814 = vsel %vm1717, 1e+30, %v1645
      %v1815 = vsel %vm1718, 1e+30, %v1646
      %v1816 = vsel %vm1719, 1e+30, %v1647
      %v1817 = vsel %vm1720, 1e+30, %v1648
      %v1818 = vsel %vm1721, 1e+30, %v1649
      %v1819 = vsel %vm1722, 1e+30, %v1650
      %v1820 = vsel %vm1723, 1e+30, %v1651
      %v1821 = vsel %vm1152, %v1813, inf
      %1822 = vmin.xlane.f32.xlu0 %v1821
      %v1823 = vpop.xlane.xlu0 %1822
      %v1824 = vsel %vm1152, %v1814, inf
      %1825 = vmin.xlane.f32.xlu0 %v1824
      %v1826 = vpop.xlane.xlu0 %1825
      %v1827 = vsel %vm1152, %v1815, inf
      %1828 = vmin.xlane.f32.xlu0 %v1827
      %v1829 = vpop.xlane.xlu0 %1828
      %v1830 = vsel %vm1152, %v1816, inf
      %1831 = vmin.xlane.f32.xlu0 %v1830
      %v1832 = vpop.xlane.xlu0 %1831
      %v1833 = vsel %vm1152, %v1817, inf
      %1834 = vmin.xlane.f32.xlu0 %v1833
      %v1835 = vpop.xlane.xlu0 %1834
      %v1836 = vsel %vm1152, %v1818, inf
      %1837 = vmin.xlane.f32.xlu0 %v1836
      %v1838 = vpop.xlane.xlu0 %1837
      %v1839 = vsel %vm1152, %v1819, inf
      %1840 = vmin.xlane.f32.xlu0 %v1839
      %v1841 = vpop.xlane.xlu0 %1840
      %v1842 = vsel %vm1152, %v1820, inf
      %1843 = vmin.xlane.f32.xlu0 %v1842
      %v1844 = vpop.xlane.xlu0 %1843
      %vm1845 = vcmp.le.f32.partialorder %v1813, %v1823
      %vm1846 = vcmp.le.f32.partialorder %v1814, %v1826
      %vm1847 = vcmp.le.f32.partialorder %v1815, %v1829
      %vm1848 = vcmp.le.f32.partialorder %v1816, %v1832
      %vm1849 = vcmp.le.f32.partialorder %v1817, %v1835
      %vm1850 = vcmp.le.f32.partialorder %v1818, %v1838
      %vm1851 = vcmp.le.f32.partialorder %v1819, %v1841
      %vm1852 = vcmp.le.f32.partialorder %v1820, %v1844
      %v1853 = vsel %vm1845, %v1151, 64.0
      %v1854 = vsel %vm1846, %v1151, 64.0
      %v1855 = vsel %vm1847, %v1151, 64.0
      %v1856 = vsel %vm1848, %v1151, 64.0
      %v1857 = vsel %vm1849, %v1151, 64.0
      %v1858 = vsel %vm1850, %v1151, 64.0
      %v1859 = vsel %vm1851, %v1151, 64.0
      %v1860 = vsel %vm1852, %v1151, 64.0
      %v1861 = vsel %vm1152, %v1853, inf
      %1862 = vmin.xlane.f32.xlu0 %v1861
      %v1863 = vpop.xlane.xlu0 %1862
      %v1864 = vsel %vm1152, %v1854, inf
      %1865 = vmin.xlane.f32.xlu0 %v1864
      %v1866 = vpop.xlane.xlu0 %1865
      %v1867 = vsel %vm1152, %v1855, inf
      %1868 = vmin.xlane.f32.xlu0 %v1867
      %v1869 = vpop.xlane.xlu0 %1868
      %v1870 = vsel %vm1152, %v1856, inf
      %1871 = vmin.xlane.f32.xlu0 %v1870
      %v1872 = vpop.xlane.xlu0 %1871
      %v1873 = vsel %vm1152, %v1857, inf
      %1874 = vmin.xlane.f32.xlu0 %v1873
      %v1875 = vpop.xlane.xlu0 %1874
      %v1876 = vsel %vm1152, %v1858, inf
      %1877 = vmin.xlane.f32.xlu0 %v1876
      %v1878 = vpop.xlane.xlu0 %1877
      %v1879 = vsel %vm1152, %v1859, inf
      %1880 = vmin.xlane.f32.xlu0 %v1879
      %v1881 = vpop.xlane.xlu0 %1880
      %v1882 = vsel %vm1152, %v1860, inf
      %1883 = vmin.xlane.f32.xlu0 %v1882
      %v1884 = vpop.xlane.xlu0 %1883
      %vm1885 = vcmp.eq.f32.partialorder %v1151, %v1863
      %vm1886 = vcmp.eq.f32.partialorder %v1151, %v1866
      %vm1887 = vcmp.eq.f32.partialorder %v1151, %v1869
      %vm1888 = vcmp.eq.f32.partialorder %v1151, %v1872
      %vm1889 = vcmp.eq.f32.partialorder %v1151, %v1875
      %vm1890 = vcmp.eq.f32.partialorder %v1151, %v1878
      %vm1891 = vcmp.eq.f32.partialorder %v1151, %v1881
      %vm1892 = vcmp.eq.f32.partialorder %v1151, %v1884
      %v1893 = vsel %vm1885, 1, 0
      %v1894 = vsel %vm1886, 1, 0
      %v1895 = vsel %vm1887, 1, 0
      %v1896 = vsel %vm1888, 1, 0
      %v1897 = vsel %vm1889, 1, 0
      %v1898 = vsel %vm1890, 1, 0
      %v1899 = vsel %vm1891, 1, 0
      %v1900 = vsel %vm1892, 1, 0
      %v1901 = vcvt.s32.f32 %v1893
      %v1902 = vcvt.s32.f32 %v1894
      %v1903 = vcvt.s32.f32 %v1895
      %v1904 = vcvt.s32.f32 %v1896
      %v1905 = vcvt.s32.f32 %v1897
      %v1906 = vcvt.s32.f32 %v1898
      %v1907 = vcvt.s32.f32 %v1899
      %v1908 = vcvt.s32.f32 %v1900
      %v1910 = vsel %vm1152, %v1901, 0
      %v1913 = vsel %vm1152, %v1902, 0
      %v1916 = vsel %vm1152, %v1903, 0
      %v1919 = vsel %vm1152, %v1904, 0
      %v1922 = vsel %vm1152, %v1905, 0
      %v1925 = vsel %vm1152, %v1906, 0
      %v1928 = vsel %vm1152, %v1907, 0
      %v1931 = vsel %vm1152, %v1908, 0
      %1933 = vmatpush.msra.mxu0 0.0
      %1934 = vmatpush.msra.mxu0 0.0
      %1935 = vmatpush.msra.mxu0 0.0
      %1936 = vmatpush.msra.mxu0 0.0
      %1937 = vmatpush.msra.mxu0 0.0
      %1938 = vmatpush.msra.mxu0 0.0
      %1939 = vmatpush.msra.mxu0 0.0
      %1940 = vmatpush.msra.mxu0 0.0
      %1941 = vmatpush.msra.mxu0 %v939
      %1942 = vmatpush.msra.mxu0 %v938
      %1943 = vmatpush.msra.mxu0 %v937
      %1944 = vmatpush.msra.mxu0 %v936
      %1945 = vmatpush.msra.mxu0 %v935
      %1946 = vmatpush.msra.mxu0 %v934
      %1947 = vmatpush.msra.mxu0 %v933
      %1948 = vmatpush.msra.mxu0 %v932
      %1949 = vmatmul.f32.gmra.mxu0 %v1910
      %v1950 = vpop.f32.mrf.mxu0
      %v1951 = vadd.f32 0.0, %v1950
      %1952 = vmatmul.f32.gmra.mxu0 %v1913
      %v1953 = vpop.f32.mrf.mxu0
      %v1954 = vadd.f32 0.0, %v1953
      %1955 = vmatmul.f32.gmra.mxu0 %v1916
      %v1956 = vpop.f32.mrf.mxu0
      %v1957 = vadd.f32 0.0, %v1956
      %1958 = vmatmul.f32.gmra.mxu0 %v1919
      %v1959 = vpop.f32.mrf.mxu0
      %v1960 = vadd.f32 0.0, %v1959
      %1961 = vmatmul.f32.gmra.mxu0 %v1922
      %v1962 = vpop.f32.mrf.mxu0
      %v1963 = vadd.f32 0.0, %v1962
      %1964 = vmatmul.f32.gmra.mxu0 %v1925
      %v1965 = vpop.f32.mrf.mxu0
      %v1966 = vadd.f32 0.0, %v1965
      %1967 = vmatmul.f32.gmra.mxu0 %v1928
      %v1968 = vpop.f32.mrf.mxu0
      %v1969 = vadd.f32 0.0, %v1968
      %1970 = vmatmul.f32.gmra.mxu0 %v1931
      %v1971 = vpop.f32.mrf.mxu0
      %v1972 = vadd.f32 0.0, %v1971
      %1973 = vdwg.mxu0
      %v1974 = vmax.f32 %v1805, %v1951
      %v1975 = vmax.f32 %v1806, %v1954
      %v1976 = vmax.f32 %v1807, %v1957
      %v1977 = vmax.f32 %v1808, %v1960
      %v1978 = vmax.f32 %v1809, %v1963
      %v1979 = vmax.f32 %v1810, %v1966
      %v1980 = vmax.f32 %v1811, %v1969
      %v1981 = vmax.f32 %v1812, %v1972
      %v1982 = vsel %vm1885, 1e+30, %v1813
      %v1983 = vsel %vm1886, 1e+30, %v1814
      %v1984 = vsel %vm1887, 1e+30, %v1815
      %v1985 = vsel %vm1888, 1e+30, %v1816
      %v1986 = vsel %vm1889, 1e+30, %v1817
      %v1987 = vsel %vm1890, 1e+30, %v1818
      %v1988 = vsel %vm1891, 1e+30, %v1819
      %v1989 = vsel %vm1892, 1e+30, %v1820
      %v1990 = vsel %vm1152, %v1982, inf
      %1991 = vmin.xlane.f32.xlu0 %v1990
      %v1992 = vpop.xlane.xlu0 %1991
      %v1993 = vsel %vm1152, %v1983, inf
      %1994 = vmin.xlane.f32.xlu0 %v1993
      %v1995 = vpop.xlane.xlu0 %1994
      %v1996 = vsel %vm1152, %v1984, inf
      %1997 = vmin.xlane.f32.xlu0 %v1996
      %v1998 = vpop.xlane.xlu0 %1997
      %v1999 = vsel %vm1152, %v1985, inf
      %2000 = vmin.xlane.f32.xlu0 %v1999
      %v2001 = vpop.xlane.xlu0 %2000
      %v2002 = vsel %vm1152, %v1986, inf
      %2003 = vmin.xlane.f32.xlu0 %v2002
      %v2004 = vpop.xlane.xlu0 %2003
      %v2005 = vsel %vm1152, %v1987, inf
      %2006 = vmin.xlane.f32.xlu0 %v2005
      %v2007 = vpop.xlane.xlu0 %2006
      %v2008 = vsel %vm1152, %v1988, inf
      %2009 = vmin.xlane.f32.xlu0 %v2008
      %v2010 = vpop.xlane.xlu0 %2009
      %v2011 = vsel %vm1152, %v1989, inf
      %2012 = vmin.xlane.f32.xlu0 %v2011
      %v2013 = vpop.xlane.xlu0 %2012
      %vm2014 = vcmp.le.f32.partialorder %v1982, %v1992
      %vm2015 = vcmp.le.f32.partialorder %v1983, %v1995
      %vm2016 = vcmp.le.f32.partialorder %v1984, %v1998
      %vm2017 = vcmp.le.f32.partialorder %v1985, %v2001
      %vm2018 = vcmp.le.f32.partialorder %v1986, %v2004
      %vm2019 = vcmp.le.f32.partialorder %v1987, %v2007
      %vm2020 = vcmp.le.f32.partialorder %v1988, %v2010
      %vm2021 = vcmp.le.f32.partialorder %v1989, %v2013
      %v2022 = vsel %vm2014, %v1151, 64.0
      %v2023 = vsel %vm2015, %v1151, 64.0
      %v2024 = vsel %vm2016, %v1151, 64.0
      %v2025 = vsel %vm2017, %v1151, 64.0
      %v2026 = vsel %vm2018, %v1151, 64.0
      %v2027 = vsel %vm2019, %v1151, 64.0
      %v2028 = vsel %vm2020, %v1151, 64.0
      %v2029 = vsel %vm2021, %v1151, 64.0
      %v2030 = vsel %vm1152, %v2022, inf
      %2031 = vmin.xlane.f32.xlu0 %v2030
      %v2032 = vpop.xlane.xlu0 %2031
      %v2033 = vsel %vm1152, %v2023, inf
      %2034 = vmin.xlane.f32.xlu0 %v2033
      %v2035 = vpop.xlane.xlu0 %2034
      %v2036 = vsel %vm1152, %v2024, inf
      %2037 = vmin.xlane.f32.xlu0 %v2036
      %v2038 = vpop.xlane.xlu0 %2037
      %v2039 = vsel %vm1152, %v2025, inf
      %2040 = vmin.xlane.f32.xlu0 %v2039
      %v2041 = vpop.xlane.xlu0 %2040
      %v2042 = vsel %vm1152, %v2026, inf
      %2043 = vmin.xlane.f32.xlu0 %v2042
      %v2044 = vpop.xlane.xlu0 %2043
      %v2045 = vsel %vm1152, %v2027, inf
      %2046 = vmin.xlane.f32.xlu0 %v2045
      %v2047 = vpop.xlane.xlu0 %2046
      %v2048 = vsel %vm1152, %v2028, inf
      %2049 = vmin.xlane.f32.xlu0 %v2048
      %v2050 = vpop.xlane.xlu0 %2049
      %v2051 = vsel %vm1152, %v2029, inf
      %2052 = vmin.xlane.f32.xlu0 %v2051
      %v2053 = vpop.xlane.xlu0 %2052
      %vm2054 = vcmp.eq.f32.partialorder %v1151, %v2032
      %vm2055 = vcmp.eq.f32.partialorder %v1151, %v2035
      %vm2056 = vcmp.eq.f32.partialorder %v1151, %v2038
      %vm2057 = vcmp.eq.f32.partialorder %v1151, %v2041
      %vm2058 = vcmp.eq.f32.partialorder %v1151, %v2044
      %vm2059 = vcmp.eq.f32.partialorder %v1151, %v2047
      %vm2060 = vcmp.eq.f32.partialorder %v1151, %v2050
      %vm2061 = vcmp.eq.f32.partialorder %v1151, %v2053
      %v2062 = vsel %vm2054, 1, 0
      %v2063 = vsel %vm2055, 1, 0
      %v2064 = vsel %vm2056, 1, 0
      %v2065 = vsel %vm2057, 1, 0
      %v2066 = vsel %vm2058, 1, 0
      %v2067 = vsel %vm2059, 1, 0
      %v2068 = vsel %vm2060, 1, 0
      %v2069 = vsel %vm2061, 1, 0
      %v2070 = vcvt.s32.f32 %v2062
      %v2071 = vcvt.s32.f32 %v2063
      %v2072 = vcvt.s32.f32 %v2064
      %v2073 = vcvt.s32.f32 %v2065
      %v2074 = vcvt.s32.f32 %v2066
      %v2075 = vcvt.s32.f32 %v2067
      %v2076 = vcvt.s32.f32 %v2068
      %v2077 = vcvt.s32.f32 %v2069
      %v2079 = vsel %vm1152, %v2070, 0
      %v2082 = vsel %vm1152, %v2071, 0
      %v2085 = vsel %vm1152, %v2072, 0
      %v2088 = vsel %vm1152, %v2073, 0
      %v2091 = vsel %vm1152, %v2074, 0
      %v2094 = vsel %vm1152, %v2075, 0
      %v2097 = vsel %vm1152, %v2076, 0
      %v2100 = vsel %vm1152, %v2077, 0
      %2102 = vmatpush.msra.mxu0 0.0
      %2103 = vmatpush.msra.mxu0 0.0
      %2104 = vmatpush.msra.mxu0 0.0
      %2105 = vmatpush.msra.mxu0 0.0
      %2106 = vmatpush.msra.mxu0 0.0
      %2107 = vmatpush.msra.mxu0 0.0
      %2108 = vmatpush.msra.mxu0 0.0
      %2109 = vmatpush.msra.mxu0 0.0
      %2110 = vmatpush.msra.mxu0 %v939
      %2111 = vmatpush.msra.mxu0 %v938
      %2112 = vmatpush.msra.mxu0 %v937
      %2113 = vmatpush.msra.mxu0 %v936
      %2114 = vmatpush.msra.mxu0 %v935
      %2115 = vmatpush.msra.mxu0 %v934
      %2116 = vmatpush.msra.mxu0 %v933
      %2117 = vmatpush.msra.mxu0 %v932
      %2118 = vmatmul.f32.gmra.mxu0 %v2079
      %v2119 = vpop.f32.mrf.mxu0
      %v2120 = vadd.f32 0.0, %v2119
      %2121 = vmatmul.f32.gmra.mxu0 %v2082
      %v2122 = vpop.f32.mrf.mxu0
      %v2123 = vadd.f32 0.0, %v2122
      %2124 = vmatmul.f32.gmra.mxu0 %v2085
      %v2125 = vpop.f32.mrf.mxu0
      %v2126 = vadd.f32 0.0, %v2125
      %2127 = vmatmul.f32.gmra.mxu0 %v2088
      %v2128 = vpop.f32.mrf.mxu0
      %v2129 = vadd.f32 0.0, %v2128
      %2130 = vmatmul.f32.gmra.mxu0 %v2091
      %v2131 = vpop.f32.mrf.mxu0
      %v2132 = vadd.f32 0.0, %v2131
      %2133 = vmatmul.f32.gmra.mxu0 %v2094
      %v2134 = vpop.f32.mrf.mxu0
      %v2135 = vadd.f32 0.0, %v2134
      %2136 = vmatmul.f32.gmra.mxu0 %v2097
      %v2137 = vpop.f32.mrf.mxu0
      %v2138 = vadd.f32 0.0, %v2137
      %2139 = vmatmul.f32.gmra.mxu0 %v2100
      %v2140 = vpop.f32.mrf.mxu0
      %v2141 = vadd.f32 0.0, %v2140
      %2142 = vdwg.mxu0
      %v2143 = vmax.f32 %v1974, %v2120
      %v2144 = vmax.f32 %v1975, %v2123
      %v2145 = vmax.f32 %v1976, %v2126
      %v2146 = vmax.f32 %v1977, %v2129
      %v2147 = vmax.f32 %v1978, %v2132
      %v2148 = vmax.f32 %v1979, %v2135
      %v2149 = vmax.f32 %v1980, %v2138
      %v2150 = vmax.f32 %v1981, %v2141
      %v2151 = vsel %vm2054, 1e+30, %v1982
      %v2152 = vsel %vm2055, 1e+30, %v1983
      %v2153 = vsel %vm2056, 1e+30, %v1984
      %v2154 = vsel %vm2057, 1e+30, %v1985
      %v2155 = vsel %vm2058, 1e+30, %v1986
      %v2156 = vsel %vm2059, 1e+30, %v1987
      %v2157 = vsel %vm2060, 1e+30, %v1988
      %v2158 = vsel %vm2061, 1e+30, %v1989
      %v2159 = vsel %vm1152, %v2151, inf
      %2160 = vmin.xlane.f32.xlu0 %v2159
      %v2161 = vpop.xlane.xlu0 %2160
      %v2162 = vsel %vm1152, %v2152, inf
      %2163 = vmin.xlane.f32.xlu0 %v2162
      %v2164 = vpop.xlane.xlu0 %2163
      %v2165 = vsel %vm1152, %v2153, inf
      %2166 = vmin.xlane.f32.xlu0 %v2165
      %v2167 = vpop.xlane.xlu0 %2166
      %v2168 = vsel %vm1152, %v2154, inf
      %2169 = vmin.xlane.f32.xlu0 %v2168
      %v2170 = vpop.xlane.xlu0 %2169
      %v2171 = vsel %vm1152, %v2155, inf
      %2172 = vmin.xlane.f32.xlu0 %v2171
      %v2173 = vpop.xlane.xlu0 %2172
      %v2174 = vsel %vm1152, %v2156, inf
      %2175 = vmin.xlane.f32.xlu0 %v2174
      %v2176 = vpop.xlane.xlu0 %2175
      %v2177 = vsel %vm1152, %v2157, inf
      %2178 = vmin.xlane.f32.xlu0 %v2177
      %v2179 = vpop.xlane.xlu0 %2178
      %v2180 = vsel %vm1152, %v2158, inf
      %2181 = vmin.xlane.f32.xlu0 %v2180
      %v2182 = vpop.xlane.xlu0 %2181
      %vm2183 = vcmp.le.f32.partialorder %v2151, %v2161
      %vm2184 = vcmp.le.f32.partialorder %v2152, %v2164
      %vm2185 = vcmp.le.f32.partialorder %v2153, %v2167
      %vm2186 = vcmp.le.f32.partialorder %v2154, %v2170
      %vm2187 = vcmp.le.f32.partialorder %v2155, %v2173
      %vm2188 = vcmp.le.f32.partialorder %v2156, %v2176
      %vm2189 = vcmp.le.f32.partialorder %v2157, %v2179
      %vm2190 = vcmp.le.f32.partialorder %v2158, %v2182
      %v2191 = vsel %vm2183, %v1151, 64.0
      %v2192 = vsel %vm2184, %v1151, 64.0
      %v2193 = vsel %vm2185, %v1151, 64.0
      %v2194 = vsel %vm2186, %v1151, 64.0
      %v2195 = vsel %vm2187, %v1151, 64.0
      %v2196 = vsel %vm2188, %v1151, 64.0
      %v2197 = vsel %vm2189, %v1151, 64.0
      %v2198 = vsel %vm2190, %v1151, 64.0
      %v2199 = vsel %vm1152, %v2191, inf
      %2200 = vmin.xlane.f32.xlu0 %v2199
      %v2201 = vpop.xlane.xlu0 %2200
      %v2202 = vsel %vm1152, %v2192, inf
      %2203 = vmin.xlane.f32.xlu0 %v2202
      %v2204 = vpop.xlane.xlu0 %2203
      %v2205 = vsel %vm1152, %v2193, inf
      %2206 = vmin.xlane.f32.xlu0 %v2205
      %v2207 = vpop.xlane.xlu0 %2206
      %v2208 = vsel %vm1152, %v2194, inf
      %2209 = vmin.xlane.f32.xlu0 %v2208
      %v2210 = vpop.xlane.xlu0 %2209
      %v2211 = vsel %vm1152, %v2195, inf
      %2212 = vmin.xlane.f32.xlu0 %v2211
      %v2213 = vpop.xlane.xlu0 %2212
      %v2214 = vsel %vm1152, %v2196, inf
      %2215 = vmin.xlane.f32.xlu0 %v2214
      %v2216 = vpop.xlane.xlu0 %2215
      %v2217 = vsel %vm1152, %v2197, inf
      %2218 = vmin.xlane.f32.xlu0 %v2217
      %v2219 = vpop.xlane.xlu0 %2218
      %v2220 = vsel %vm1152, %v2198, inf
      %2221 = vmin.xlane.f32.xlu0 %v2220
      %v2222 = vpop.xlane.xlu0 %2221
      %vm2223 = vcmp.eq.f32.partialorder %v1151, %v2201
      %vm2224 = vcmp.eq.f32.partialorder %v1151, %v2204
      %vm2225 = vcmp.eq.f32.partialorder %v1151, %v2207
      %vm2226 = vcmp.eq.f32.partialorder %v1151, %v2210
      %vm2227 = vcmp.eq.f32.partialorder %v1151, %v2213
      %vm2228 = vcmp.eq.f32.partialorder %v1151, %v2216
      %vm2229 = vcmp.eq.f32.partialorder %v1151, %v2219
      %vm2230 = vcmp.eq.f32.partialorder %v1151, %v2222
      %v2231 = vsel %vm2223, 1, 0
      %v2232 = vsel %vm2224, 1, 0
      %v2233 = vsel %vm2225, 1, 0
      %v2234 = vsel %vm2226, 1, 0
      %v2235 = vsel %vm2227, 1, 0
      %v2236 = vsel %vm2228, 1, 0
      %v2237 = vsel %vm2229, 1, 0
      %v2238 = vsel %vm2230, 1, 0
      %v2239 = vcvt.s32.f32 %v2231
      %v2240 = vcvt.s32.f32 %v2232
      %v2241 = vcvt.s32.f32 %v2233
      %v2242 = vcvt.s32.f32 %v2234
      %v2243 = vcvt.s32.f32 %v2235
      %v2244 = vcvt.s32.f32 %v2236
      %v2245 = vcvt.s32.f32 %v2237
      %v2246 = vcvt.s32.f32 %v2238
      %v2248 = vsel %vm1152, %v2239, 0
      %v2251 = vsel %vm1152, %v2240, 0
      %v2254 = vsel %vm1152, %v2241, 0
      %v2257 = vsel %vm1152, %v2242, 0
      %v2260 = vsel %vm1152, %v2243, 0
      %v2263 = vsel %vm1152, %v2244, 0
      %v2266 = vsel %vm1152, %v2245, 0
      %v2269 = vsel %vm1152, %v2246, 0
      %2271 = vmatpush.msra.mxu0 0.0
      %2272 = vmatpush.msra.mxu0 0.0
      %2273 = vmatpush.msra.mxu0 0.0
      %2274 = vmatpush.msra.mxu0 0.0
      %2275 = vmatpush.msra.mxu0 0.0
      %2276 = vmatpush.msra.mxu0 0.0
      %2277 = vmatpush.msra.mxu0 0.0
      %2278 = vmatpush.msra.mxu0 0.0
      %2279 = vmatpush.msra.mxu0 %v939
      %2280 = vmatpush.msra.mxu0 %v938
      %2281 = vmatpush.msra.mxu0 %v937
      %2282 = vmatpush.msra.mxu0 %v936
      %2283 = vmatpush.msra.mxu0 %v935
      %2284 = vmatpush.msra.mxu0 %v934
      %2285 = vmatpush.msra.mxu0 %v933
      %2286 = vmatpush.msra.mxu0 %v932
      %2287 = vmatmul.f32.gmra.mxu0 %v2248
      %v2288 = vpop.f32.mrf.mxu0
      %v2289 = vadd.f32 0.0, %v2288
      %2290 = vmatmul.f32.gmra.mxu0 %v2251
      %v2291 = vpop.f32.mrf.mxu0
      %v2292 = vadd.f32 0.0, %v2291
      %2293 = vmatmul.f32.gmra.mxu0 %v2254
      %v2294 = vpop.f32.mrf.mxu0
      %v2295 = vadd.f32 0.0, %v2294
      %2296 = vmatmul.f32.gmra.mxu0 %v2257
      %v2297 = vpop.f32.mrf.mxu0
      %v2298 = vadd.f32 0.0, %v2297
      %2299 = vmatmul.f32.gmra.mxu0 %v2260
      %v2300 = vpop.f32.mrf.mxu0
      %v2301 = vadd.f32 0.0, %v2300
      %2302 = vmatmul.f32.gmra.mxu0 %v2263
      %v2303 = vpop.f32.mrf.mxu0
      %v2304 = vadd.f32 0.0, %v2303
      %2305 = vmatmul.f32.gmra.mxu0 %v2266
      %v2306 = vpop.f32.mrf.mxu0
      %v2307 = vadd.f32 0.0, %v2306
      %2308 = vmatmul.f32.gmra.mxu0 %v2269
      %v2309 = vpop.f32.mrf.mxu0
      %v2310 = vadd.f32 0.0, %v2309
      %2311 = vdwg.mxu0
      %v2312 = vmax.f32 %v2143, %v2289
      %v2313 = vmax.f32 %v2144, %v2292
      %v2314 = vmax.f32 %v2145, %v2295
      %v2315 = vmax.f32 %v2146, %v2298
      %v2316 = vmax.f32 %v2147, %v2301
      %v2317 = vmax.f32 %v2148, %v2304
      %v2318 = vmax.f32 %v2149, %v2307
      %v2319 = vmax.f32 %v2150, %v2310
      %v2320 = vsel %vm2223, 1e+30, %v2151
      %v2321 = vsel %vm2224, 1e+30, %v2152
      %v2322 = vsel %vm2225, 1e+30, %v2153
      %v2323 = vsel %vm2226, 1e+30, %v2154
      %v2324 = vsel %vm2227, 1e+30, %v2155
      %v2325 = vsel %vm2228, 1e+30, %v2156
      %v2326 = vsel %vm2229, 1e+30, %v2157
      %v2327 = vsel %vm2230, 1e+30, %v2158
      %v2328 = vsel %vm1152, %v2320, inf
      %2329 = vmin.xlane.f32.xlu0 %v2328
      %v2330 = vpop.xlane.xlu0 %2329
      %v2331 = vsel %vm1152, %v2321, inf
      %2332 = vmin.xlane.f32.xlu0 %v2331
      %v2333 = vpop.xlane.xlu0 %2332
      %v2334 = vsel %vm1152, %v2322, inf
      %2335 = vmin.xlane.f32.xlu0 %v2334
      %v2336 = vpop.xlane.xlu0 %2335
      %v2337 = vsel %vm1152, %v2323, inf
      %2338 = vmin.xlane.f32.xlu0 %v2337
      %v2339 = vpop.xlane.xlu0 %2338
      %v2340 = vsel %vm1152, %v2324, inf
      %2341 = vmin.xlane.f32.xlu0 %v2340
      %v2342 = vpop.xlane.xlu0 %2341
      %v2343 = vsel %vm1152, %v2325, inf
      %2344 = vmin.xlane.f32.xlu0 %v2343
      %v2345 = vpop.xlane.xlu0 %2344
      %v2346 = vsel %vm1152, %v2326, inf
      %2347 = vmin.xlane.f32.xlu0 %v2346
      %v2348 = vpop.xlane.xlu0 %2347
      %v2349 = vsel %vm1152, %v2327, inf
      %2350 = vmin.xlane.f32.xlu0 %v2349
      %v2351 = vpop.xlane.xlu0 %2350
      %vm2352 = vcmp.le.f32.partialorder %v2320, %v2330
      %vm2353 = vcmp.le.f32.partialorder %v2321, %v2333
      %vm2354 = vcmp.le.f32.partialorder %v2322, %v2336
      %vm2355 = vcmp.le.f32.partialorder %v2323, %v2339
      %vm2356 = vcmp.le.f32.partialorder %v2324, %v2342
      %vm2357 = vcmp.le.f32.partialorder %v2325, %v2345
      %vm2358 = vcmp.le.f32.partialorder %v2326, %v2348
      %vm2359 = vcmp.le.f32.partialorder %v2327, %v2351
      %v2360 = vsel %vm2352, %v1151, 64.0
      %v2361 = vsel %vm2353, %v1151, 64.0
      %v2362 = vsel %vm2354, %v1151, 64.0
      %v2363 = vsel %vm2355, %v1151, 64.0
      %v2364 = vsel %vm2356, %v1151, 64.0
      %v2365 = vsel %vm2357, %v1151, 64.0
      %v2366 = vsel %vm2358, %v1151, 64.0
      %v2367 = vsel %vm2359, %v1151, 64.0
      %v2368 = vsel %vm1152, %v2360, inf
      %2369 = vmin.xlane.f32.xlu0 %v2368
      %v2370 = vpop.xlane.xlu0 %2369
      %v2371 = vsel %vm1152, %v2361, inf
      %2372 = vmin.xlane.f32.xlu0 %v2371
      %v2373 = vpop.xlane.xlu0 %2372
      %v2374 = vsel %vm1152, %v2362, inf
      %2375 = vmin.xlane.f32.xlu0 %v2374
      %v2376 = vpop.xlane.xlu0 %2375
      %v2377 = vsel %vm1152, %v2363, inf
      %2378 = vmin.xlane.f32.xlu0 %v2377
      %v2379 = vpop.xlane.xlu0 %2378
      %v2380 = vsel %vm1152, %v2364, inf
      %2381 = vmin.xlane.f32.xlu0 %v2380
      %v2382 = vpop.xlane.xlu0 %2381
      %v2383 = vsel %vm1152, %v2365, inf
      %2384 = vmin.xlane.f32.xlu0 %v2383
      %v2385 = vpop.xlane.xlu0 %2384
      %v2386 = vsel %vm1152, %v2366, inf
      %2387 = vmin.xlane.f32.xlu0 %v2386
      %v2388 = vpop.xlane.xlu0 %2387
      %v2389 = vsel %vm1152, %v2367, inf
      %2390 = vmin.xlane.f32.xlu0 %v2389
      %v2391 = vpop.xlane.xlu0 %2390
      %vm2392 = vcmp.eq.f32.partialorder %v1151, %v2370
      %vm2393 = vcmp.eq.f32.partialorder %v1151, %v2373
      %vm2394 = vcmp.eq.f32.partialorder %v1151, %v2376
      %vm2395 = vcmp.eq.f32.partialorder %v1151, %v2379
      %vm2396 = vcmp.eq.f32.partialorder %v1151, %v2382
      %vm2397 = vcmp.eq.f32.partialorder %v1151, %v2385
      %vm2398 = vcmp.eq.f32.partialorder %v1151, %v2388
      %vm2399 = vcmp.eq.f32.partialorder %v1151, %v2391
      %v2400 = vsel %vm2392, 1, 0
      %v2401 = vsel %vm2393, 1, 0
      %v2402 = vsel %vm2394, 1, 0
      %v2403 = vsel %vm2395, 1, 0
      %v2404 = vsel %vm2396, 1, 0
      %v2405 = vsel %vm2397, 1, 0
      %v2406 = vsel %vm2398, 1, 0
      %v2407 = vsel %vm2399, 1, 0
      %v2408 = vcvt.s32.f32 %v2400
      %v2409 = vcvt.s32.f32 %v2401
      %v2410 = vcvt.s32.f32 %v2402
      %v2411 = vcvt.s32.f32 %v2403
      %v2412 = vcvt.s32.f32 %v2404
      %v2413 = vcvt.s32.f32 %v2405
      %v2414 = vcvt.s32.f32 %v2406
      %v2415 = vcvt.s32.f32 %v2407
      %v2417 = vsel %vm1152, %v2408, 0
      %v2420 = vsel %vm1152, %v2409, 0
      %v2423 = vsel %vm1152, %v2410, 0
      %v2426 = vsel %vm1152, %v2411, 0
      %v2429 = vsel %vm1152, %v2412, 0
      %v2432 = vsel %vm1152, %v2413, 0
      %v2435 = vsel %vm1152, %v2414, 0
      %v2438 = vsel %vm1152, %v2415, 0
      %2440 = vmatpush.msra.mxu0 0.0
      %2441 = vmatpush.msra.mxu0 0.0
      %2442 = vmatpush.msra.mxu0 0.0
      %2443 = vmatpush.msra.mxu0 0.0
      %2444 = vmatpush.msra.mxu0 0.0
      %2445 = vmatpush.msra.mxu0 0.0
      %2446 = vmatpush.msra.mxu0 0.0
      %2447 = vmatpush.msra.mxu0 0.0
      %2448 = vmatpush.msra.mxu0 %v939
      %2449 = vmatpush.msra.mxu0 %v938
      %2450 = vmatpush.msra.mxu0 %v937
      %2451 = vmatpush.msra.mxu0 %v936
      %2452 = vmatpush.msra.mxu0 %v935
      %2453 = vmatpush.msra.mxu0 %v934
      %2454 = vmatpush.msra.mxu0 %v933
      %2455 = vmatpush.msra.mxu0 %v932
      %2456 = vmatmul.f32.gmra.mxu0 %v2417
      %v2457 = vpop.f32.mrf.mxu0
      %v2458 = vadd.f32 0.0, %v2457
      %2459 = vmatmul.f32.gmra.mxu0 %v2420
      %v2460 = vpop.f32.mrf.mxu0
      %v2461 = vadd.f32 0.0, %v2460
      %2462 = vmatmul.f32.gmra.mxu0 %v2423
      %v2463 = vpop.f32.mrf.mxu0
      %v2464 = vadd.f32 0.0, %v2463
      %2465 = vmatmul.f32.gmra.mxu0 %v2426
      %v2466 = vpop.f32.mrf.mxu0
      %v2467 = vadd.f32 0.0, %v2466
      %2468 = vmatmul.f32.gmra.mxu0 %v2429
      %v2469 = vpop.f32.mrf.mxu0
      %v2470 = vadd.f32 0.0, %v2469
      %2471 = vmatmul.f32.gmra.mxu0 %v2432
      %v2472 = vpop.f32.mrf.mxu0
      %v2473 = vadd.f32 0.0, %v2472
      %2474 = vmatmul.f32.gmra.mxu0 %v2435
      %v2475 = vpop.f32.mrf.mxu0
      %v2476 = vadd.f32 0.0, %v2475
      %2477 = vmatmul.f32.gmra.mxu0 %v2438
      %v2478 = vpop.f32.mrf.mxu0
      %v2479 = vadd.f32 0.0, %v2478
      %2480 = vdwg.mxu0
      %v2481 = vmax.f32 %v2312, %v2458
      %v2482 = vmax.f32 %v2313, %v2461
      %v2483 = vmax.f32 %v2314, %v2464
      %v2484 = vmax.f32 %v2315, %v2467
      %v2485 = vmax.f32 %v2316, %v2470
      %v2486 = vmax.f32 %v2317, %v2473
      %v2487 = vmax.f32 %v2318, %v2476
      %v2488 = vmax.f32 %v2319, %v2479
      %v2489 = vsel %vm2392, 1e+30, %v2320
      %v2490 = vsel %vm2393, 1e+30, %v2321
      %v2491 = vsel %vm2394, 1e+30, %v2322
      %v2492 = vsel %vm2395, 1e+30, %v2323
      %v2493 = vsel %vm2396, 1e+30, %v2324
      %v2494 = vsel %vm2397, 1e+30, %v2325
      %v2495 = vsel %vm2398, 1e+30, %v2326
      %v2496 = vsel %vm2399, 1e+30, %v2327
      %v2497 = vsel %vm1152, %v2489, inf
      %2498 = vmin.xlane.f32.xlu0 %v2497
      %v2499 = vpop.xlane.xlu0 %2498
      %v2500 = vsel %vm1152, %v2490, inf
      %2501 = vmin.xlane.f32.xlu0 %v2500
      %v2502 = vpop.xlane.xlu0 %2501
      %v2503 = vsel %vm1152, %v2491, inf
      %2504 = vmin.xlane.f32.xlu0 %v2503
      %v2505 = vpop.xlane.xlu0 %2504
      %v2506 = vsel %vm1152, %v2492, inf
      %2507 = vmin.xlane.f32.xlu0 %v2506
      %v2508 = vpop.xlane.xlu0 %2507
      %v2509 = vsel %vm1152, %v2493, inf
      %2510 = vmin.xlane.f32.xlu0 %v2509
      %v2511 = vpop.xlane.xlu0 %2510
      %v2512 = vsel %vm1152, %v2494, inf
      %2513 = vmin.xlane.f32.xlu0 %v2512
      %v2514 = vpop.xlane.xlu0 %2513
      %v2515 = vsel %vm1152, %v2495, inf
      %2516 = vmin.xlane.f32.xlu0 %v2515
      %v2517 = vpop.xlane.xlu0 %2516
      %v2518 = vsel %vm1152, %v2496, inf
      %2519 = vmin.xlane.f32.xlu0 %v2518
      %v2520 = vpop.xlane.xlu0 %2519
      %vm2521 = vcmp.le.f32.partialorder %v2489, %v2499
      %vm2522 = vcmp.le.f32.partialorder %v2490, %v2502
      %vm2523 = vcmp.le.f32.partialorder %v2491, %v2505
      %vm2524 = vcmp.le.f32.partialorder %v2492, %v2508
      %vm2525 = vcmp.le.f32.partialorder %v2493, %v2511
      %vm2526 = vcmp.le.f32.partialorder %v2494, %v2514
      %vm2527 = vcmp.le.f32.partialorder %v2495, %v2517
      %vm2528 = vcmp.le.f32.partialorder %v2496, %v2520
      %v2529 = vsel %vm2521, %v1151, 64.0
      %v2530 = vsel %vm2522, %v1151, 64.0
      %v2531 = vsel %vm2523, %v1151, 64.0
      %v2532 = vsel %vm2524, %v1151, 64.0
      %v2533 = vsel %vm2525, %v1151, 64.0
      %v2534 = vsel %vm2526, %v1151, 64.0
      %v2535 = vsel %vm2527, %v1151, 64.0
      %v2536 = vsel %vm2528, %v1151, 64.0
      %v2537 = vsel %vm1152, %v2529, inf
      %2538 = vmin.xlane.f32.xlu0 %v2537
      %v2539 = vpop.xlane.xlu0 %2538
      %v2540 = vsel %vm1152, %v2530, inf
      %2541 = vmin.xlane.f32.xlu0 %v2540
      %v2542 = vpop.xlane.xlu0 %2541
      %v2543 = vsel %vm1152, %v2531, inf
      %2544 = vmin.xlane.f32.xlu0 %v2543
      %v2545 = vpop.xlane.xlu0 %2544
      %v2546 = vsel %vm1152, %v2532, inf
      %2547 = vmin.xlane.f32.xlu0 %v2546
      %v2548 = vpop.xlane.xlu0 %2547
      %v2549 = vsel %vm1152, %v2533, inf
      %2550 = vmin.xlane.f32.xlu0 %v2549
      %v2551 = vpop.xlane.xlu0 %2550
      %v2552 = vsel %vm1152, %v2534, inf
      %2553 = vmin.xlane.f32.xlu0 %v2552
      %v2554 = vpop.xlane.xlu0 %2553
      %v2555 = vsel %vm1152, %v2535, inf
      %2556 = vmin.xlane.f32.xlu0 %v2555
      %v2557 = vpop.xlane.xlu0 %2556
      %v2558 = vsel %vm1152, %v2536, inf
      %2559 = vmin.xlane.f32.xlu0 %v2558
      %v2560 = vpop.xlane.xlu0 %2559
      %vm2561 = vcmp.eq.f32.partialorder %v1151, %v2539
      %vm2562 = vcmp.eq.f32.partialorder %v1151, %v2542
      %vm2563 = vcmp.eq.f32.partialorder %v1151, %v2545
      %vm2564 = vcmp.eq.f32.partialorder %v1151, %v2548
      %vm2565 = vcmp.eq.f32.partialorder %v1151, %v2551
      %vm2566 = vcmp.eq.f32.partialorder %v1151, %v2554
      %vm2567 = vcmp.eq.f32.partialorder %v1151, %v2557
      %vm2568 = vcmp.eq.f32.partialorder %v1151, %v2560
      %v2569 = vsel %vm2561, 1, 0
      %v2570 = vsel %vm2562, 1, 0
      %v2571 = vsel %vm2563, 1, 0
      %v2572 = vsel %vm2564, 1, 0
      %v2573 = vsel %vm2565, 1, 0
      %v2574 = vsel %vm2566, 1, 0
      %v2575 = vsel %vm2567, 1, 0
      %v2576 = vsel %vm2568, 1, 0
      %v2577 = vcvt.s32.f32 %v2569
      %v2578 = vcvt.s32.f32 %v2570
      %v2579 = vcvt.s32.f32 %v2571
      %v2580 = vcvt.s32.f32 %v2572
      %v2581 = vcvt.s32.f32 %v2573
      %v2582 = vcvt.s32.f32 %v2574
      %v2583 = vcvt.s32.f32 %v2575
      %v2584 = vcvt.s32.f32 %v2576
      %v2586 = vsel %vm1152, %v2577, 0
      %v2589 = vsel %vm1152, %v2578, 0
      %v2592 = vsel %vm1152, %v2579, 0
      %v2595 = vsel %vm1152, %v2580, 0
      %v2598 = vsel %vm1152, %v2581, 0
      %v2601 = vsel %vm1152, %v2582, 0
      %v2604 = vsel %vm1152, %v2583, 0
      %v2607 = vsel %vm1152, %v2584, 0
      %2609 = vmatpush.msra.mxu0 0.0
      %2610 = vmatpush.msra.mxu0 0.0
      %2611 = vmatpush.msra.mxu0 0.0
      %2612 = vmatpush.msra.mxu0 0.0
      %2613 = vmatpush.msra.mxu0 0.0
      %2614 = vmatpush.msra.mxu0 0.0
      %2615 = vmatpush.msra.mxu0 0.0
      %2616 = vmatpush.msra.mxu0 0.0
      %2617 = vmatpush.msra.mxu0 %v939
      %2618 = vmatpush.msra.mxu0 %v938
      %2619 = vmatpush.msra.mxu0 %v937
      %2620 = vmatpush.msra.mxu0 %v936
      %2621 = vmatpush.msra.mxu0 %v935
      %2622 = vmatpush.msra.mxu0 %v934
      %2623 = vmatpush.msra.mxu0 %v933
      %2624 = vmatpush.msra.mxu0 %v932
      %2625 = vmatmul.f32.gmra.mxu0 %v2586
      %v2626 = vpop.f32.mrf.mxu0
      %v2627 = vadd.f32 0.0, %v2626
      %2628 = vmatmul.f32.gmra.mxu0 %v2589
      %v2629 = vpop.f32.mrf.mxu0
      %v2630 = vadd.f32 0.0, %v2629
      %2631 = vmatmul.f32.gmra.mxu0 %v2592
      %v2632 = vpop.f32.mrf.mxu0
      %v2633 = vadd.f32 0.0, %v2632
      %2634 = vmatmul.f32.gmra.mxu0 %v2595
      %v2635 = vpop.f32.mrf.mxu0
      %v2636 = vadd.f32 0.0, %v2635
      %2637 = vmatmul.f32.gmra.mxu0 %v2598
      %v2638 = vpop.f32.mrf.mxu0
      %v2639 = vadd.f32 0.0, %v2638
      %2640 = vmatmul.f32.gmra.mxu0 %v2601
      %v2641 = vpop.f32.mrf.mxu0
      %v2642 = vadd.f32 0.0, %v2641
      %2643 = vmatmul.f32.gmra.mxu0 %v2604
      %v2644 = vpop.f32.mrf.mxu0
      %v2645 = vadd.f32 0.0, %v2644
      %2646 = vmatmul.f32.gmra.mxu0 %v2607
      %v2647 = vpop.f32.mrf.mxu0
      %v2648 = vadd.f32 0.0, %v2647
      %2649 = vdwg.mxu0
      %v2650 = vmax.f32 %v2481, %v2627
      %v2651 = vmax.f32 %v2482, %v2630
      %v2652 = vmax.f32 %v2483, %v2633
      %v2653 = vmax.f32 %v2484, %v2636
      %v2654 = vmax.f32 %v2485, %v2639
      %v2655 = vmax.f32 %v2486, %v2642
      %v2656 = vmax.f32 %v2487, %v2645
      %v2657 = vmax.f32 %v2488, %v2648
      %v2658 = vsub.f32 %v2650, %v932
      %v2659 = vsub.f32 %v2651, %v933
      %v2660 = vsub.f32 %v2652, %v934
      %v2661 = vsub.f32 %v2653, %v935
      %v2662 = vsub.f32 %v2654, %v936
      %v2663 = vsub.f32 %v2655, %v937
      %v2664 = vsub.f32 %v2656, %v938
      %v2665 = vsub.f32 %v2657, %v939
      %v2667 = vsel %vm781, %v2658, 0
      %v2670 = vsel %vm781, %v2659, 0
      %v2673 = vsel %vm781, %v2660, 0
      %v2676 = vsel %vm781, %v2661, 0
      %v2679 = vsel %vm781, %v2662, 0
      %v2682 = vsel %vm781, %v2663, 0
      %v2685 = vsel %vm781, %v2664, 0
      %v2688 = vsel %vm781, %v2665, 0
      %v2691 = vsel %vm806, %v741, 0
      %2693 = vmatpush.msra.mxu0 0.0
      %2694 = vmatpush.msra.mxu0 0.0
      %2695 = vmatpush.msra.mxu0 0.0
      %2696 = vmatpush.msra.mxu0 0.0
      %2697 = vmatpush.msra.mxu0 0.0
      %2698 = vmatpush.msra.mxu0 0.0
      %2699 = vmatpush.msra.mxu0 0.0
      %2700 = vmatpush.msra.mxu0 0.0
      %2701 = vmatpush.msra.mxu0 0.0
      %2702 = vmatpush.msra.mxu0 0.0
      %2703 = vmatpush.msra.mxu0 0.0
      %2704 = vmatpush.msra.mxu0 0.0
      %2705 = vmatpush.msra.mxu0 0.0
      %2706 = vmatpush.msra.mxu0 0.0
      %2707 = vmatpush.msra.mxu0 0.0
      %2708 = vmatpush.msra.mxu0 %v2691
      %2709 = vmatmul.f32.gmra.mxu0 %v2667
      %v2710 = vpop.f32.mrf.mxu0
      %v2711 = vadd.f32 0.0, %v2710
      %2712 = vmatmul.f32.gmra.mxu0 %v2670
      %v2713 = vpop.f32.mrf.mxu0
      %v2714 = vadd.f32 0.0, %v2713
      %2715 = vmatmul.f32.gmra.mxu0 %v2673
      %v2716 = vpop.f32.mrf.mxu0
      %v2717 = vadd.f32 0.0, %v2716
      %2718 = vmatmul.f32.gmra.mxu0 %v2676
      %v2719 = vpop.f32.mrf.mxu0
      %v2720 = vadd.f32 0.0, %v2719
      %2721 = vmatmul.f32.gmra.mxu0 %v2679
      %v2722 = vpop.f32.mrf.mxu0
      %v2723 = vadd.f32 0.0, %v2722
      %2724 = vmatmul.f32.gmra.mxu0 %v2682
      %v2725 = vpop.f32.mrf.mxu0
      %v2726 = vadd.f32 0.0, %v2725
      %2727 = vmatmul.f32.gmra.mxu0 %v2685
      %v2728 = vpop.f32.mrf.mxu0
      %v2729 = vadd.f32 0.0, %v2728
      %2730 = vmatmul.f32.gmra.mxu0 %v2688
      %v2731 = vpop.f32.mrf.mxu0
      %v2732 = vadd.f32 0.0, %v2731
      %2733 = vdwg.mxu0
      %v2735 = vsel %vm781, %v932, 0
      %v2738 = vsel %vm781, %v933, 0
      %v2741 = vsel %vm781, %v934, 0
      %v2744 = vsel %vm781, %v935, 0
      %v2747 = vsel %vm781, %v936, 0
      %v2750 = vsel %vm781, %v937, 0
      %v2753 = vsel %vm781, %v938, 0
      %v2756 = vsel %vm781, %v939, 0
      %v2759 = vsel %vm806, %v740, 0
      %2761 = vmatpush.msra.mxu0 0.0
      %2762 = vmatpush.msra.mxu0 0.0
      %2763 = vmatpush.msra.mxu0 0.0
      %2764 = vmatpush.msra.mxu0 0.0
      %2765 = vmatpush.msra.mxu0 0.0
      %2766 = vmatpush.msra.mxu0 0.0
      %2767 = vmatpush.msra.mxu0 0.0
      %2768 = vmatpush.msra.mxu0 0.0
      %2769 = vmatpush.msra.mxu0 0.0
      %2770 = vmatpush.msra.mxu0 0.0
      %2771 = vmatpush.msra.mxu0 0.0
      %2772 = vmatpush.msra.mxu0 0.0
      %2773 = vmatpush.msra.mxu0 0.0
      %2774 = vmatpush.msra.mxu0 0.0
      %2775 = vmatpush.msra.mxu0 0.0
      %2776 = vmatpush.msra.mxu0 %v2759
      %2777 = vmatmul.f32.gmra.mxu0 %v2735
      %v2778 = vpop.f32.mrf.mxu0
      %v2779 = vadd.f32 %v2711, %v2778
      %2780 = vmatmul.f32.gmra.mxu0 %v2738
      %v2781 = vpop.f32.mrf.mxu0
      %v2782 = vadd.f32 %v2714, %v2781
      %2783 = vmatmul.f32.gmra.mxu0 %v2741
      %v2784 = vpop.f32.mrf.mxu0
      %v2785 = vadd.f32 %v2717, %v2784
      %2786 = vmatmul.f32.gmra.mxu0 %v2744
      %v2787 = vpop.f32.mrf.mxu0
      %v2788 = vadd.f32 %v2720, %v2787
      %2789 = vmatmul.f32.gmra.mxu0 %v2747
      %v2790 = vpop.f32.mrf.mxu0
      %v2791 = vadd.f32 %v2723, %v2790
      %2792 = vmatmul.f32.gmra.mxu0 %v2750
      %v2793 = vpop.f32.mrf.mxu0
      %v2794 = vadd.f32 %v2726, %v2793
      %2795 = vmatmul.f32.gmra.mxu0 %v2753
      %v2796 = vpop.f32.mrf.mxu0
      %v2797 = vadd.f32 %v2729, %v2796
      %2798 = vmatmul.f32.gmra.mxu0 %v2756
      %v2799 = vpop.f32.mrf.mxu0
      %v2800 = vadd.f32 %v2732, %v2799
      %2801 = vdwg.mxu0
      %v2803 = vperm.slane %v742, 0
      %v2805 = vadd.f32 %v2779, %v2803
      %v2806 = vadd.f32 %v2782, %v2803
      %v2807 = vadd.f32 %v2785, %v2803
      %v2808 = vadd.f32 %v2788, %v2803
      %v2809 = vadd.f32 %v2791, %v2803
      %v2810 = vadd.f32 %v2794, %v2803
      %v2811 = vadd.f32 %v2797, %v2803
      %v2812 = vadd.f32 %v2800, %v2803
      %vm2813 = vcmask 64512
      %v2814 = vsel %vm2813, %v2805, 0.0
      %v2815 = vsel %vm2813, %v2806, 0.0
      %v2816 = vadd.f32 %v2814, %v2815
      %v2817 = vsel %vm2813, %v2807, 0.0
      %v2818 = vadd.f32 %v2816, %v2817
      %v2819 = vsel %vm2813, %v2808, 0.0
      %v2820 = vadd.f32 %v2818, %v2819
      %v2821 = vsel %vm2813, %v2809, 0.0
      %v2822 = vadd.f32 %v2820, %v2821
      %v2823 = vsel %vm2813, %v2810, 0.0
      %v2824 = vadd.f32 %v2822, %v2823
      %v2825 = vsel %vm2813, %v2811, 0.0
      %v2826 = vadd.f32 %v2824, %v2825
      %v2827 = vsel %vm2813, %v2812, 0.0
      %v2828 = vadd.f32 %v2826, %v2827
      %v2829 = vrot.slane %v2828, 4
      %v2830 = vadd.f32 %v2828, %v2829
      %v2831 = vrot.slane %v2830, 2
      %v2832 = vadd.f32 %v2830, %v2831
      %v2833 = vrot.slane %v2832, 1
      %v2834 = vadd.f32 %v2832, %v2833
      %v2835 = vmul.f32 %v2834, %v878
      %v2836 = vmul.f32 %v2805, %v2805
      %v2837 = vmul.f32 %v2806, %v2806
      %v2838 = vmul.f32 %v2807, %v2807
      %v2839 = vmul.f32 %v2808, %v2808
      %v2840 = vmul.f32 %v2809, %v2809
      %v2841 = vmul.f32 %v2810, %v2810
      %v2842 = vmul.f32 %v2811, %v2811
      %v2843 = vmul.f32 %v2812, %v2812
      %v2844 = vsel %vm2813, %v2836, 0.0
      %v2845 = vsel %vm2813, %v2837, 0.0
      %v2846 = vadd.f32 %v2844, %v2845
      %v2847 = vsel %vm2813, %v2838, 0.0
      %v2848 = vadd.f32 %v2846, %v2847
      %v2849 = vsel %vm2813, %v2839, 0.0
      %v2850 = vadd.f32 %v2848, %v2849
      %v2851 = vsel %vm2813, %v2840, 0.0
      %v2852 = vadd.f32 %v2850, %v2851
      %v2853 = vsel %vm2813, %v2841, 0.0
      %v2854 = vadd.f32 %v2852, %v2853
      %v2855 = vsel %vm2813, %v2842, 0.0
      %v2856 = vadd.f32 %v2854, %v2855
      %v2857 = vsel %vm2813, %v2843, 0.0
      %v2858 = vadd.f32 %v2856, %v2857
      %v2859 = vrot.slane %v2858, 4
      %v2860 = vadd.f32 %v2858, %v2859
      %v2861 = vrot.slane %v2860, 2
      %v2862 = vadd.f32 %v2860, %v2861
      %v2863 = vrot.slane %v2862, 1
      %v2864 = vadd.f32 %v2862, %v2863
      %v2865 = vmul.f32 %v2864, %v878
      %v2866 = vmul.f32 %v2835, %v2835
      %v2867 = vsub.f32 %v2865, %v2866
      %v2868 = vmax.f32 %v2867, 0.0
      %v2869 = vsub.f32 %v2805, %v2835
      %v2870 = vsub.f32 %v2806, %v2835
      %v2871 = vsub.f32 %v2807, %v2835
      %v2872 = vsub.f32 %v2808, %v2835
      %v2873 = vsub.f32 %v2809, %v2835
      %v2874 = vsub.f32 %v2810, %v2835
      %v2875 = vsub.f32 %v2811, %v2835
      %v2876 = vsub.f32 %v2812, %v2835
      %v2877 = vadd.f32 %v2868, 1e-05
      %v2878 = vrsqrt.pop %v2877
      %v2879 = vmul.f32 %v2878, %v2877
      %v2880 = vmul.f32 %v2879, %v2878
      %v2881 = vmul.f32 0.5, %v2880
      %v2882 = vsub.f32 1.5, %v2881
      %v2883 = vmul.f32 %v2878, %v2882
      %vm2884 = vweird.f32 %v2877
      %vm2885 = vweird.f32 %v2878
      %vm2886 = vmor %vm2884, %vm2885
      %v2887 = vsel %vm2886, %v2878, %v2883
      %v2888 = vmul.f32 %v2869, %v2887
      %v2889 = vmul.f32 %v2870, %v2887
      %v2890 = vmul.f32 %v2871, %v2887
      %v2891 = vmul.f32 %v2872, %v2887
      %v2892 = vmul.f32 %v2873, %v2887
      %v2893 = vmul.f32 %v2874, %v2887
      %v2894 = vmul.f32 %v2875, %v2887
      %v2895 = vmul.f32 %v2876, %v2887
      %v2896 = vmul.f32 %v2888, 0.5
      %v2897 = vmul.f32 %v2889, 0.5
      %v2898 = vmul.f32 %v2890, 0.5
      %v2899 = vmul.f32 %v2891, 0.5
      %v2900 = vmul.f32 %v2892, 0.5
      %v2901 = vmul.f32 %v2893, 0.5
      %v2902 = vmul.f32 %v2894, 0.5
      %v2903 = vmul.f32 %v2895, 0.5
      %v2904 = vmul.f32 %v2888, 0.044715
      %v2905 = vmul.f32 %v2889, 0.044715
      %v2906 = vmul.f32 %v2890, 0.044715
      %v2907 = vmul.f32 %v2891, 0.044715
      %v2908 = vmul.f32 %v2892, 0.044715
      %v2909 = vmul.f32 %v2893, 0.044715
      %v2910 = vmul.f32 %v2894, 0.044715
      %v2911 = vmul.f32 %v2895, 0.044715
      %v2912 = vmul.f32 %v2904, %v2888
      %v2913 = vmul.f32 %v2905, %v2889
      %v2914 = vmul.f32 %v2906, %v2890
      %v2915 = vmul.f32 %v2907, %v2891
      %v2916 = vmul.f32 %v2908, %v2892
      %v2917 = vmul.f32 %v2909, %v2893
      %v2918 = vmul.f32 %v2910, %v2894
      %v2919 = vmul.f32 %v2911, %v2895
      %v2920 = vmul.f32 %v2912, %v2888
      %v2921 = vmul.f32 %v2913, %v2889
      %v2922 = vmul.f32 %v2914, %v2890
      %v2923 = vmul.f32 %v2915, %v2891
      %v2924 = vmul.f32 %v2916, %v2892
      %v2925 = vmul.f32 %v2917, %v2893
      %v2926 = vmul.f32 %v2918, %v2894
      %v2927 = vmul.f32 %v2919, %v2895
      %v2928 = vadd.f32 %v2888, %v2920
      %v2929 = vadd.f32 %v2889, %v2921
      %v2930 = vadd.f32 %v2890, %v2922
      %v2931 = vadd.f32 %v2891, %v2923
      %v2932 = vadd.f32 %v2892, %v2924
      %v2933 = vadd.f32 %v2893, %v2925
      %v2934 = vadd.f32 %v2894, %v2926
      %v2935 = vadd.f32 %v2895, %v2927
      %v2936 = vmul.f32 %v2928, 0.7978846
      %v2937 = vmul.f32 %v2929, 0.7978846
      %v2938 = vmul.f32 %v2930, 0.7978846
      %v2939 = vmul.f32 %v2931, 0.7978846
      %v2940 = vmul.f32 %v2932, 0.7978846
      %v2941 = vmul.f32 %v2933, 0.7978846
      %v2942 = vmul.f32 %v2934, 0.7978846
      %v2943 = vmul.f32 %v2935, 0.7978846
      %v2944 = vtanh.pop %v2936
      %v2945 = vtanh.pop %v2937
      %v2946 = vtanh.pop %v2938
      %v2947 = vtanh.pop %v2939
      %v2948 = vtanh.pop %v2940
      %v2949 = vtanh.pop %v2941
      %v2950 = vtanh.pop %v2942
      %v2951 = vtanh.pop %v2943
      %v2952 = vadd.f32 %v2944, 1.0
      %v2953 = vadd.f32 %v2945, 1.0
      %v2954 = vadd.f32 %v2946, 1.0
      %v2955 = vadd.f32 %v2947, 1.0
      %v2956 = vadd.f32 %v2948, 1.0
      %v2957 = vadd.f32 %v2949, 1.0
      %v2958 = vadd.f32 %v2950, 1.0
      %v2959 = vadd.f32 %v2951, 1.0
      %v2960 = vmul.f32 %v2896, %v2952
      %v2961 = vmul.f32 %v2897, %v2953
      %v2962 = vmul.f32 %v2898, %v2954
      %v2963 = vmul.f32 %v2899, %v2955
      %v2964 = vmul.f32 %v2900, %v2956
      %v2965 = vmul.f32 %v2901, %v2957
      %v2966 = vmul.f32 %v2902, %v2958
      %v2967 = vmul.f32 %v2903, %v2959
      %v2969 = vperm.slane %v744, 0
      %v2972 = vsel %vm2813, %v2960, 0
      %v2975 = vsel %vm2813, %v2961, 0
      %v2978 = vsel %vm2813, %v2962, 0
      %v2981 = vsel %vm2813, %v2963, 0
      %v2984 = vsel %vm2813, %v2964, 0
      %v2987 = vsel %vm2813, %v2965, 0
      %v2990 = vsel %vm2813, %v2966, 0
      %v2993 = vsel %vm2813, %v2967, 0
      %2995 = vmatpush.msra.mxu0 0.0
      %2996 = vmatpush.msra.mxu0 0.0
      %2997 = vmatpush.msra.mxu0 0.0
      %2998 = vmatpush.msra.mxu0 0.0
      %2999 = vmatpush.msra.mxu0 0.0
      %3000 = vmatpush.msra.mxu0 0.0
      %3001 = vmatpush.msra.mxu0 0.0
      %3002 = vmatpush.msra.mxu0 0.0
      %3003 = vmatpush.msra.mxu0 0.0
      %3004 = vmatpush.msra.mxu0 0.0
      %3005 = vmatpush.msra.mxu0 0.0
      %3006 = vmatpush.msra.mxu0 0.0
      %3007 = vmatpush.msra.mxu0 0.0
      %3008 = vmatpush.msra.mxu0 0.0
      %3009 = vmatpush.msra.mxu0 0.0
      %3010 = vmatpush.msra.mxu0 %v743
      %3011 = vmatmul.f32.gmra.mxu0 %v2972
      %v3012 = vpop.f32.mrf.mxu0
      %v3013 = vadd.f32 %v2969, %v3012
      %3014 = vmatmul.f32.gmra.mxu0 %v2975
      %v3015 = vpop.f32.mrf.mxu0
      %v3016 = vadd.f32 %v2969, %v3015
      %3017 = vmatmul.f32.gmra.mxu0 %v2978
      %v3018 = vpop.f32.mrf.mxu0
      %v3019 = vadd.f32 %v2969, %v3018
      %3020 = vmatmul.f32.gmra.mxu0 %v2981
      %v3021 = vpop.f32.mrf.mxu0
      %v3022 = vadd.f32 %v2969, %v3021
      %3023 = vmatmul.f32.gmra.mxu0 %v2984
      %v3024 = vpop.f32.mrf.mxu0
      %v3025 = vadd.f32 %v2969, %v3024
      %3026 = vmatmul.f32.gmra.mxu0 %v2987
      %v3027 = vpop.f32.mrf.mxu0
      %v3028 = vadd.f32 %v2969, %v3027
      %3029 = vmatmul.f32.gmra.mxu0 %v2990
      %v3030 = vpop.f32.mrf.mxu0
      %v3031 = vadd.f32 %v2969, %v3030
      %3032 = vmatmul.f32.gmra.mxu0 %v2993
      %v3033 = vpop.f32.mrf.mxu0
      %v3034 = vadd.f32 %v2969, %v3033
      %3035 = vdwg.mxu0
      %v3036 = vsel %vm781, %v3013, 0.0
      %v3037 = vsel %vm781, %v3016, 0.0
      %v3038 = vadd.f32 %v3036, %v3037
      %v3039 = vsel %vm781, %v3019, 0.0
      %v3040 = vadd.f32 %v3038, %v3039
      %v3041 = vsel %vm781, %v3022, 0.0
      %v3042 = vadd.f32 %v3040, %v3041
      %v3043 = vsel %vm781, %v3025, 0.0
      %v3044 = vadd.f32 %v3042, %v3043
      %v3045 = vsel %vm781, %v3028, 0.0
      %v3046 = vadd.f32 %v3044, %v3045
      %v3047 = vsel %vm781, %v3031, 0.0
      %v3048 = vadd.f32 %v3046, %v3047
      %v3049 = vsel %vm781, %v3034, 0.0
      %v3050 = vadd.f32 %v3048, %v3049
      %v3051 = vrot.slane %v3050, 4
      %v3052 = vadd.f32 %v3050, %v3051
      %v3053 = vrot.slane %v3052, 2
      %v3054 = vadd.f32 %v3052, %v3053
      %v3055 = vrot.slane %v3054, 1
      %v3056 = vadd.f32 %v3054, %v3055
      %v3057 = vmul.f32 %v3056, %v878
      %v3058 = vmul.f32 %v3013, %v3013
      %v3059 = vmul.f32 %v3016, %v3016
      %v3060 = vmul.f32 %v3019, %v3019
      %v3061 = vmul.f32 %v3022, %v3022
      %v3062 = vmul.f32 %v3025, %v3025
      %v3063 = vmul.f32 %v3028, %v3028
      %v3064 = vmul.f32 %v3031, %v3031
      %v3065 = vmul.f32 %v3034, %v3034
      %v3066 = vsel %vm781, %v3058, 0.0
      %v3067 = vsel %vm781, %v3059, 0.0
      %v3068 = vadd.f32 %v3066, %v3067
      %v3069 = vsel %vm781, %v3060, 0.0
      %v3070 = vadd.f32 %v3068, %v3069
      %v3071 = vsel %vm781, %v3061, 0.0
      %v3072 = vadd.f32 %v3070, %v3071
      %v3073 = vsel %vm781, %v3062, 0.0
      %v3074 = vadd.f32 %v3072, %v3073
      %v3075 = vsel %vm781, %v3063, 0.0
      %v3076 = vadd.f32 %v3074, %v3075
      %v3077 = vsel %vm781, %v3064, 0.0
      %v3078 = vadd.f32 %v3076, %v3077
      %v3079 = vsel %vm781, %v3065, 0.0
      %v3080 = vadd.f32 %v3078, %v3079
      %v3081 = vrot.slane %v3080, 4
      %v3082 = vadd.f32 %v3080, %v3081
      %v3083 = vrot.slane %v3082, 2
      %v3084 = vadd.f32 %v3082, %v3083
      %v3085 = vrot.slane %v3084, 1
      %v3086 = vadd.f32 %v3084, %v3085
      %v3087 = vmul.f32 %v3086, %v878
      %v3088 = vmul.f32 %v3057, %v3057
      %v3089 = vsub.f32 %v3087, %v3088
      %v3090 = vmax.f32 %v3089, 0.0
      %v3091 = vsub.f32 %v3013, %v3057
      %v3092 = vsub.f32 %v3016, %v3057
      %v3093 = vsub.f32 %v3019, %v3057
      %v3094 = vsub.f32 %v3022, %v3057
      %v3095 = vsub.f32 %v3025, %v3057
      %v3096 = vsub.f32 %v3028, %v3057
      %v3097 = vsub.f32 %v3031, %v3057
      %v3098 = vsub.f32 %v3034, %v3057
      %v3099 = vadd.f32 %v3090, 1e-05
      %v3100 = vrsqrt.pop %v3099
      %v3101 = vmul.f32 %v3100, %v3099
      %v3102 = vmul.f32 %v3101, %v3100
      %v3103 = vmul.f32 0.5, %v3102
      %v3104 = vsub.f32 1.5, %v3103
      %v3105 = vmul.f32 %v3100, %v3104
      %vm3106 = vweird.f32 %v3099
      %vm3107 = vweird.f32 %v3100
      %vm3108 = vmor %vm3106, %vm3107
      %v3109 = vsel %vm3108, %v3100, %v3105
      %v3110 = vmul.f32 %v3091, %v3109
      %v3111 = vmul.f32 %v3092, %v3109
      %v3112 = vmul.f32 %v3093, %v3109
      %v3113 = vmul.f32 %v3094, %v3109
      %v3114 = vmul.f32 %v3095, %v3109
      %v3115 = vmul.f32 %v3096, %v3109
      %v3116 = vmul.f32 %v3097, %v3109
      %v3117 = vmul.f32 %v3098, %v3109
      %v3118 = vadd.f32 %v3110, %v762
      %v3119 = vadd.f32 %v3111, %v763
      %v3120 = vadd.f32 %v3112, %v764
      %v3121 = vadd.f32 %v3113, %v765
      %v3122 = vadd.f32 %v3114, %v766
      %v3123 = vadd.f32 %v3115, %v767
      %v3124 = vadd.f32 %v3116, %v768
      %v3125 = vadd.f32 %v3117, %v769
      %v3127 = vperm.slane %v746, 0
      %v3130 = vsel %vm781, %v3118, 0
      %v3133 = vsel %vm781, %v3119, 0
      %v3136 = vsel %vm781, %v3120, 0
      %v3139 = vsel %vm781, %v3121, 0
      %v3142 = vsel %vm781, %v3122, 0
      %v3145 = vsel %vm781, %v3123, 0
      %v3148 = vsel %vm781, %v3124, 0
      %v3151 = vsel %vm781, %v3125, 0
      %v3154 = vsel %vm806, %v745, 0
      %3156 = vmatpush.msra.mxu0 0.0
      %3157 = vmatpush.msra.mxu0 0.0
      %3158 = vmatpush.msra.mxu0 0.0
      %3159 = vmatpush.msra.mxu0 0.0
      %3160 = vmatpush.msra.mxu0 0.0
      %3161 = vmatpush.msra.mxu0 0.0
      %3162 = vmatpush.msra.mxu0 0.0
      %3163 = vmatpush.msra.mxu0 0.0
      %3164 = vmatpush.msra.mxu0 0.0
      %3165 = vmatpush.msra.mxu0 0.0
      %3166 = vmatpush.msra.mxu0 0.0
      %3167 = vmatpush.msra.mxu0 0.0
      %3168 = vmatpush.msra.mxu0 0.0
      %3169 = vmatpush.msra.mxu0 0.0
      %3170 = vmatpush.msra.mxu0 0.0
      %3171 = vmatpush.msra.mxu0 %v3154
      %3172 = vmatmul.f32.gmra.mxu0 %v3130
      %v3173 = vpop.f32.mrf.mxu0
      %v3174 = vadd.f32 %v3127, %v3173
      %3175 = vmatmul.f32.gmra.mxu0 %v3133
      %v3176 = vpop.f32.mrf.mxu0
      %v3177 = vadd.f32 %v3127, %v3176
      %3178 = vmatmul.f32.gmra.mxu0 %v3136
      %v3179 = vpop.f32.mrf.mxu0
      %v3180 = vadd.f32 %v3127, %v3179
      %3181 = vmatmul.f32.gmra.mxu0 %v3139
      %v3182 = vpop.f32.mrf.mxu0
      %v3183 = vadd.f32 %v3127, %v3182
      %3184 = vmatmul.f32.gmra.mxu0 %v3142
      %v3185 = vpop.f32.mrf.mxu0
      %v3186 = vadd.f32 %v3127, %v3185
      %3187 = vmatmul.f32.gmra.mxu0 %v3145
      %v3188 = vpop.f32.mrf.mxu0
      %v3189 = vadd.f32 %v3127, %v3188
      %3190 = vmatmul.f32.gmra.mxu0 %v3148
      %v3191 = vpop.f32.mrf.mxu0
      %v3192 = vadd.f32 %v3127, %v3191
      %3193 = vmatmul.f32.gmra.mxu0 %v3151
      %v3194 = vpop.f32.mrf.mxu0
      %v3195 = vadd.f32 %v3127, %v3194
      %3196 = vdwg.mxu0
      %vm3197 = vcmask 130048
      %v3198 = vsel %vm3197, %v3174, 0.0
      %v3199 = vsel %vm3197, %v3177, 0.0
      %v3200 = vadd.f32 %v3198, %v3199
      %v3201 = vsel %vm3197, %v3180, 0.0
      %v3202 = vadd.f32 %v3200, %v3201
      %v3203 = vsel %vm3197, %v3183, 0.0
      %v3204 = vadd.f32 %v3202, %v3203
      %v3205 = vsel %vm3197, %v3186, 0.0
      %v3206 = vadd.f32 %v3204, %v3205
      %v3207 = vsel %vm3197, %v3189, 0.0
      %v3208 = vadd.f32 %v3206, %v3207
      %v3209 = vsel %vm3197, %v3192, 0.0
      %v3210 = vadd.f32 %v3208, %v3209
      %v3211 = vsel %vm3197, %v3195, 0.0
      %v3212 = vadd.f32 %v3210, %v3211
      %v3213 = vrot.slane %v3212, 4
      %v3214 = vadd.f32 %v3212, %v3213
      %v3215 = vrot.slane %v3214, 2
      %v3216 = vadd.f32 %v3214, %v3215
      %v3217 = vrot.slane %v3216, 1
      %v3218 = vadd.f32 %v3216, %v3217
      %v3219 = vmul.f32 %v3218, %v878
      %v3220 = vmul.f32 %v3174, %v3174
      %v3221 = vmul.f32 %v3177, %v3177
      %v3222 = vmul.f32 %v3180, %v3180
      %v3223 = vmul.f32 %v3183, %v3183
      %v3224 = vmul.f32 %v3186, %v3186
      %v3225 = vmul.f32 %v3189, %v3189
      %v3226 = vmul.f32 %v3192, %v3192
      %v3227 = vmul.f32 %v3195, %v3195
      %v3228 = vsel %vm3197, %v3220, 0.0
      %v3229 = vsel %vm3197, %v3221, 0.0
      %v3230 = vadd.f32 %v3228, %v3229
      %v3231 = vsel %vm3197, %v3222, 0.0
      %v3232 = vadd.f32 %v3230, %v3231
      %v3233 = vsel %vm3197, %v3223, 0.0
      %v3234 = vadd.f32 %v3232, %v3233
      %v3235 = vsel %vm3197, %v3224, 0.0
      %v3236 = vadd.f32 %v3234, %v3235
      %v3237 = vsel %vm3197, %v3225, 0.0
      %v3238 = vadd.f32 %v3236, %v3237
      %v3239 = vsel %vm3197, %v3226, 0.0
      %v3240 = vadd.f32 %v3238, %v3239
      %v3241 = vsel %vm3197, %v3227, 0.0
      %v3242 = vadd.f32 %v3240, %v3241
      %v3243 = vrot.slane %v3242, 4
      %v3244 = vadd.f32 %v3242, %v3243
      %v3245 = vrot.slane %v3244, 2
      %v3246 = vadd.f32 %v3244, %v3245
      %v3247 = vrot.slane %v3246, 1
      %v3248 = vadd.f32 %v3246, %v3247
      %v3249 = vmul.f32 %v3248, %v878
      %v3250 = vmul.f32 %v3219, %v3219
      %v3251 = vsub.f32 %v3249, %v3250
      %v3252 = vmax.f32 %v3251, 0.0
      %v3253 = vsub.f32 %v3174, %v3219
      %v3254 = vsub.f32 %v3177, %v3219
      %v3255 = vsub.f32 %v3180, %v3219
      %v3256 = vsub.f32 %v3183, %v3219
      %v3257 = vsub.f32 %v3186, %v3219
      %v3258 = vsub.f32 %v3189, %v3219
      %v3259 = vsub.f32 %v3192, %v3219
      %v3260 = vsub.f32 %v3195, %v3219
      %v3261 = vadd.f32 %v3252, 1e-05
      %v3262 = vrsqrt.pop %v3261
      %v3263 = vmul.f32 %v3262, %v3261
      %v3264 = vmul.f32 %v3263, %v3262
      %v3265 = vmul.f32 0.5, %v3264
      %v3266 = vsub.f32 1.5, %v3265
      %v3267 = vmul.f32 %v3262, %v3266
      %vm3268 = vweird.f32 %v3261
      %vm3269 = vweird.f32 %v3262
      %vm3270 = vmor %vm3268, %vm3269
      %v3271 = vsel %vm3270, %v3262, %v3267
      %v3272 = vmul.f32 %v3253, %v3271
      %v3273 = vmul.f32 %v3254, %v3271
      %v3274 = vmul.f32 %v3255, %v3271
      %v3275 = vmul.f32 %v3256, %v3271
      %v3276 = vmul.f32 %v3257, %v3271
      %v3277 = vmul.f32 %v3258, %v3271
      %v3278 = vmul.f32 %v3259, %v3271
      %v3279 = vmul.f32 %v3260, %v3271
      %v3280 = vmul.f32 %v3272, 0.5
      %v3281 = vmul.f32 %v3273, 0.5
      %v3282 = vmul.f32 %v3274, 0.5
      %v3283 = vmul.f32 %v3275, 0.5
      %v3284 = vmul.f32 %v3276, 0.5
      %v3285 = vmul.f32 %v3277, 0.5
      %v3286 = vmul.f32 %v3278, 0.5
      %v3287 = vmul.f32 %v3279, 0.5
      %v3288 = vmul.f32 %v3272, 0.044715
      %v3289 = vmul.f32 %v3273, 0.044715
      %v3290 = vmul.f32 %v3274, 0.044715
      %v3291 = vmul.f32 %v3275, 0.044715
      %v3292 = vmul.f32 %v3276, 0.044715
      %v3293 = vmul.f32 %v3277, 0.044715
      %v3294 = vmul.f32 %v3278, 0.044715
      %v3295 = vmul.f32 %v3279, 0.044715
      %v3296 = vmul.f32 %v3288, %v3272
      %v3297 = vmul.f32 %v3289, %v3273
      %v3298 = vmul.f32 %v3290, %v3274
      %v3299 = vmul.f32 %v3291, %v3275
      %v3300 = vmul.f32 %v3292, %v3276
      %v3301 = vmul.f32 %v3293, %v3277
      %v3302 = vmul.f32 %v3294, %v3278
      %v3303 = vmul.f32 %v3295, %v3279
      %v3304 = vmul.f32 %v3296, %v3272
      %v3305 = vmul.f32 %v3297, %v3273
      %v3306 = vmul.f32 %v3298, %v3274
      %v3307 = vmul.f32 %v3299, %v3275
      %v3308 = vmul.f32 %v3300, %v3276
      %v3309 = vmul.f32 %v3301, %v3277
      %v3310 = vmul.f32 %v3302, %v3278
      %v3311 = vmul.f32 %v3303, %v3279
      %v3312 = vadd.f32 %v3272, %v3304
      %v3313 = vadd.f32 %v3273, %v3305
      %v3314 = vadd.f32 %v3274, %v3306
      %v3315 = vadd.f32 %v3275, %v3307
      %v3316 = vadd.f32 %v3276, %v3308
      %v3317 = vadd.f32 %v3277, %v3309
      %v3318 = vadd.f32 %v3278, %v3310
      %v3319 = vadd.f32 %v3279, %v3311
      %v3320 = vmul.f32 %v3312, 0.7978846
      %v3321 = vmul.f32 %v3313, 0.7978846
      %v3322 = vmul.f32 %v3314, 0.7978846
      %v3323 = vmul.f32 %v3315, 0.7978846
      %v3324 = vmul.f32 %v3316, 0.7978846
      %v3325 = vmul.f32 %v3317, 0.7978846
      %v3326 = vmul.f32 %v3318, 0.7978846
      %v3327 = vmul.f32 %v3319, 0.7978846
      %v3328 = vtanh.pop %v3320
      %v3329 = vtanh.pop %v3321
      %v3330 = vtanh.pop %v3322
      %v3331 = vtanh.pop %v3323
      %v3332 = vtanh.pop %v3324
      %v3333 = vtanh.pop %v3325
      %v3334 = vtanh.pop %v3326
      %v3335 = vtanh.pop %v3327
      %v3336 = vadd.f32 %v3328, 1.0
      %v3337 = vadd.f32 %v3329, 1.0
      %v3338 = vadd.f32 %v3330, 1.0
      %v3339 = vadd.f32 %v3331, 1.0
      %v3340 = vadd.f32 %v3332, 1.0
      %v3341 = vadd.f32 %v3333, 1.0
      %v3342 = vadd.f32 %v3334, 1.0
      %v3343 = vadd.f32 %v3335, 1.0
      %v3344 = vmul.f32 %v3280, %v3336
      %v3345 = vmul.f32 %v3281, %v3337
      %v3346 = vmul.f32 %v3282, %v3338
      %v3347 = vmul.f32 %v3283, %v3339
      %v3348 = vmul.f32 %v3284, %v3340
      %v3349 = vmul.f32 %v3285, %v3341
      %v3350 = vmul.f32 %v3286, %v3342
      %v3351 = vmul.f32 %v3287, %v3343
      %v3353 = vperm.slane %v749, 0
      %v3356 = vsel %vm3197, %v3344, 0
      %v3359 = vsel %vm3197, %v3345, 0
      %v3362 = vsel %vm3197, %v3346, 0
      %v3365 = vsel %vm3197, %v3347, 0
      %v3368 = vsel %vm3197, %v3348, 0
      %v3371 = vsel %vm3197, %v3349, 0
      %v3374 = vsel %vm3197, %v3350, 0
      %v3377 = vsel %vm3197, %v3351, 0
      %3379 = vmatpush.msra.mxu0 0.0
      %3380 = vmatpush.msra.mxu0 0.0
      %3381 = vmatpush.msra.mxu0 0.0
      %3382 = vmatpush.msra.mxu0 0.0
      %3383 = vmatpush.msra.mxu0 0.0
      %3384 = vmatpush.msra.mxu0 0.0
      %3385 = vmatpush.msra.mxu0 0.0
      %3386 = vmatpush.msra.mxu0 0.0
      %3387 = vmatpush.msra.mxu0 0.0
      %3388 = vmatpush.msra.mxu0 0.0
      %3389 = vmatpush.msra.mxu0 0.0
      %3390 = vmatpush.msra.mxu0 0.0
      %3391 = vmatpush.msra.mxu0 0.0
      %3392 = vmatpush.msra.mxu0 0.0
      %3393 = vmatpush.msra.mxu0 %v748
      %3394 = vmatpush.msra.mxu0 %v747
      %3395 = vmatmul.f32.gmra.mxu0 %v3356
      %v3396 = vpop.f32.mrf.mxu0
      %v3397 = vadd.f32 %v3353, %v3396
      %3398 = vmatmul.f32.gmra.mxu0 %v3359
      %v3399 = vpop.f32.mrf.mxu0
      %v3400 = vadd.f32 %v3353, %v3399
      %3401 = vmatmul.f32.gmra.mxu0 %v3362
      %v3402 = vpop.f32.mrf.mxu0
      %v3403 = vadd.f32 %v3353, %v3402
      %3404 = vmatmul.f32.gmra.mxu0 %v3365
      %v3405 = vpop.f32.mrf.mxu0
      %v3406 = vadd.f32 %v3353, %v3405
      %3407 = vmatmul.f32.gmra.mxu0 %v3368
      %v3408 = vpop.f32.mrf.mxu0
      %v3409 = vadd.f32 %v3353, %v3408
      %3410 = vmatmul.f32.gmra.mxu0 %v3371
      %v3411 = vpop.f32.mrf.mxu0
      %v3412 = vadd.f32 %v3353, %v3411
      %3413 = vmatmul.f32.gmra.mxu0 %v3374
      %v3414 = vpop.f32.mrf.mxu0
      %v3415 = vadd.f32 %v3353, %v3414
      %3416 = vmatmul.f32.gmra.mxu0 %v3377
      %v3417 = vpop.f32.mrf.mxu0
      %v3418 = vadd.f32 %v3353, %v3417
      %3419 = vdwg.mxu0
      %v3420 = vsel %vm781, %v3397, 0.0
      %v3421 = vsel %vm781, %v3400, 0.0
      %v3422 = vadd.f32 %v3420, %v3421
      %v3423 = vsel %vm781, %v3403, 0.0
      %v3424 = vadd.f32 %v3422, %v3423
      %v3425 = vsel %vm781, %v3406, 0.0
      %v3426 = vadd.f32 %v3424, %v3425
      %v3427 = vsel %vm781, %v3409, 0.0
      %v3428 = vadd.f32 %v3426, %v3427
      %v3429 = vsel %vm781, %v3412, 0.0
      %v3430 = vadd.f32 %v3428, %v3429
      %v3431 = vsel %vm781, %v3415, 0.0
      %v3432 = vadd.f32 %v3430, %v3431
      %v3433 = vsel %vm781, %v3418, 0.0
      %v3434 = vadd.f32 %v3432, %v3433
      %v3435 = vrot.slane %v3434, 4
      %v3436 = vadd.f32 %v3434, %v3435
      %v3437 = vrot.slane %v3436, 2
      %v3438 = vadd.f32 %v3436, %v3437
      %v3439 = vrot.slane %v3438, 1
      %v3440 = vadd.f32 %v3438, %v3439
      %v3441 = vmul.f32 %v3440, %v878
      %v3442 = vmul.f32 %v3397, %v3397
      %v3443 = vmul.f32 %v3400, %v3400
      %v3444 = vmul.f32 %v3403, %v3403
      %v3445 = vmul.f32 %v3406, %v3406
      %v3446 = vmul.f32 %v3409, %v3409
      %v3447 = vmul.f32 %v3412, %v3412
      %v3448 = vmul.f32 %v3415, %v3415
      %v3449 = vmul.f32 %v3418, %v3418
      %v3450 = vsel %vm781, %v3442, 0.0
      %v3451 = vsel %vm781, %v3443, 0.0
      %v3452 = vadd.f32 %v3450, %v3451
      %v3453 = vsel %vm781, %v3444, 0.0
      %v3454 = vadd.f32 %v3452, %v3453
      %v3455 = vsel %vm781, %v3445, 0.0
      %v3456 = vadd.f32 %v3454, %v3455
      %v3457 = vsel %vm781, %v3446, 0.0
      %v3458 = vadd.f32 %v3456, %v3457
      %v3459 = vsel %vm781, %v3447, 0.0
      %v3460 = vadd.f32 %v3458, %v3459
      %v3461 = vsel %vm781, %v3448, 0.0
      %v3462 = vadd.f32 %v3460, %v3461
      %v3463 = vsel %vm781, %v3449, 0.0
      %v3464 = vadd.f32 %v3462, %v3463
      %v3465 = vrot.slane %v3464, 4
      %v3466 = vadd.f32 %v3464, %v3465
      %v3467 = vrot.slane %v3466, 2
      %v3468 = vadd.f32 %v3466, %v3467
      %v3469 = vrot.slane %v3468, 1
      %v3470 = vadd.f32 %v3468, %v3469
      %v3471 = vmul.f32 %v3470, %v878
      %v3472 = vmul.f32 %v3441, %v3441
      %v3473 = vsub.f32 %v3471, %v3472
      %v3474 = vmax.f32 %v3473, 0.0
      %v3475 = vsub.f32 %v3397, %v3441
      %v3476 = vsub.f32 %v3400, %v3441
      %v3477 = vsub.f32 %v3403, %v3441
      %v3478 = vsub.f32 %v3406, %v3441
      %v3479 = vsub.f32 %v3409, %v3441
      %v3480 = vsub.f32 %v3412, %v3441
      %v3481 = vsub.f32 %v3415, %v3441
      %v3482 = vsub.f32 %v3418, %v3441
      %v3483 = vadd.f32 %v3474, 1e-05
      %v3484 = vrsqrt.pop %v3483
      %v3485 = vmul.f32 %v3484, %v3483
      %v3486 = vmul.f32 %v3485, %v3484
      %v3487 = vmul.f32 0.5, %v3486
      %v3488 = vsub.f32 1.5, %v3487
      %v3489 = vmul.f32 %v3484, %v3488
      %vm3490 = vweird.f32 %v3483
      %vm3491 = vweird.f32 %v3484
      %vm3492 = vmor %vm3490, %vm3491
      %v3493 = vsel %vm3492, %v3484, %v3489
      %v3494 = vmul.f32 %v3475, %v3493
      %v3495 = vmul.f32 %v3476, %v3493
      %v3496 = vmul.f32 %v3477, %v3493
      %v3497 = vmul.f32 %v3478, %v3493
      %v3498 = vmul.f32 %v3479, %v3493
      %v3499 = vmul.f32 %v3480, %v3493
      %v3500 = vmul.f32 %v3481, %v3493
      %v3501 = vmul.f32 %v3482, %v3493
      %v3502 = vadd.f32 %v3494, %v3118
      %v3503 = vadd.f32 %v3495, %v3119
      %v3504 = vadd.f32 %v3496, %v3120
      %v3505 = vadd.f32 %v3497, %v3121
      %v3506 = vadd.f32 %v3498, %v3122
      %v3507 = vadd.f32 %v3499, %v3123
      %v3508 = vadd.f32 %v3500, %v3124
      %v3509 = vadd.f32 %v3501, %v3125
      %v3510 = vsel %vm781, %v3502, 0.0
      %v3511 = vsel %vm781, %v3503, 0.0
      %v3512 = vadd.f32 %v3510, %v3511
      %v3513 = vsel %vm781, %v3504, 0.0
      %v3514 = vadd.f32 %v3512, %v3513
      %v3515 = vsel %vm781, %v3505, 0.0
      %v3516 = vadd.f32 %v3514, %v3515
      %v3517 = vsel %vm781, %v3506, 0.0
      %v3518 = vadd.f32 %v3516, %v3517
      %v3519 = vsel %vm781, %v3507, 0.0
      %v3520 = vadd.f32 %v3518, %v3519
      %v3521 = vsel %vm781, %v3508, 0.0
      %v3522 = vadd.f32 %v3520, %v3521
      %v3523 = vsel %vm781, %v3509, 0.0
      %v3524 = vadd.f32 %v3522, %v3523
      %v3525 = vrot.slane %v3524, 4
      %v3526 = vadd.f32 %v3524, %v3525
      %v3527 = vrot.slane %v3526, 2
      %v3528 = vadd.f32 %v3526, %v3527
      %v3529 = vrot.slane %v3528, 1
      %v3530 = vadd.f32 %v3528, %v3529
      %v3531 = vmul.f32 %v3530, %v878
      %v3532 = vmul.f32 %v3502, %v3502
      %v3533 = vmul.f32 %v3503, %v3503
      %v3534 = vmul.f32 %v3504, %v3504
      %v3535 = vmul.f32 %v3505, %v3505
      %v3536 = vmul.f32 %v3506, %v3506
      %v3537 = vmul.f32 %v3507, %v3507
      %v3538 = vmul.f32 %v3508, %v3508
      %v3539 = vmul.f32 %v3509, %v3509
      %v3540 = vsel %vm781, %v3532, 0.0
      %v3541 = vsel %vm781, %v3533, 0.0
      %v3542 = vadd.f32 %v3540, %v3541
      %v3543 = vsel %vm781, %v3534, 0.0
      %v3544 = vadd.f32 %v3542, %v3543
      %v3545 = vsel %vm781, %v3535, 0.0
      %v3546 = vadd.f32 %v3544, %v3545
      %v3547 = vsel %vm781, %v3536, 0.0
      %v3548 = vadd.f32 %v3546, %v3547
      %v3549 = vsel %vm781, %v3537, 0.0
      %v3550 = vadd.f32 %v3548, %v3549
      %v3551 = vsel %vm781, %v3538, 0.0
      %v3552 = vadd.f32 %v3550, %v3551
      %v3553 = vsel %vm781, %v3539, 0.0
      %v3554 = vadd.f32 %v3552, %v3553
      %v3555 = vrot.slane %v3554, 4
      %v3556 = vadd.f32 %v3554, %v3555
      %v3557 = vrot.slane %v3556, 2
      %v3558 = vadd.f32 %v3556, %v3557
      %v3559 = vrot.slane %v3558, 1
      %v3560 = vadd.f32 %v3558, %v3559
      %v3561 = vmul.f32 %v3560, %v878
      %v3562 = vmul.f32 %v3531, %v3531
      %v3563 = vsub.f32 %v3561, %v3562
      %v3564 = vmax.f32 %v3563, 0.0
      %v3565 = vsub.f32 %v3502, %v3531
      %v3566 = vsub.f32 %v3503, %v3531
      %v3567 = vsub.f32 %v3504, %v3531
      %v3568 = vsub.f32 %v3505, %v3531
      %v3569 = vsub.f32 %v3506, %v3531
      %v3570 = vsub.f32 %v3507, %v3531
      %v3571 = vsub.f32 %v3508, %v3531
      %v3572 = vsub.f32 %v3509, %v3531
      %v3573 = vadd.f32 %v3564, 1e-05
      %v3574 = vrsqrt.pop %v3573
      %v3575 = vmul.f32 %v3574, %v3573
      %v3576 = vmul.f32 %v3575, %v3574
      %v3577 = vmul.f32 0.5, %v3576
      %v3578 = vsub.f32 1.5, %v3577
      %v3579 = vmul.f32 %v3574, %v3578
      %vm3580 = vweird.f32 %v3573
      %vm3581 = vweird.f32 %v3574
      %vm3582 = vmor %vm3580, %vm3581
      %v3583 = vsel %vm3582, %v3574, %v3579
      %v3584 = vmul.f32 %v3565, %v3583
      %v3585 = vmul.f32 %v3566, %v3583
      %v3586 = vmul.f32 %v3567, %v3583
      %v3587 = vmul.f32 %v3568, %v3583
      %v3588 = vmul.f32 %v3569, %v3583
      %v3589 = vmul.f32 %v3570, %v3583
      %v3590 = vmul.f32 %v3571, %v3583
      %v3591 = vmul.f32 %v3572, %v3583
      %v3592 = vmax.f32 %v3584, 0.0
      %v3593 = vmax.f32 %v3585, 0.0
      %v3594 = vmax.f32 %v3586, 0.0
      %v3595 = vmax.f32 %v3587, 0.0
      %v3596 = vmax.f32 %v3588, 0.0
      %v3597 = vmax.f32 %v3589, 0.0
      %v3598 = vmax.f32 %v3590, 0.0
      %v3599 = vmax.f32 %v3591, 0.0
      %v3601 = vperm.slane %v751, 0
      %v3604 = vsel %vm781, %v3592, 0
      %v3607 = vsel %vm781, %v3593, 0
      %v3610 = vsel %vm781, %v3594, 0
      %v3613 = vsel %vm781, %v3595, 0
      %v3616 = vsel %vm781, %v3596, 0
      %v3619 = vsel %vm781, %v3597, 0
      %v3622 = vsel %vm781, %v3598, 0
      %v3625 = vsel %vm781, %v3599, 0
      %v3628 = vsel %vm806, %v750, 0
      %3630 = vmatpush.msra.mxu0 0.0
      %3631 = vmatpush.msra.mxu0 0.0
      %3632 = vmatpush.msra.mxu0 0.0
      %3633 = vmatpush.msra.mxu0 0.0
      %3634 = vmatpush.msra.mxu0 0.0
      %3635 = vmatpush.msra.mxu0 0.0
      %3636 = vmatpush.msra.mxu0 0.0
      %3637 = vmatpush.msra.mxu0 0.0
      %3638 = vmatpush.msra.mxu0 0.0
      %3639 = vmatpush.msra.mxu0 0.0
      %3640 = vmatpush.msra.mxu0 0.0
      %3641 = vmatpush.msra.mxu0 0.0
      %3642 = vmatpush.msra.mxu0 0.0
      %3643 = vmatpush.msra.mxu0 0.0
      %3644 = vmatpush.msra.mxu0 0.0
      %3645 = vmatpush.msra.mxu0 %v3628
      %3646 = vmatmul.f32.gmra.mxu0 %v3604
      %v3647 = vpop.f32.mrf.mxu0
      %v3648 = vadd.f32 %v3601, %v3647
      %3649 = vmatmul.f32.gmra.mxu0 %v3607
      %v3650 = vpop.f32.mrf.mxu0
      %v3651 = vadd.f32 %v3601, %v3650
      %3652 = vmatmul.f32.gmra.mxu0 %v3610
      %v3653 = vpop.f32.mrf.mxu0
      %v3654 = vadd.f32 %v3601, %v3653
      %3655 = vmatmul.f32.gmra.mxu0 %v3613
      %v3656 = vpop.f32.mrf.mxu0
      %v3657 = vadd.f32 %v3601, %v3656
      %3658 = vmatmul.f32.gmra.mxu0 %v3616
      %v3659 = vpop.f32.mrf.mxu0
      %v3660 = vadd.f32 %v3601, %v3659
      %3661 = vmatmul.f32.gmra.mxu0 %v3619
      %v3662 = vpop.f32.mrf.mxu0
      %v3663 = vadd.f32 %v3601, %v3662
      %3664 = vmatmul.f32.gmra.mxu0 %v3622
      %v3665 = vpop.f32.mrf.mxu0
      %v3666 = vadd.f32 %v3601, %v3665
      %3667 = vmatmul.f32.gmra.mxu0 %v3625
      %v3668 = vpop.f32.mrf.mxu0
      %v3669 = vadd.f32 %v3601, %v3668
      %3670 = vdwg.mxu0
      %v3671 = vsel %vm781, %v3648, 0.0
      %v3672 = vsel %vm781, %v3651, 0.0
      %v3673 = vadd.f32 %v3671, %v3672
      %v3674 = vsel %vm781, %v3654, 0.0
      %v3675 = vadd.f32 %v3673, %v3674
      %v3676 = vsel %vm781, %v3657, 0.0
      %v3677 = vadd.f32 %v3675, %v3676
      %v3678 = vsel %vm781, %v3660, 0.0
      %v3679 = vadd.f32 %v3677, %v3678
      %v3680 = vsel %vm781, %v3663, 0.0
      %v3681 = vadd.f32 %v3679, %v3680
      %v3682 = vsel %vm781, %v3666, 0.0
      %v3683 = vadd.f32 %v3681, %v3682
      %v3684 = vsel %vm781, %v3669, 0.0
      %v3685 = vadd.f32 %v3683, %v3684
      %v3686 = vrot.slane %v3685, 4
      %v3687 = vadd.f32 %v3685, %v3686
      %v3688 = vrot.slane %v3687, 2
      %v3689 = vadd.f32 %v3687, %v3688
      %v3690 = vrot.slane %v3689, 1
      %v3691 = vadd.f32 %v3689, %v3690
      %v3692 = vmul.f32 %v3691, %v878
      %v3693 = vmul.f32 %v3648, %v3648
      %v3694 = vmul.f32 %v3651, %v3651
      %v3695 = vmul.f32 %v3654, %v3654
      %v3696 = vmul.f32 %v3657, %v3657
      %v3697 = vmul.f32 %v3660, %v3660
      %v3698 = vmul.f32 %v3663, %v3663
      %v3699 = vmul.f32 %v3666, %v3666
      %v3700 = vmul.f32 %v3669, %v3669
      %v3701 = vsel %vm781, %v3693, 0.0
      %v3702 = vsel %vm781, %v3694, 0.0
      %v3703 = vadd.f32 %v3701, %v3702
      %v3704 = vsel %vm781, %v3695, 0.0
      %v3705 = vadd.f32 %v3703, %v3704
      %v3706 = vsel %vm781, %v3696, 0.0
      %v3707 = vadd.f32 %v3705, %v3706
      %v3708 = vsel %vm781, %v3697, 0.0
      %v3709 = vadd.f32 %v3707, %v3708
      %v3710 = vsel %vm781, %v3698, 0.0
      %v3711 = vadd.f32 %v3709, %v3710
      %v3712 = vsel %vm781, %v3699, 0.0
      %v3713 = vadd.f32 %v3711, %v3712
      %v3714 = vsel %vm781, %v3700, 0.0
      %v3715 = vadd.f32 %v3713, %v3714
      %v3716 = vrot.slane %v3715, 4
      %v3717 = vadd.f32 %v3715, %v3716
      %v3718 = vrot.slane %v3717, 2
      %v3719 = vadd.f32 %v3717, %v3718
      %v3720 = vrot.slane %v3719, 1
      %v3721 = vadd.f32 %v3719, %v3720
      %v3722 = vmul.f32 %v3721, %v878
      %v3723 = vmul.f32 %v3692, %v3692
      %v3724 = vsub.f32 %v3722, %v3723
      %v3725 = vmax.f32 %v3724, 0.0
      %v3726 = vsub.f32 %v3648, %v3692
      %v3727 = vsub.f32 %v3651, %v3692
      %v3728 = vsub.f32 %v3654, %v3692
      %v3729 = vsub.f32 %v3657, %v3692
      %v3730 = vsub.f32 %v3660, %v3692
      %v3731 = vsub.f32 %v3663, %v3692
      %v3732 = vsub.f32 %v3666, %v3692
      %v3733 = vsub.f32 %v3669, %v3692
      %v3734 = vadd.f32 %v3725, 1e-05
      %v3735 = vrsqrt.pop %v3734
      %v3736 = vmul.f32 %v3735, %v3734
      %v3737 = vmul.f32 %v3736, %v3735
      %v3738 = vmul.f32 0.5, %v3737
      %v3739 = vsub.f32 1.5, %v3738
      %v3740 = vmul.f32 %v3735, %v3739
      %vm3741 = vweird.f32 %v3734
      %vm3742 = vweird.f32 %v3735
      %vm3743 = vmor %vm3741, %vm3742
      %v3744 = vsel %vm3743, %v3735, %v3740
      %v3745 = vmul.f32 %v3726, %v3744
      %v3746 = vmul.f32 %v3727, %v3744
      %v3747 = vmul.f32 %v3728, %v3744
      %v3748 = vmul.f32 %v3729, %v3744
      %v3749 = vmul.f32 %v3730, %v3744
      %v3750 = vmul.f32 %v3731, %v3744
      %v3751 = vmul.f32 %v3732, %v3744
      %v3752 = vmul.f32 %v3733, %v3744
      %v3753 = vmul.f32 %v3745, %v3745
      %v3754 = vmul.f32 %v3746, %v3746
      %v3755 = vmul.f32 %v3747, %v3747
      %v3756 = vmul.f32 %v3748, %v3748
      %v3757 = vmul.f32 %v3749, %v3749
      %v3758 = vmul.f32 %v3750, %v3750
      %v3759 = vmul.f32 %v3751, %v3751
      %v3760 = vmul.f32 %v3752, %v3752
      %v3761 = vsel %vm781, %v3753, 0.0
      %3762 = vadd.xlane.f32.xlu0 %v3761
      %v3763 = vpop.xlane.xlu0 %3762
      %v3764 = vsel %vm781, %v3754, 0.0
      %3765 = vadd.xlane.f32.xlu0 %v3764
      %v3766 = vpop.xlane.xlu0 %3765
      %v3767 = vsel %vm781, %v3755, 0.0
      %3768 = vadd.xlane.f32.xlu0 %v3767
      %v3769 = vpop.xlane.xlu0 %3768
      %v3770 = vsel %vm781, %v3756, 0.0
      %3771 = vadd.xlane.f32.xlu0 %v3770
      %v3772 = vpop.xlane.xlu0 %3771
      %v3773 = vsel %vm781, %v3757, 0.0
      %3774 = vadd.xlane.f32.xlu0 %v3773
      %v3775 = vpop.xlane.xlu0 %3774
      %v3776 = vsel %vm781, %v3758, 0.0
      %3777 = vadd.xlane.f32.xlu0 %v3776
      %v3778 = vpop.xlane.xlu0 %3777
      %v3779 = vsel %vm781, %v3759, 0.0
      %3780 = vadd.xlane.f32.xlu0 %v3779
      %v3781 = vpop.xlane.xlu0 %3780
      %v3782 = vsel %vm781, %v3760, 0.0
      %3783 = vadd.xlane.f32.xlu0 %v3782
      %v3784 = vpop.xlane.xlu0 %3783
      %v3785 = vmax.f32 %v3763, 1e-24
      %v3786 = vmax.f32 %v3766, 1e-24
      %v3787 = vmax.f32 %v3769, 1e-24
      %v3788 = vmax.f32 %v3772, 1e-24
      %v3789 = vmax.f32 %v3775, 1e-24
      %v3790 = vmax.f32 %v3778, 1e-24
      %v3791 = vmax.f32 %v3781, 1e-24
      %v3792 = vmax.f32 %v3784, 1e-24
      %v3793 = vrsqrt.pop %v3785
      %v3794 = vmul.f32 %v3793, %v3785
      %v3795 = vmul.f32 %v3794, %v3793
      %v3796 = vmul.f32 0.5, %v3795
      %v3797 = vsub.f32 1.5, %v3796
      %v3798 = vmul.f32 %v3793, %v3797
      %vm3799 = vweird.f32 %v3785
      %vm3800 = vweird.f32 %v3793
      %vm3801 = vmor %vm3799, %vm3800
      %v3802 = vsel %vm3801, %v3793, %v3798
      %v3803 = vrsqrt.pop %v3786
      %v3804 = vmul.f32 %v3803, %v3786
      %v3805 = vmul.f32 %v3804, %v3803
      %v3806 = vmul.f32 0.5, %v3805
      %v3807 = vsub.f32 1.5, %v3806
      %v3808 = vmul.f32 %v3803, %v3807
      %vm3809 = vweird.f32 %v3786
      %vm3810 = vweird.f32 %v3803
      %vm3811 = vmor %vm3809, %vm3810
      %v3812 = vsel %vm3811, %v3803, %v3808
      %v3813 = vrsqrt.pop %v3787
      %v3814 = vmul.f32 %v3813, %v3787
      %v3815 = vmul.f32 %v3814, %v3813
      %v3816 = vmul.f32 0.5, %v3815
      %v3817 = vsub.f32 1.5, %v3816
      %v3818 = vmul.f32 %v3813, %v3817
      %vm3819 = vweird.f32 %v3787
      %vm3820 = vweird.f32 %v3813
      %vm3821 = vmor %vm3819, %vm3820
      %v3822 = vsel %vm3821, %v3813, %v3818
      %v3823 = vrsqrt.pop %v3788
      %v3824 = vmul.f32 %v3823, %v3788
      %v3825 = vmul.f32 %v3824, %v3823
      %v3826 = vmul.f32 0.5, %v3825
      %v3827 = vsub.f32 1.5, %v3826
      %v3828 = vmul.f32 %v3823, %v3827
      %vm3829 = vweird.f32 %v3788
      %vm3830 = vweird.f32 %v3823
      %vm3831 = vmor %vm3829, %vm3830
      %v3832 = vsel %vm3831, %v3823, %v3828
      %v3833 = vrsqrt.pop %v3789
      %v3834 = vmul.f32 %v3833, %v3789
      %v3835 = vmul.f32 %v3834, %v3833
      %v3836 = vmul.f32 0.5, %v3835
      %v3837 = vsub.f32 1.5, %v3836
      %v3838 = vmul.f32 %v3833, %v3837
      %vm3839 = vweird.f32 %v3789
      %vm3840 = vweird.f32 %v3833
      %vm3841 = vmor %vm3839, %vm3840
      %v3842 = vsel %vm3841, %v3833, %v3838
      %v3843 = vrsqrt.pop %v3790
      %v3844 = vmul.f32 %v3843, %v3790
      %v3845 = vmul.f32 %v3844, %v3843
      %v3846 = vmul.f32 0.5, %v3845
      %v3847 = vsub.f32 1.5, %v3846
      %v3848 = vmul.f32 %v3843, %v3847
      %vm3849 = vweird.f32 %v3790
      %vm3850 = vweird.f32 %v3843
      %vm3851 = vmor %vm3849, %vm3850
      %v3852 = vsel %vm3851, %v3843, %v3848
      %v3853 = vrsqrt.pop %v3791
      %v3854 = vmul.f32 %v3853, %v3791
      %v3855 = vmul.f32 %v3854, %v3853
      %v3856 = vmul.f32 0.5, %v3855
      %v3857 = vsub.f32 1.5, %v3856
      %v3858 = vmul.f32 %v3853, %v3857
      %vm3859 = vweird.f32 %v3791
      %vm3860 = vweird.f32 %v3853
      %vm3861 = vmor %vm3859, %vm3860
      %v3862 = vsel %vm3861, %v3853, %v3858
      %v3863 = vrsqrt.pop %v3792
      %v3864 = vmul.f32 %v3863, %v3792
      %v3865 = vmul.f32 %v3864, %v3863
      %v3866 = vmul.f32 0.5, %v3865
      %v3867 = vsub.f32 1.5, %v3866
      %v3868 = vmul.f32 %v3863, %v3867
      %vm3869 = vweird.f32 %v3792
      %vm3870 = vweird.f32 %v3863
      %vm3871 = vmor %vm3869, %vm3870
      %v3872 = vsel %vm3871, %v3863, %v3868
      %v3873 = vmul.f32 %v3745, %v3802
      %v3874 = vmul.f32 %v3746, %v3812
      %v3875 = vmul.f32 %v3747, %v3822
      %v3876 = vmul.f32 %v3748, %v3832
      %v3877 = vmul.f32 %v3749, %v3842
      %v3878 = vmul.f32 %v3750, %v3852
      %v3879 = vmul.f32 %v3751, %v3862
      %v3880 = vmul.f32 %v3752, %v3872
      %v3882 = vsel %vm781, %v3873, 0
      %v3885 = vsel %vm781, %v3874, 0
      %v3888 = vsel %vm781, %v3875, 0
      %v3891 = vsel %vm781, %v3876, 0
      %v3894 = vsel %vm781, %v3877, 0
      %v3897 = vsel %vm781, %v3878, 0
      %v3900 = vsel %vm781, %v3879, 0
      %v3903 = vsel %vm781, %v3880, 0
      %3905 = vmatpush.xpose.msra.mxu0 0.0
      %3906 = vmatpush.xpose.msra.mxu0 0.0
      %3907 = vmatpush.xpose.msra.mxu0 0.0
      %3908 = vmatpush.xpose.msra.mxu0 0.0
      %3909 = vmatpush.xpose.msra.mxu0 0.0
      %3910 = vmatpush.xpose.msra.mxu0 0.0
      %3911 = vmatpush.xpose.msra.mxu0 0.0
      %3912 = vmatpush.xpose.msra.mxu0 0.0
      %3913 = vmatpush.xpose.msra.mxu0 %v3903
      %3914 = vmatpush.xpose.msra.mxu0 %v3900
      %3915 = vmatpush.xpose.msra.mxu0 %v3897
      %3916 = vmatpush.xpose.msra.mxu0 %v3894
      %3917 = vmatpush.xpose.msra.mxu0 %v3891
      %3918 = vmatpush.xpose.msra.mxu0 %v3888
      %3919 = vmatpush.xpose.msra.mxu0 %v3885
      %3920 = vmatpush.xpose.msra.mxu0 %v3882
      %3921 = vmatmul.f32.gmra.mxu0 %v3882
      %v3922 = vpop.f32.mrf.mxu0
      %v3923 = vadd.f32 0.0, %v3922
      %3924 = vmatmul.f32.gmra.mxu0 %v3885
      %v3925 = vpop.f32.mrf.mxu0
      %v3926 = vadd.f32 0.0, %v3925
      %3927 = vmatmul.f32.gmra.mxu0 %v3888
      %v3928 = vpop.f32.mrf.mxu0
      %v3929 = vadd.f32 0.0, %v3928
      %3930 = vmatmul.f32.gmra.mxu0 %v3891
      %v3931 = vpop.f32.mrf.mxu0
      %v3932 = vadd.f32 0.0, %v3931
      %3933 = vmatmul.f32.gmra.mxu0 %v3894
      %v3934 = vpop.f32.mrf.mxu0
      %v3935 = vadd.f32 0.0, %v3934
      %3936 = vmatmul.f32.gmra.mxu0 %v3897
      %v3937 = vpop.f32.mrf.mxu0
      %v3938 = vadd.f32 0.0, %v3937
      %3939 = vmatmul.f32.gmra.mxu0 %v3900
      %v3940 = vpop.f32.mrf.mxu0
      %v3941 = vadd.f32 0.0, %v3940
      %3942 = vmatmul.f32.gmra.mxu0 %v3903
      %v3943 = vpop.f32.mrf.mxu0
      %v3944 = vadd.f32 0.0, %v3943
      %3945 = vdwg.mxu0
      %v3946 = vmul.f32 %v3923, -2.0
      %v3947 = vmul.f32 %v3926, -2.0
      %v3948 = vmul.f32 %v3929, -2.0
      %v3949 = vmul.f32 %v3932, -2.0
      %v3950 = vmul.f32 %v3935, -2.0
      %v3951 = vmul.f32 %v3938, -2.0
      %v3952 = vmul.f32 %v3941, -2.0
      %v3953 = vmul.f32 %v3944, -2.0
      %v3954 = vadd.f32 %v3946, %v770
      %v3955 = vadd.f32 %v3947, %v771
      %v3956 = vadd.f32 %v3948, %v772
      %v3957 = vadd.f32 %v3949, %v773
      %v3958 = vadd.f32 %v3950, %v774
      %v3959 = vadd.f32 %v3951, %v775
      %v3960 = vadd.f32 %v3952, %v776
      %v3961 = vadd.f32 %v3953, %v777
      %v3962 = vsel %vm1152, %v3954, inf
      %3963 = vmin.xlane.f32.xlu0 %v3962
      %v3964 = vpop.xlane.xlu0 %3963
      %v3965 = vsel %vm1152, %v3955, inf
      %3966 = vmin.xlane.f32.xlu0 %v3965
      %v3967 = vpop.xlane.xlu0 %3966
      %v3968 = vsel %vm1152, %v3956, inf
      %3969 = vmin.xlane.f32.xlu0 %v3968
      %v3970 = vpop.xlane.xlu0 %3969
      %v3971 = vsel %vm1152, %v3957, inf
      %3972 = vmin.xlane.f32.xlu0 %v3971
      %v3973 = vpop.xlane.xlu0 %3972
      %v3974 = vsel %vm1152, %v3958, inf
      %3975 = vmin.xlane.f32.xlu0 %v3974
      %v3976 = vpop.xlane.xlu0 %3975
      %v3977 = vsel %vm1152, %v3959, inf
      %3978 = vmin.xlane.f32.xlu0 %v3977
      %v3979 = vpop.xlane.xlu0 %3978
      %v3980 = vsel %vm1152, %v3960, inf
      %3981 = vmin.xlane.f32.xlu0 %v3980
      %v3982 = vpop.xlane.xlu0 %3981
      %v3983 = vsel %vm1152, %v3961, inf
      %3984 = vmin.xlane.f32.xlu0 %v3983
      %v3985 = vpop.xlane.xlu0 %3984
      %vm3986 = vcmp.le.f32.partialorder %v3954, %v3964
      %vm3987 = vcmp.le.f32.partialorder %v3955, %v3967
      %vm3988 = vcmp.le.f32.partialorder %v3956, %v3970
      %vm3989 = vcmp.le.f32.partialorder %v3957, %v3973
      %vm3990 = vcmp.le.f32.partialorder %v3958, %v3976
      %vm3991 = vcmp.le.f32.partialorder %v3959, %v3979
      %vm3992 = vcmp.le.f32.partialorder %v3960, %v3982
      %vm3993 = vcmp.le.f32.partialorder %v3961, %v3985
      %v3994 = vsel %vm3986, %v1151, 64.0
      %v3995 = vsel %vm3987, %v1151, 64.0
      %v3996 = vsel %vm3988, %v1151, 64.0
      %v3997 = vsel %vm3989, %v1151, 64.0
      %v3998 = vsel %vm3990, %v1151, 64.0
      %v3999 = vsel %vm3991, %v1151, 64.0
      %v4000 = vsel %vm3992, %v1151, 64.0
      %v4001 = vsel %vm3993, %v1151, 64.0
      %v4002 = vsel %vm1152, %v3994, inf
      %4003 = vmin.xlane.f32.xlu0 %v4002
      %v4004 = vpop.xlane.xlu0 %4003
      %v4005 = vsel %vm1152, %v3995, inf
      %4006 = vmin.xlane.f32.xlu0 %v4005
      %v4007 = vpop.xlane.xlu0 %4006
      %v4008 = vsel %vm1152, %v3996, inf
      %4009 = vmin.xlane.f32.xlu0 %v4008
      %v4010 = vpop.xlane.xlu0 %4009
      %v4011 = vsel %vm1152, %v3997, inf
      %4012 = vmin.xlane.f32.xlu0 %v4011
      %v4013 = vpop.xlane.xlu0 %4012
      %v4014 = vsel %vm1152, %v3998, inf
      %4015 = vmin.xlane.f32.xlu0 %v4014
      %v4016 = vpop.xlane.xlu0 %4015
      %v4017 = vsel %vm1152, %v3999, inf
      %4018 = vmin.xlane.f32.xlu0 %v4017
      %v4019 = vpop.xlane.xlu0 %4018
      %v4020 = vsel %vm1152, %v4000, inf
      %4021 = vmin.xlane.f32.xlu0 %v4020
      %v4022 = vpop.xlane.xlu0 %4021
      %v4023 = vsel %vm1152, %v4001, inf
      %4024 = vmin.xlane.f32.xlu0 %v4023
      %v4025 = vpop.xlane.xlu0 %4024
      %vm4026 = vcmp.eq.f32.partialorder %v1151, %v4004
      %vm4027 = vcmp.eq.f32.partialorder %v1151, %v4007
      %vm4028 = vcmp.eq.f32.partialorder %v1151, %v4010
      %vm4029 = vcmp.eq.f32.partialorder %v1151, %v4013
      %vm4030 = vcmp.eq.f32.partialorder %v1151, %v4016
      %vm4031 = vcmp.eq.f32.partialorder %v1151, %v4019
      %vm4032 = vcmp.eq.f32.partialorder %v1151, %v4022
      %vm4033 = vcmp.eq.f32.partialorder %v1151, %v4025
      %v4034 = vsel %vm4026, 1, 0
      %v4035 = vsel %vm4027, 1, 0
      %v4036 = vsel %vm4028, 1, 0
      %v4037 = vsel %vm4029, 1, 0
      %v4038 = vsel %vm4030, 1, 0
      %v4039 = vsel %vm4031, 1, 0
      %v4040 = vsel %vm4032, 1, 0
      %v4041 = vsel %vm4033, 1, 0
      %v4042 = vcvt.s32.f32 %v4034
      %v4043 = vcvt.s32.f32 %v4035
      %v4044 = vcvt.s32.f32 %v4036
      %v4045 = vcvt.s32.f32 %v4037
      %v4046 = vcvt.s32.f32 %v4038
      %v4047 = vcvt.s32.f32 %v4039
      %v4048 = vcvt.s32.f32 %v4040
      %v4049 = vcvt.s32.f32 %v4041
      %v4051 = vsel %vm1152, %v4042, 0
      %v4054 = vsel %vm1152, %v4043, 0
      %v4057 = vsel %vm1152, %v4044, 0
      %v4060 = vsel %vm1152, %v4045, 0
      %v4063 = vsel %vm1152, %v4046, 0
      %v4066 = vsel %vm1152, %v4047, 0
      %v4069 = vsel %vm1152, %v4048, 0
      %v4072 = vsel %vm1152, %v4049, 0
      %4074 = vmatpush.msra.mxu0 0.0
      %4075 = vmatpush.msra.mxu0 0.0
      %4076 = vmatpush.msra.mxu0 0.0
      %4077 = vmatpush.msra.mxu0 0.0
      %4078 = vmatpush.msra.mxu0 0.0
      %4079 = vmatpush.msra.mxu0 0.0
      %4080 = vmatpush.msra.mxu0 0.0
      %4081 = vmatpush.msra.mxu0 0.0
      %4082 = vmatpush.msra.mxu0 %v3752
      %4083 = vmatpush.msra.mxu0 %v3751
      %4084 = vmatpush.msra.mxu0 %v3750
      %4085 = vmatpush.msra.mxu0 %v3749
      %4086 = vmatpush.msra.mxu0 %v3748
      %4087 = vmatpush.msra.mxu0 %v3747
      %4088 = vmatpush.msra.mxu0 %v3746
      %4089 = vmatpush.msra.mxu0 %v3745
      %4090 = vmatmul.f32.gmra.mxu0 %v4051
      %v4091 = vpop.f32.mrf.mxu0
      %v4092 = vadd.f32 0.0, %v4091
      %4093 = vmatmul.f32.gmra.mxu0 %v4054
      %v4094 = vpop.f32.mrf.mxu0
      %v4095 = vadd.f32 0.0, %v4094
      %4096 = vmatmul.f32.gmra.mxu0 %v4057
      %v4097 = vpop.f32.mrf.mxu0
      %v4098 = vadd.f32 0.0, %v4097
      %4099 = vmatmul.f32.gmra.mxu0 %v4060
      %v4100 = vpop.f32.mrf.mxu0
      %v4101 = vadd.f32 0.0, %v4100
      %4102 = vmatmul.f32.gmra.mxu0 %v4063
      %v4103 = vpop.f32.mrf.mxu0
      %v4104 = vadd.f32 0.0, %v4103
      %4105 = vmatmul.f32.gmra.mxu0 %v4066
      %v4106 = vpop.f32.mrf.mxu0
      %v4107 = vadd.f32 0.0, %v4106
      %4108 = vmatmul.f32.gmra.mxu0 %v4069
      %v4109 = vpop.f32.mrf.mxu0
      %v4110 = vadd.f32 0.0, %v4109
      %4111 = vmatmul.f32.gmra.mxu0 %v4072
      %v4112 = vpop.f32.mrf.mxu0
      %v4113 = vadd.f32 0.0, %v4112
      %4114 = vdwg.mxu0
      %v4115 = vsel %vm4026, 1e+30, %v3954
      %v4116 = vsel %vm4027, 1e+30, %v3955
      %v4117 = vsel %vm4028, 1e+30, %v3956
      %v4118 = vsel %vm4029, 1e+30, %v3957
      %v4119 = vsel %vm4030, 1e+30, %v3958
      %v4120 = vsel %vm4031, 1e+30, %v3959
      %v4121 = vsel %vm4032, 1e+30, %v3960
      %v4122 = vsel %vm4033, 1e+30, %v3961
      %v4123 = vsel %vm1152, %v4115, inf
      %4124 = vmin.xlane.f32.xlu0 %v4123
      %v4125 = vpop.xlane.xlu0 %4124
      %v4126 = vsel %vm1152, %v4116, inf
      %4127 = vmin.xlane.f32.xlu0 %v4126
      %v4128 = vpop.xlane.xlu0 %4127
      %v4129 = vsel %vm1152, %v4117, inf
      %4130 = vmin.xlane.f32.xlu0 %v4129
      %v4131 = vpop.xlane.xlu0 %4130
      %v4132 = vsel %vm1152, %v4118, inf
      %4133 = vmin.xlane.f32.xlu0 %v4132
      %v4134 = vpop.xlane.xlu0 %4133
      %v4135 = vsel %vm1152, %v4119, inf
      %4136 = vmin.xlane.f32.xlu0 %v4135
      %v4137 = vpop.xlane.xlu0 %4136
      %v4138 = vsel %vm1152, %v4120, inf
      %4139 = vmin.xlane.f32.xlu0 %v4138
      %v4140 = vpop.xlane.xlu0 %4139
      %v4141 = vsel %vm1152, %v4121, inf
      %4142 = vmin.xlane.f32.xlu0 %v4141
      %v4143 = vpop.xlane.xlu0 %4142
      %v4144 = vsel %vm1152, %v4122, inf
      %4145 = vmin.xlane.f32.xlu0 %v4144
      %v4146 = vpop.xlane.xlu0 %4145
      %vm4147 = vcmp.le.f32.partialorder %v4115, %v4125
      %vm4148 = vcmp.le.f32.partialorder %v4116, %v4128
      %vm4149 = vcmp.le.f32.partialorder %v4117, %v4131
      %vm4150 = vcmp.le.f32.partialorder %v4118, %v4134
      %vm4151 = vcmp.le.f32.partialorder %v4119, %v4137
      %vm4152 = vcmp.le.f32.partialorder %v4120, %v4140
      %vm4153 = vcmp.le.f32.partialorder %v4121, %v4143
      %vm4154 = vcmp.le.f32.partialorder %v4122, %v4146
      %v4155 = vsel %vm4147, %v1151, 64.0
      %v4156 = vsel %vm4148, %v1151, 64.0
      %v4157 = vsel %vm4149, %v1151, 64.0
      %v4158 = vsel %vm4150, %v1151, 64.0
      %v4159 = vsel %vm4151, %v1151, 64.0
      %v4160 = vsel %vm4152, %v1151, 64.0
      %v4161 = vsel %vm4153, %v1151, 64.0
      %v4162 = vsel %vm4154, %v1151, 64.0
      %v4163 = vsel %vm1152, %v4155, inf
      %4164 = vmin.xlane.f32.xlu0 %v4163
      %v4165 = vpop.xlane.xlu0 %4164
      %v4166 = vsel %vm1152, %v4156, inf
      %4167 = vmin.xlane.f32.xlu0 %v4166
      %v4168 = vpop.xlane.xlu0 %4167
      %v4169 = vsel %vm1152, %v4157, inf
      %4170 = vmin.xlane.f32.xlu0 %v4169
      %v4171 = vpop.xlane.xlu0 %4170
      %v4172 = vsel %vm1152, %v4158, inf
      %4173 = vmin.xlane.f32.xlu0 %v4172
      %v4174 = vpop.xlane.xlu0 %4173
      %v4175 = vsel %vm1152, %v4159, inf
      %4176 = vmin.xlane.f32.xlu0 %v4175
      %v4177 = vpop.xlane.xlu0 %4176
      %v4178 = vsel %vm1152, %v4160, inf
      %4179 = vmin.xlane.f32.xlu0 %v4178
      %v4180 = vpop.xlane.xlu0 %4179
      %v4181 = vsel %vm1152, %v4161, inf
      %4182 = vmin.xlane.f32.xlu0 %v4181
      %v4183 = vpop.xlane.xlu0 %4182
      %v4184 = vsel %vm1152, %v4162, inf
      %4185 = vmin.xlane.f32.xlu0 %v4184
      %v4186 = vpop.xlane.xlu0 %4185
      %vm4187 = vcmp.eq.f32.partialorder %v1151, %v4165
      %vm4188 = vcmp.eq.f32.partialorder %v1151, %v4168
      %vm4189 = vcmp.eq.f32.partialorder %v1151, %v4171
      %vm4190 = vcmp.eq.f32.partialorder %v1151, %v4174
      %vm4191 = vcmp.eq.f32.partialorder %v1151, %v4177
      %vm4192 = vcmp.eq.f32.partialorder %v1151, %v4180
      %vm4193 = vcmp.eq.f32.partialorder %v1151, %v4183
      %vm4194 = vcmp.eq.f32.partialorder %v1151, %v4186
      %v4195 = vsel %vm4187, 1, 0
      %v4196 = vsel %vm4188, 1, 0
      %v4197 = vsel %vm4189, 1, 0
      %v4198 = vsel %vm4190, 1, 0
      %v4199 = vsel %vm4191, 1, 0
      %v4200 = vsel %vm4192, 1, 0
      %v4201 = vsel %vm4193, 1, 0
      %v4202 = vsel %vm4194, 1, 0
      %v4203 = vcvt.s32.f32 %v4195
      %v4204 = vcvt.s32.f32 %v4196
      %v4205 = vcvt.s32.f32 %v4197
      %v4206 = vcvt.s32.f32 %v4198
      %v4207 = vcvt.s32.f32 %v4199
      %v4208 = vcvt.s32.f32 %v4200
      %v4209 = vcvt.s32.f32 %v4201
      %v4210 = vcvt.s32.f32 %v4202
      %v4212 = vsel %vm1152, %v4203, 0
      %v4215 = vsel %vm1152, %v4204, 0
      %v4218 = vsel %vm1152, %v4205, 0
      %v4221 = vsel %vm1152, %v4206, 0
      %v4224 = vsel %vm1152, %v4207, 0
      %v4227 = vsel %vm1152, %v4208, 0
      %v4230 = vsel %vm1152, %v4209, 0
      %v4233 = vsel %vm1152, %v4210, 0
      %4235 = vmatpush.msra.mxu0 0.0
      %4236 = vmatpush.msra.mxu0 0.0
      %4237 = vmatpush.msra.mxu0 0.0
      %4238 = vmatpush.msra.mxu0 0.0
      %4239 = vmatpush.msra.mxu0 0.0
      %4240 = vmatpush.msra.mxu0 0.0
      %4241 = vmatpush.msra.mxu0 0.0
      %4242 = vmatpush.msra.mxu0 0.0
      %4243 = vmatpush.msra.mxu0 %v3752
      %4244 = vmatpush.msra.mxu0 %v3751
      %4245 = vmatpush.msra.mxu0 %v3750
      %4246 = vmatpush.msra.mxu0 %v3749
      %4247 = vmatpush.msra.mxu0 %v3748
      %4248 = vmatpush.msra.mxu0 %v3747
      %4249 = vmatpush.msra.mxu0 %v3746
      %4250 = vmatpush.msra.mxu0 %v3745
      %4251 = vmatmul.f32.gmra.mxu0 %v4212
      %v4252 = vpop.f32.mrf.mxu0
      %v4253 = vadd.f32 0.0, %v4252
      %4254 = vmatmul.f32.gmra.mxu0 %v4215
      %v4255 = vpop.f32.mrf.mxu0
      %v4256 = vadd.f32 0.0, %v4255
      %4257 = vmatmul.f32.gmra.mxu0 %v4218
      %v4258 = vpop.f32.mrf.mxu0
      %v4259 = vadd.f32 0.0, %v4258
      %4260 = vmatmul.f32.gmra.mxu0 %v4221
      %v4261 = vpop.f32.mrf.mxu0
      %v4262 = vadd.f32 0.0, %v4261
      %4263 = vmatmul.f32.gmra.mxu0 %v4224
      %v4264 = vpop.f32.mrf.mxu0
      %v4265 = vadd.f32 0.0, %v4264
      %4266 = vmatmul.f32.gmra.mxu0 %v4227
      %v4267 = vpop.f32.mrf.mxu0
      %v4268 = vadd.f32 0.0, %v4267
      %4269 = vmatmul.f32.gmra.mxu0 %v4230
      %v4270 = vpop.f32.mrf.mxu0
      %v4271 = vadd.f32 0.0, %v4270
      %4272 = vmatmul.f32.gmra.mxu0 %v4233
      %v4273 = vpop.f32.mrf.mxu0
      %v4274 = vadd.f32 0.0, %v4273
      %4275 = vdwg.mxu0
      %v4276 = vmax.f32 %v4092, %v4253
      %v4277 = vmax.f32 %v4095, %v4256
      %v4278 = vmax.f32 %v4098, %v4259
      %v4279 = vmax.f32 %v4101, %v4262
      %v4280 = vmax.f32 %v4104, %v4265
      %v4281 = vmax.f32 %v4107, %v4268
      %v4282 = vmax.f32 %v4110, %v4271
      %v4283 = vmax.f32 %v4113, %v4274
      %v4284 = vsel %vm4187, 1e+30, %v4115
      %v4285 = vsel %vm4188, 1e+30, %v4116
      %v4286 = vsel %vm4189, 1e+30, %v4117
      %v4287 = vsel %vm4190, 1e+30, %v4118
      %v4288 = vsel %vm4191, 1e+30, %v4119
      %v4289 = vsel %vm4192, 1e+30, %v4120
      %v4290 = vsel %vm4193, 1e+30, %v4121
      %v4291 = vsel %vm4194, 1e+30, %v4122
      %v4292 = vsel %vm1152, %v4284, inf
      %4293 = vmin.xlane.f32.xlu0 %v4292
      %v4294 = vpop.xlane.xlu0 %4293
      %v4295 = vsel %vm1152, %v4285, inf
      %4296 = vmin.xlane.f32.xlu0 %v4295
      %v4297 = vpop.xlane.xlu0 %4296
      %v4298 = vsel %vm1152, %v4286, inf
      %4299 = vmin.xlane.f32.xlu0 %v4298
      %v4300 = vpop.xlane.xlu0 %4299
      %v4301 = vsel %vm1152, %v4287, inf
      %4302 = vmin.xlane.f32.xlu0 %v4301
      %v4303 = vpop.xlane.xlu0 %4302
      %v4304 = vsel %vm1152, %v4288, inf
      %4305 = vmin.xlane.f32.xlu0 %v4304
      %v4306 = vpop.xlane.xlu0 %4305
      %v4307 = vsel %vm1152, %v4289, inf
      %4308 = vmin.xlane.f32.xlu0 %v4307
      %v4309 = vpop.xlane.xlu0 %4308
      %v4310 = vsel %vm1152, %v4290, inf
      %4311 = vmin.xlane.f32.xlu0 %v4310
      %v4312 = vpop.xlane.xlu0 %4311
      %v4313 = vsel %vm1152, %v4291, inf
      %4314 = vmin.xlane.f32.xlu0 %v4313
      %v4315 = vpop.xlane.xlu0 %4314
      %vm4316 = vcmp.le.f32.partialorder %v4284, %v4294
      %vm4317 = vcmp.le.f32.partialorder %v4285, %v4297
      %vm4318 = vcmp.le.f32.partialorder %v4286, %v4300
      %vm4319 = vcmp.le.f32.partialorder %v4287, %v4303
      %vm4320 = vcmp.le.f32.partialorder %v4288, %v4306
      %vm4321 = vcmp.le.f32.partialorder %v4289, %v4309
      %vm4322 = vcmp.le.f32.partialorder %v4290, %v4312
      %vm4323 = vcmp.le.f32.partialorder %v4291, %v4315
      %v4324 = vsel %vm4316, %v1151, 64.0
      %v4325 = vsel %vm4317, %v1151, 64.0
      %v4326 = vsel %vm4318, %v1151, 64.0
      %v4327 = vsel %vm4319, %v1151, 64.0
      %v4328 = vsel %vm4320, %v1151, 64.0
      %v4329 = vsel %vm4321, %v1151, 64.0
      %v4330 = vsel %vm4322, %v1151, 64.0
      %v4331 = vsel %vm4323, %v1151, 64.0
      %v4332 = vsel %vm1152, %v4324, inf
      %4333 = vmin.xlane.f32.xlu0 %v4332
      %v4334 = vpop.xlane.xlu0 %4333
      %v4335 = vsel %vm1152, %v4325, inf
      %4336 = vmin.xlane.f32.xlu0 %v4335
      %v4337 = vpop.xlane.xlu0 %4336
      %v4338 = vsel %vm1152, %v4326, inf
      %4339 = vmin.xlane.f32.xlu0 %v4338
      %v4340 = vpop.xlane.xlu0 %4339
      %v4341 = vsel %vm1152, %v4327, inf
      %4342 = vmin.xlane.f32.xlu0 %v4341
      %v4343 = vpop.xlane.xlu0 %4342
      %v4344 = vsel %vm1152, %v4328, inf
      %4345 = vmin.xlane.f32.xlu0 %v4344
      %v4346 = vpop.xlane.xlu0 %4345
      %v4347 = vsel %vm1152, %v4329, inf
      %4348 = vmin.xlane.f32.xlu0 %v4347
      %v4349 = vpop.xlane.xlu0 %4348
      %v4350 = vsel %vm1152, %v4330, inf
      %4351 = vmin.xlane.f32.xlu0 %v4350
      %v4352 = vpop.xlane.xlu0 %4351
      %v4353 = vsel %vm1152, %v4331, inf
      %4354 = vmin.xlane.f32.xlu0 %v4353
      %v4355 = vpop.xlane.xlu0 %4354
      %vm4356 = vcmp.eq.f32.partialorder %v1151, %v4334
      %vm4357 = vcmp.eq.f32.partialorder %v1151, %v4337
      %vm4358 = vcmp.eq.f32.partialorder %v1151, %v4340
      %vm4359 = vcmp.eq.f32.partialorder %v1151, %v4343
      %vm4360 = vcmp.eq.f32.partialorder %v1151, %v4346
      %vm4361 = vcmp.eq.f32.partialorder %v1151, %v4349
      %vm4362 = vcmp.eq.f32.partialorder %v1151, %v4352
      %vm4363 = vcmp.eq.f32.partialorder %v1151, %v4355
      %v4364 = vsel %vm4356, 1, 0
      %v4365 = vsel %vm4357, 1, 0
      %v4366 = vsel %vm4358, 1, 0
      %v4367 = vsel %vm4359, 1, 0
      %v4368 = vsel %vm4360, 1, 0
      %v4369 = vsel %vm4361, 1, 0
      %v4370 = vsel %vm4362, 1, 0
      %v4371 = vsel %vm4363, 1, 0
      %v4372 = vcvt.s32.f32 %v4364
      %v4373 = vcvt.s32.f32 %v4365
      %v4374 = vcvt.s32.f32 %v4366
      %v4375 = vcvt.s32.f32 %v4367
      %v4376 = vcvt.s32.f32 %v4368
      %v4377 = vcvt.s32.f32 %v4369
      %v4378 = vcvt.s32.f32 %v4370
      %v4379 = vcvt.s32.f32 %v4371
      %v4381 = vsel %vm1152, %v4372, 0
      %v4384 = vsel %vm1152, %v4373, 0
      %v4387 = vsel %vm1152, %v4374, 0
      %v4390 = vsel %vm1152, %v4375, 0
      %v4393 = vsel %vm1152, %v4376, 0
      %v4396 = vsel %vm1152, %v4377, 0
      %v4399 = vsel %vm1152, %v4378, 0
      %v4402 = vsel %vm1152, %v4379, 0
      %4404 = vmatpush.msra.mxu0 0.0
      %4405 = vmatpush.msra.mxu0 0.0
      %4406 = vmatpush.msra.mxu0 0.0
      %4407 = vmatpush.msra.mxu0 0.0
      %4408 = vmatpush.msra.mxu0 0.0
      %4409 = vmatpush.msra.mxu0 0.0
      %4410 = vmatpush.msra.mxu0 0.0
      %4411 = vmatpush.msra.mxu0 0.0
      %4412 = vmatpush.msra.mxu0 %v3752
      %4413 = vmatpush.msra.mxu0 %v3751
      %4414 = vmatpush.msra.mxu0 %v3750
      %4415 = vmatpush.msra.mxu0 %v3749
      %4416 = vmatpush.msra.mxu0 %v3748
      %4417 = vmatpush.msra.mxu0 %v3747
      %4418 = vmatpush.msra.mxu0 %v3746
      %4419 = vmatpush.msra.mxu0 %v3745
      %4420 = vmatmul.f32.gmra.mxu0 %v4381
      %v4421 = vpop.f32.mrf.mxu0
      %v4422 = vadd.f32 0.0, %v4421
      %4423 = vmatmul.f32.gmra.mxu0 %v4384
      %v4424 = vpop.f32.mrf.mxu0
      %v4425 = vadd.f32 0.0, %v4424
      %4426 = vmatmul.f32.gmra.mxu0 %v4387
      %v4427 = vpop.f32.mrf.mxu0
      %v4428 = vadd.f32 0.0, %v4427
      %4429 = vmatmul.f32.gmra.mxu0 %v4390
      %v4430 = vpop.f32.mrf.mxu0
      %v4431 = vadd.f32 0.0, %v4430
      %4432 = vmatmul.f32.gmra.mxu0 %v4393
      %v4433 = vpop.f32.mrf.mxu0
      %v4434 = vadd.f32 0.0, %v4433
      %4435 = vmatmul.f32.gmra.mxu0 %v4396
      %v4436 = vpop.f32.mrf.mxu0
      %v4437 = vadd.f32 0.0, %v4436
      %4438 = vmatmul.f32.gmra.mxu0 %v4399
      %v4439 = vpop.f32.mrf.mxu0
      %v4440 = vadd.f32 0.0, %v4439
      %4441 = vmatmul.f32.gmra.mxu0 %v4402
      %v4442 = vpop.f32.mrf.mxu0
      %v4443 = vadd.f32 0.0, %v4442
      %4444 = vdwg.mxu0
      %v4445 = vmax.f32 %v4276, %v4422
      %v4446 = vmax.f32 %v4277, %v4425
      %v4447 = vmax.f32 %v4278, %v4428
      %v4448 = vmax.f32 %v4279, %v4431
      %v4449 = vmax.f32 %v4280, %v4434
      %v4450 = vmax.f32 %v4281, %v4437
      %v4451 = vmax.f32 %v4282, %v4440
      %v4452 = vmax.f32 %v4283, %v4443
      %v4453 = vsel %vm4356, 1e+30, %v4284
      %v4454 = vsel %vm4357, 1e+30, %v4285
      %v4455 = vsel %vm4358, 1e+30, %v4286
      %v4456 = vsel %vm4359, 1e+30, %v4287
      %v4457 = vsel %vm4360, 1e+30, %v4288
      %v4458 = vsel %vm4361, 1e+30, %v4289
      %v4459 = vsel %vm4362, 1e+30, %v4290
      %v4460 = vsel %vm4363, 1e+30, %v4291
      %v4461 = vsel %vm1152, %v4453, inf
      %4462 = vmin.xlane.f32.xlu0 %v4461
      %v4463 = vpop.xlane.xlu0 %4462
      %v4464 = vsel %vm1152, %v4454, inf
      %4465 = vmin.xlane.f32.xlu0 %v4464
      %v4466 = vpop.xlane.xlu0 %4465
      %v4467 = vsel %vm1152, %v4455, inf
      %4468 = vmin.xlane.f32.xlu0 %v4467
      %v4469 = vpop.xlane.xlu0 %4468
      %v4470 = vsel %vm1152, %v4456, inf
      %4471 = vmin.xlane.f32.xlu0 %v4470
      %v4472 = vpop.xlane.xlu0 %4471
      %v4473 = vsel %vm1152, %v4457, inf
      %4474 = vmin.xlane.f32.xlu0 %v4473
      %v4475 = vpop.xlane.xlu0 %4474
      %v4476 = vsel %vm1152, %v4458, inf
      %4477 = vmin.xlane.f32.xlu0 %v4476
      %v4478 = vpop.xlane.xlu0 %4477
      %v4479 = vsel %vm1152, %v4459, inf
      %4480 = vmin.xlane.f32.xlu0 %v4479
      %v4481 = vpop.xlane.xlu0 %4480
      %v4482 = vsel %vm1152, %v4460, inf
      %4483 = vmin.xlane.f32.xlu0 %v4482
      %v4484 = vpop.xlane.xlu0 %4483
      %vm4485 = vcmp.le.f32.partialorder %v4453, %v4463
      %vm4486 = vcmp.le.f32.partialorder %v4454, %v4466
      %vm4487 = vcmp.le.f32.partialorder %v4455, %v4469
      %vm4488 = vcmp.le.f32.partialorder %v4456, %v4472
      %vm4489 = vcmp.le.f32.partialorder %v4457, %v4475
      %vm4490 = vcmp.le.f32.partialorder %v4458, %v4478
      %vm4491 = vcmp.le.f32.partialorder %v4459, %v4481
      %vm4492 = vcmp.le.f32.partialorder %v4460, %v4484
      %v4493 = vsel %vm4485, %v1151, 64.0
      %v4494 = vsel %vm4486, %v1151, 64.0
      %v4495 = vsel %vm4487, %v1151, 64.0
      %v4496 = vsel %vm4488, %v1151, 64.0
      %v4497 = vsel %vm4489, %v1151, 64.0
      %v4498 = vsel %vm4490, %v1151, 64.0
      %v4499 = vsel %vm4491, %v1151, 64.0
      %v4500 = vsel %vm4492, %v1151, 64.0
      %v4501 = vsel %vm1152, %v4493, inf
      %4502 = vmin.xlane.f32.xlu0 %v4501
      %v4503 = vpop.xlane.xlu0 %4502
      %v4504 = vsel %vm1152, %v4494, inf
      %4505 = vmin.xlane.f32.xlu0 %v4504
      %v4506 = vpop.xlane.xlu0 %4505
      %v4507 = vsel %vm1152, %v4495, inf
      %4508 = vmin.xlane.f32.xlu0 %v4507
      %v4509 = vpop.xlane.xlu0 %4508
      %v4510 = vsel %vm1152, %v4496, inf
      %4511 = vmin.xlane.f32.xlu0 %v4510
      %v4512 = vpop.xlane.xlu0 %4511
      %v4513 = vsel %vm1152, %v4497, inf
      %4514 = vmin.xlane.f32.xlu0 %v4513
      %v4515 = vpop.xlane.xlu0 %4514
      %v4516 = vsel %vm1152, %v4498, inf
      %4517 = vmin.xlane.f32.xlu0 %v4516
      %v4518 = vpop.xlane.xlu0 %4517
      %v4519 = vsel %vm1152, %v4499, inf
      %4520 = vmin.xlane.f32.xlu0 %v4519
      %v4521 = vpop.xlane.xlu0 %4520
      %v4522 = vsel %vm1152, %v4500, inf
      %4523 = vmin.xlane.f32.xlu0 %v4522
      %v4524 = vpop.xlane.xlu0 %4523
      %vm4525 = vcmp.eq.f32.partialorder %v1151, %v4503
      %vm4526 = vcmp.eq.f32.partialorder %v1151, %v4506
      %vm4527 = vcmp.eq.f32.partialorder %v1151, %v4509
      %vm4528 = vcmp.eq.f32.partialorder %v1151, %v4512
      %vm4529 = vcmp.eq.f32.partialorder %v1151, %v4515
      %vm4530 = vcmp.eq.f32.partialorder %v1151, %v4518
      %vm4531 = vcmp.eq.f32.partialorder %v1151, %v4521
      %vm4532 = vcmp.eq.f32.partialorder %v1151, %v4524
      %v4533 = vsel %vm4525, 1, 0
      %v4534 = vsel %vm4526, 1, 0
      %v4535 = vsel %vm4527, 1, 0
      %v4536 = vsel %vm4528, 1, 0
      %v4537 = vsel %vm4529, 1, 0
      %v4538 = vsel %vm4530, 1, 0
      %v4539 = vsel %vm4531, 1, 0
      %v4540 = vsel %vm4532, 1, 0
      %v4541 = vcvt.s32.f32 %v4533
      %v4542 = vcvt.s32.f32 %v4534
      %v4543 = vcvt.s32.f32 %v4535
      %v4544 = vcvt.s32.f32 %v4536
      %v4545 = vcvt.s32.f32 %v4537
      %v4546 = vcvt.s32.f32 %v4538
      %v4547 = vcvt.s32.f32 %v4539
      %v4548 = vcvt.s32.f32 %v4540
      %v4550 = vsel %vm1152, %v4541, 0
      %v4553 = vsel %vm1152, %v4542, 0
      %v4556 = vsel %vm1152, %v4543, 0
      %v4559 = vsel %vm1152, %v4544, 0
      %v4562 = vsel %vm1152, %v4545, 0
      %v4565 = vsel %vm1152, %v4546, 0
      %v4568 = vsel %vm1152, %v4547, 0
      %v4571 = vsel %vm1152, %v4548, 0
      %4573 = vmatpush.msra.mxu0 0.0
      %4574 = vmatpush.msra.mxu0 0.0
      %4575 = vmatpush.msra.mxu0 0.0
      %4576 = vmatpush.msra.mxu0 0.0
      %4577 = vmatpush.msra.mxu0 0.0
      %4578 = vmatpush.msra.mxu0 0.0
      %4579 = vmatpush.msra.mxu0 0.0
      %4580 = vmatpush.msra.mxu0 0.0
      %4581 = vmatpush.msra.mxu0 %v3752
      %4582 = vmatpush.msra.mxu0 %v3751
      %4583 = vmatpush.msra.mxu0 %v3750
      %4584 = vmatpush.msra.mxu0 %v3749
      %4585 = vmatpush.msra.mxu0 %v3748
      %4586 = vmatpush.msra.mxu0 %v3747
      %4587 = vmatpush.msra.mxu0 %v3746
      %4588 = vmatpush.msra.mxu0 %v3745
      %4589 = vmatmul.f32.gmra.mxu0 %v4550
      %v4590 = vpop.f32.mrf.mxu0
      %v4591 = vadd.f32 0.0, %v4590
      %4592 = vmatmul.f32.gmra.mxu0 %v4553
      %v4593 = vpop.f32.mrf.mxu0
      %v4594 = vadd.f32 0.0, %v4593
      %4595 = vmatmul.f32.gmra.mxu0 %v4556
      %v4596 = vpop.f32.mrf.mxu0
      %v4597 = vadd.f32 0.0, %v4596
      %4598 = vmatmul.f32.gmra.mxu0 %v4559
      %v4599 = vpop.f32.mrf.mxu0
      %v4600 = vadd.f32 0.0, %v4599
      %4601 = vmatmul.f32.gmra.mxu0 %v4562
      %v4602 = vpop.f32.mrf.mxu0
      %v4603 = vadd.f32 0.0, %v4602
      %4604 = vmatmul.f32.gmra.mxu0 %v4565
      %v4605 = vpop.f32.mrf.mxu0
      %v4606 = vadd.f32 0.0, %v4605
      %4607 = vmatmul.f32.gmra.mxu0 %v4568
      %v4608 = vpop.f32.mrf.mxu0
      %v4609 = vadd.f32 0.0, %v4608
      %4610 = vmatmul.f32.gmra.mxu0 %v4571
      %v4611 = vpop.f32.mrf.mxu0
      %v4612 = vadd.f32 0.0, %v4611
      %4613 = vdwg.mxu0
      %v4614 = vmax.f32 %v4445, %v4591
      %v4615 = vmax.f32 %v4446, %v4594
      %v4616 = vmax.f32 %v4447, %v4597
      %v4617 = vmax.f32 %v4448, %v4600
      %v4618 = vmax.f32 %v4449, %v4603
      %v4619 = vmax.f32 %v4450, %v4606
      %v4620 = vmax.f32 %v4451, %v4609
      %v4621 = vmax.f32 %v4452, %v4612
      %v4622 = vsel %vm4525, 1e+30, %v4453
      %v4623 = vsel %vm4526, 1e+30, %v4454
      %v4624 = vsel %vm4527, 1e+30, %v4455
      %v4625 = vsel %vm4528, 1e+30, %v4456
      %v4626 = vsel %vm4529, 1e+30, %v4457
      %v4627 = vsel %vm4530, 1e+30, %v4458
      %v4628 = vsel %vm4531, 1e+30, %v4459
      %v4629 = vsel %vm4532, 1e+30, %v4460
      %v4630 = vsel %vm1152, %v4622, inf
      %4631 = vmin.xlane.f32.xlu0 %v4630
      %v4632 = vpop.xlane.xlu0 %4631
      %v4633 = vsel %vm1152, %v4623, inf
      %4634 = vmin.xlane.f32.xlu0 %v4633
      %v4635 = vpop.xlane.xlu0 %4634
      %v4636 = vsel %vm1152, %v4624, inf
      %4637 = vmin.xlane.f32.xlu0 %v4636
      %v4638 = vpop.xlane.xlu0 %4637
      %v4639 = vsel %vm1152, %v4625, inf
      %4640 = vmin.xlane.f32.xlu0 %v4639
      %v4641 = vpop.xlane.xlu0 %4640
      %v4642 = vsel %vm1152, %v4626, inf
      %4643 = vmin.xlane.f32.xlu0 %v4642
      %v4644 = vpop.xlane.xlu0 %4643
      %v4645 = vsel %vm1152, %v4627, inf
      %4646 = vmin.xlane.f32.xlu0 %v4645
      %v4647 = vpop.xlane.xlu0 %4646
      %v4648 = vsel %vm1152, %v4628, inf
      %4649 = vmin.xlane.f32.xlu0 %v4648
      %v4650 = vpop.xlane.xlu0 %4649
      %v4651 = vsel %vm1152, %v4629, inf
      %4652 = vmin.xlane.f32.xlu0 %v4651
      %v4653 = vpop.xlane.xlu0 %4652
      %vm4654 = vcmp.le.f32.partialorder %v4622, %v4632
      %vm4655 = vcmp.le.f32.partialorder %v4623, %v4635
      %vm4656 = vcmp.le.f32.partialorder %v4624, %v4638
      %vm4657 = vcmp.le.f32.partialorder %v4625, %v4641
      %vm4658 = vcmp.le.f32.partialorder %v4626, %v4644
      %vm4659 = vcmp.le.f32.partialorder %v4627, %v4647
      %vm4660 = vcmp.le.f32.partialorder %v4628, %v4650
      %vm4661 = vcmp.le.f32.partialorder %v4629, %v4653
      %v4662 = vsel %vm4654, %v1151, 64.0
      %v4663 = vsel %vm4655, %v1151, 64.0
      %v4664 = vsel %vm4656, %v1151, 64.0
      %v4665 = vsel %vm4657, %v1151, 64.0
      %v4666 = vsel %vm4658, %v1151, 64.0
      %v4667 = vsel %vm4659, %v1151, 64.0
      %v4668 = vsel %vm4660, %v1151, 64.0
      %v4669 = vsel %vm4661, %v1151, 64.0
      %v4670 = vsel %vm1152, %v4662, inf
      %4671 = vmin.xlane.f32.xlu0 %v4670
      %v4672 = vpop.xlane.xlu0 %4671
      %v4673 = vsel %vm1152, %v4663, inf
      %4674 = vmin.xlane.f32.xlu0 %v4673
      %v4675 = vpop.xlane.xlu0 %4674
      %v4676 = vsel %vm1152, %v4664, inf
      %4677 = vmin.xlane.f32.xlu0 %v4676
      %v4678 = vpop.xlane.xlu0 %4677
      %v4679 = vsel %vm1152, %v4665, inf
      %4680 = vmin.xlane.f32.xlu0 %v4679
      %v4681 = vpop.xlane.xlu0 %4680
      %v4682 = vsel %vm1152, %v4666, inf
      %4683 = vmin.xlane.f32.xlu0 %v4682
      %v4684 = vpop.xlane.xlu0 %4683
      %v4685 = vsel %vm1152, %v4667, inf
      %4686 = vmin.xlane.f32.xlu0 %v4685
      %v4687 = vpop.xlane.xlu0 %4686
      %v4688 = vsel %vm1152, %v4668, inf
      %4689 = vmin.xlane.f32.xlu0 %v4688
      %v4690 = vpop.xlane.xlu0 %4689
      %v4691 = vsel %vm1152, %v4669, inf
      %4692 = vmin.xlane.f32.xlu0 %v4691
      %v4693 = vpop.xlane.xlu0 %4692
      %vm4694 = vcmp.eq.f32.partialorder %v1151, %v4672
      %vm4695 = vcmp.eq.f32.partialorder %v1151, %v4675
      %vm4696 = vcmp.eq.f32.partialorder %v1151, %v4678
      %vm4697 = vcmp.eq.f32.partialorder %v1151, %v4681
      %vm4698 = vcmp.eq.f32.partialorder %v1151, %v4684
      %vm4699 = vcmp.eq.f32.partialorder %v1151, %v4687
      %vm4700 = vcmp.eq.f32.partialorder %v1151, %v4690
      %vm4701 = vcmp.eq.f32.partialorder %v1151, %v4693
      %v4702 = vsel %vm4694, 1, 0
      %v4703 = vsel %vm4695, 1, 0
      %v4704 = vsel %vm4696, 1, 0
      %v4705 = vsel %vm4697, 1, 0
      %v4706 = vsel %vm4698, 1, 0
      %v4707 = vsel %vm4699, 1, 0
      %v4708 = vsel %vm4700, 1, 0
      %v4709 = vsel %vm4701, 1, 0
      %v4710 = vcvt.s32.f32 %v4702
      %v4711 = vcvt.s32.f32 %v4703
      %v4712 = vcvt.s32.f32 %v4704
      %v4713 = vcvt.s32.f32 %v4705
      %v4714 = vcvt.s32.f32 %v4706
      %v4715 = vcvt.s32.f32 %v4707
      %v4716 = vcvt.s32.f32 %v4708
      %v4717 = vcvt.s32.f32 %v4709
      %v4719 = vsel %vm1152, %v4710, 0
      %v4722 = vsel %vm1152, %v4711, 0
      %v4725 = vsel %vm1152, %v4712, 0
      %v4728 = vsel %vm1152, %v4713, 0
      %v4731 = vsel %vm1152, %v4714, 0
      %v4734 = vsel %vm1152, %v4715, 0
      %v4737 = vsel %vm1152, %v4716, 0
      %v4740 = vsel %vm1152, %v4717, 0
      %4742 = vmatpush.msra.mxu0 0.0
      %4743 = vmatpush.msra.mxu0 0.0
      %4744 = vmatpush.msra.mxu0 0.0
      %4745 = vmatpush.msra.mxu0 0.0
      %4746 = vmatpush.msra.mxu0 0.0
      %4747 = vmatpush.msra.mxu0 0.0
      %4748 = vmatpush.msra.mxu0 0.0
      %4749 = vmatpush.msra.mxu0 0.0
      %4750 = vmatpush.msra.mxu0 %v3752
      %4751 = vmatpush.msra.mxu0 %v3751
      %4752 = vmatpush.msra.mxu0 %v3750
      %4753 = vmatpush.msra.mxu0 %v3749
      %4754 = vmatpush.msra.mxu0 %v3748
      %4755 = vmatpush.msra.mxu0 %v3747
      %4756 = vmatpush.msra.mxu0 %v3746
      %4757 = vmatpush.msra.mxu0 %v3745
      %4758 = vmatmul.f32.gmra.mxu0 %v4719
      %v4759 = vpop.f32.mrf.mxu0
      %v4760 = vadd.f32 0.0, %v4759
      %4761 = vmatmul.f32.gmra.mxu0 %v4722
      %v4762 = vpop.f32.mrf.mxu0
      %v4763 = vadd.f32 0.0, %v4762
      %4764 = vmatmul.f32.gmra.mxu0 %v4725
      %v4765 = vpop.f32.mrf.mxu0
      %v4766 = vadd.f32 0.0, %v4765
      %4767 = vmatmul.f32.gmra.mxu0 %v4728
      %v4768 = vpop.f32.mrf.mxu0
      %v4769 = vadd.f32 0.0, %v4768
      %4770 = vmatmul.f32.gmra.mxu0 %v4731
      %v4771 = vpop.f32.mrf.mxu0
      %v4772 = vadd.f32 0.0, %v4771
      %4773 = vmatmul.f32.gmra.mxu0 %v4734
      %v4774 = vpop.f32.mrf.mxu0
      %v4775 = vadd.f32 0.0, %v4774
      %4776 = vmatmul.f32.gmra.mxu0 %v4737
      %v4777 = vpop.f32.mrf.mxu0
      %v4778 = vadd.f32 0.0, %v4777
      %4779 = vmatmul.f32.gmra.mxu0 %v4740
      %v4780 = vpop.f32.mrf.mxu0
      %v4781 = vadd.f32 0.0, %v4780
      %4782 = vdwg.mxu0
      %v4783 = vmax.f32 %v4614, %v4760
      %v4784 = vmax.f32 %v4615, %v4763
      %v4785 = vmax.f32 %v4616, %v4766
      %v4786 = vmax.f32 %v4617, %v4769
      %v4787 = vmax.f32 %v4618, %v4772
      %v4788 = vmax.f32 %v4619, %v4775
      %v4789 = vmax.f32 %v4620, %v4778
      %v4790 = vmax.f32 %v4621, %v4781
      %v4791 = vsel %vm4694, 1e+30, %v4622
      %v4792 = vsel %vm4695, 1e+30, %v4623
      %v4793 = vsel %vm4696, 1e+30, %v4624
      %v4794 = vsel %vm4697, 1e+30, %v4625
      %v4795 = vsel %vm4698, 1e+30, %v4626
      %v4796 = vsel %vm4699, 1e+30, %v4627
      %v4797 = vsel %vm4700, 1e+30, %v4628
      %v4798 = vsel %vm4701, 1e+30, %v4629
      %v4799 = vsel %vm1152, %v4791, inf
      %4800 = vmin.xlane.f32.xlu0 %v4799
      %v4801 = vpop.xlane.xlu0 %4800
      %v4802 = vsel %vm1152, %v4792, inf
      %4803 = vmin.xlane.f32.xlu0 %v4802
      %v4804 = vpop.xlane.xlu0 %4803
      %v4805 = vsel %vm1152, %v4793, inf
      %4806 = vmin.xlane.f32.xlu0 %v4805
      %v4807 = vpop.xlane.xlu0 %4806
      %v4808 = vsel %vm1152, %v4794, inf
      %4809 = vmin.xlane.f32.xlu0 %v4808
      %v4810 = vpop.xlane.xlu0 %4809
      %v4811 = vsel %vm1152, %v4795, inf
      %4812 = vmin.xlane.f32.xlu0 %v4811
      %v4813 = vpop.xlane.xlu0 %4812
      %v4814 = vsel %vm1152, %v4796, inf
      %4815 = vmin.xlane.f32.xlu0 %v4814
      %v4816 = vpop.xlane.xlu0 %4815
      %v4817 = vsel %vm1152, %v4797, inf
      %4818 = vmin.xlane.f32.xlu0 %v4817
      %v4819 = vpop.xlane.xlu0 %4818
      %v4820 = vsel %vm1152, %v4798, inf
      %4821 = vmin.xlane.f32.xlu0 %v4820
      %v4822 = vpop.xlane.xlu0 %4821
      %vm4823 = vcmp.le.f32.partialorder %v4791, %v4801
      %vm4824 = vcmp.le.f32.partialorder %v4792, %v4804
      %vm4825 = vcmp.le.f32.partialorder %v4793, %v4807
      %vm4826 = vcmp.le.f32.partialorder %v4794, %v4810
      %vm4827 = vcmp.le.f32.partialorder %v4795, %v4813
      %vm4828 = vcmp.le.f32.partialorder %v4796, %v4816
      %vm4829 = vcmp.le.f32.partialorder %v4797, %v4819
      %vm4830 = vcmp.le.f32.partialorder %v4798, %v4822
      %v4831 = vsel %vm4823, %v1151, 64.0
      %v4832 = vsel %vm4824, %v1151, 64.0
      %v4833 = vsel %vm4825, %v1151, 64.0
      %v4834 = vsel %vm4826, %v1151, 64.0
      %v4835 = vsel %vm4827, %v1151, 64.0
      %v4836 = vsel %vm4828, %v1151, 64.0
      %v4837 = vsel %vm4829, %v1151, 64.0
      %v4838 = vsel %vm4830, %v1151, 64.0
      %v4839 = vsel %vm1152, %v4831, inf
      %4840 = vmin.xlane.f32.xlu0 %v4839
      %v4841 = vpop.xlane.xlu0 %4840
      %v4842 = vsel %vm1152, %v4832, inf
      %4843 = vmin.xlane.f32.xlu0 %v4842
      %v4844 = vpop.xlane.xlu0 %4843
      %v4845 = vsel %vm1152, %v4833, inf
      %4846 = vmin.xlane.f32.xlu0 %v4845
      %v4847 = vpop.xlane.xlu0 %4846
      %v4848 = vsel %vm1152, %v4834, inf
      %4849 = vmin.xlane.f32.xlu0 %v4848
      %v4850 = vpop.xlane.xlu0 %4849
      %v4851 = vsel %vm1152, %v4835, inf
      %4852 = vmin.xlane.f32.xlu0 %v4851
      %v4853 = vpop.xlane.xlu0 %4852
      %v4854 = vsel %vm1152, %v4836, inf
      %4855 = vmin.xlane.f32.xlu0 %v4854
      %v4856 = vpop.xlane.xlu0 %4855
      %v4857 = vsel %vm1152, %v4837, inf
      %4858 = vmin.xlane.f32.xlu0 %v4857
      %v4859 = vpop.xlane.xlu0 %4858
      %v4860 = vsel %vm1152, %v4838, inf
      %4861 = vmin.xlane.f32.xlu0 %v4860
      %v4862 = vpop.xlane.xlu0 %4861
      %vm4863 = vcmp.eq.f32.partialorder %v1151, %v4841
      %vm4864 = vcmp.eq.f32.partialorder %v1151, %v4844
      %vm4865 = vcmp.eq.f32.partialorder %v1151, %v4847
      %vm4866 = vcmp.eq.f32.partialorder %v1151, %v4850
      %vm4867 = vcmp.eq.f32.partialorder %v1151, %v4853
      %vm4868 = vcmp.eq.f32.partialorder %v1151, %v4856
      %vm4869 = vcmp.eq.f32.partialorder %v1151, %v4859
      %vm4870 = vcmp.eq.f32.partialorder %v1151, %v4862
      %v4871 = vsel %vm4863, 1, 0
      %v4872 = vsel %vm4864, 1, 0
      %v4873 = vsel %vm4865, 1, 0
      %v4874 = vsel %vm4866, 1, 0
      %v4875 = vsel %vm4867, 1, 0
      %v4876 = vsel %vm4868, 1, 0
      %v4877 = vsel %vm4869, 1, 0
      %v4878 = vsel %vm4870, 1, 0
      %v4879 = vcvt.s32.f32 %v4871
      %v4880 = vcvt.s32.f32 %v4872
      %v4881 = vcvt.s32.f32 %v4873
      %v4882 = vcvt.s32.f32 %v4874
      %v4883 = vcvt.s32.f32 %v4875
      %v4884 = vcvt.s32.f32 %v4876
      %v4885 = vcvt.s32.f32 %v4877
      %v4886 = vcvt.s32.f32 %v4878
      %v4888 = vsel %vm1152, %v4879, 0
      %v4891 = vsel %vm1152, %v4880, 0
      %v4894 = vsel %vm1152, %v4881, 0
      %v4897 = vsel %vm1152, %v4882, 0
      %v4900 = vsel %vm1152, %v4883, 0
      %v4903 = vsel %vm1152, %v4884, 0
      %v4906 = vsel %vm1152, %v4885, 0
      %v4909 = vsel %vm1152, %v4886, 0
      %4911 = vmatpush.msra.mxu0 0.0
      %4912 = vmatpush.msra.mxu0 0.0
      %4913 = vmatpush.msra.mxu0 0.0
      %4914 = vmatpush.msra.mxu0 0.0
      %4915 = vmatpush.msra.mxu0 0.0
      %4916 = vmatpush.msra.mxu0 0.0
      %4917 = vmatpush.msra.mxu0 0.0
      %4918 = vmatpush.msra.mxu0 0.0
      %4919 = vmatpush.msra.mxu0 %v3752
      %4920 = vmatpush.msra.mxu0 %v3751
      %4921 = vmatpush.msra.mxu0 %v3750
      %4922 = vmatpush.msra.mxu0 %v3749
      %4923 = vmatpush.msra.mxu0 %v3748
      %4924 = vmatpush.msra.mxu0 %v3747
      %4925 = vmatpush.msra.mxu0 %v3746
      %4926 = vmatpush.msra.mxu0 %v3745
      %4927 = vmatmul.f32.gmra.mxu0 %v4888
      %v4928 = vpop.f32.mrf.mxu0
      %v4929 = vadd.f32 0.0, %v4928
      %4930 = vmatmul.f32.gmra.mxu0 %v4891
      %v4931 = vpop.f32.mrf.mxu0
      %v4932 = vadd.f32 0.0, %v4931
      %4933 = vmatmul.f32.gmra.mxu0 %v4894
      %v4934 = vpop.f32.mrf.mxu0
      %v4935 = vadd.f32 0.0, %v4934
      %4936 = vmatmul.f32.gmra.mxu0 %v4897
      %v4937 = vpop.f32.mrf.mxu0
      %v4938 = vadd.f32 0.0, %v4937
      %4939 = vmatmul.f32.gmra.mxu0 %v4900
      %v4940 = vpop.f32.mrf.mxu0
      %v4941 = vadd.f32 0.0, %v4940
      %4942 = vmatmul.f32.gmra.mxu0 %v4903
      %v4943 = vpop.f32.mrf.mxu0
      %v4944 = vadd.f32 0.0, %v4943
      %4945 = vmatmul.f32.gmra.mxu0 %v4906
      %v4946 = vpop.f32.mrf.mxu0
      %v4947 = vadd.f32 0.0, %v4946
      %4948 = vmatmul.f32.gmra.mxu0 %v4909
      %v4949 = vpop.f32.mrf.mxu0
      %v4950 = vadd.f32 0.0, %v4949
      %4951 = vdwg.mxu0
      %v4952 = vmax.f32 %v4783, %v4929
      %v4953 = vmax.f32 %v4784, %v4932
      %v4954 = vmax.f32 %v4785, %v4935
      %v4955 = vmax.f32 %v4786, %v4938
      %v4956 = vmax.f32 %v4787, %v4941
      %v4957 = vmax.f32 %v4788, %v4944
      %v4958 = vmax.f32 %v4789, %v4947
      %v4959 = vmax.f32 %v4790, %v4950
      %v4960 = vsel %vm4863, 1e+30, %v4791
      %v4961 = vsel %vm4864, 1e+30, %v4792
      %v4962 = vsel %vm4865, 1e+30, %v4793
      %v4963 = vsel %vm4866, 1e+30, %v4794
      %v4964 = vsel %vm4867, 1e+30, %v4795
      %v4965 = vsel %vm4868, 1e+30, %v4796
      %v4966 = vsel %vm4869, 1e+30, %v4797
      %v4967 = vsel %vm4870, 1e+30, %v4798
      %v4968 = vsel %vm1152, %v4960, inf
      %4969 = vmin.xlane.f32.xlu0 %v4968
      %v4970 = vpop.xlane.xlu0 %4969
      %v4971 = vsel %vm1152, %v4961, inf
      %4972 = vmin.xlane.f32.xlu0 %v4971
      %v4973 = vpop.xlane.xlu0 %4972
      %v4974 = vsel %vm1152, %v4962, inf
      %4975 = vmin.xlane.f32.xlu0 %v4974
      %v4976 = vpop.xlane.xlu0 %4975
      %v4977 = vsel %vm1152, %v4963, inf
      %4978 = vmin.xlane.f32.xlu0 %v4977
      %v4979 = vpop.xlane.xlu0 %4978
      %v4980 = vsel %vm1152, %v4964, inf
      %4981 = vmin.xlane.f32.xlu0 %v4980
      %v4982 = vpop.xlane.xlu0 %4981
      %v4983 = vsel %vm1152, %v4965, inf
      %4984 = vmin.xlane.f32.xlu0 %v4983
      %v4985 = vpop.xlane.xlu0 %4984
      %v4986 = vsel %vm1152, %v4966, inf
      %4987 = vmin.xlane.f32.xlu0 %v4986
      %v4988 = vpop.xlane.xlu0 %4987
      %v4989 = vsel %vm1152, %v4967, inf
      %4990 = vmin.xlane.f32.xlu0 %v4989
      %v4991 = vpop.xlane.xlu0 %4990
      %vm4992 = vcmp.le.f32.partialorder %v4960, %v4970
      %vm4993 = vcmp.le.f32.partialorder %v4961, %v4973
      %vm4994 = vcmp.le.f32.partialorder %v4962, %v4976
      %vm4995 = vcmp.le.f32.partialorder %v4963, %v4979
      %vm4996 = vcmp.le.f32.partialorder %v4964, %v4982
      %vm4997 = vcmp.le.f32.partialorder %v4965, %v4985
      %vm4998 = vcmp.le.f32.partialorder %v4966, %v4988
      %vm4999 = vcmp.le.f32.partialorder %v4967, %v4991
      %v5000 = vsel %vm4992, %v1151, 64.0
      %v5001 = vsel %vm4993, %v1151, 64.0
      %v5002 = vsel %vm4994, %v1151, 64.0
      %v5003 = vsel %vm4995, %v1151, 64.0
      %v5004 = vsel %vm4996, %v1151, 64.0
      %v5005 = vsel %vm4997, %v1151, 64.0
      %v5006 = vsel %vm4998, %v1151, 64.0
      %v5007 = vsel %vm4999, %v1151, 64.0
      %v5008 = vsel %vm1152, %v5000, inf
      %5009 = vmin.xlane.f32.xlu0 %v5008
      %v5010 = vpop.xlane.xlu0 %5009
      %v5011 = vsel %vm1152, %v5001, inf
      %5012 = vmin.xlane.f32.xlu0 %v5011
      %v5013 = vpop.xlane.xlu0 %5012
      %v5014 = vsel %vm1152, %v5002, inf
      %5015 = vmin.xlane.f32.xlu0 %v5014
      %v5016 = vpop.xlane.xlu0 %5015
      %v5017 = vsel %vm1152, %v5003, inf
      %5018 = vmin.xlane.f32.xlu0 %v5017
      %v5019 = vpop.xlane.xlu0 %5018
      %v5020 = vsel %vm1152, %v5004, inf
      %5021 = vmin.xlane.f32.xlu0 %v5020
      %v5022 = vpop.xlane.xlu0 %5021
      %v5023 = vsel %vm1152, %v5005, inf
      %5024 = vmin.xlane.f32.xlu0 %v5023
      %v5025 = vpop.xlane.xlu0 %5024
      %v5026 = vsel %vm1152, %v5006, inf
      %5027 = vmin.xlane.f32.xlu0 %v5026
      %v5028 = vpop.xlane.xlu0 %5027
      %v5029 = vsel %vm1152, %v5007, inf
      %5030 = vmin.xlane.f32.xlu0 %v5029
      %v5031 = vpop.xlane.xlu0 %5030
      %vm5032 = vcmp.eq.f32.partialorder %v1151, %v5010
      %vm5033 = vcmp.eq.f32.partialorder %v1151, %v5013
      %vm5034 = vcmp.eq.f32.partialorder %v1151, %v5016
      %vm5035 = vcmp.eq.f32.partialorder %v1151, %v5019
      %vm5036 = vcmp.eq.f32.partialorder %v1151, %v5022
      %vm5037 = vcmp.eq.f32.partialorder %v1151, %v5025
      %vm5038 = vcmp.eq.f32.partialorder %v1151, %v5028
      %vm5039 = vcmp.eq.f32.partialorder %v1151, %v5031
      %v5040 = vsel %vm5032, 1, 0
      %v5041 = vsel %vm5033, 1, 0
      %v5042 = vsel %vm5034, 1, 0
      %v5043 = vsel %vm5035, 1, 0
      %v5044 = vsel %vm5036, 1, 0
      %v5045 = vsel %vm5037, 1, 0
      %v5046 = vsel %vm5038, 1, 0
      %v5047 = vsel %vm5039, 1, 0
      %v5048 = vcvt.s32.f32 %v5040
      %v5049 = vcvt.s32.f32 %v5041
      %v5050 = vcvt.s32.f32 %v5042
      %v5051 = vcvt.s32.f32 %v5043
      %v5052 = vcvt.s32.f32 %v5044
      %v5053 = vcvt.s32.f32 %v5045
      %v5054 = vcvt.s32.f32 %v5046
      %v5055 = vcvt.s32.f32 %v5047
      %v5057 = vsel %vm1152, %v5048, 0
      %v5060 = vsel %vm1152, %v5049, 0
      %v5063 = vsel %vm1152, %v5050, 0
      %v5066 = vsel %vm1152, %v5051, 0
      %v5069 = vsel %vm1152, %v5052, 0
      %v5072 = vsel %vm1152, %v5053, 0
      %v5075 = vsel %vm1152, %v5054, 0
      %v5078 = vsel %vm1152, %v5055, 0
      %5080 = vmatpush.msra.mxu0 0.0
      %5081 = vmatpush.msra.mxu0 0.0
      %5082 = vmatpush.msra.mxu0 0.0
      %5083 = vmatpush.msra.mxu0 0.0
      %5084 = vmatpush.msra.mxu0 0.0
      %5085 = vmatpush.msra.mxu0 0.0
      %5086 = vmatpush.msra.mxu0 0.0
      %5087 = vmatpush.msra.mxu0 0.0
      %5088 = vmatpush.msra.mxu0 %v3752
      %5089 = vmatpush.msra.mxu0 %v3751
      %5090 = vmatpush.msra.mxu0 %v3750
      %5091 = vmatpush.msra.mxu0 %v3749
      %5092 = vmatpush.msra.mxu0 %v3748
      %5093 = vmatpush.msra.mxu0 %v3747
      %5094 = vmatpush.msra.mxu0 %v3746
      %5095 = vmatpush.msra.mxu0 %v3745
      %5096 = vmatmul.f32.gmra.mxu0 %v5057
      %v5097 = vpop.f32.mrf.mxu0
      %v5098 = vadd.f32 0.0, %v5097
      %5099 = vmatmul.f32.gmra.mxu0 %v5060
      %v5100 = vpop.f32.mrf.mxu0
      %v5101 = vadd.f32 0.0, %v5100
      %5102 = vmatmul.f32.gmra.mxu0 %v5063
      %v5103 = vpop.f32.mrf.mxu0
      %v5104 = vadd.f32 0.0, %v5103
      %5105 = vmatmul.f32.gmra.mxu0 %v5066
      %v5106 = vpop.f32.mrf.mxu0
      %v5107 = vadd.f32 0.0, %v5106
      %5108 = vmatmul.f32.gmra.mxu0 %v5069
      %v5109 = vpop.f32.mrf.mxu0
      %v5110 = vadd.f32 0.0, %v5109
      %5111 = vmatmul.f32.gmra.mxu0 %v5072
      %v5112 = vpop.f32.mrf.mxu0
      %v5113 = vadd.f32 0.0, %v5112
      %5114 = vmatmul.f32.gmra.mxu0 %v5075
      %v5115 = vpop.f32.mrf.mxu0
      %v5116 = vadd.f32 0.0, %v5115
      %5117 = vmatmul.f32.gmra.mxu0 %v5078
      %v5118 = vpop.f32.mrf.mxu0
      %v5119 = vadd.f32 0.0, %v5118
      %5120 = vdwg.mxu0
      %v5121 = vmax.f32 %v4952, %v5098
      %v5122 = vmax.f32 %v4953, %v5101
      %v5123 = vmax.f32 %v4954, %v5104
      %v5124 = vmax.f32 %v4955, %v5107
      %v5125 = vmax.f32 %v4956, %v5110
      %v5126 = vmax.f32 %v4957, %v5113
      %v5127 = vmax.f32 %v4958, %v5116
      %v5128 = vmax.f32 %v4959, %v5119
      %v5129 = vsel %vm5032, 1e+30, %v4960
      %v5130 = vsel %vm5033, 1e+30, %v4961
      %v5131 = vsel %vm5034, 1e+30, %v4962
      %v5132 = vsel %vm5035, 1e+30, %v4963
      %v5133 = vsel %vm5036, 1e+30, %v4964
      %v5134 = vsel %vm5037, 1e+30, %v4965
      %v5135 = vsel %vm5038, 1e+30, %v4966
      %v5136 = vsel %vm5039, 1e+30, %v4967
      %v5137 = vsel %vm1152, %v5129, inf
      %5138 = vmin.xlane.f32.xlu0 %v5137
      %v5139 = vpop.xlane.xlu0 %5138
      %v5140 = vsel %vm1152, %v5130, inf
      %5141 = vmin.xlane.f32.xlu0 %v5140
      %v5142 = vpop.xlane.xlu0 %5141
      %v5143 = vsel %vm1152, %v5131, inf
      %5144 = vmin.xlane.f32.xlu0 %v5143
      %v5145 = vpop.xlane.xlu0 %5144
      %v5146 = vsel %vm1152, %v5132, inf
      %5147 = vmin.xlane.f32.xlu0 %v5146
      %v5148 = vpop.xlane.xlu0 %5147
      %v5149 = vsel %vm1152, %v5133, inf
      %5150 = vmin.xlane.f32.xlu0 %v5149
      %v5151 = vpop.xlane.xlu0 %5150
      %v5152 = vsel %vm1152, %v5134, inf
      %5153 = vmin.xlane.f32.xlu0 %v5152
      %v5154 = vpop.xlane.xlu0 %5153
      %v5155 = vsel %vm1152, %v5135, inf
      %5156 = vmin.xlane.f32.xlu0 %v5155
      %v5157 = vpop.xlane.xlu0 %5156
      %v5158 = vsel %vm1152, %v5136, inf
      %5159 = vmin.xlane.f32.xlu0 %v5158
      %v5160 = vpop.xlane.xlu0 %5159
      %vm5161 = vcmp.le.f32.partialorder %v5129, %v5139
      %vm5162 = vcmp.le.f32.partialorder %v5130, %v5142
      %vm5163 = vcmp.le.f32.partialorder %v5131, %v5145
      %vm5164 = vcmp.le.f32.partialorder %v5132, %v5148
      %vm5165 = vcmp.le.f32.partialorder %v5133, %v5151
      %vm5166 = vcmp.le.f32.partialorder %v5134, %v5154
      %vm5167 = vcmp.le.f32.partialorder %v5135, %v5157
      %vm5168 = vcmp.le.f32.partialorder %v5136, %v5160
      %v5169 = vsel %vm5161, %v1151, 64.0
      %v5170 = vsel %vm5162, %v1151, 64.0
      %v5171 = vsel %vm5163, %v1151, 64.0
      %v5172 = vsel %vm5164, %v1151, 64.0
      %v5173 = vsel %vm5165, %v1151, 64.0
      %v5174 = vsel %vm5166, %v1151, 64.0
      %v5175 = vsel %vm5167, %v1151, 64.0
      %v5176 = vsel %vm5168, %v1151, 64.0
      %v5177 = vsel %vm1152, %v5169, inf
      %5178 = vmin.xlane.f32.xlu0 %v5177
      %v5179 = vpop.xlane.xlu0 %5178
      %v5180 = vsel %vm1152, %v5170, inf
      %5181 = vmin.xlane.f32.xlu0 %v5180
      %v5182 = vpop.xlane.xlu0 %5181
      %v5183 = vsel %vm1152, %v5171, inf
      %5184 = vmin.xlane.f32.xlu0 %v5183
      %v5185 = vpop.xlane.xlu0 %5184
      %v5186 = vsel %vm1152, %v5172, inf
      %5187 = vmin.xlane.f32.xlu0 %v5186
      %v5188 = vpop.xlane.xlu0 %5187
      %v5189 = vsel %vm1152, %v5173, inf
      %5190 = vmin.xlane.f32.xlu0 %v5189
      %v5191 = vpop.xlane.xlu0 %5190
      %v5192 = vsel %vm1152, %v5174, inf
      %5193 = vmin.xlane.f32.xlu0 %v5192
      %v5194 = vpop.xlane.xlu0 %5193
      %v5195 = vsel %vm1152, %v5175, inf
      %5196 = vmin.xlane.f32.xlu0 %v5195
      %v5197 = vpop.xlane.xlu0 %5196
      %v5198 = vsel %vm1152, %v5176, inf
      %5199 = vmin.xlane.f32.xlu0 %v5198
      %v5200 = vpop.xlane.xlu0 %5199
      %vm5201 = vcmp.eq.f32.partialorder %v1151, %v5179
      %vm5202 = vcmp.eq.f32.partialorder %v1151, %v5182
      %vm5203 = vcmp.eq.f32.partialorder %v1151, %v5185
      %vm5204 = vcmp.eq.f32.partialorder %v1151, %v5188
      %vm5205 = vcmp.eq.f32.partialorder %v1151, %v5191
      %vm5206 = vcmp.eq.f32.partialorder %v1151, %v5194
      %vm5207 = vcmp.eq.f32.partialorder %v1151, %v5197
      %vm5208 = vcmp.eq.f32.partialorder %v1151, %v5200
      %v5209 = vsel %vm5201, 1, 0
      %v5210 = vsel %vm5202, 1, 0
      %v5211 = vsel %vm5203, 1, 0
      %v5212 = vsel %vm5204, 1, 0
      %v5213 = vsel %vm5205, 1, 0
      %v5214 = vsel %vm5206, 1, 0
      %v5215 = vsel %vm5207, 1, 0
      %v5216 = vsel %vm5208, 1, 0
      %v5217 = vcvt.s32.f32 %v5209
      %v5218 = vcvt.s32.f32 %v5210
      %v5219 = vcvt.s32.f32 %v5211
      %v5220 = vcvt.s32.f32 %v5212
      %v5221 = vcvt.s32.f32 %v5213
      %v5222 = vcvt.s32.f32 %v5214
      %v5223 = vcvt.s32.f32 %v5215
      %v5224 = vcvt.s32.f32 %v5216
      %v5226 = vsel %vm1152, %v5217, 0
      %v5229 = vsel %vm1152, %v5218, 0
      %v5232 = vsel %vm1152, %v5219, 0
      %v5235 = vsel %vm1152, %v5220, 0
      %v5238 = vsel %vm1152, %v5221, 0
      %v5241 = vsel %vm1152, %v5222, 0
      %v5244 = vsel %vm1152, %v5223, 0
      %v5247 = vsel %vm1152, %v5224, 0
      %5249 = vmatpush.msra.mxu0 0.0
      %5250 = vmatpush.msra.mxu0 0.0
      %5251 = vmatpush.msra.mxu0 0.0
      %5252 = vmatpush.msra.mxu0 0.0
      %5253 = vmatpush.msra.mxu0 0.0
      %5254 = vmatpush.msra.mxu0 0.0
      %5255 = vmatpush.msra.mxu0 0.0
      %5256 = vmatpush.msra.mxu0 0.0
      %5257 = vmatpush.msra.mxu0 %v3752
      %5258 = vmatpush.msra.mxu0 %v3751
      %5259 = vmatpush.msra.mxu0 %v3750
      %5260 = vmatpush.msra.mxu0 %v3749
      %5261 = vmatpush.msra.mxu0 %v3748
      %5262 = vmatpush.msra.mxu0 %v3747
      %5263 = vmatpush.msra.mxu0 %v3746
      %5264 = vmatpush.msra.mxu0 %v3745
      %5265 = vmatmul.f32.gmra.mxu0 %v5226
      %v5266 = vpop.f32.mrf.mxu0
      %v5267 = vadd.f32 0.0, %v5266
      %5268 = vmatmul.f32.gmra.mxu0 %v5229
      %v5269 = vpop.f32.mrf.mxu0
      %v5270 = vadd.f32 0.0, %v5269
      %5271 = vmatmul.f32.gmra.mxu0 %v5232
      %v5272 = vpop.f32.mrf.mxu0
      %v5273 = vadd.f32 0.0, %v5272
      %5274 = vmatmul.f32.gmra.mxu0 %v5235
      %v5275 = vpop.f32.mrf.mxu0
      %v5276 = vadd.f32 0.0, %v5275
      %5277 = vmatmul.f32.gmra.mxu0 %v5238
      %v5278 = vpop.f32.mrf.mxu0
      %v5279 = vadd.f32 0.0, %v5278
      %5280 = vmatmul.f32.gmra.mxu0 %v5241
      %v5281 = vpop.f32.mrf.mxu0
      %v5282 = vadd.f32 0.0, %v5281
      %5283 = vmatmul.f32.gmra.mxu0 %v5244
      %v5284 = vpop.f32.mrf.mxu0
      %v5285 = vadd.f32 0.0, %v5284
      %5286 = vmatmul.f32.gmra.mxu0 %v5247
      %v5287 = vpop.f32.mrf.mxu0
      %v5288 = vadd.f32 0.0, %v5287
      %5289 = vdwg.mxu0
      %v5290 = vmax.f32 %v5121, %v5267
      %v5291 = vmax.f32 %v5122, %v5270
      %v5292 = vmax.f32 %v5123, %v5273
      %v5293 = vmax.f32 %v5124, %v5276
      %v5294 = vmax.f32 %v5125, %v5279
      %v5295 = vmax.f32 %v5126, %v5282
      %v5296 = vmax.f32 %v5127, %v5285
      %v5297 = vmax.f32 %v5128, %v5288
      %v5298 = vsel %vm5201, 1e+30, %v5129
      %v5299 = vsel %vm5202, 1e+30, %v5130
      %v5300 = vsel %vm5203, 1e+30, %v5131
      %v5301 = vsel %vm5204, 1e+30, %v5132
      %v5302 = vsel %vm5205, 1e+30, %v5133
      %v5303 = vsel %vm5206, 1e+30, %v5134
      %v5304 = vsel %vm5207, 1e+30, %v5135
      %v5305 = vsel %vm5208, 1e+30, %v5136
      %v5306 = vsel %vm1152, %v5298, inf
      %5307 = vmin.xlane.f32.xlu0 %v5306
      %v5308 = vpop.xlane.xlu0 %5307
      %v5309 = vsel %vm1152, %v5299, inf
      %5310 = vmin.xlane.f32.xlu0 %v5309
      %v5311 = vpop.xlane.xlu0 %5310
      %v5312 = vsel %vm1152, %v5300, inf
      %5313 = vmin.xlane.f32.xlu0 %v5312
      %v5314 = vpop.xlane.xlu0 %5313
      %v5315 = vsel %vm1152, %v5301, inf
      %5316 = vmin.xlane.f32.xlu0 %v5315
      %v5317 = vpop.xlane.xlu0 %5316
      %v5318 = vsel %vm1152, %v5302, inf
      %5319 = vmin.xlane.f32.xlu0 %v5318
      %v5320 = vpop.xlane.xlu0 %5319
      %v5321 = vsel %vm1152, %v5303, inf
      %5322 = vmin.xlane.f32.xlu0 %v5321
      %v5323 = vpop.xlane.xlu0 %5322
      %v5324 = vsel %vm1152, %v5304, inf
      %5325 = vmin.xlane.f32.xlu0 %v5324
      %v5326 = vpop.xlane.xlu0 %5325
      %v5327 = vsel %vm1152, %v5305, inf
      %5328 = vmin.xlane.f32.xlu0 %v5327
      %v5329 = vpop.xlane.xlu0 %5328
      %vm5330 = vcmp.le.f32.partialorder %v5298, %v5308
      %vm5331 = vcmp.le.f32.partialorder %v5299, %v5311
      %vm5332 = vcmp.le.f32.partialorder %v5300, %v5314
      %vm5333 = vcmp.le.f32.partialorder %v5301, %v5317
      %vm5334 = vcmp.le.f32.partialorder %v5302, %v5320
      %vm5335 = vcmp.le.f32.partialorder %v5303, %v5323
      %vm5336 = vcmp.le.f32.partialorder %v5304, %v5326
      %vm5337 = vcmp.le.f32.partialorder %v5305, %v5329
      %v5338 = vsel %vm5330, %v1151, 64.0
      %v5339 = vsel %vm5331, %v1151, 64.0
      %v5340 = vsel %vm5332, %v1151, 64.0
      %v5341 = vsel %vm5333, %v1151, 64.0
      %v5342 = vsel %vm5334, %v1151, 64.0
      %v5343 = vsel %vm5335, %v1151, 64.0
      %v5344 = vsel %vm5336, %v1151, 64.0
      %v5345 = vsel %vm5337, %v1151, 64.0
      %v5346 = vsel %vm1152, %v5338, inf
      %5347 = vmin.xlane.f32.xlu0 %v5346
      %v5348 = vpop.xlane.xlu0 %5347
      %v5349 = vsel %vm1152, %v5339, inf
      %5350 = vmin.xlane.f32.xlu0 %v5349
      %v5351 = vpop.xlane.xlu0 %5350
      %v5352 = vsel %vm1152, %v5340, inf
      %5353 = vmin.xlane.f32.xlu0 %v5352
      %v5354 = vpop.xlane.xlu0 %5353
      %v5355 = vsel %vm1152, %v5341, inf
      %5356 = vmin.xlane.f32.xlu0 %v5355
      %v5357 = vpop.xlane.xlu0 %5356
      %v5358 = vsel %vm1152, %v5342, inf
      %5359 = vmin.xlane.f32.xlu0 %v5358
      %v5360 = vpop.xlane.xlu0 %5359
      %v5361 = vsel %vm1152, %v5343, inf
      %5362 = vmin.xlane.f32.xlu0 %v5361
      %v5363 = vpop.xlane.xlu0 %5362
      %v5364 = vsel %vm1152, %v5344, inf
      %5365 = vmin.xlane.f32.xlu0 %v5364
      %v5366 = vpop.xlane.xlu0 %5365
      %v5367 = vsel %vm1152, %v5345, inf
      %5368 = vmin.xlane.f32.xlu0 %v5367
      %v5369 = vpop.xlane.xlu0 %5368
      %vm5370 = vcmp.eq.f32.partialorder %v1151, %v5348
      %vm5371 = vcmp.eq.f32.partialorder %v1151, %v5351
      %vm5372 = vcmp.eq.f32.partialorder %v1151, %v5354
      %vm5373 = vcmp.eq.f32.partialorder %v1151, %v5357
      %vm5374 = vcmp.eq.f32.partialorder %v1151, %v5360
      %vm5375 = vcmp.eq.f32.partialorder %v1151, %v5363
      %vm5376 = vcmp.eq.f32.partialorder %v1151, %v5366
      %vm5377 = vcmp.eq.f32.partialorder %v1151, %v5369
      %v5378 = vsel %vm5370, 1, 0
      %v5379 = vsel %vm5371, 1, 0
      %v5380 = vsel %vm5372, 1, 0
      %v5381 = vsel %vm5373, 1, 0
      %v5382 = vsel %vm5374, 1, 0
      %v5383 = vsel %vm5375, 1, 0
      %v5384 = vsel %vm5376, 1, 0
      %v5385 = vsel %vm5377, 1, 0
      %v5386 = vcvt.s32.f32 %v5378
      %v5387 = vcvt.s32.f32 %v5379
      %v5388 = vcvt.s32.f32 %v5380
      %v5389 = vcvt.s32.f32 %v5381
      %v5390 = vcvt.s32.f32 %v5382
      %v5391 = vcvt.s32.f32 %v5383
      %v5392 = vcvt.s32.f32 %v5384
      %v5393 = vcvt.s32.f32 %v5385
      %v5395 = vsel %vm1152, %v5386, 0
      %v5398 = vsel %vm1152, %v5387, 0
      %v5401 = vsel %vm1152, %v5388, 0
      %v5404 = vsel %vm1152, %v5389, 0
      %v5407 = vsel %vm1152, %v5390, 0
      %v5410 = vsel %vm1152, %v5391, 0
      %v5413 = vsel %vm1152, %v5392, 0
      %v5416 = vsel %vm1152, %v5393, 0
      %5418 = vmatpush.msra.mxu0 0.0
      %5419 = vmatpush.msra.mxu0 0.0
      %5420 = vmatpush.msra.mxu0 0.0
      %5421 = vmatpush.msra.mxu0 0.0
      %5422 = vmatpush.msra.mxu0 0.0
      %5423 = vmatpush.msra.mxu0 0.0
      %5424 = vmatpush.msra.mxu0 0.0
      %5425 = vmatpush.msra.mxu0 0.0
      %5426 = vmatpush.msra.mxu0 %v3752
      %5427 = vmatpush.msra.mxu0 %v3751
      %5428 = vmatpush.msra.mxu0 %v3750
      %5429 = vmatpush.msra.mxu0 %v3749
      %5430 = vmatpush.msra.mxu0 %v3748
      %5431 = vmatpush.msra.mxu0 %v3747
      %5432 = vmatpush.msra.mxu0 %v3746
      %5433 = vmatpush.msra.mxu0 %v3745
      %5434 = vmatmul.f32.gmra.mxu0 %v5395
      %v5435 = vpop.f32.mrf.mxu0
      %v5436 = vadd.f32 0.0, %v5435
      %5437 = vmatmul.f32.gmra.mxu0 %v5398
      %v5438 = vpop.f32.mrf.mxu0
      %v5439 = vadd.f32 0.0, %v5438
      %5440 = vmatmul.f32.gmra.mxu0 %v5401
      %v5441 = vpop.f32.mrf.mxu0
      %v5442 = vadd.f32 0.0, %v5441
      %5443 = vmatmul.f32.gmra.mxu0 %v5404
      %v5444 = vpop.f32.mrf.mxu0
      %v5445 = vadd.f32 0.0, %v5444
      %5446 = vmatmul.f32.gmra.mxu0 %v5407
      %v5447 = vpop.f32.mrf.mxu0
      %v5448 = vadd.f32 0.0, %v5447
      %5449 = vmatmul.f32.gmra.mxu0 %v5410
      %v5450 = vpop.f32.mrf.mxu0
      %v5451 = vadd.f32 0.0, %v5450
      %5452 = vmatmul.f32.gmra.mxu0 %v5413
      %v5453 = vpop.f32.mrf.mxu0
      %v5454 = vadd.f32 0.0, %v5453
      %5455 = vmatmul.f32.gmra.mxu0 %v5416
      %v5456 = vpop.f32.mrf.mxu0
      %v5457 = vadd.f32 0.0, %v5456
      %5458 = vdwg.mxu0
      %v5459 = vmax.f32 %v5290, %v5436
      %v5460 = vmax.f32 %v5291, %v5439
      %v5461 = vmax.f32 %v5292, %v5442
      %v5462 = vmax.f32 %v5293, %v5445
      %v5463 = vmax.f32 %v5294, %v5448
      %v5464 = vmax.f32 %v5295, %v5451
      %v5465 = vmax.f32 %v5296, %v5454
      %v5466 = vmax.f32 %v5297, %v5457
      %v5467 = vsub.f32 %v5459, %v3745
      %v5468 = vsub.f32 %v5460, %v3746
      %v5469 = vsub.f32 %v5461, %v3747
      %v5470 = vsub.f32 %v5462, %v3748
      %v5471 = vsub.f32 %v5463, %v3749
      %v5472 = vsub.f32 %v5464, %v3750
      %v5473 = vsub.f32 %v5465, %v3751
      %v5474 = vsub.f32 %v5466, %v3752
      %v5476 = vsel %vm781, %v5467, 0
      %v5479 = vsel %vm781, %v5468, 0
      %v5482 = vsel %vm781, %v5469, 0
      %v5485 = vsel %vm781, %v5470, 0
      %v5488 = vsel %vm781, %v5471, 0
      %v5491 = vsel %vm781, %v5472, 0
      %v5494 = vsel %vm781, %v5473, 0
      %v5497 = vsel %vm781, %v5474, 0
      %v5500 = vsel %vm806, %v753, 0
      %5502 = vmatpush.msra.mxu0 0.0
      %5503 = vmatpush.msra.mxu0 0.0
      %5504 = vmatpush.msra.mxu0 0.0
      %5505 = vmatpush.msra.mxu0 0.0
      %5506 = vmatpush.msra.mxu0 0.0
      %5507 = vmatpush.msra.mxu0 0.0
      %5508 = vmatpush.msra.mxu0 0.0
      %5509 = vmatpush.msra.mxu0 0.0
      %5510 = vmatpush.msra.mxu0 0.0
      %5511 = vmatpush.msra.mxu0 0.0
      %5512 = vmatpush.msra.mxu0 0.0
      %5513 = vmatpush.msra.mxu0 0.0
      %5514 = vmatpush.msra.mxu0 0.0
      %5515 = vmatpush.msra.mxu0 0.0
      %5516 = vmatpush.msra.mxu0 0.0
      %5517 = vmatpush.msra.mxu0 %v5500
      %5518 = vmatmul.f32.gmra.mxu0 %v5476
      %v5519 = vpop.f32.mrf.mxu0
      %v5520 = vadd.f32 0.0, %v5519
      %5521 = vmatmul.f32.gmra.mxu0 %v5479
      %v5522 = vpop.f32.mrf.mxu0
      %v5523 = vadd.f32 0.0, %v5522
      %5524 = vmatmul.f32.gmra.mxu0 %v5482
      %v5525 = vpop.f32.mrf.mxu0
      %v5526 = vadd.f32 0.0, %v5525
      %5527 = vmatmul.f32.gmra.mxu0 %v5485
      %v5528 = vpop.f32.mrf.mxu0
      %v5529 = vadd.f32 0.0, %v5528
      %5530 = vmatmul.f32.gmra.mxu0 %v5488
      %v5531 = vpop.f32.mrf.mxu0
      %v5532 = vadd.f32 0.0, %v5531
      %5533 = vmatmul.f32.gmra.mxu0 %v5491
      %v5534 = vpop.f32.mrf.mxu0
      %v5535 = vadd.f32 0.0, %v5534
      %5536 = vmatmul.f32.gmra.mxu0 %v5494
      %v5537 = vpop.f32.mrf.mxu0
      %v5538 = vadd.f32 0.0, %v5537
      %5539 = vmatmul.f32.gmra.mxu0 %v5497
      %v5540 = vpop.f32.mrf.mxu0
      %v5541 = vadd.f32 0.0, %v5540
      %5542 = vdwg.mxu0
      %v5544 = vsel %vm781, %v3745, 0
      %v5547 = vsel %vm781, %v3746, 0
      %v5550 = vsel %vm781, %v3747, 0
      %v5553 = vsel %vm781, %v3748, 0
      %v5556 = vsel %vm781, %v3749, 0
      %v5559 = vsel %vm781, %v3750, 0
      %v5562 = vsel %vm781, %v3751, 0
      %v5565 = vsel %vm781, %v3752, 0
      %v5568 = vsel %vm806, %v752, 0
      %5570 = vmatpush.msra.mxu0 0.0
      %5571 = vmatpush.msra.mxu0 0.0
      %5572 = vmatpush.msra.mxu0 0.0
      %5573 = vmatpush.msra.mxu0 0.0
      %5574 = vmatpush.msra.mxu0 0.0
      %5575 = vmatpush.msra.mxu0 0.0
      %5576 = vmatpush.msra.mxu0 0.0
      %5577 = vmatpush.msra.mxu0 0.0
      %5578 = vmatpush.msra.mxu0 0.0
      %5579 = vmatpush.msra.mxu0 0.0
      %5580 = vmatpush.msra.mxu0 0.0
      %5581 = vmatpush.msra.mxu0 0.0
      %5582 = vmatpush.msra.mxu0 0.0
      %5583 = vmatpush.msra.mxu0 0.0
      %5584 = vmatpush.msra.mxu0 0.0
      %5585 = vmatpush.msra.mxu0 %v5568
      %5586 = vmatmul.f32.gmra.mxu0 %v5544
      %v5587 = vpop.f32.mrf.mxu0
      %v5588 = vadd.f32 %v5520, %v5587
      %5589 = vmatmul.f32.gmra.mxu0 %v5547
      %v5590 = vpop.f32.mrf.mxu0
      %v5591 = vadd.f32 %v5523, %v5590
      %5592 = vmatmul.f32.gmra.mxu0 %v5550
      %v5593 = vpop.f32.mrf.mxu0
      %v5594 = vadd.f32 %v5526, %v5593
      %5595 = vmatmul.f32.gmra.mxu0 %v5553
      %v5596 = vpop.f32.mrf.mxu0
      %v5597 = vadd.f32 %v5529, %v5596
      %5598 = vmatmul.f32.gmra.mxu0 %v5556
      %v5599 = vpop.f32.mrf.mxu0
      %v5600 = vadd.f32 %v5532, %v5599
      %5601 = vmatmul.f32.gmra.mxu0 %v5559
      %v5602 = vpop.f32.mrf.mxu0
      %v5603 = vadd.f32 %v5535, %v5602
      %5604 = vmatmul.f32.gmra.mxu0 %v5562
      %v5605 = vpop.f32.mrf.mxu0
      %v5606 = vadd.f32 %v5538, %v5605
      %5607 = vmatmul.f32.gmra.mxu0 %v5565
      %v5608 = vpop.f32.mrf.mxu0
      %v5609 = vadd.f32 %v5541, %v5608
      %5610 = vdwg.mxu0
      %v5612 = vperm.slane %v754, 0
      %v5614 = vadd.f32 %v5588, %v5612
      %v5615 = vadd.f32 %v5591, %v5612
      %v5616 = vadd.f32 %v5594, %v5612
      %v5617 = vadd.f32 %v5597, %v5612
      %v5618 = vadd.f32 %v5600, %v5612
      %v5619 = vadd.f32 %v5603, %v5612
      %v5620 = vadd.f32 %v5606, %v5612
      %v5621 = vadd.f32 %v5609, %v5612
      %v5622 = vsel %vm2813, %v5614, 0.0
      %v5623 = vsel %vm2813, %v5615, 0.0
      %v5624 = vadd.f32 %v5622, %v5623
      %v5625 = vsel %vm2813, %v5616, 0.0
      %v5626 = vadd.f32 %v5624, %v5625
      %v5627 = vsel %vm2813, %v5617, 0.0
      %v5628 = vadd.f32 %v5626, %v5627
      %v5629 = vsel %vm2813, %v5618, 0.0
      %v5630 = vadd.f32 %v5628, %v5629
      %v5631 = vsel %vm2813, %v5619, 0.0
      %v5632 = vadd.f32 %v5630, %v5631
      %v5633 = vsel %vm2813, %v5620, 0.0
      %v5634 = vadd.f32 %v5632, %v5633
      %v5635 = vsel %vm2813, %v5621, 0.0
      %v5636 = vadd.f32 %v5634, %v5635
      %v5637 = vrot.slane %v5636, 4
      %v5638 = vadd.f32 %v5636, %v5637
      %v5639 = vrot.slane %v5638, 2
      %v5640 = vadd.f32 %v5638, %v5639
      %v5641 = vrot.slane %v5640, 1
      %v5642 = vadd.f32 %v5640, %v5641
      %v5643 = vmul.f32 %v5642, %v878
      %v5644 = vmul.f32 %v5614, %v5614
      %v5645 = vmul.f32 %v5615, %v5615
      %v5646 = vmul.f32 %v5616, %v5616
      %v5647 = vmul.f32 %v5617, %v5617
      %v5648 = vmul.f32 %v5618, %v5618
      %v5649 = vmul.f32 %v5619, %v5619
      %v5650 = vmul.f32 %v5620, %v5620
      %v5651 = vmul.f32 %v5621, %v5621
      %v5652 = vsel %vm2813, %v5644, 0.0
      %v5653 = vsel %vm2813, %v5645, 0.0
      %v5654 = vadd.f32 %v5652, %v5653
      %v5655 = vsel %vm2813, %v5646, 0.0
      %v5656 = vadd.f32 %v5654, %v5655
      %v5657 = vsel %vm2813, %v5647, 0.0
      %v5658 = vadd.f32 %v5656, %v5657
      %v5659 = vsel %vm2813, %v5648, 0.0
      %v5660 = vadd.f32 %v5658, %v5659
      %v5661 = vsel %vm2813, %v5649, 0.0
      %v5662 = vadd.f32 %v5660, %v5661
      %v5663 = vsel %vm2813, %v5650, 0.0
      %v5664 = vadd.f32 %v5662, %v5663
      %v5665 = vsel %vm2813, %v5651, 0.0
      %v5666 = vadd.f32 %v5664, %v5665
      %v5667 = vrot.slane %v5666, 4
      %v5668 = vadd.f32 %v5666, %v5667
      %v5669 = vrot.slane %v5668, 2
      %v5670 = vadd.f32 %v5668, %v5669
      %v5671 = vrot.slane %v5670, 1
      %v5672 = vadd.f32 %v5670, %v5671
      %v5673 = vmul.f32 %v5672, %v878
      %v5674 = vmul.f32 %v5643, %v5643
      %v5675 = vsub.f32 %v5673, %v5674
      %v5676 = vmax.f32 %v5675, 0.0
      %v5677 = vsub.f32 %v5614, %v5643
      %v5678 = vsub.f32 %v5615, %v5643
      %v5679 = vsub.f32 %v5616, %v5643
      %v5680 = vsub.f32 %v5617, %v5643
      %v5681 = vsub.f32 %v5618, %v5643
      %v5682 = vsub.f32 %v5619, %v5643
      %v5683 = vsub.f32 %v5620, %v5643
      %v5684 = vsub.f32 %v5621, %v5643
      %v5685 = vadd.f32 %v5676, 1e-05
      %v5686 = vrsqrt.pop %v5685
      %v5687 = vmul.f32 %v5686, %v5685
      %v5688 = vmul.f32 %v5687, %v5686
      %v5689 = vmul.f32 0.5, %v5688
      %v5690 = vsub.f32 1.5, %v5689
      %v5691 = vmul.f32 %v5686, %v5690
      %vm5692 = vweird.f32 %v5685
      %vm5693 = vweird.f32 %v5686
      %vm5694 = vmor %vm5692, %vm5693
      %v5695 = vsel %vm5694, %v5686, %v5691
      %v5696 = vmul.f32 %v5677, %v5695
      %v5697 = vmul.f32 %v5678, %v5695
      %v5698 = vmul.f32 %v5679, %v5695
      %v5699 = vmul.f32 %v5680, %v5695
      %v5700 = vmul.f32 %v5681, %v5695
      %v5701 = vmul.f32 %v5682, %v5695
      %v5702 = vmul.f32 %v5683, %v5695
      %v5703 = vmul.f32 %v5684, %v5695
      %v5704 = vmul.f32 %v5696, 0.5
      %v5705 = vmul.f32 %v5697, 0.5
      %v5706 = vmul.f32 %v5698, 0.5
      %v5707 = vmul.f32 %v5699, 0.5
      %v5708 = vmul.f32 %v5700, 0.5
      %v5709 = vmul.f32 %v5701, 0.5
      %v5710 = vmul.f32 %v5702, 0.5
      %v5711 = vmul.f32 %v5703, 0.5
      %v5712 = vmul.f32 %v5696, 0.044715
      %v5713 = vmul.f32 %v5697, 0.044715
      %v5714 = vmul.f32 %v5698, 0.044715
      %v5715 = vmul.f32 %v5699, 0.044715
      %v5716 = vmul.f32 %v5700, 0.044715
      %v5717 = vmul.f32 %v5701, 0.044715
      %v5718 = vmul.f32 %v5702, 0.044715
      %v5719 = vmul.f32 %v5703, 0.044715
      %v5720 = vmul.f32 %v5712, %v5696
      %v5721 = vmul.f32 %v5713, %v5697
      %v5722 = vmul.f32 %v5714, %v5698
      %v5723 = vmul.f32 %v5715, %v5699
      %v5724 = vmul.f32 %v5716, %v5700
      %v5725 = vmul.f32 %v5717, %v5701
      %v5726 = vmul.f32 %v5718, %v5702
      %v5727 = vmul.f32 %v5719, %v5703
      %v5728 = vmul.f32 %v5720, %v5696
      %v5729 = vmul.f32 %v5721, %v5697
      %v5730 = vmul.f32 %v5722, %v5698
      %v5731 = vmul.f32 %v5723, %v5699
      %v5732 = vmul.f32 %v5724, %v5700
      %v5733 = vmul.f32 %v5725, %v5701
      %v5734 = vmul.f32 %v5726, %v5702
      %v5735 = vmul.f32 %v5727, %v5703
      %v5736 = vadd.f32 %v5696, %v5728
      %v5737 = vadd.f32 %v5697, %v5729
      %v5738 = vadd.f32 %v5698, %v5730
      %v5739 = vadd.f32 %v5699, %v5731
      %v5740 = vadd.f32 %v5700, %v5732
      %v5741 = vadd.f32 %v5701, %v5733
      %v5742 = vadd.f32 %v5702, %v5734
      %v5743 = vadd.f32 %v5703, %v5735
      %v5744 = vmul.f32 %v5736, 0.7978846
      %v5745 = vmul.f32 %v5737, 0.7978846
      %v5746 = vmul.f32 %v5738, 0.7978846
      %v5747 = vmul.f32 %v5739, 0.7978846
      %v5748 = vmul.f32 %v5740, 0.7978846
      %v5749 = vmul.f32 %v5741, 0.7978846
      %v5750 = vmul.f32 %v5742, 0.7978846
      %v5751 = vmul.f32 %v5743, 0.7978846
      %v5752 = vtanh.pop %v5744
      %v5753 = vtanh.pop %v5745
      %v5754 = vtanh.pop %v5746
      %v5755 = vtanh.pop %v5747
      %v5756 = vtanh.pop %v5748
      %v5757 = vtanh.pop %v5749
      %v5758 = vtanh.pop %v5750
      %v5759 = vtanh.pop %v5751
      %v5760 = vadd.f32 %v5752, 1.0
      %v5761 = vadd.f32 %v5753, 1.0
      %v5762 = vadd.f32 %v5754, 1.0
      %v5763 = vadd.f32 %v5755, 1.0
      %v5764 = vadd.f32 %v5756, 1.0
      %v5765 = vadd.f32 %v5757, 1.0
      %v5766 = vadd.f32 %v5758, 1.0
      %v5767 = vadd.f32 %v5759, 1.0
      %v5768 = vmul.f32 %v5704, %v5760
      %v5769 = vmul.f32 %v5705, %v5761
      %v5770 = vmul.f32 %v5706, %v5762
      %v5771 = vmul.f32 %v5707, %v5763
      %v5772 = vmul.f32 %v5708, %v5764
      %v5773 = vmul.f32 %v5709, %v5765
      %v5774 = vmul.f32 %v5710, %v5766
      %v5775 = vmul.f32 %v5711, %v5767
      %v5777 = vperm.slane %v756, 0
      %v5780 = vsel %vm2813, %v5768, 0
      %v5783 = vsel %vm2813, %v5769, 0
      %v5786 = vsel %vm2813, %v5770, 0
      %v5789 = vsel %vm2813, %v5771, 0
      %v5792 = vsel %vm2813, %v5772, 0
      %v5795 = vsel %vm2813, %v5773, 0
      %v5798 = vsel %vm2813, %v5774, 0
      %v5801 = vsel %vm2813, %v5775, 0
      %5803 = vmatpush.msra.mxu0 0.0
      %5804 = vmatpush.msra.mxu0 0.0
      %5805 = vmatpush.msra.mxu0 0.0
      %5806 = vmatpush.msra.mxu0 0.0
      %5807 = vmatpush.msra.mxu0 0.0
      %5808 = vmatpush.msra.mxu0 0.0
      %5809 = vmatpush.msra.mxu0 0.0
      %5810 = vmatpush.msra.mxu0 0.0
      %5811 = vmatpush.msra.mxu0 0.0
      %5812 = vmatpush.msra.mxu0 0.0
      %5813 = vmatpush.msra.mxu0 0.0
      %5814 = vmatpush.msra.mxu0 0.0
      %5815 = vmatpush.msra.mxu0 0.0
      %5816 = vmatpush.msra.mxu0 0.0
      %5817 = vmatpush.msra.mxu0 0.0
      %5818 = vmatpush.msra.mxu0 %v755
      %5819 = vmatmul.f32.gmra.mxu0 %v5780
      %v5820 = vpop.f32.mrf.mxu0
      %v5821 = vadd.f32 %v5777, %v5820
      %5822 = vmatmul.f32.gmra.mxu0 %v5783
      %v5823 = vpop.f32.mrf.mxu0
      %v5824 = vadd.f32 %v5777, %v5823
      %5825 = vmatmul.f32.gmra.mxu0 %v5786
      %v5826 = vpop.f32.mrf.mxu0
      %v5827 = vadd.f32 %v5777, %v5826
      %5828 = vmatmul.f32.gmra.mxu0 %v5789
      %v5829 = vpop.f32.mrf.mxu0
      %v5830 = vadd.f32 %v5777, %v5829
      %5831 = vmatmul.f32.gmra.mxu0 %v5792
      %v5832 = vpop.f32.mrf.mxu0
      %v5833 = vadd.f32 %v5777, %v5832
      %5834 = vmatmul.f32.gmra.mxu0 %v5795
      %v5835 = vpop.f32.mrf.mxu0
      %v5836 = vadd.f32 %v5777, %v5835
      %5837 = vmatmul.f32.gmra.mxu0 %v5798
      %v5838 = vpop.f32.mrf.mxu0
      %v5839 = vadd.f32 %v5777, %v5838
      %5840 = vmatmul.f32.gmra.mxu0 %v5801
      %v5841 = vpop.f32.mrf.mxu0
      %v5842 = vadd.f32 %v5777, %v5841
      %5843 = vdwg.mxu0
      %v5844 = vsel %vm781, %v5821, 0.0
      %v5845 = vsel %vm781, %v5824, 0.0
      %v5846 = vadd.f32 %v5844, %v5845
      %v5847 = vsel %vm781, %v5827, 0.0
      %v5848 = vadd.f32 %v5846, %v5847
      %v5849 = vsel %vm781, %v5830, 0.0
      %v5850 = vadd.f32 %v5848, %v5849
      %v5851 = vsel %vm781, %v5833, 0.0
      %v5852 = vadd.f32 %v5850, %v5851
      %v5853 = vsel %vm781, %v5836, 0.0
      %v5854 = vadd.f32 %v5852, %v5853
      %v5855 = vsel %vm781, %v5839, 0.0
      %v5856 = vadd.f32 %v5854, %v5855
      %v5857 = vsel %vm781, %v5842, 0.0
      %v5858 = vadd.f32 %v5856, %v5857
      %v5859 = vrot.slane %v5858, 4
      %v5860 = vadd.f32 %v5858, %v5859
      %v5861 = vrot.slane %v5860, 2
      %v5862 = vadd.f32 %v5860, %v5861
      %v5863 = vrot.slane %v5862, 1
      %v5864 = vadd.f32 %v5862, %v5863
      %v5865 = vmul.f32 %v5864, %v878
      %v5866 = vmul.f32 %v5821, %v5821
      %v5867 = vmul.f32 %v5824, %v5824
      %v5868 = vmul.f32 %v5827, %v5827
      %v5869 = vmul.f32 %v5830, %v5830
      %v5870 = vmul.f32 %v5833, %v5833
      %v5871 = vmul.f32 %v5836, %v5836
      %v5872 = vmul.f32 %v5839, %v5839
      %v5873 = vmul.f32 %v5842, %v5842
      %v5874 = vsel %vm781, %v5866, 0.0
      %v5875 = vsel %vm781, %v5867, 0.0
      %v5876 = vadd.f32 %v5874, %v5875
      %v5877 = vsel %vm781, %v5868, 0.0
      %v5878 = vadd.f32 %v5876, %v5877
      %v5879 = vsel %vm781, %v5869, 0.0
      %v5880 = vadd.f32 %v5878, %v5879
      %v5881 = vsel %vm781, %v5870, 0.0
      %v5882 = vadd.f32 %v5880, %v5881
      %v5883 = vsel %vm781, %v5871, 0.0
      %v5884 = vadd.f32 %v5882, %v5883
      %v5885 = vsel %vm781, %v5872, 0.0
      %v5886 = vadd.f32 %v5884, %v5885
      %v5887 = vsel %vm781, %v5873, 0.0
      %v5888 = vadd.f32 %v5886, %v5887
      %v5889 = vrot.slane %v5888, 4
      %v5890 = vadd.f32 %v5888, %v5889
      %v5891 = vrot.slane %v5890, 2
      %v5892 = vadd.f32 %v5890, %v5891
      %v5893 = vrot.slane %v5892, 1
      %v5894 = vadd.f32 %v5892, %v5893
      %v5895 = vmul.f32 %v5894, %v878
      %v5896 = vmul.f32 %v5865, %v5865
      %v5897 = vsub.f32 %v5895, %v5896
      %v5898 = vmax.f32 %v5897, 0.0
      %v5899 = vsub.f32 %v5821, %v5865
      %v5900 = vsub.f32 %v5824, %v5865
      %v5901 = vsub.f32 %v5827, %v5865
      %v5902 = vsub.f32 %v5830, %v5865
      %v5903 = vsub.f32 %v5833, %v5865
      %v5904 = vsub.f32 %v5836, %v5865
      %v5905 = vsub.f32 %v5839, %v5865
      %v5906 = vsub.f32 %v5842, %v5865
      %v5907 = vadd.f32 %v5898, 1e-05
      %v5908 = vrsqrt.pop %v5907
      %v5909 = vmul.f32 %v5908, %v5907
      %v5910 = vmul.f32 %v5909, %v5908
      %v5911 = vmul.f32 0.5, %v5910
      %v5912 = vsub.f32 1.5, %v5911
      %v5913 = vmul.f32 %v5908, %v5912
      %vm5914 = vweird.f32 %v5907
      %vm5915 = vweird.f32 %v5908
      %vm5916 = vmor %vm5914, %vm5915
      %v5917 = vsel %vm5916, %v5908, %v5913
      %v5918 = vmul.f32 %v5899, %v5917
      %v5919 = vmul.f32 %v5900, %v5917
      %v5920 = vmul.f32 %v5901, %v5917
      %v5921 = vmul.f32 %v5902, %v5917
      %v5922 = vmul.f32 %v5903, %v5917
      %v5923 = vmul.f32 %v5904, %v5917
      %v5924 = vmul.f32 %v5905, %v5917
      %v5925 = vmul.f32 %v5906, %v5917
      %v5926 = vadd.f32 %v5918, %v3592
      %v5927 = vadd.f32 %v5919, %v3593
      %v5928 = vadd.f32 %v5920, %v3594
      %v5929 = vadd.f32 %v5921, %v3595
      %v5930 = vadd.f32 %v5922, %v3596
      %v5931 = vadd.f32 %v5923, %v3597
      %v5932 = vadd.f32 %v5924, %v3598
      %v5933 = vadd.f32 %v5925, %v3599
      %v5935 = vperm.slane %v758, 0
      %v5938 = vsel %vm781, %v5926, 0
      %v5941 = vsel %vm781, %v5927, 0
      %v5944 = vsel %vm781, %v5928, 0
      %v5947 = vsel %vm781, %v5929, 0
      %v5950 = vsel %vm781, %v5930, 0
      %v5953 = vsel %vm781, %v5931, 0
      %v5956 = vsel %vm781, %v5932, 0
      %v5959 = vsel %vm781, %v5933, 0
      %v5962 = vsel %vm806, %v757, 0
      %5964 = vmatpush.msra.mxu0 0.0
      %5965 = vmatpush.msra.mxu0 0.0
      %5966 = vmatpush.msra.mxu0 0.0
      %5967 = vmatpush.msra.mxu0 0.0
      %5968 = vmatpush.msra.mxu0 0.0
      %5969 = vmatpush.msra.mxu0 0.0
      %5970 = vmatpush.msra.mxu0 0.0
      %5971 = vmatpush.msra.mxu0 0.0
      %5972 = vmatpush.msra.mxu0 0.0
      %5973 = vmatpush.msra.mxu0 0.0
      %5974 = vmatpush.msra.mxu0 0.0
      %5975 = vmatpush.msra.mxu0 0.0
      %5976 = vmatpush.msra.mxu0 0.0
      %5977 = vmatpush.msra.mxu0 0.0
      %5978 = vmatpush.msra.mxu0 0.0
      %5979 = vmatpush.msra.mxu0 %v5962
      %5980 = vmatmul.f32.gmra.mxu0 %v5938
      %v5981 = vpop.f32.mrf.mxu0
      %v5982 = vadd.f32 %v5935, %v5981
      %5983 = vmatmul.f32.gmra.mxu0 %v5941
      %v5984 = vpop.f32.mrf.mxu0
      %v5985 = vadd.f32 %v5935, %v5984
      %5986 = vmatmul.f32.gmra.mxu0 %v5944
      %v5987 = vpop.f32.mrf.mxu0
      %v5988 = vadd.f32 %v5935, %v5987
      %5989 = vmatmul.f32.gmra.mxu0 %v5947
      %v5990 = vpop.f32.mrf.mxu0
      %v5991 = vadd.f32 %v5935, %v5990
      %5992 = vmatmul.f32.gmra.mxu0 %v5950
      %v5993 = vpop.f32.mrf.mxu0
      %v5994 = vadd.f32 %v5935, %v5993
      %5995 = vmatmul.f32.gmra.mxu0 %v5953
      %v5996 = vpop.f32.mrf.mxu0
      %v5997 = vadd.f32 %v5935, %v5996
      %5998 = vmatmul.f32.gmra.mxu0 %v5956
      %v5999 = vpop.f32.mrf.mxu0
      %v6000 = vadd.f32 %v5935, %v5999
      %6001 = vmatmul.f32.gmra.mxu0 %v5959
      %v6002 = vpop.f32.mrf.mxu0
      %v6003 = vadd.f32 %v5935, %v6002
      %6004 = vdwg.mxu0
      %v6005 = vsel %vm3197, %v5982, 0.0
      %v6006 = vsel %vm3197, %v5985, 0.0
      %v6007 = vadd.f32 %v6005, %v6006
      %v6008 = vsel %vm3197, %v5988, 0.0
      %v6009 = vadd.f32 %v6007, %v6008
      %v6010 = vsel %vm3197, %v5991, 0.0
      %v6011 = vadd.f32 %v6009, %v6010
      %v6012 = vsel %vm3197, %v5994, 0.0
      %v6013 = vadd.f32 %v6011, %v6012
      %v6014 = vsel %vm3197, %v5997, 0.0
      %v6015 = vadd.f32 %v6013, %v6014
      %v6016 = vsel %vm3197, %v6000, 0.0
      %v6017 = vadd.f32 %v6015, %v6016
      %v6018 = vsel %vm3197, %v6003, 0.0
      %v6019 = vadd.f32 %v6017, %v6018
      %v6020 = vrot.slane %v6019, 4
      %v6021 = vadd.f32 %v6019, %v6020
      %v6022 = vrot.slane %v6021, 2
      %v6023 = vadd.f32 %v6021, %v6022
      %v6024 = vrot.slane %v6023, 1
      %v6025 = vadd.f32 %v6023, %v6024
      %v6026 = vmul.f32 %v6025, %v878
      %v6027 = vmul.f32 %v5982, %v5982
      %v6028 = vmul.f32 %v5985, %v5985
      %v6029 = vmul.f32 %v5988, %v5988
      %v6030 = vmul.f32 %v5991, %v5991
      %v6031 = vmul.f32 %v5994, %v5994
      %v6032 = vmul.f32 %v5997, %v5997
      %v6033 = vmul.f32 %v6000, %v6000
      %v6034 = vmul.f32 %v6003, %v6003
      %v6035 = vsel %vm3197, %v6027, 0.0
      %v6036 = vsel %vm3197, %v6028, 0.0
      %v6037 = vadd.f32 %v6035, %v6036
      %v6038 = vsel %vm3197, %v6029, 0.0
      %v6039 = vadd.f32 %v6037, %v6038
      %v6040 = vsel %vm3197, %v6030, 0.0
      %v6041 = vadd.f32 %v6039, %v6040
      %v6042 = vsel %vm3197, %v6031, 0.0
      %v6043 = vadd.f32 %v6041, %v6042
      %v6044 = vsel %vm3197, %v6032, 0.0
      %v6045 = vadd.f32 %v6043, %v6044
      %v6046 = vsel %vm3197, %v6033, 0.0
      %v6047 = vadd.f32 %v6045, %v6046
      %v6048 = vsel %vm3197, %v6034, 0.0
      %v6049 = vadd.f32 %v6047, %v6048
      %v6050 = vrot.slane %v6049, 4
      %v6051 = vadd.f32 %v6049, %v6050
      %v6052 = vrot.slane %v6051, 2
      %v6053 = vadd.f32 %v6051, %v6052
      %v6054 = vrot.slane %v6053, 1
      %v6055 = vadd.f32 %v6053, %v6054
      %v6056 = vmul.f32 %v6055, %v878
      %v6057 = vmul.f32 %v6026, %v6026
      %v6058 = vsub.f32 %v6056, %v6057
      %v6059 = vmax.f32 %v6058, 0.0
      %v6060 = vsub.f32 %v5982, %v6026
      %v6061 = vsub.f32 %v5985, %v6026
      %v6062 = vsub.f32 %v5988, %v6026
      %v6063 = vsub.f32 %v5991, %v6026
      %v6064 = vsub.f32 %v5994, %v6026
      %v6065 = vsub.f32 %v5997, %v6026
      %v6066 = vsub.f32 %v6000, %v6026
      %v6067 = vsub.f32 %v6003, %v6026
      %v6068 = vadd.f32 %v6059, 1e-05
      %v6069 = vrsqrt.pop %v6068
      %v6070 = vmul.f32 %v6069, %v6068
      %v6071 = vmul.f32 %v6070, %v6069
      %v6072 = vmul.f32 0.5, %v6071
      %v6073 = vsub.f32 1.5, %v6072
      %v6074 = vmul.f32 %v6069, %v6073
      %vm6075 = vweird.f32 %v6068
      %vm6076 = vweird.f32 %v6069
      %vm6077 = vmor %vm6075, %vm6076
      %v6078 = vsel %vm6077, %v6069, %v6074
      %v6079 = vmul.f32 %v6060, %v6078
      %v6080 = vmul.f32 %v6061, %v6078
      %v6081 = vmul.f32 %v6062, %v6078
      %v6082 = vmul.f32 %v6063, %v6078
      %v6083 = vmul.f32 %v6064, %v6078
      %v6084 = vmul.f32 %v6065, %v6078
      %v6085 = vmul.f32 %v6066, %v6078
      %v6086 = vmul.f32 %v6067, %v6078
      %v6087 = vmul.f32 %v6079, 0.5
      %v6088 = vmul.f32 %v6080, 0.5
      %v6089 = vmul.f32 %v6081, 0.5
      %v6090 = vmul.f32 %v6082, 0.5
      %v6091 = vmul.f32 %v6083, 0.5
      %v6092 = vmul.f32 %v6084, 0.5
      %v6093 = vmul.f32 %v6085, 0.5
      %v6094 = vmul.f32 %v6086, 0.5
      %v6095 = vmul.f32 %v6079, 0.044715
      %v6096 = vmul.f32 %v6080, 0.044715
      %v6097 = vmul.f32 %v6081, 0.044715
      %v6098 = vmul.f32 %v6082, 0.044715
      %v6099 = vmul.f32 %v6083, 0.044715
      %v6100 = vmul.f32 %v6084, 0.044715
      %v6101 = vmul.f32 %v6085, 0.044715
      %v6102 = vmul.f32 %v6086, 0.044715
      %v6103 = vmul.f32 %v6095, %v6079
      %v6104 = vmul.f32 %v6096, %v6080
      %v6105 = vmul.f32 %v6097, %v6081
      %v6106 = vmul.f32 %v6098, %v6082
      %v6107 = vmul.f32 %v6099, %v6083
      %v6108 = vmul.f32 %v6100, %v6084
      %v6109 = vmul.f32 %v6101, %v6085
      %v6110 = vmul.f32 %v6102, %v6086
      %v6111 = vmul.f32 %v6103, %v6079
      %v6112 = vmul.f32 %v6104, %v6080
      %v6113 = vmul.f32 %v6105, %v6081
      %v6114 = vmul.f32 %v6106, %v6082
      %v6115 = vmul.f32 %v6107, %v6083
      %v6116 = vmul.f32 %v6108, %v6084
      %v6117 = vmul.f32 %v6109, %v6085
      %v6118 = vmul.f32 %v6110, %v6086
      %v6119 = vadd.f32 %v6079, %v6111
      %v6120 = vadd.f32 %v6080, %v6112
      %v6121 = vadd.f32 %v6081, %v6113
      %v6122 = vadd.f32 %v6082, %v6114
      %v6123 = vadd.f32 %v6083, %v6115
      %v6124 = vadd.f32 %v6084, %v6116
      %v6125 = vadd.f32 %v6085, %v6117
      %v6126 = vadd.f32 %v6086, %v6118
      %v6127 = vmul.f32 %v6119, 0.7978846
      %v6128 = vmul.f32 %v6120, 0.7978846
      %v6129 = vmul.f32 %v6121, 0.7978846
      %v6130 = vmul.f32 %v6122, 0.7978846
      %v6131 = vmul.f32 %v6123, 0.7978846
      %v6132 = vmul.f32 %v6124, 0.7978846
      %v6133 = vmul.f32 %v6125, 0.7978846
      %v6134 = vmul.f32 %v6126, 0.7978846
      %v6135 = vtanh.pop %v6127
      %v6136 = vtanh.pop %v6128
      %v6137 = vtanh.pop %v6129
      %v6138 = vtanh.pop %v6130
      %v6139 = vtanh.pop %v6131
      %v6140 = vtanh.pop %v6132
      %v6141 = vtanh.pop %v6133
      %v6142 = vtanh.pop %v6134
      %v6143 = vadd.f32 %v6135, 1.0
      %v6144 = vadd.f32 %v6136, 1.0
      %v6145 = vadd.f32 %v6137, 1.0
      %v6146 = vadd.f32 %v6138, 1.0
      %v6147 = vadd.f32 %v6139, 1.0
      %v6148 = vadd.f32 %v6140, 1.0
      %v6149 = vadd.f32 %v6141, 1.0
      %v6150 = vadd.f32 %v6142, 1.0
      %v6151 = vmul.f32 %v6087, %v6143
      %v6152 = vmul.f32 %v6088, %v6144
      %v6153 = vmul.f32 %v6089, %v6145
      %v6154 = vmul.f32 %v6090, %v6146
      %v6155 = vmul.f32 %v6091, %v6147
      %v6156 = vmul.f32 %v6092, %v6148
      %v6157 = vmul.f32 %v6093, %v6149
      %v6158 = vmul.f32 %v6094, %v6150
      %v6160 = vperm.slane %v761, 0
      %v6163 = vsel %vm3197, %v6151, 0
      %v6166 = vsel %vm3197, %v6152, 0
      %v6169 = vsel %vm3197, %v6153, 0
      %v6172 = vsel %vm3197, %v6154, 0
      %v6175 = vsel %vm3197, %v6155, 0
      %v6178 = vsel %vm3197, %v6156, 0
      %v6181 = vsel %vm3197, %v6157, 0
      %v6184 = vsel %vm3197, %v6158, 0
      %6186 = vmatpush.msra.mxu0 0.0
      %6187 = vmatpush.msra.mxu0 0.0
      %6188 = vmatpush.msra.mxu0 0.0
      %6189 = vmatpush.msra.mxu0 0.0
      %6190 = vmatpush.msra.mxu0 0.0
      %6191 = vmatpush.msra.mxu0 0.0
      %6192 = vmatpush.msra.mxu0 0.0
      %6193 = vmatpush.msra.mxu0 0.0
      %6194 = vmatpush.msra.mxu0 0.0
      %6195 = vmatpush.msra.mxu0 0.0
      %6196 = vmatpush.msra.mxu0 0.0
      %6197 = vmatpush.msra.mxu0 0.0
      %6198 = vmatpush.msra.mxu0 0.0
      %6199 = vmatpush.msra.mxu0 0.0
      %6200 = vmatpush.msra.mxu0 %v760
      %6201 = vmatpush.msra.mxu0 %v759
      %6202 = vmatmul.f32.gmra.mxu0 %v6163
      %v6203 = vpop.f32.mrf.mxu0
      %v6204 = vadd.f32 %v6160, %v6203
      %6205 = vmatmul.f32.gmra.mxu0 %v6166
      %v6206 = vpop.f32.mrf.mxu0
      %v6207 = vadd.f32 %v6160, %v6206
      %6208 = vmatmul.f32.gmra.mxu0 %v6169
      %v6209 = vpop.f32.mrf.mxu0
      %v6210 = vadd.f32 %v6160, %v6209
      %6211 = vmatmul.f32.gmra.mxu0 %v6172
      %v6212 = vpop.f32.mrf.mxu0
      %v6213 = vadd.f32 %v6160, %v6212
      %6214 = vmatmul.f32.gmra.mxu0 %v6175
      %v6215 = vpop.f32.mrf.mxu0
      %v6216 = vadd.f32 %v6160, %v6215
      %6217 = vmatmul.f32.gmra.mxu0 %v6178
      %v6218 = vpop.f32.mrf.mxu0
      %v6219 = vadd.f32 %v6160, %v6218
      %6220 = vmatmul.f32.gmra.mxu0 %v6181
      %v6221 = vpop.f32.mrf.mxu0
      %v6222 = vadd.f32 %v6160, %v6221
      %6223 = vmatmul.f32.gmra.mxu0 %v6184
      %v6224 = vpop.f32.mrf.mxu0
      %v6225 = vadd.f32 %v6160, %v6224
      %6226 = vdwg.mxu0
      %v6227 = vsel %vm781, %v6204, 0.0
      %v6228 = vsel %vm781, %v6207, 0.0
      %v6229 = vadd.f32 %v6227, %v6228
      %v6230 = vsel %vm781, %v6210, 0.0
      %v6231 = vadd.f32 %v6229, %v6230
      %v6232 = vsel %vm781, %v6213, 0.0
      %v6233 = vadd.f32 %v6231, %v6232
      %v6234 = vsel %vm781, %v6216, 0.0
      %v6235 = vadd.f32 %v6233, %v6234
      %v6236 = vsel %vm781, %v6219, 0.0
      %v6237 = vadd.f32 %v6235, %v6236
      %v6238 = vsel %vm781, %v6222, 0.0
      %v6239 = vadd.f32 %v6237, %v6238
      %v6240 = vsel %vm781, %v6225, 0.0
      %v6241 = vadd.f32 %v6239, %v6240
      %v6242 = vrot.slane %v6241, 4
      %v6243 = vadd.f32 %v6241, %v6242
      %v6244 = vrot.slane %v6243, 2
      %v6245 = vadd.f32 %v6243, %v6244
      %v6246 = vrot.slane %v6245, 1
      %v6247 = vadd.f32 %v6245, %v6246
      %v6248 = vmul.f32 %v6247, %v878
      %v6249 = vmul.f32 %v6204, %v6204
      %v6250 = vmul.f32 %v6207, %v6207
      %v6251 = vmul.f32 %v6210, %v6210
      %v6252 = vmul.f32 %v6213, %v6213
      %v6253 = vmul.f32 %v6216, %v6216
      %v6254 = vmul.f32 %v6219, %v6219
      %v6255 = vmul.f32 %v6222, %v6222
      %v6256 = vmul.f32 %v6225, %v6225
      %v6257 = vsel %vm781, %v6249, 0.0
      %v6258 = vsel %vm781, %v6250, 0.0
      %v6259 = vadd.f32 %v6257, %v6258
      %v6260 = vsel %vm781, %v6251, 0.0
      %v6261 = vadd.f32 %v6259, %v6260
      %v6262 = vsel %vm781, %v6252, 0.0
      %v6263 = vadd.f32 %v6261, %v6262
      %v6264 = vsel %vm781, %v6253, 0.0
      %v6265 = vadd.f32 %v6263, %v6264
      %v6266 = vsel %vm781, %v6254, 0.0
      %v6267 = vadd.f32 %v6265, %v6266
      %v6268 = vsel %vm781, %v6255, 0.0
      %v6269 = vadd.f32 %v6267, %v6268
      %v6270 = vsel %vm781, %v6256, 0.0
      %v6271 = vadd.f32 %v6269, %v6270
      %v6272 = vrot.slane %v6271, 4
      %v6273 = vadd.f32 %v6271, %v6272
      %v6274 = vrot.slane %v6273, 2
      %v6275 = vadd.f32 %v6273, %v6274
      %v6276 = vrot.slane %v6275, 1
      %v6277 = vadd.f32 %v6275, %v6276
      %v6278 = vmul.f32 %v6277, %v878
      %v6279 = vmul.f32 %v6248, %v6248
      %v6280 = vsub.f32 %v6278, %v6279
      %v6281 = vmax.f32 %v6280, 0.0
      %v6282 = vsub.f32 %v6204, %v6248
      %v6283 = vsub.f32 %v6207, %v6248
      %v6284 = vsub.f32 %v6210, %v6248
      %v6285 = vsub.f32 %v6213, %v6248
      %v6286 = vsub.f32 %v6216, %v6248
      %v6287 = vsub.f32 %v6219, %v6248
      %v6288 = vsub.f32 %v6222, %v6248
      %v6289 = vsub.f32 %v6225, %v6248
      %v6290 = vadd.f32 %v6281, 1e-05
      %v6291 = vrsqrt.pop %v6290
      %v6292 = vmul.f32 %v6291, %v6290
      %v6293 = vmul.f32 %v6292, %v6291
      %v6294 = vmul.f32 0.5, %v6293
      %v6295 = vsub.f32 1.5, %v6294
      %v6296 = vmul.f32 %v6291, %v6295
      %vm6297 = vweird.f32 %v6290
      %vm6298 = vweird.f32 %v6291
      %vm6299 = vmor %vm6297, %vm6298
      %v6300 = vsel %vm6299, %v6291, %v6296
      %v6301 = vmul.f32 %v6282, %v6300
      %v6302 = vmul.f32 %v6283, %v6300
      %v6303 = vmul.f32 %v6284, %v6300
      %v6304 = vmul.f32 %v6285, %v6300
      %v6305 = vmul.f32 %v6286, %v6300
      %v6306 = vmul.f32 %v6287, %v6300
      %v6307 = vmul.f32 %v6288, %v6300
      %v6308 = vmul.f32 %v6289, %v6300
      %v6309 = vadd.f32 %v6301, %v5926
      %v6310 = vadd.f32 %v6302, %v5927
      %v6311 = vadd.f32 %v6303, %v5928
      %v6312 = vadd.f32 %v6304, %v5929
      %v6313 = vadd.f32 %v6305, %v5930
      %v6314 = vadd.f32 %v6306, %v5931
      %v6315 = vadd.f32 %v6307, %v5932
      %v6316 = vadd.f32 %v6308, %v5933
      %v6317 = vsel %vm781, %v6309, 0.0
      %v6318 = vsel %vm781, %v6310, 0.0
      %v6319 = vadd.f32 %v6317, %v6318
      %v6320 = vsel %vm781, %v6311, 0.0
      %v6321 = vadd.f32 %v6319, %v6320
      %v6322 = vsel %vm781, %v6312, 0.0
      %v6323 = vadd.f32 %v6321, %v6322
      %v6324 = vsel %vm781, %v6313, 0.0
      %v6325 = vadd.f32 %v6323, %v6324
      %v6326 = vsel %vm781, %v6314, 0.0
      %v6327 = vadd.f32 %v6325, %v6326
      %v6328 = vsel %vm781, %v6315, 0.0
      %v6329 = vadd.f32 %v6327, %v6328
      %v6330 = vsel %vm781, %v6316, 0.0
      %v6331 = vadd.f32 %v6329, %v6330
      %v6332 = vrot.slane %v6331, 4
      %v6333 = vadd.f32 %v6331, %v6332
      %v6334 = vrot.slane %v6333, 2
      %v6335 = vadd.f32 %v6333, %v6334
      %v6336 = vrot.slane %v6335, 1
      %v6337 = vadd.f32 %v6335, %v6336
      %v6338 = vmul.f32 %v6337, %v878
      %v6339 = vmul.f32 %v6309, %v6309
      %v6340 = vmul.f32 %v6310, %v6310
      %v6341 = vmul.f32 %v6311, %v6311
      %v6342 = vmul.f32 %v6312, %v6312
      %v6343 = vmul.f32 %v6313, %v6313
      %v6344 = vmul.f32 %v6314, %v6314
      %v6345 = vmul.f32 %v6315, %v6315
      %v6346 = vmul.f32 %v6316, %v6316
      %v6347 = vsel %vm781, %v6339, 0.0
      %v6348 = vsel %vm781, %v6340, 0.0
      %v6349 = vadd.f32 %v6347, %v6348
      %v6350 = vsel %vm781, %v6341, 0.0
      %v6351 = vadd.f32 %v6349, %v6350
      %v6352 = vsel %vm781, %v6342, 0.0
      %v6353 = vadd.f32 %v6351, %v6352
      %v6354 = vsel %vm781, %v6343, 0.0
      %v6355 = vadd.f32 %v6353, %v6354
      %v6356 = vsel %vm781, %v6344, 0.0
      %v6357 = vadd.f32 %v6355, %v6356
      %v6358 = vsel %vm781, %v6345, 0.0
      %v6359 = vadd.f32 %v6357, %v6358
      %v6360 = vsel %vm781, %v6346, 0.0
      %v6361 = vadd.f32 %v6359, %v6360
      %v6362 = vrot.slane %v6361, 4
      %v6363 = vadd.f32 %v6361, %v6362
      %v6364 = vrot.slane %v6363, 2
      %v6365 = vadd.f32 %v6363, %v6364
      %v6366 = vrot.slane %v6365, 1
      %v6367 = vadd.f32 %v6365, %v6366
      %v6368 = vmul.f32 %v6367, %v878
      %v6369 = vmul.f32 %v6338, %v6338
      %v6370 = vsub.f32 %v6368, %v6369
      %v6371 = vmax.f32 %v6370, 0.0
      %v6372 = vsub.f32 %v6309, %v6338
      %v6373 = vsub.f32 %v6310, %v6338
      %v6374 = vsub.f32 %v6311, %v6338
      %v6375 = vsub.f32 %v6312, %v6338
      %v6376 = vsub.f32 %v6313, %v6338
      %v6377 = vsub.f32 %v6314, %v6338
      %v6378 = vsub.f32 %v6315, %v6338
      %v6379 = vsub.f32 %v6316, %v6338
      %v6380 = vadd.f32 %v6371, 1e-05
      %v6381 = vrsqrt.pop %v6380
      %v6382 = vmul.f32 %v6381, %v6380
      %v6383 = vmul.f32 %v6382, %v6381
      %v6384 = vmul.f32 0.5, %v6383
      %v6385 = vsub.f32 1.5, %v6384
      %v6386 = vmul.f32 %v6381, %v6385
      %vm6387 = vweird.f32 %v6380
      %vm6388 = vweird.f32 %v6381
      %vm6389 = vmor %vm6387, %vm6388
      %v6390 = vsel %vm6389, %v6381, %v6386
      %v6391 = vmul.f32 %v6372, %v6390
      %v6392 = vmul.f32 %v6373, %v6390
      %v6393 = vmul.f32 %v6374, %v6390
      %v6394 = vmul.f32 %v6375, %v6390
      %v6395 = vmul.f32 %v6376, %v6390
      %v6396 = vmul.f32 %v6377, %v6390
      %v6397 = vmul.f32 %v6378, %v6390
      %v6398 = vmul.f32 %v6379, %v6390
      %v6399 = vadd.f32 %v6391, %v762
      %v6400 = vadd.f32 %v6392, %v763
      %v6401 = vadd.f32 %v6393, %v764
      %v6402 = vadd.f32 %v6394, %v765
      %v6403 = vadd.f32 %v6395, %v766
      %v6404 = vadd.f32 %v6396, %v767
      %v6405 = vadd.f32 %v6397, %v768
      %v6406 = vadd.f32 %v6398, %v769
      %6407 = vst.msk [vmem:[%s737] sm:$0xff] %vm781, %v6399
      %6408 = vst.msk [vmem:[%s737 + $0x8] sm:$0xff] %vm781, %v6400
      %6409 = vst.msk [vmem:[%s737 + $0x10] sm:$0xff] %vm781, %v6401
      %6410 = vst.msk [vmem:[%s737 + $0x18] sm:$0xff] %vm781, %v6402
      %6411 = vst.msk [vmem:[%s737 + $0x20] sm:$0xff] %vm781, %v6403
      %6412 = vst.msk [vmem:[%s737 + $0x28] sm:$0xff] %vm781, %v6404
      %6413 = vst.msk [vmem:[%s737 + $0x30] sm:$0xff] %vm781, %v6405
      %6414 = vst.msk [vmem:[%s737 + $0x38] sm:$0xff] %vm781, %v6406
      %p6415 = scmp.lt.s32.totalorder %s35, 1
      %s6416 = scalar_select %p6415, %s35, 1
      %s6417 = smul.addr %s6416, 8
      %s6418 = smul.addr %s6417, 8
      %s6419 = scalar_lea.vmem %s24, %s6418
      // Predicated region
      $region117: #{vig_block_forward.1} parent=115 // pred_check
        %p6420 = pneg %p562
      $region118: #{vig_block_forward.1} parent=115 // pred_check_branch
        %6422 = sbr.rel (%p6420) target = $region120
      $region119: #{vig_block_forward.1} parent=115 // pred_region
        _
      $region120: #{vig_block_forward.1} parent=115 // pred_fallthru
        _
    $region116: #{vig_block_forward.1} parent=5 // pred_fallthru
      _
    %p6423 = scmp.le.s32.totalorder 2, %s30
    // Predicated region
    $region121: #{vig_block_forward.1} parent=5 // pred_check
      %p6424 = pneg %p6423
    $region122: #{vig_block_forward.1} parent=5 // pred_check_branch
      %6426 = sbr.rel (%p6424) target = $region124
    $region123: #{vig_block_forward.1} parent=5 // pred_region
      %s6427 = ssub.s32 %s30, 2
      // Predicated region
      $region125: #{vig_block_forward.1} parent=123 // pred_check
        %p6428 = pneg %p568
      $region126: #{vig_block_forward.1} parent=123 // pred_check_branch
        %6430 = sbr.rel (%p6428) target = $region128
      $region127: #{vig_block_forward.1} parent=123 // pred_region
        %p6431 = scmp.lt.s32.totalorder %s36, 1
        %s6432 = scalar_select %p6431, %s36, 1
        %s6433 = smul.addr %s6432, 8
        %s6434 = smul.addr %s6433, 8
        %s6435 = scalar_lea.vmem %s24, %s6434
      $region128: #{vig_block_forward.1} parent=123 // pred_fallthru
        _
    $region124: #{vig_block_forward.1} parent=5 // pred_fallthru
      _
  $region6: #{vig_block_forward.1} parent=0 // loop_footer
    %s34 = sadd.s32 1, %s30
  $region7: #{vig_block_forward.1} parent=0 // loop_footer_branch
    %29 = sbr.rel target = $region3
  $region8: #{vig_block_forward.1} parent=0 // loop_exit
    _

</llo_original>
